<compile_context>
chip_gen: v6e
topology: v6e:2x2x1
jax: 0.10.0
libtpu: 0.0.40
codegen_flags: <defaults>
</compile_context>

<pallas_src>
import functools

import jax
import jax.numpy as jnp
from jax import lax
from jax.experimental import pallas as pl
from jax.experimental.pallas import tpu as pltpu


# ----------------------------------------------------------------------------- #
# Kernel 1: conv1 + bn1 + relu + conv2 + bn2 + relu + adaptive avg-pool (4,4)
# ----------------------------------------------------------------------------- #
def _conv_stack_kernel(x_ref, w1_ref, t1_ref, w2_ref, t2_ref,
                       mask_ref, pool_ref, out_ref, y1buf,
                       *, np_rows, wp, padr):
    """Per-image conv stack.

    x_ref:   (padr + np_rows + padr, Cin)   zero-padded image, flattened (hp,wp)
    w1_ref:  (9, Cin, 32)    conv1 taps, k = kh*3 + kw (BN1 scale pre-folded)
    w2_ref:  (9, 32, Cout)   conv2 taps (BN2 scale pre-folded)
    t*_ref:  (1, C)          folded BatchNorm shift (scale already in weights)
    mask_ref:(np_rows, 1)    1.0 on interior rows, 0.0 on halo
    pool_ref:(16, np_rows)   4x4 adaptive-avg-pool matrix
    out_ref: (16, Cout)      pooled NHWC features for this image
    y1buf:   VMEM scratch (padr + np_rows + padr, 32)
    """
    c_mid = w1_ref.shape[-1]
    c_out = w2_ref.shape[-1]

    # ---- conv1: fused im2col -> 9 shifted-slice MXU matmuls ----
    acc1 = jnp.zeros((np_rows, c_mid), jnp.float32)
    for k in range(9):
        kh, kw = divmod(k, 3)
        delta = (kh - 1) * wp + (kw - 1)
        src = x_ref[pl.ds(padr + delta, np_rows), :]
        acc1 = acc1 + jnp.dot(src, w1_ref[k], preferred_element_type=jnp.float32)
    # folded BN shift + ReLU; zero the halo rows so they act as conv2's zero
    # padding (relu(bn(garbage)) must not leak into conv2).
    y1 = jnp.maximum(acc1 + t1_ref[...], 0.0) * mask_ref[...]

    zeros_pad = jnp.zeros((padr, c_mid), jnp.float32)
    y1buf[pl.ds(0, padr), :] = zeros_pad
    y1buf[pl.ds(padr + np_rows, padr), :] = zeros_pad
    y1buf[pl.ds(padr, np_rows), :] = y1

    # ---- conv2: same trick, reading the VMEM-resident y1 ----
    acc2 = jnp.zeros((np_rows, c_out), jnp.float32)
    for k in range(9):
        kh, kw = divmod(k, 3)
        delta = (kh - 1) * wp + (kw - 1)
        src = y1buf[pl.ds(padr + delta, np_rows), :]
        acc2 = acc2 + jnp.dot(src, w2_ref[k], preferred_element_type=jnp.float32)
    y2 = jnp.maximum(acc2 + t2_ref[...], 0.0)

    # ---- fused adaptive-avg-pool(4,4): one (16, HW) @ (HW, Cout) matmul ----
    # (pool matrix has zero weight on halo rows, so their garbage never escapes)
    out_ref[...] = jnp.dot(pool_ref[...], y2, preferred_element_type=jnp.float32)


def conv_stack_call(x_prep, pp, mask, poolm, H, W):
    B, nbuf, c_in = x_prep.shape
    c_mid = pp["w1"].shape[-1]
    c_out = pp["w2"].shape[-1]
    HP, WP = H + 2, W + 2
    np_rows = HP * WP
    padr = (nbuf - np_rows) // 2

    kernel = functools.partial(_conv_stack_kernel, np_rows=np_rows, wp=WP, padr=padr)
    return pl.pallas_call(
        kernel,
        out_shape=jax.ShapeDtypeStruct((B, 16, c_out), jnp.float32),
        grid_spec=pltpu.PrefetchScalarGridSpec(
            num_scalar_prefetch=0,
            grid=(B,),
            in_specs=[
                pl.BlockSpec((None, nbuf, c_in), lambda b: (b, 0, 0)),   # x
                pl.BlockSpec((9, c_in, c_mid), lambda b: (0, 0, 0)),     # w1 (scale-folded)
                pl.BlockSpec((1, c_mid), lambda b: (0, 0)),              # t1
                pl.BlockSpec((9, c_mid, c_out), lambda b: (0, 0, 0)),    # w2 (scale-folded)
                pl.BlockSpec((1, c_out), lambda b: (0, 0)),              # t2
                pl.BlockSpec((np_rows, 1), lambda b: (0, 0)),            # mask
                pl.BlockSpec((16, np_rows), lambda b: (0, 0)),           # pool
            ],
            out_specs=pl.BlockSpec((None, 16, c_out), lambda b: (b, 0, 0)),
            scratch_shapes=[pltpu.VMEM((nbuf, c_mid), jnp.float32)],
        ),
        compiler_params=pltpu.CompilerParams(dimension_semantics=("parallel",)),
    )(x_prep, pp["w1"], pp["t1"], pp["w2"], pp["t2"], mask, poolm)


# ----------------------------------------------------------------------------- #
# Kernel 2: cnn_fc + vector_fc1 + (concat-free, gate-fused) GRUCell + fc_q
# ----------------------------------------------------------------------------- #
def _head_kernel(pooled_ref, vec_ref, h_ref,
                 wc_ref, bc_ref, wv_ref, bv_ref,
                 wis_ref, wiv_ref, bi_ref, wh_ref, bh_ref,
                 wq_ref, bq_ref,
                 q_ref, h_out_ref):
    hdim = h_ref.shape[-1]

    # cnn_fc (Wc rows pre-permuted to consume NHWC-flat pooled features) + ReLU
    xs = jnp.maximum(
        jnp.dot(pooled_ref[...], wc_ref[...], preferred_element_type=jnp.float32)
        + bc_ref[...], 0.0)
    # vector_fc1 + ReLU
    xv = jnp.maximum(
        jnp.dot(vec_ref[...], wv_ref[...], preferred_element_type=jnp.float32)
        + bv_ref[...], 0.0)

    # concat([xs, xv]) @ Wi  ==  xs @ Wi_top + xv @ Wi_bottom  (no VMEM concat).
    # Gates r|z|n are fused into single (*, 3*hdim) weights.
    gi = (jnp.dot(xs, wis_ref[...], preferred_element_type=jnp.float32)
          + jnp.dot(xv, wiv_ref[...], preferred_element_type=jnp.float32)
          + bi_ref[...])
    h = h_ref[...]
    gh = jnp.dot(h, wh_ref[...], preferred_element_type=jnp.float32) + bh_ref[...]

    r = jax.nn.sigmoid(gi[:, 0:hdim] + gh[:, 0:hdim])
    z = jax.nn.sigmoid(gi[:, hdim:2 * hdim] + gh[:, hdim:2 * hdim])
    n = jnp.tanh(gi[:, 2 * hdim:3 * hdim] + r * gh[:, 2 * hdim:3 * hdim])
    h_new = (1.0 - z) * n + z * h

    h_out_ref[...] = h_new
    q_ref[...] = jnp.dot(h_new, wq_ref[...],
                         preferred_element_type=jnp.float32) + bq_ref[...]


def head_call(pooled_flat, vec, h, pp, n_actions, hdim):
    B = pooled_flat.shape[0]
    args = (pooled_flat, vec, h,
            pp["Wc_perm"], pp["bc"], pp["Wv"], pp["bv"],
            pp["Wi_s"], pp["Wi_v"], pp["bi"], pp["Wh"], pp["bh"],
            pp["Wq"], pp["bq"])
    vmem = pl.BlockSpec(memory_space=pltpu.MemorySpace.VMEM)
    return pl.pallas_call(
        _head_kernel,
        out_shape=(jax.ShapeDtypeStruct((B, n_actions), jnp.float32),
                   jax.ShapeDtypeStruct((B, hdim), jnp.float32)),
        in_specs=[vmem] * len(args),
        out_specs=(vmem, vmem),
        input_output_aliases={2: 1},   # alias h_in -> h_out (no extra state copy)
    )(*args)


# ----------------------------------------------------------------------------- #
# Parameter prep (one-time): BN folding (scale -> weights, shift -> bias),
# GRU gate fusion, cnn_fc row permutation.
# ----------------------------------------------------------------------------- #
def prepare_params(p, eps=1e-5):
    def fold(gamma, beta, rmean, rvar, bias):
        scale = gamma / jnp.sqrt(rvar + eps)            # (C,)
        shift = scale * (bias - rmean) + beta           # (C,)
        return scale, shift

    s1, t1 = fold(p["bn1_gamma"], p["bn1_beta"], p["bn1_rmean"], p["bn1_rvar"], p["b1"])
    s2, t2 = fold(p["bn2_gamma"], p["bn2_beta"], p["bn2_rmean"], p["bn2_rvar"], p["b2"])

    c_in = p["W1"].shape[2]
    c_mid = p["W1"].shape[3]
    c_out = p["W2"].shape[3]
    # Fold BN scale into the conv weights (exact: scale is per output channel).
    w1 = (p["W1"] * s1[None, None, None, :]).reshape(9, c_in, c_mid)   # k = kh*3+kw
    w2 = (p["W2"] * s2[None, None, None, :]).reshape(9, c_mid, c_out)

    cnn_mlp = p["Wc"].shape[1]
    # fold PyTorch's channel-major flatten (c*16 + ph*4 + pw) into Wc so the
    # kernel can consume the NHWC-flat pooled features ((ph*4+pw)*Cout + c).
    Wc_perm = (p["Wc"].reshape(c_out, 16, cnn_mlp)
               .transpose(1, 0, 2).reshape(16 * c_out, cnn_mlp))

    # GRU: fuse gates r|z|n column-wise, split rows by [xs | xv].
    cm = cnn_mlp
    Wi_s = jnp.concatenate([p["Wir"][:cm], p["Wiz"][:cm], p["Win"][:cm]], axis=1)
    Wi_v = jnp.concatenate([p["Wir"][cm:], p["Wiz"][cm:], p["Win"][cm:]], axis=1)
    bi = jnp.concatenate([p["bir"], p["biz"], p["bin"]], axis=1)
    Wh = jnp.concatenate([p["Whr"], p["Whz"], p["Whn"]], axis=1)
    bh = jnp.concatenate([p["bhr"], p["bhz"], p["bhn"]], axis=1)

    return dict(w1=w1, t1=t1.reshape(1, -1), w2=w2, t2=t2.reshape(1, -1),
                Wc_perm=Wc_perm, bc=p["bc"], Wv=p["Wv"], bv=p["bv"],
                Wi_s=Wi_s, Wi_v=Wi_v, bi=bi, Wh=Wh, bh=bh,
                Wq=p["Wq"], bq=p["bq"])


def _pool_and_mask_constants(H, W):
    """Interior-row mask (HW, 1) and 4x4 adaptive-avg-pool matrix (16, HW) over
    the zero-padded (H+2, W+2) spatial grid."""
    HP, WP = H + 2, W + 2
    hp = jnp.arange(HP)[:, None]
    wp = jnp.arange(WP)[None, :]
    interior = (hp >= 1) & (hp <= H) & (wp >= 1) & (wp <= W)          # (HP, WP)
    mask = interior.astype(jnp.float32).reshape(HP * WP, 1)
    ph = (hp - 1) // (H // 4)
    pw = (wp - 1) // (W // 4)
    bin_idx = ph * 4 + pw                                             # (HP, WP)
    sel = (jnp.arange(16)[:, None, None] == bin_idx[None]) & interior[None]
    poolm = sel.reshape(16, HP * WP).astype(jnp.float32) / float((H // 4) * (W // 4))
    return mask, poolm


# ----------------------------------------------------------------------------- #
# Forward pass
# ----------------------------------------------------------------------------- #
def rnn_agent_forward(pp, spatial_obs_nchw, vector_obs, hidden_state,
                      n_actions=15, rnn_hidden_dim=32):
    N, C, H, W = spatial_obs_nchw.shape
    x = jnp.transpose(spatial_obs_nchw, (0, 2, 3, 1))                 # NCHW -> NHWC
    HP, WP = H + 2, W + 2

    # small zero halo (3x3 SAME padding) + extra guard rows for the shifted
    # row-slices; this replaces any im2col materialization entirely.
    padr = -(-(W + 3) // 8) * 8                                       # >= WP+1, 8-aligned
    xpad = jnp.pad(x, ((0, 0), (1, 1), (1, 1), (0, 0)))
    x_prep = jnp.pad(xpad.reshape(N, HP * WP, C), ((0, 0), (padr, padr), (0, 0)))

    mask, poolm = _pool_and_mask_constants(H, W)
    pooled = conv_stack_call(x_prep, pp, mask, poolm, H, W)           # (N, 16, Cout)
    pooled_flat = pooled.reshape(N, -1)                               # free reshape

    h_in = hidden_state.reshape(-1, rnn_hidden_dim)
    return head_call(pooled_flat, vector_obs, h_in, pp, n_actions, rnn_hidden_dim)


# ----------------------------------------------------------------------------- #
# Deterministic parameter init (PyTorch-style uniform(-1/sqrt(fan_in), ...))
# ----------------------------------------------------------------------------- #
def init_params(key, c_in=4, dv=32, hdim=32, n_actions=15,
                cnn_out=64, cnn_mlp=128, vec_mlp=128):
    ks = iter(jax.random.split(key, 40))

    def u(shape, fan_in):
        b = 1.0 / jnp.sqrt(jnp.float32(fan_in))
        return jax.random.uniform(next(ks), shape, jnp.float32, -b, b)

    p = {}
    p["W1"] = u((3, 3, c_in, 32), c_in * 9)
    p["b1"] = u((32,), c_in * 9)
    p["bn1_gamma"] = 1.0 + 0.1 * jax.random.normal(next(ks), (32,), jnp.float32)
    p["bn1_beta"] = 0.1 * jax.random.normal(next(ks), (32,), jnp.float32)
    p["bn1_rmean"] = 0.1 * jax.random.normal(next(ks), (32,), jnp.float32)
    p["bn1_rvar"] = jax.random.uniform(next(ks), (32,), jnp.float32, 0.5, 1.5)
    p["W2"] = u((3, 3, 32, cnn_out), 32 * 9)
    p["b2"] = u((cnn_out,), 32 * 9)
    p["bn2_gamma"] = 1.0 + 0.1 * jax.random.normal(next(ks), (cnn_out,), jnp.float32)
    p["bn2_beta"] = 0.1 * jax.random.normal(next(ks), (cnn_out,), jnp.float32)
    p["bn2_rmean"] = 0.1 * jax.random.normal(next(ks), (cnn_out,), jnp.float32)
    p["bn2_rvar"] = jax.random.uniform(next(ks), (cnn_out,), jnp.float32, 0.5, 1.5)
    flat = cnn_out * 4 * 4
    p["Wc"] = u((flat, cnn_mlp), flat)
    p["bc"] = u((1, cnn_mlp), flat)
    p["Wv"] = u((dv, vec_mlp), dv)
    p["bv"] = u((1, vec_mlp), dv)
    comb = cnn_mlp + vec_mlp
    for g in ("r", "z", "n"):
        p[f"Wi{g}"] = u((comb, hdim), hdim)
        p[f"bi{g}"] = u((1, hdim), hdim)
        p[f"Wh{g}"] = u((hdim, hdim), hdim)
        p[f"bh{g}"] = u((1, hdim), hdim)
    p["Wq"] = u((hdim, n_actions), hdim)
    p["bq"] = u((1, n_actions), hdim)
    return p


# ----------------------------------------------------------------------------- #
# Pure-JAX reference (lax.conv based) for verification
# ----------------------------------------------------------------------------- #
def reference_forward(p, spatial_obs_nchw, vector_obs, hidden_state,
                      n_actions=15, rnn_hidden_dim=32, eps=1e-5):
    N, C, H, W = spatial_obs_nchw.shape
    x = jnp.transpose(spatial_obs_nchw, (0, 2, 3, 1))
    dn = ("NHWC", "HWIO", "NHWC")

    def conv_bn_relu(inp, w, b, g, beta, rm, rv):
        y = lax.conv_general_dilated(inp, w, (1, 1), "SAME", dimension_numbers=dn) + b
        y = (y - rm) / jnp.sqrt(rv + eps) * g + beta
        return jnp.maximum(y, 0.0)

    y1 = conv_bn_relu(x, p["W1"], p["b1"], p["bn1_gamma"], p["bn1_beta"],
                      p["bn1_rmean"], p["bn1_rvar"])
    y2 = conv_bn_relu(y1, p["W2"], p["b2"], p["bn2_gamma"], p["bn2_beta"],
                      p["bn2_rmean"], p["bn2_rvar"])
    cnn_out = y2.shape[-1]
    pooled = y2.reshape(N, 4, H // 4, 4, W // 4, cnn_out).mean(axis=(2, 4))
    flat = jnp.transpose(pooled, (0, 3, 1, 2)).reshape(N, -1)

    xs = jnp.maximum(flat @ p["Wc"] + p["bc"], 0.0)
    xv = jnp.maximum(vector_obs @ p["Wv"] + p["bv"], 0.0)
    xc = jnp.concatenate([xs, xv], axis=1)
    h = hidden_state.reshape(-1, rnn_hidden_dim)

    r = jax.nn.sigmoid(xc @ p["Wir"] + p["bir"] + h @ p["Whr"] + p["bhr"])
    z = jax.nn.sigmoid(xc @ p["Wiz"] + p["biz"] + h @ p["Whz"] + p["bhz"])
    n = jnp.tanh(xc @ p["Win"] + p["bin"] + r * (h @ p["Whn"] + p["bhn"]))
    h_new = (1.0 - z) * n + z * h
    q = h_new @ p["Wq"] + p["bq"]
    return q, h_new


# ----------------------------------------------------------------------------- #
if __name__ == "__main__":
    B, C, H, W = 2, 4, 16, 16
    DV, HID, NACT = 32, 32, 15

    key = jax.random.PRNGKey(0)
    k_sp, k_vec, k_h = jax.random.split(key, 3)
    spatial_obs = jax.random.normal(k_sp, (B, C, H, W), jnp.float32)   # NCHW (PyTorch)
    vector_obs = jax.random.normal(k_vec, (B, DV), jnp.float32)
    hidden_state = jax.random.normal(k_h, (B, HID), jnp.float32)

    params = init_params(jax.random.PRNGKey(42), c_in=C, dv=DV, hdim=HID, n_actions=NACT)
    prepped = prepare_params(params)   # one-time BN folding / gate fusion / Wc permute

    fwd = jax.jit(functools.partial(rnn_agent_forward, n_actions=NACT, rnn_hidden_dim=HID))
    q, h = fwd(prepped, spatial_obs, vector_obs, hidden_state)
    jax.block_until_ready((q, h))

    q_ref, h_ref = reference_forward(params, spatial_obs, vector_obs, hidden_state,
                                     n_actions=NACT, rnn_hidden_dim=HID)
    assert q.shape == (B, NACT) and h.shape == (B, HID)
    assert jnp.allclose(q, q_ref, atol=1e-2, rtol=1e-2), "q mismatch vs reference"
    assert jnp.allclose(h, h_ref, atol=1e-2, rtol=1e-2), "h mismatch vs reference"

    print("KERNEL_OK")
</pallas_src>

<mosaic_0001>
module attributes {stable_mosaic.version = 11 : i64} {
  func.func @_conv_stack_kernel(%arg0: i32, %arg1: memref<1x372x4xf32, #tpu.memory_space<vmem>>, %arg2: memref<9x4x32xf32, #tpu.memory_space<vmem>>, %arg3: memref<1x32xf32, #tpu.memory_space<vmem>>, %arg4: memref<9x32x64xf32, #tpu.memory_space<vmem>>, %arg5: memref<1x64xf32, #tpu.memory_space<vmem>>, %arg6: memref<324x1xf32, #tpu.memory_space<vmem>>, %arg7: memref<16x324xf32, #tpu.memory_space<vmem>>, %arg8: memref<1x16x64xf32, #tpu.memory_space<vmem>>, %arg9: memref<372x32xf32, #tpu.memory_space<vmem>>) attributes {dimension_semantics = [#tpu.dimension_semantics<parallel>], iteration_bounds = array<i64: 2>, scalar_prefetch = 0 : i64, scratch_operands = 1 : i64, tpu.core_type = #tpu.core_type<tc>, window_params = [{transform_indices = @transform_0, window_bounds = array<i64: 1, 372, 4>}, {pipeline_mode = #tpu.pipeline_mode<synchronous>, transform_indices = @transform_1, window_bounds = array<i64: 9, 4, 32>}, {pipeline_mode = #tpu.pipeline_mode<synchronous>, transform_indices = @transform_2, window_bounds = array<i64: 1, 32>}, {pipeline_mode = #tpu.pipeline_mode<synchronous>, transform_indices = @transform_3, window_bounds = array<i64: 9, 32, 64>}, {pipeline_mode = #tpu.pipeline_mode<synchronous>, transform_indices = @transform_4, window_bounds = array<i64: 1, 64>}, {pipeline_mode = #tpu.pipeline_mode<synchronous>, transform_indices = @transform_5, window_bounds = array<i64: 324, 1>}, {pipeline_mode = #tpu.pipeline_mode<synchronous>, transform_indices = @transform_6, window_bounds = array<i64: 16, 324>}, {transform_indices = @transform_7, window_bounds = array<i64: 1, 16, 64>}]} {
    %cst = arith.constant 0.000000e+00 : f32
    %0 = vector.broadcast %cst : f32 to vector<324x32xf32>
    %c0 = arith.constant 0 : index
    %c5 = arith.constant 5 : index
    %c0_0 = arith.constant 0 : index
    %1 = vector.load %arg1[%c0, %c5, %c0_0] : memref<1x372x4xf32, #tpu.memory_space<vmem>>, vector<1x324x4xf32>
    %2 = vector.shape_cast %1 : vector<1x324x4xf32> to vector<324x4xf32>
    %c0_1 = arith.constant 0 : index
    %c0_2 = arith.constant 0 : index
    %c0_3 = arith.constant 0 : index
    %3 = vector.load %arg2[%c0_1, %c0_2, %c0_3] : memref<9x4x32xf32, #tpu.memory_space<vmem>>, vector<1x4x32xf32>
    %4 = vector.shape_cast %3 : vector<1x4x32xf32> to vector<4x32xf32>
    %cst_4 = arith.constant dense<0.000000e+00> : vector<324x32xf32>
    %5 = tpu.matmul %2, %4, %cst_4 {dimension_numbers = #tpu.dot_dimension_numbers<[1], [0], [0], [1], [0, 0, 1, 1], [], []>} : vector<324x4xf32>, vector<4x32xf32>, vector<324x32xf32> -> vector<324x32xf32>
    %6 = arith.addf %0, %5 : vector<324x32xf32>
    %c0_5 = arith.constant 0 : index
    %c6 = arith.constant 6 : index
    %c0_6 = arith.constant 0 : index
    %7 = vector.load %arg1[%c0_5, %c6, %c0_6] : memref<1x372x4xf32, #tpu.memory_space<vmem>>, vector<1x324x4xf32>
    %8 = vector.shape_cast %7 : vector<1x324x4xf32> to vector<324x4xf32>
    %c1 = arith.constant 1 : index
    %c0_7 = arith.constant 0 : index
    %c0_8 = arith.constant 0 : index
    %9 = vector.load %arg2[%c1, %c0_7, %c0_8] : memref<9x4x32xf32, #tpu.memory_space<vmem>>, vector<1x4x32xf32>
    %10 = vector.shape_cast %9 : vector<1x4x32xf32> to vector<4x32xf32>
    %cst_9 = arith.constant dense<0.000000e+00> : vector<324x32xf32>
    %11 = tpu.matmul %8, %10, %cst_9 {dimension_numbers = #tpu.dot_dimension_numbers<[1], [0], [0], [1], [0, 0, 1, 1], [], []>} : vector<324x4xf32>, vector<4x32xf32>, vector<324x32xf32> -> vector<324x32xf32>
    %12 = arith.addf %6, %11 : vector<324x32xf32>
    %c0_10 = arith.constant 0 : index
    %c7 = arith.constant 7 : index
    %c0_11 = arith.constant 0 : index
    %13 = vector.load %arg1[%c0_10, %c7, %c0_11] : memref<1x372x4xf32, #tpu.memory_space<vmem>>, vector<1x324x4xf32>
    %14 = vector.shape_cast %13 : vector<1x324x4xf32> to vector<324x4xf32>
    %c2 = arith.constant 2 : index
    %c0_12 = arith.constant 0 : index
    %c0_13 = arith.constant 0 : index
    %15 = vector.load %arg2[%c2, %c0_12, %c0_13] : memref<9x4x32xf32, #tpu.memory_space<vmem>>, vector<1x4x32xf32>
    %16 = vector.shape_cast %15 : vector<1x4x32xf32> to vector<4x32xf32>
    %cst_14 = arith.constant dense<0.000000e+00> : vector<324x32xf32>
    %17 = tpu.matmul %14, %16, %cst_14 {dimension_numbers = #tpu.dot_dimension_numbers<[1], [0], [0], [1], [0, 0, 1, 1], [], []>} : vector<324x4xf32>, vector<4x32xf32>, vector<324x32xf32> -> vector<324x32xf32>
    %18 = arith.addf %12, %17 : vector<324x32xf32>
    %c0_15 = arith.constant 0 : index
    %c23 = arith.constant 23 : index
    %c0_16 = arith.constant 0 : index
    %19 = vector.load %arg1[%c0_15, %c23, %c0_16] : memref<1x372x4xf32, #tpu.memory_space<vmem>>, vector<1x324x4xf32>
    %20 = vector.shape_cast %19 : vector<1x324x4xf32> to vector<324x4xf32>
    %c3 = arith.constant 3 : index
    %c0_17 = arith.constant 0 : index
    %c0_18 = arith.constant 0 : index
    %21 = vector.load %arg2[%c3, %c0_17, %c0_18] : memref<9x4x32xf32, #tpu.memory_space<vmem>>, vector<1x4x32xf32>
    %22 = vector.shape_cast %21 : vector<1x4x32xf32> to vector<4x32xf32>
    %cst_19 = arith.constant dense<0.000000e+00> : vector<324x32xf32>
    %23 = tpu.matmul %20, %22, %cst_19 {dimension_numbers = #tpu.dot_dimension_numbers<[1], [0], [0], [1], [0, 0, 1, 1], [], []>} : vector<324x4xf32>, vector<4x32xf32>, vector<324x32xf32> -> vector<324x32xf32>
    %24 = arith.addf %18, %23 : vector<324x32xf32>
    %c0_20 = arith.constant 0 : index
    %c24 = arith.constant 24 : index
    %c0_21 = arith.constant 0 : index
    %25 = vector.load %arg1[%c0_20, %c24, %c0_21] : memref<1x372x4xf32, #tpu.memory_space<vmem>>, vector<1x324x4xf32>
    %26 = vector.shape_cast %25 : vector<1x324x4xf32> to vector<324x4xf32>
    %c4 = arith.constant 4 : index
    %c0_22 = arith.constant 0 : index
    %c0_23 = arith.constant 0 : index
    %27 = vector.load %arg2[%c4, %c0_22, %c0_23] : memref<9x4x32xf32, #tpu.memory_space<vmem>>, vector<1x4x32xf32>
    %28 = vector.shape_cast %27 : vector<1x4x32xf32> to vector<4x32xf32>
    %cst_24 = arith.constant dense<0.000000e+00> : vector<324x32xf32>
    %29 = tpu.matmul %26, %28, %cst_24 {dimension_numbers = #tpu.dot_dimension_numbers<[1], [0], [0], [1], [0, 0, 1, 1], [], []>} : vector<324x4xf32>, vector<4x32xf32>, vector<324x32xf32> -> vector<324x32xf32>
    %30 = arith.addf %24, %29 : vector<324x32xf32>
    %c0_25 = arith.constant 0 : index
    %c25 = arith.constant 25 : index
    %c0_26 = arith.constant 0 : index
    %31 = vector.load %arg1[%c0_25, %c25, %c0_26] : memref<1x372x4xf32, #tpu.memory_space<vmem>>, vector<1x324x4xf32>
    %32 = vector.shape_cast %31 : vector<1x324x4xf32> to vector<324x4xf32>
    %c5_27 = arith.constant 5 : index
    %c0_28 = arith.constant 0 : index
    %c0_29 = arith.constant 0 : index
    %33 = vector.load %arg2[%c5_27, %c0_28, %c0_29] : memref<9x4x32xf32, #tpu.memory_space<vmem>>, vector<1x4x32xf32>
    %34 = vector.shape_cast %33 : vector<1x4x32xf32> to vector<4x32xf32>
    %cst_30 = arith.constant dense<0.000000e+00> : vector<324x32xf32>
    %35 = tpu.matmul %32, %34, %cst_30 {dimension_numbers = #tpu.dot_dimension_numbers<[1], [0], [0], [1], [0, 0, 1, 1], [], []>} : vector<324x4xf32>, vector<4x32xf32>, vector<324x32xf32> -> vector<324x32xf32>
    %36 = arith.addf %30, %35 : vector<324x32xf32>
    %c0_31 = arith.constant 0 : index
    %c41 = arith.constant 41 : index
    %c0_32 = arith.constant 0 : index
    %37 = vector.load %arg1[%c0_31, %c41, %c0_32] : memref<1x372x4xf32, #tpu.memory_space<vmem>>, vector<1x324x4xf32>
    %38 = vector.shape_cast %37 : vector<1x324x4xf32> to vector<324x4xf32>
    %c6_33 = arith.constant 6 : index
    %c0_34 = arith.constant 0 : index
    %c0_35 = arith.constant 0 : index
    %39 = vector.load %arg2[%c6_33, %c0_34, %c0_35] : memref<9x4x32xf32, #tpu.memory_space<vmem>>, vector<1x4x32xf32>
    %40 = vector.shape_cast %39 : vector<1x4x32xf32> to vector<4x32xf32>
    %cst_36 = arith.constant dense<0.000000e+00> : vector<324x32xf32>
    %41 = tpu.matmul %38, %40, %cst_36 {dimension_numbers = #tpu.dot_dimension_numbers<[1], [0], [0], [1], [0, 0, 1, 1], [], []>} : vector<324x4xf32>, vector<4x32xf32>, vector<324x32xf32> -> vector<324x32xf32>
    %42 = arith.addf %36, %41 : vector<324x32xf32>
    %c0_37 = arith.constant 0 : index
    %c42 = arith.constant 42 : index
    %c0_38 = arith.constant 0 : index
    %43 = vector.load %arg1[%c0_37, %c42, %c0_38] : memref<1x372x4xf32, #tpu.memory_space<vmem>>, vector<1x324x4xf32>
    %44 = vector.shape_cast %43 : vector<1x324x4xf32> to vector<324x4xf32>
    %c7_39 = arith.constant 7 : index
    %c0_40 = arith.constant 0 : index
    %c0_41 = arith.constant 0 : index
    %45 = vector.load %arg2[%c7_39, %c0_40, %c0_41] : memref<9x4x32xf32, #tpu.memory_space<vmem>>, vector<1x4x32xf32>
    %46 = vector.shape_cast %45 : vector<1x4x32xf32> to vector<4x32xf32>
    %cst_42 = arith.constant dense<0.000000e+00> : vector<324x32xf32>
    %47 = tpu.matmul %44, %46, %cst_42 {dimension_numbers = #tpu.dot_dimension_numbers<[1], [0], [0], [1], [0, 0, 1, 1], [], []>} : vector<324x4xf32>, vector<4x32xf32>, vector<324x32xf32> -> vector<324x32xf32>
    %48 = arith.addf %42, %47 : vector<324x32xf32>
    %c0_43 = arith.constant 0 : index
    %c43 = arith.constant 43 : index
    %c0_44 = arith.constant 0 : index
    %49 = vector.load %arg1[%c0_43, %c43, %c0_44] : memref<1x372x4xf32, #tpu.memory_space<vmem>>, vector<1x324x4xf32>
    %50 = vector.shape_cast %49 : vector<1x324x4xf32> to vector<324x4xf32>
    %c8 = arith.constant 8 : index
    %c0_45 = arith.constant 0 : index
    %c0_46 = arith.constant 0 : index
    %51 = vector.load %arg2[%c8, %c0_45, %c0_46] : memref<9x4x32xf32, #tpu.memory_space<vmem>>, vector<1x4x32xf32>
    %52 = vector.shape_cast %51 : vector<1x4x32xf32> to vector<4x32xf32>
    %cst_47 = arith.constant dense<0.000000e+00> : vector<324x32xf32>
    %53 = tpu.matmul %50, %52, %cst_47 {dimension_numbers = #tpu.dot_dimension_numbers<[1], [0], [0], [1], [0, 0, 1, 1], [], []>} : vector<324x4xf32>, vector<4x32xf32>, vector<324x32xf32> -> vector<324x32xf32>
    %54 = arith.addf %48, %53 : vector<324x32xf32>
    %c0_48 = arith.constant 0 : index
    %c0_49 = arith.constant 0 : index
    %55 = vector.load %arg3[%c0_48, %c0_49] : memref<1x32xf32, #tpu.memory_space<vmem>>, vector<1x32xf32>
    %56 = vector.broadcast %55 : vector<1x32xf32> to vector<324x32xf32>
    %57 = arith.addf %54, %56 : vector<324x32xf32>
    %cst_50 = arith.constant 0.000000e+00 : f32
    %58 = vector.broadcast %cst_50 : f32 to vector<324x32xf32>
    %59 = arith.maximumf %57, %58 : vector<324x32xf32>
    %c0_51 = arith.constant 0 : index
    %c0_52 = arith.constant 0 : index
    %60 = vector.load %arg6[%c0_51, %c0_52] : memref<324x1xf32, #tpu.memory_space<vmem>>, vector<324x1xf32>
    %61 = vector.broadcast %60 : vector<324x1xf32> to vector<324x32xf32>
    %62 = arith.mulf %59, %61 : vector<324x32xf32>
    %cst_53 = arith.constant 0.000000e+00 : f32
    %63 = vector.broadcast %cst_53 : f32 to vector<24x32xf32>
    %c0_54 = arith.constant 0 : index
    %c0_55 = arith.constant 0 : index
    %64 = vector.load %arg9[%c0_54, %c0_55] : memref<372x32xf32, #tpu.memory_space<vmem>>, vector<24x32xf32>
    tpu.vector_store %arg9[%c0_54, %c0_55], %63 {strides = array<i32>} : memref<372x32xf32, #tpu.memory_space<vmem>>, vector<24x32xf32>,
    %c348 = arith.constant 348 : index
    %c0_56 = arith.constant 0 : index
    %65 = vector.load %arg9[%c348, %c0_56] : memref<372x32xf32, #tpu.memory_space<vmem>>, vector<24x32xf32>
    tpu.vector_store %arg9[%c348, %c0_56], %63 {strides = array<i32>} : memref<372x32xf32, #tpu.memory_space<vmem>>, vector<24x32xf32>,
    %c24_57 = arith.constant 24 : index
    %c0_58 = arith.constant 0 : index
    %66 = vector.load %arg9[%c24_57, %c0_58] : memref<372x32xf32, #tpu.memory_space<vmem>>, vector<324x32xf32>
    tpu.vector_store %arg9[%c24_57, %c0_58], %62 {strides = array<i32>} : memref<372x32xf32, #tpu.memory_space<vmem>>, vector<324x32xf32>,
    %cst_59 = arith.constant 0.000000e+00 : f32
    %67 = vector.broadcast %cst_59 : f32 to vector<324x64xf32>
    %c5_60 = arith.constant 5 : index
    %c0_61 = arith.constant 0 : index
    %68 = vector.load %arg9[%c5_60, %c0_61] : memref<372x32xf32, #tpu.memory_space<vmem>>, vector<324x32xf32>
    %c0_62 = arith.constant 0 : index
    %c0_63 = arith.constant 0 : index
    %c0_64 = arith.constant 0 : index
    %69 = vector.load %arg4[%c0_62, %c0_63, %c0_64] : memref<9x32x64xf32, #tpu.memory_space<vmem>>, vector<1x32x64xf32>
    %70 = vector.shape_cast %69 : vector<1x32x64xf32> to vector<32x64xf32>
    %cst_65 = arith.constant dense<0.000000e+00> : vector<324x64xf32>
    %71 = tpu.matmul %68, %70, %cst_65 {dimension_numbers = #tpu.dot_dimension_numbers<[1], [0], [0], [1], [0, 0, 1, 1], [], []>} : vector<324x32xf32>, vector<32x64xf32>, vector<324x64xf32> -> vector<324x64xf32>
    %72 = arith.addf %67, %71 : vector<324x64xf32>
    %c6_66 = arith.constant 6 : index
    %c0_67 = arith.constant 0 : index
    %73 = vector.load %arg9[%c6_66, %c0_67] : memref<372x32xf32, #tpu.memory_space<vmem>>, vector<324x32xf32>
    %c1_68 = arith.constant 1 : index
    %c0_69 = arith.constant 0 : index
    %c0_70 = arith.constant 0 : index
    %74 = vector.load %arg4[%c1_68, %c0_69, %c0_70] : memref<9x32x64xf32, #tpu.memory_space<vmem>>, vector<1x32x64xf32>
    %75 = vector.shape_cast %74 : vector<1x32x64xf32> to vector<32x64xf32>
    %cst_71 = arith.constant dense<0.000000e+00> : vector<324x64xf32>
    %76 = tpu.matmul %73, %75, %cst_71 {dimension_numbers = #tpu.dot_dimension_numbers<[1], [0], [0], [1], [0, 0, 1, 1], [], []>} : vector<324x32xf32>, vector<32x64xf32>, vector<324x64xf32> -> vector<324x64xf32>
    %77 = arith.addf %72, %76 : vector<324x64xf32>
    %c7_72 = arith.constant 7 : index
    %c0_73 = arith.constant 0 : index
    %78 = vector.load %arg9[%c7_72, %c0_73] : memref<372x32xf32, #tpu.memory_space<vmem>>, vector<324x32xf32>
    %c2_74 = arith.constant 2 : index
    %c0_75 = arith.constant 0 : index
    %c0_76 = arith.constant 0 : index
    %79 = vector.load %arg4[%c2_74, %c0_75, %c0_76] : memref<9x32x64xf32, #tpu.memory_space<vmem>>, vector<1x32x64xf32>
    %80 = vector.shape_cast %79 : vector<1x32x64xf32> to vector<32x64xf32>
    %cst_77 = arith.constant dense<0.000000e+00> : vector<324x64xf32>
    %81 = tpu.matmul %78, %80, %cst_77 {dimension_numbers = #tpu.dot_dimension_numbers<[1], [0], [0], [1], [0, 0, 1, 1], [], []>} : vector<324x32xf32>, vector<32x64xf32>, vector<324x64xf32> -> vector<324x64xf32>
    %82 = arith.addf %77, %81 : vector<324x64xf32>
    %c23_78 = arith.constant 23 : index
    %c0_79 = arith.constant 0 : index
    %83 = vector.load %arg9[%c23_78, %c0_79] : memref<372x32xf32, #tpu.memory_space<vmem>>, vector<324x32xf32>
    %c3_80 = arith.constant 3 : index
    %c0_81 = arith.constant 0 : index
    %c0_82 = arith.constant 0 : index
    %84 = vector.load %arg4[%c3_80, %c0_81, %c0_82] : memref<9x32x64xf32, #tpu.memory_space<vmem>>, vector<1x32x64xf32>
    %85 = vector.shape_cast %84 : vector<1x32x64xf32> to vector<32x64xf32>
    %cst_83 = arith.constant dense<0.000000e+00> : vector<324x64xf32>
    %86 = tpu.matmul %83, %85, %cst_83 {dimension_numbers = #tpu.dot_dimension_numbers<[1], [0], [0], [1], [0, 0, 1, 1], [], []>} : vector<324x32xf32>, vector<32x64xf32>, vector<324x64xf32> -> vector<324x64xf32>
    %87 = arith.addf %82, %86 : vector<324x64xf32>
    %c24_84 = arith.constant 24 : index
    %c0_85 = arith.constant 0 : index
    %88 = vector.load %arg9[%c24_84, %c0_85] : memref<372x32xf32, #tpu.memory_space<vmem>>, vector<324x32xf32>
    %c4_86 = arith.constant 4 : index
    %c0_87 = arith.constant 0 : index
    %c0_88 = arith.constant 0 : index
    %89 = vector.load %arg4[%c4_86, %c0_87, %c0_88] : memref<9x32x64xf32, #tpu.memory_space<vmem>>, vector<1x32x64xf32>
    %90 = vector.shape_cast %89 : vector<1x32x64xf32> to vector<32x64xf32>
    %cst_89 = arith.constant dense<0.000000e+00> : vector<324x64xf32>
    %91 = tpu.matmul %88, %90, %cst_89 {dimension_numbers = #tpu.dot_dimension_numbers<[1], [0], [0], [1], [0, 0, 1, 1], [], []>} : vector<324x32xf32>, vector<32x64xf32>, vector<324x64xf32> -> vector<324x64xf32>
    %92 = arith.addf %87, %91 : vector<324x64xf32>
    %c25_90 = arith.constant 25 : index
    %c0_91 = arith.constant 0 : index
    %93 = vector.load %arg9[%c25_90, %c0_91] : memref<372x32xf32, #tpu.memory_space<vmem>>, vector<324x32xf32>
    %c5_92 = arith.constant 5 : index
    %c0_93 = arith.constant 0 : index
    %c0_94 = arith.constant 0 : index
    %94 = vector.load %arg4[%c5_92, %c0_93, %c0_94] : memref<9x32x64xf32, #tpu.memory_space<vmem>>, vector<1x32x64xf32>
    %95 = vector.shape_cast %94 : vector<1x32x64xf32> to vector<32x64xf32>
    %cst_95 = arith.constant dense<0.000000e+00> : vector<324x64xf32>
    %96 = tpu.matmul %93, %95, %cst_95 {dimension_numbers = #tpu.dot_dimension_numbers<[1], [0], [0], [1], [0, 0, 1, 1], [], []>} : vector<324x32xf32>, vector<32x64xf32>, vector<324x64xf32> -> vector<324x64xf32>
    %97 = arith.addf %92, %96 : vector<324x64xf32>
    %c41_96 = arith.constant 41 : index
    %c0_97 = arith.constant 0 : index
    %98 = vector.load %arg9[%c41_96, %c0_97] : memref<372x32xf32, #tpu.memory_space<vmem>>, vector<324x32xf32>
    %c6_98 = arith.constant 6 : index
    %c0_99 = arith.constant 0 : index
    %c0_100 = arith.constant 0 : index
    %99 = vector.load %arg4[%c6_98, %c0_99, %c0_100] : memref<9x32x64xf32, #tpu.memory_space<vmem>>, vector<1x32x64xf32>
    %100 = vector.shape_cast %99 : vector<1x32x64xf32> to vector<32x64xf32>
    %cst_101 = arith.constant dense<0.000000e+00> : vector<324x64xf32>
    %101 = tpu.matmul %98, %100, %cst_101 {dimension_numbers = #tpu.dot_dimension_numbers<[1], [0], [0], [1], [0, 0, 1, 1], [], []>} : vector<324x32xf32>, vector<32x64xf32>, vector<324x64xf32> -> vector<324x64xf32>
    %102 = arith.addf %97, %101 : vector<324x64xf32>
    %c42_102 = arith.constant 42 : index
    %c0_103 = arith.constant 0 : index
    %103 = vector.load %arg9[%c42_102, %c0_103] : memref<372x32xf32, #tpu.memory_space<vmem>>, vector<324x32xf32>
    %c7_104 = arith.constant 7 : index
    %c0_105 = arith.constant 0 : index
    %c0_106 = arith.constant 0 : index
    %104 = vector.load %arg4[%c7_104, %c0_105, %c0_106] : memref<9x32x64xf32, #tpu.memory_space<vmem>>, vector<1x32x64xf32>
    %105 = vector.shape_cast %104 : vector<1x32x64xf32> to vector<32x64xf32>
    %cst_107 = arith.constant dense<0.000000e+00> : vector<324x64xf32>
    %106 = tpu.matmul %103, %105, %cst_107 {dimension_numbers = #tpu.dot_dimension_numbers<[1], [0], [0], [1], [0, 0, 1, 1], [], []>} : vector<324x32xf32>, vector<32x64xf32>, vector<324x64xf32> -> vector<324x64xf32>
    %107 = arith.addf %102, %106 : vector<324x64xf32>
    %c43_108 = arith.constant 43 : index
    %c0_109 = arith.constant 0 : index
    %108 = vector.load %arg9[%c43_108, %c0_109] : memref<372x32xf32, #tpu.memory_space<vmem>>, vector<324x32xf32>
    %c8_110 = arith.constant 8 : index
    %c0_111 = arith.constant 0 : index
    %c0_112 = arith.constant 0 : index
    %109 = vector.load %arg4[%c8_110, %c0_111, %c0_112] : memref<9x32x64xf32, #tpu.memory_space<vmem>>, vector<1x32x64xf32>
    %110 = vector.shape_cast %109 : vector<1x32x64xf32> to vector<32x64xf32>
    %cst_113 = arith.constant dense<0.000000e+00> : vector<324x64xf32>
    %111 = tpu.matmul %108, %110, %cst_113 {dimension_numbers = #tpu.dot_dimension_numbers<[1], [0], [0], [1], [0, 0, 1, 1], [], []>} : vector<324x32xf32>, vector<32x64xf32>, vector<324x64xf32> -> vector<324x64xf32>
    %112 = arith.addf %107, %111 : vector<324x64xf32>
    %c0_114 = arith.constant 0 : index
    %c0_115 = arith.constant 0 : index
    %113 = vector.load %arg5[%c0_114, %c0_115] : memref<1x64xf32, #tpu.memory_space<vmem>>, vector<1x64xf32>
    %114 = vector.broadcast %113 : vector<1x64xf32> to vector<324x64xf32>
    %115 = arith.addf %112, %114 : vector<324x64xf32>
    %cst_116 = arith.constant 0.000000e+00 : f32
    %116 = vector.broadcast %cst_116 : f32 to vector<324x64xf32>
    %117 = arith.maximumf %115, %116 : vector<324x64xf32>
    %c0_117 = arith.constant 0 : index
    %c0_118 = arith.constant 0 : index
    %118 = vector.load %arg7[%c0_117, %c0_118] : memref<16x324xf32, #tpu.memory_space<vmem>>, vector<16x324xf32>
    %cst_119 = arith.constant dense<0.000000e+00> : vector<16x64xf32>
    %119 = tpu.matmul %118, %117, %cst_119 {dimension_numbers = #tpu.dot_dimension_numbers<[1], [0], [0], [1], [0, 0, 1, 1], [], []>} : vector<16x324xf32>, vector<324x64xf32>, vector<16x64xf32> -> vector<16x64xf32>
    %c0_120 = arith.constant 0 : index
    %c0_121 = arith.constant 0 : index
    %c0_122 = arith.constant 0 : index
    %120 = vector.load %arg8[%c0_120, %c0_121, %c0_122] : memref<1x16x64xf32, #tpu.memory_space<vmem>>, vector<1x16x64xf32>
    %121 = vector.shape_cast %120 : vector<1x16x64xf32> to vector<16x64xf32>
    %122 = vector.shape_cast %119 : vector<16x64xf32> to vector<1x16x64xf32>
    tpu.vector_store %arg8[%c0_120, %c0_121, %c0_122], %122 {strides = array<i32>} : memref<1x16x64xf32, #tpu.memory_space<vmem>>, vector<1x16x64xf32>,
    return
  }
  func.func @transform_0(%arg0: i32) -> (i32, i32, i32) {
    %c0_i32 = arith.constant 0 : i32
    %c0_i32_0 = arith.constant 0 : i32
    %c0_i32_1 = arith.constant 0 : i32
    return %arg0, %c0_i32, %c0_i32_0 : i32, i32, i32
  }
  func.func @transform_1(%arg0: i32) -> (i32, i32, i32) {
    %c0_i32 = arith.constant 0 : i32
    %c0_i32_0 = arith.constant 0 : i32
    %c0_i32_1 = arith.constant 0 : i32
    %c0_i32_2 = arith.constant 0 : i32
    return %c0_i32, %c0_i32_0, %c0_i32_1 : i32, i32, i32
  }
  func.func @transform_2(%arg0: i32) -> (i32, i32) {
    %c0_i32 = arith.constant 0 : i32
    %c0_i32_0 = arith.constant 0 : i32
    %c0_i32_1 = arith.constant 0 : i32
    return %c0_i32, %c0_i32_0 : i32, i32
  }
  func.func @transform_3(%arg0: i32) -> (i32, i32, i32) {
    %c0_i32 = arith.constant 0 : i32
    %c0_i32_0 = arith.constant 0 : i32
    %c0_i32_1 = arith.constant 0 : i32
    %c0_i32_2 = arith.constant 0 : i32
    return %c0_i32, %c0_i32_0, %c0_i32_1 : i32, i32, i32
  }
  func.func @transform_4(%arg0: i32) -> (i32, i32) {
    %c0_i32 = arith.constant 0 : i32
    %c0_i32_0 = arith.constant 0 : i32
    %c0_i32_1 = arith.constant 0 : i32
    return %c0_i32, %c0_i32_0 : i32, i32
  }
  func.func @transform_5(%arg0: i32) -> (i32, i32) {
    %c0_i32 = arith.constant 0 : i32
    %c0_i32_0 = arith.constant 0 : i32
    %c0_i32_1 = arith.constant 0 : i32
    return %c0_i32, %c0_i32_0 : i32, i32
  }
  func.func @transform_6(%arg0: i32) -> (i32, i32) {
    %c0_i32 = arith.constant 0 : i32
    %c0_i32_0 = arith.constant 0 : i32
    %c0_i32_1 = arith.constant 0 : i32
    return %c0_i32, %c0_i32_0 : i32, i32
  }
  func.func @transform_7(%arg0: i32) -> (i32, i32, i32) {
    %c0_i32 = arith.constant 0 : i32
    %c0_i32_0 = arith.constant 0 : i32
    %c0_i32_1 = arith.constant 0 : i32
    return %arg0, %c0_i32, %c0_i32_0 : i32, i32, i32
  }
}

module attributes {stable_mosaic.version = 11 : i64} {
  func.func @_head_kernel(%arg0: memref<2x1024xf32, #tpu.memory_space<vmem>>, %arg1: memref<2x32xf32, #tpu.memory_space<vmem>>, %arg2: memref<2x32xf32, #tpu.memory_space<vmem>>, %arg3: memref<1024x128xf32, #tpu.memory_space<vmem>>, %arg4: memref<1x128xf32, #tpu.memory_space<vmem>>, %arg5: memref<32x128xf32, #tpu.memory_space<vmem>>, %arg6: memref<1x128xf32, #tpu.memory_space<vmem>>, %arg7: memref<128x96xf32, #tpu.memory_space<vmem>>, %arg8: memref<128x96xf32, #tpu.memory_space<vmem>>, %arg9: memref<1x96xf32, #tpu.memory_space<vmem>>, %arg10: memref<32x96xf32, #tpu.memory_space<vmem>>, %arg11: memref<1x96xf32, #tpu.memory_space<vmem>>, %arg12: memref<32x15xf32, #tpu.memory_space<vmem>>, %arg13: memref<1x15xf32, #tpu.memory_space<vmem>>, %arg14: memref<2x15xf32, #tpu.memory_space<vmem>>, %arg15: memref<2x32xf32, #tpu.memory_space<vmem>>) attributes {dimension_semantics = [], scalar_prefetch = 0 : i64, scratch_operands = 0 : i64, tpu.core_type = #tpu.core_type<tc>} {
    %c0 = arith.constant 0 : index
    %c0_0 = arith.constant 0 : index
    %0 = vector.load %arg0[%c0, %c0_0] : memref<2x1024xf32, #tpu.memory_space<vmem>>, vector<2x1024xf32>
    %c0_1 = arith.constant 0 : index
    %c0_2 = arith.constant 0 : index
    %1 = vector.load %arg3[%c0_1, %c0_2] : memref<1024x128xf32, #tpu.memory_space<vmem>>, vector<1024x128xf32>
    %cst = arith.constant dense<0.000000e+00> : vector<2x128xf32>
    %2 = tpu.matmul %0, %1, %cst {dimension_numbers = #tpu.dot_dimension_numbers<[1], [0], [0], [1], [0, 0, 1, 1], [], []>} : vector<2x1024xf32>, vector<1024x128xf32>, vector<2x128xf32> -> vector<2x128xf32>
    %c0_3 = arith.constant 0 : index
    %c0_4 = arith.constant 0 : index
    %3 = vector.load %arg4[%c0_3, %c0_4] : memref<1x128xf32, #tpu.memory_space<vmem>>, vector<1x128xf32>
    %4 = vector.broadcast %3 : vector<1x128xf32> to vector<2x128xf32>
    %5 = arith.addf %2, %4 : vector<2x128xf32>
    %cst_5 = arith.constant 0.000000e+00 : f32
    %6 = vector.broadcast %cst_5 : f32 to vector<2x128xf32>
    %7 = arith.maximumf %5, %6 : vector<2x128xf32>
    %c0_6 = arith.constant 0 : index
    %c0_7 = arith.constant 0 : index
    %8 = vector.load %arg1[%c0_6, %c0_7] : memref<2x32xf32, #tpu.memory_space<vmem>>, vector<2x32xf32>
    %c0_8 = arith.constant 0 : index
    %c0_9 = arith.constant 0 : index
    %9 = vector.load %arg5[%c0_8, %c0_9] : memref<32x128xf32, #tpu.memory_space<vmem>>, vector<32x128xf32>
    %cst_10 = arith.constant dense<0.000000e+00> : vector<2x128xf32>
    %10 = tpu.matmul %8, %9, %cst_10 {dimension_numbers = #tpu.dot_dimension_numbers<[1], [0], [0], [1], [0, 0, 1, 1], [], []>} : vector<2x32xf32>, vector<32x128xf32>, vector<2x128xf32> -> vector<2x128xf32>
    %c0_11 = arith.constant 0 : index
    %c0_12 = arith.constant 0 : index
    %11 = vector.load %arg6[%c0_11, %c0_12] : memref<1x128xf32, #tpu.memory_space<vmem>>, vector<1x128xf32>
    %12 = vector.broadcast %11 : vector<1x128xf32> to vector<2x128xf32>
    %13 = arith.addf %10, %12 : vector<2x128xf32>
    %cst_13 = arith.constant 0.000000e+00 : f32
    %14 = vector.broadcast %cst_13 : f32 to vector<2x128xf32>
    %15 = arith.maximumf %13, %14 : vector<2x128xf32>
    %c0_14 = arith.constant 0 : index
    %c0_15 = arith.constant 0 : index
    %16 = vector.load %arg7[%c0_14, %c0_15] : memref<128x96xf32, #tpu.memory_space<vmem>>, vector<128x96xf32>
    %cst_16 = arith.constant dense<0.000000e+00> : vector<2x96xf32>
    %17 = tpu.matmul %7, %16, %cst_16 {dimension_numbers = #tpu.dot_dimension_numbers<[1], [0], [0], [1], [0, 0, 1, 1], [], []>} : vector<2x128xf32>, vector<128x96xf32>, vector<2x96xf32> -> vector<2x96xf32>
    %c0_17 = arith.constant 0 : index
    %c0_18 = arith.constant 0 : index
    %18 = vector.load %arg8[%c0_17, %c0_18] : memref<128x96xf32, #tpu.memory_space<vmem>>, vector<128x96xf32>
    %cst_19 = arith.constant dense<0.000000e+00> : vector<2x96xf32>
    %19 = tpu.matmul %15, %18, %cst_19 {dimension_numbers = #tpu.dot_dimension_numbers<[1], [0], [0], [1], [0, 0, 1, 1], [], []>} : vector<2x128xf32>, vector<128x96xf32>, vector<2x96xf32> -> vector<2x96xf32>
    %20 = arith.addf %17, %19 : vector<2x96xf32>
    %c0_20 = arith.constant 0 : index
    %c0_21 = arith.constant 0 : index
    %21 = vector.load %arg9[%c0_20, %c0_21] : memref<1x96xf32, #tpu.memory_space<vmem>>, vector<1x96xf32>
    %22 = vector.broadcast %21 : vector<1x96xf32> to vector<2x96xf32>
    %23 = arith.addf %20, %22 : vector<2x96xf32>
    %c0_22 = arith.constant 0 : index
    %c0_23 = arith.constant 0 : index
    %24 = vector.load %arg2[%c0_22, %c0_23] : memref<2x32xf32, #tpu.memory_space<vmem>>, vector<2x32xf32>
    %c0_24 = arith.constant 0 : index
    %c0_25 = arith.constant 0 : index
    %25 = vector.load %arg10[%c0_24, %c0_25] : memref<32x96xf32, #tpu.memory_space<vmem>>, vector<32x96xf32>
    %cst_26 = arith.constant dense<0.000000e+00> : vector<2x96xf32>
    %26 = tpu.matmul %24, %25, %cst_26 {dimension_numbers = #tpu.dot_dimension_numbers<[1], [0], [0], [1], [0, 0, 1, 1], [], []>} : vector<2x32xf32>, vector<32x96xf32>, vector<2x96xf32> -> vector<2x96xf32>
    %c0_27 = arith.constant 0 : index
    %c0_28 = arith.constant 0 : index
    %27 = vector.load %arg11[%c0_27, %c0_28] : memref<1x96xf32, #tpu.memory_space<vmem>>, vector<1x96xf32>
    %28 = vector.broadcast %27 : vector<1x96xf32> to vector<2x96xf32>
    %29 = arith.addf %26, %28 : vector<2x96xf32>
    %30 = vector.extract_strided_slice %23 {offsets = [0, 0], sizes = [2, 32], strides = [1, 1]} : vector<2x96xf32> to vector<2x32xf32>
    %31 = vector.extract_strided_slice %29 {offsets = [0, 0], sizes = [2, 32], strides = [1, 1]} : vector<2x96xf32> to vector<2x32xf32>
    %32 = arith.addf %30, %31 : vector<2x32xf32>
    %33 = arith.negf %32 : vector<2x32xf32>
    %34 = math.exp %33 : vector<2x32xf32>
    %cst_29 = arith.constant 1.000000e+00 : f32
    %35 = vector.broadcast %cst_29 : f32 to vector<2x32xf32>
    %36 = arith.addf %35, %34 : vector<2x32xf32>
    %37 = arith.divf %35, %36 : vector<2x32xf32>
    %38 = vector.extract_strided_slice %23 {offsets = [0, 32], sizes = [2, 32], strides = [1, 1]} : vector<2x96xf32> to vector<2x32xf32>
    %39 = vector.extract_strided_slice %29 {offsets = [0, 32], sizes = [2, 32], strides = [1, 1]} : vector<2x96xf32> to vector<2x32xf32>
    %40 = arith.addf %38, %39 : vector<2x32xf32>
    %41 = arith.negf %40 : vector<2x32xf32>
    %42 = math.exp %41 : vector<2x32xf32>
    %cst_30 = arith.constant 1.000000e+00 : f32
    %43 = vector.broadcast %cst_30 : f32 to vector<2x32xf32>
    %44 = arith.addf %43, %42 : vector<2x32xf32>
    %45 = arith.divf %43, %44 : vector<2x32xf32>
    %46 = vector.extract_strided_slice %23 {offsets = [0, 64], sizes = [2, 32], strides = [1, 1]} : vector<2x96xf32> to vector<2x32xf32>
    %47 = vector.extract_strided_slice %29 {offsets = [0, 64], sizes = [2, 32], strides = [1, 1]} : vector<2x96xf32> to vector<2x32xf32>
    %48 = arith.mulf %37, %47 : vector<2x32xf32>
    %49 = arith.addf %46, %48 : vector<2x32xf32>
    %50 = math.tanh %49 : vector<2x32xf32>
    %cst_31 = arith.constant 1.000000e+00 : f32
    %51 = vector.broadcast %cst_31 : f32 to vector<2x32xf32>
    %52 = arith.subf %51, %45 : vector<2x32xf32>
    %53 = arith.mulf %52, %50 : vector<2x32xf32>
    %54 = arith.mulf %45, %24 : vector<2x32xf32>
    %55 = arith.addf %53, %54 : vector<2x32xf32>
    %c0_32 = arith.constant 0 : index
    %c0_33 = arith.constant 0 : index
    %56 = vector.load %arg15[%c0_32, %c0_33] : memref<2x32xf32, #tpu.memory_space<vmem>>, vector<2x32xf32>
    tpu.vector_store %arg15[%c0_32, %c0_33], %55 {strides = array<i32>} : memref<2x32xf32, #tpu.memory_space<vmem>>, vector<2x32xf32>,
    %c0_34 = arith.constant 0 : index
    %c0_35 = arith.constant 0 : index
    %57 = vector.load %arg12[%c0_34, %c0_35] : memref<32x15xf32, #tpu.memory_space<vmem>>, vector<32x15xf32>
    %cst_36 = arith.constant dense<0.000000e+00> : vector<2x15xf32>
    %58 = tpu.matmul %55, %57, %cst_36 {dimension_numbers = #tpu.dot_dimension_numbers<[1], [0], [0], [1], [0, 0, 1, 1], [], []>} : vector<2x32xf32>, vector<32x15xf32>, vector<2x15xf32> -> vector<2x15xf32>
    %c0_37 = arith.constant 0 : index
    %c0_38 = arith.constant 0 : index
    %59 = vector.load %arg13[%c0_37, %c0_38] : memref<1x15xf32, #tpu.memory_space<vmem>>, vector<1x15xf32>
    %60 = vector.broadcast %59 : vector<1x15xf32> to vector<2x15xf32>
    %61 = arith.addf %58, %60 : vector<2x15xf32>
    %c0_39 = arith.constant 0 : index
    %c0_40 = arith.constant 0 : index
    %62 = vector.load %arg14[%c0_39, %c0_40] : memref<2x15xf32, #tpu.memory_space<vmem>>, vector<2x15xf32>
    tpu.vector_store %arg14[%c0_39, %c0_40], %61 {strides = array<i32>} : memref<2x15xf32, #tpu.memory_space<vmem>>, vector<2x15xf32>,
    return
  }
}

</mosaic_0001>

<llo_original>
// kernel: rnn_agent_forward.3
$region0: #{rnn_agent_forward.3}
  #allocation0 [shape = 'u32[]', space=smem, size = 0x4, offset = 0x4, fixed_abs, tag = 'smem constant byte address 0x4 - core index']
  #allocation1 [shape = 'u32[144,128]{1,0:T(1,128)}', space=vmem, size = 0x12000, scoped, tag = 'internal scratch']
  %s0 = inlined_call_operand.vmem [shape: f32[2,1024], index: 0, kind: input, shape index: {}]
  %s1 = inlined_call_operand.vmem [shape: f32[2,32], index: 1, kind: input, shape index: {}]
  %s2 = inlined_call_operand.hbm [shape: f32[2,32], index: 2, kind: input, shape index: {}, may-alias: {2,15}]
  %s3 = inlined_call_operand.vmem [shape: f32[1024,128], index: 3, kind: input, shape index: {}]
  %s4 = inlined_call_operand.vmem [shape: f32[1,128], index: 4, kind: input, shape index: {}]
  %s5 = inlined_call_operand.vmem [shape: f32[32,128], index: 5, kind: input, shape index: {}]
  %s6 = inlined_call_operand.vmem [shape: f32[1,128], index: 6, kind: input, shape index: {}]
  %s7 = inlined_call_operand.vmem [shape: f32[128,96], index: 7, kind: input, shape index: {}]
  %s8 = inlined_call_operand.vmem [shape: f32[128,96], index: 8, kind: input, shape index: {}]
  %s9 = inlined_call_operand.vmem [shape: f32[1,96], index: 9, kind: input, shape index: {}]
  %s10 = inlined_call_operand.vmem [shape: f32[32,96], index: 10, kind: input, shape index: {}]
  %s11 = inlined_call_operand.vmem [shape: f32[1,96], index: 11, kind: input, shape index: {}]
  %s12 = inlined_call_operand.vmem [shape: f32[32,15], index: 12, kind: input, shape index: {}]
  %s13 = inlined_call_operand.vmem [shape: f32[1,15], index: 13, kind: input, shape index: {}]
  %s14 = inlined_call_operand.hbm [shape: f32[2,15], index: 14, kind: output, shape index: {0}]
  %s15 = inlined_call_operand.hbm [shape: f32[2,32], index: 15, kind: output, shape index: {1}, may-alias: {2,15}]
  %16 = xla_tuple %s14, %s15
  %s17 = sld [smem:[#allocation0]]
  $region78: #{rnn_agent_forward.3} parent=0
    _
  %s19 = ssub.s32 1, %s17
  %s20 = scalar_select 0, %s19, %s17
  $region1: #{rnn_agent_forward.3} parent=0
    #allocation2 [shape = 'u8[1024]{0}', space=vmem, size = 0x400, scoped, tag = 'input window, operand 2, single buffered']
    #allocation3 [shape = 's32[1]{0}', space=sflag, size = 0x4, scoped, tag = 'scoped memory for rnn_agent_forward.3']
    #allocation4 [shape = 's32[1]{0}', space=sflag, size = 0x4, scoped, tag = 'scoped memory for rnn_agent_forward.3']
    #allocation5 [shape = 'u8[1024]{0}', space=vmem, size = 0x400, scoped, tag = 'output window, operand 0, single buffered']
    #allocation6 [shape = 'u8[1024]{0}', space=vmem, size = 0x400, scoped, tag = 'output window, operand 1, single buffered']
    #allocation7 [shape = 's32[1]{0}', space=sflag, size = 0x4, scoped, tag = 'scoped memory for rnn_agent_forward.3']
    %21 = vsyncpa [#allocation3], 0
    %22 = vsyncpa [#allocation4], 0
    %23 = vsyncpa [#allocation7], 0
    // Predicated region
    $region2: #{rnn_agent_forward.3} parent=1 // pred_check
      _
    $region3: #{rnn_agent_forward.3} parent=1 // pred_check_branch
      %25 = sbr.rel (0) target = $region5
    $region4: #{rnn_agent_forward.3} parent=1 // pred_region
      _
    $region5: #{rnn_agent_forward.3} parent=1 // pred_fallthru
      _
    // Predicated region
    $region6: #{rnn_agent_forward.3} parent=1 // pred_check
      _
    $region7: #{rnn_agent_forward.3} parent=1 // pred_check_branch
      %27 = sbr.rel (0) target = $region9
    $region8: #{rnn_agent_forward.3} parent=1 // pred_region
      _
    $region9: #{rnn_agent_forward.3} parent=1 // pred_fallthru
      _
    // Predicated region
    $region10: #{rnn_agent_forward.3} parent=1 // pred_check
      _
    $region11: #{rnn_agent_forward.3} parent=1 // pred_check_branch
      %29 = sbr.rel (0) target = $region13
    $region12: #{rnn_agent_forward.3} parent=1 // pred_region
      %s31 = ssub.s32 32, 32
      %32 = vsyncadd [#allocation3], %s31
      %s34 = sshll.u32 [#allocation2], 4
      %s35 = int_to_ptr.vmem [resolvable:$true] %s34
      %37 = dma.hbm_to_vmem [thread:$0]  %s2, 32, %s35, [#allocation3]
    $region13: #{rnn_agent_forward.3} parent=1 // pred_fallthru
      _
    // Predicated region
    $region14: #{rnn_agent_forward.3} parent=1 // pred_check
      _
    $region15: #{rnn_agent_forward.3} parent=1 // pred_check_branch
      %39 = sbr.rel (0) target = $region17
    $region16: #{rnn_agent_forward.3} parent=1 // pred_region
      _
    $region17: #{rnn_agent_forward.3} parent=1 // pred_fallthru
      _
    // Predicated region
    $region18: #{rnn_agent_forward.3} parent=1 // pred_check
      _
    $region19: #{rnn_agent_forward.3} parent=1 // pred_check_branch
      %41 = sbr.rel (0) target = $region21
    $region20: #{rnn_agent_forward.3} parent=1 // pred_region
      _
    $region21: #{rnn_agent_forward.3} parent=1 // pred_fallthru
      _
    // Predicated region
    $region22: #{rnn_agent_forward.3} parent=1 // pred_check
      _
    $region23: #{rnn_agent_forward.3} parent=1 // pred_check_branch
      %43 = sbr.rel (0) target = $region25
    $region24: #{rnn_agent_forward.3} parent=1 // pred_region
      _
    $region25: #{rnn_agent_forward.3} parent=1 // pred_fallthru
      _
    // Predicated region
    $region26: #{rnn_agent_forward.3} parent=1 // pred_check
      _
    $region27: #{rnn_agent_forward.3} parent=1 // pred_check_branch
      %45 = sbr.rel (0) target = $region29
    $region28: #{rnn_agent_forward.3} parent=1 // pred_region
      _
    $region29: #{rnn_agent_forward.3} parent=1 // pred_fallthru
      _
    // Predicated region
    $region30: #{rnn_agent_forward.3} parent=1 // pred_check
      _
    $region31: #{rnn_agent_forward.3} parent=1 // pred_check_branch
      %47 = sbr.rel (0) target = $region33
    $region32: #{rnn_agent_forward.3} parent=1 // pred_region
      _
    $region33: #{rnn_agent_forward.3} parent=1 // pred_fallthru
      _
    // Predicated region
    $region34: #{rnn_agent_forward.3} parent=1 // pred_check
      _
    $region35: #{rnn_agent_forward.3} parent=1 // pred_check_branch
      %49 = sbr.rel (0) target = $region37
    $region36: #{rnn_agent_forward.3} parent=1 // pred_region
      _
    $region37: #{rnn_agent_forward.3} parent=1 // pred_fallthru
      _
    // Predicated region
    $region38: #{rnn_agent_forward.3} parent=1 // pred_check
      _
    $region39: #{rnn_agent_forward.3} parent=1 // pred_check_branch
      %51 = sbr.rel (0) target = $region41
    $region40: #{rnn_agent_forward.3} parent=1 // pred_region
      _
    $region41: #{rnn_agent_forward.3} parent=1 // pred_fallthru
      _
    // Predicated region
    $region42: #{rnn_agent_forward.3} parent=1 // pred_check
      _
    $region43: #{rnn_agent_forward.3} parent=1 // pred_check_branch
      %53 = sbr.rel (0) target = $region45
    $region44: #{rnn_agent_forward.3} parent=1 // pred_region
      _
    $region45: #{rnn_agent_forward.3} parent=1 // pred_fallthru
      _
    // Predicated region
    $region46: #{rnn_agent_forward.3} parent=1 // pred_check
      _
    $region47: #{rnn_agent_forward.3} parent=1 // pred_check_branch
      %55 = sbr.rel (0) target = $region49
    $region48: #{rnn_agent_forward.3} parent=1 // pred_region
      _
    $region49: #{rnn_agent_forward.3} parent=1 // pred_fallthru
      _
    // Predicated region
    $region50: #{rnn_agent_forward.3} parent=1 // pred_check
      _
    $region51: #{rnn_agent_forward.3} parent=1 // pred_check_branch
      %57 = sbr.rel (0) target = $region53
    $region52: #{rnn_agent_forward.3} parent=1 // pred_region
      _
    $region53: #{rnn_agent_forward.3} parent=1 // pred_fallthru
      _
    // Predicated region
    $region54: #{rnn_agent_forward.3} parent=1 // pred_check
      _
    $region55: #{rnn_agent_forward.3} parent=1 // pred_check_branch
      %59 = sbr.rel (0) target = $region57
    $region56: #{rnn_agent_forward.3} parent=1 // pred_region
      _
    $region57: #{rnn_agent_forward.3} parent=1 // pred_fallthru
      _
    // Predicated region
    $region58: #{rnn_agent_forward.3} parent=1 // pred_check
      _
    $region59: #{rnn_agent_forward.3} parent=1 // pred_check_branch
      %61 = sbr.rel (0) target = $region61
    $region60: #{rnn_agent_forward.3} parent=1 // pred_region
      %62 = dma.done [#allocation3], 32
    $region61: #{rnn_agent_forward.3} parent=1 // pred_fallthru
      _
    %v63 = vld [vmem:[%s0] sm:$0xff]
    %v64 = vld [vmem:[%s0 + $0x8] sm:$0xff]
    %v65 = vld [vmem:[%s3] sm:$0xff]
    %v66 = vld [vmem:[%s3 + $0x8] sm:$0xff]
    %v67 = vld [vmem:[%s3 + $0x10] sm:$0xff]
    %v68 = vld [vmem:[%s3 + $0x18] sm:$0xff]
    %v69 = vld [vmem:[%s3 + $0x20] sm:$0xff]
    %v70 = vld [vmem:[%s3 + $0x28] sm:$0xff]
    %v71 = vld [vmem:[%s3 + $0x30] sm:$0xff]
    %v72 = vld [vmem:[%s3 + $0x38] sm:$0xff]
    %v73 = vld [vmem:[%s3 + $0x40] sm:$0xff]
    %v74 = vld [vmem:[%s3 + $0x48] sm:$0xff]
    %v75 = vld [vmem:[%s3 + $0x50] sm:$0xff]
    %v76 = vld [vmem:[%s3 + $0x58] sm:$0xff]
    %v77 = vld [vmem:[%s3 + $0x60] sm:$0xff]
    %v78 = vld [vmem:[%s3 + $0x68] sm:$0xff]
    %v79 = vld [vmem:[%s3 + $0x70] sm:$0xff]
    %v80 = vld [vmem:[%s3 + $0x78] sm:$0xff]
    %v81 = vld [vmem:[%s3 + $0x80] sm:$0xff]
    %v82 = vld [vmem:[%s3 + $0x88] sm:$0xff]
    %v83 = vld [vmem:[%s3 + $0x90] sm:$0xff]
    %v84 = vld [vmem:[%s3 + $0x98] sm:$0xff]
    %v85 = vld [vmem:[%s3 + $0xa0] sm:$0xff]
    %v86 = vld [vmem:[%s3 + $0xa8] sm:$0xff]
    %v87 = vld [vmem:[%s3 + $0xb0] sm:$0xff]
    %v88 = vld [vmem:[%s3 + $0xb8] sm:$0xff]
    %v89 = vld [vmem:[%s3 + $0xc0] sm:$0xff]
    %v90 = vld [vmem:[%s3 + $0xc8] sm:$0xff]
    %v91 = vld [vmem:[%s3 + $0xd0] sm:$0xff]
    %v92 = vld [vmem:[%s3 + $0xd8] sm:$0xff]
    %v93 = vld [vmem:[%s3 + $0xe0] sm:$0xff]
    %v94 = vld [vmem:[%s3 + $0xe8] sm:$0xff]
    %v95 = vld [vmem:[%s3 + $0xf0] sm:$0xff]
    %v96 = vld [vmem:[%s3 + $0xf8] sm:$0xff]
    %v97 = vld [vmem:[%s3 + $0x100] sm:$0xff]
    %v98 = vld [vmem:[%s3 + $0x108] sm:$0xff]
    %v99 = vld [vmem:[%s3 + $0x110] sm:$0xff]
    %v100 = vld [vmem:[%s3 + $0x118] sm:$0xff]
    %v101 = vld [vmem:[%s3 + $0x120] sm:$0xff]
    %v102 = vld [vmem:[%s3 + $0x128] sm:$0xff]
    %v103 = vld [vmem:[%s3 + $0x130] sm:$0xff]
    %v104 = vld [vmem:[%s3 + $0x138] sm:$0xff]
    %v105 = vld [vmem:[%s3 + $0x140] sm:$0xff]
    %v106 = vld [vmem:[%s3 + $0x148] sm:$0xff]
    %v107 = vld [vmem:[%s3 + $0x150] sm:$0xff]
    %v108 = vld [vmem:[%s3 + $0x158] sm:$0xff]
    %v109 = vld [vmem:[%s3 + $0x160] sm:$0xff]
    %v110 = vld [vmem:[%s3 + $0x168] sm:$0xff]
    %v111 = vld [vmem:[%s3 + $0x170] sm:$0xff]
    %v112 = vld [vmem:[%s3 + $0x178] sm:$0xff]
    %v113 = vld [vmem:[%s3 + $0x180] sm:$0xff]
    %v114 = vld [vmem:[%s3 + $0x188] sm:$0xff]
    %v115 = vld [vmem:[%s3 + $0x190] sm:$0xff]
    %v116 = vld [vmem:[%s3 + $0x198] sm:$0xff]
    %v117 = vld [vmem:[%s3 + $0x1a0] sm:$0xff]
    %v118 = vld [vmem:[%s3 + $0x1a8] sm:$0xff]
    %v119 = vld [vmem:[%s3 + $0x1b0] sm:$0xff]
    %v120 = vld [vmem:[%s3 + $0x1b8] sm:$0xff]
    %v121 = vld [vmem:[%s3 + $0x1c0] sm:$0xff]
    %v122 = vld [vmem:[%s3 + $0x1c8] sm:$0xff]
    %v123 = vld [vmem:[%s3 + $0x1d0] sm:$0xff]
    %v124 = vld [vmem:[%s3 + $0x1d8] sm:$0xff]
    %v125 = vld [vmem:[%s3 + $0x1e0] sm:$0xff]
    %v126 = vld [vmem:[%s3 + $0x1e8] sm:$0xff]
    %v127 = vld [vmem:[%s3 + $0x1f0] sm:$0xff]
    %v128 = vld [vmem:[%s3 + $0x1f8] sm:$0xff]
    %v129 = vld [vmem:[%s3 + $0x200] sm:$0xff]
    %v130 = vld [vmem:[%s3 + $0x208] sm:$0xff]
    %v131 = vld [vmem:[%s3 + $0x210] sm:$0xff]
    %v132 = vld [vmem:[%s3 + $0x218] sm:$0xff]
    %v133 = vld [vmem:[%s3 + $0x220] sm:$0xff]
    %v134 = vld [vmem:[%s3 + $0x228] sm:$0xff]
    %v135 = vld [vmem:[%s3 + $0x230] sm:$0xff]
    %v136 = vld [vmem:[%s3 + $0x238] sm:$0xff]
    %v137 = vld [vmem:[%s3 + $0x240] sm:$0xff]
    %v138 = vld [vmem:[%s3 + $0x248] sm:$0xff]
    %v139 = vld [vmem:[%s3 + $0x250] sm:$0xff]
    %v140 = vld [vmem:[%s3 + $0x258] sm:$0xff]
    %v141 = vld [vmem:[%s3 + $0x260] sm:$0xff]
    %v142 = vld [vmem:[%s3 + $0x268] sm:$0xff]
    %v143 = vld [vmem:[%s3 + $0x270] sm:$0xff]
    %v144 = vld [vmem:[%s3 + $0x278] sm:$0xff]
    %v145 = vld [vmem:[%s3 + $0x280] sm:$0xff]
    %v146 = vld [vmem:[%s3 + $0x288] sm:$0xff]
    %v147 = vld [vmem:[%s3 + $0x290] sm:$0xff]
    %v148 = vld [vmem:[%s3 + $0x298] sm:$0xff]
    %v149 = vld [vmem:[%s3 + $0x2a0] sm:$0xff]
    %v150 = vld [vmem:[%s3 + $0x2a8] sm:$0xff]
    %v151 = vld [vmem:[%s3 + $0x2b0] sm:$0xff]
    %v152 = vld [vmem:[%s3 + $0x2b8] sm:$0xff]
    %v153 = vld [vmem:[%s3 + $0x2c0] sm:$0xff]
    %v154 = vld [vmem:[%s3 + $0x2c8] sm:$0xff]
    %v155 = vld [vmem:[%s3 + $0x2d0] sm:$0xff]
    %v156 = vld [vmem:[%s3 + $0x2d8] sm:$0xff]
    %v157 = vld [vmem:[%s3 + $0x2e0] sm:$0xff]
    %v158 = vld [vmem:[%s3 + $0x2e8] sm:$0xff]
    %v159 = vld [vmem:[%s3 + $0x2f0] sm:$0xff]
    %v160 = vld [vmem:[%s3 + $0x2f8] sm:$0xff]
    %v161 = vld [vmem:[%s3 + $0x300] sm:$0xff]
    %v162 = vld [vmem:[%s3 + $0x308] sm:$0xff]
    %v163 = vld [vmem:[%s3 + $0x310] sm:$0xff]
    %v164 = vld [vmem:[%s3 + $0x318] sm:$0xff]
    %v165 = vld [vmem:[%s3 + $0x320] sm:$0xff]
    %v166 = vld [vmem:[%s3 + $0x328] sm:$0xff]
    %v167 = vld [vmem:[%s3 + $0x330] sm:$0xff]
    %v168 = vld [vmem:[%s3 + $0x338] sm:$0xff]
    %v169 = vld [vmem:[%s3 + $0x340] sm:$0xff]
    %v170 = vld [vmem:[%s3 + $0x348] sm:$0xff]
    %v171 = vld [vmem:[%s3 + $0x350] sm:$0xff]
    %v172 = vld [vmem:[%s3 + $0x358] sm:$0xff]
    %v173 = vld [vmem:[%s3 + $0x360] sm:$0xff]
    %v174 = vld [vmem:[%s3 + $0x368] sm:$0xff]
    %v175 = vld [vmem:[%s3 + $0x370] sm:$0xff]
    %v176 = vld [vmem:[%s3 + $0x378] sm:$0xff]
    %v177 = vld [vmem:[%s3 + $0x380] sm:$0xff]
    %v178 = vld [vmem:[%s3 + $0x388] sm:$0xff]
    %v179 = vld [vmem:[%s3 + $0x390] sm:$0xff]
    %v180 = vld [vmem:[%s3 + $0x398] sm:$0xff]
    %v181 = vld [vmem:[%s3 + $0x3a0] sm:$0xff]
    %v182 = vld [vmem:[%s3 + $0x3a8] sm:$0xff]
    %v183 = vld [vmem:[%s3 + $0x3b0] sm:$0xff]
    %v184 = vld [vmem:[%s3 + $0x3b8] sm:$0xff]
    %v185 = vld [vmem:[%s3 + $0x3c0] sm:$0xff]
    %v186 = vld [vmem:[%s3 + $0x3c8] sm:$0xff]
    %v187 = vld [vmem:[%s3 + $0x3d0] sm:$0xff]
    %v188 = vld [vmem:[%s3 + $0x3d8] sm:$0xff]
    %v189 = vld [vmem:[%s3 + $0x3e0] sm:$0xff]
    %v190 = vld [vmem:[%s3 + $0x3e8] sm:$0xff]
    %v191 = vld [vmem:[%s3 + $0x3f0] sm:$0xff]
    %v192 = vld [vmem:[%s3 + $0x3f8] sm:$0xff]
    %v193 = vld [vmem:[%s4] sm:$0x1]
    %v195 = vlaneseq
    %v196 = vshrl.u32 %v195, 7
    %v197 = vsub.s32 0, %v196
    %v198 = vrot.slane %v193, %v197
    %v202 = vcombine.high %v63, %v63
    %v204 = vunpack.c.l.s4 1983009808
    %v205 = vunpack.c.0.s8 %v204
    %v206 = vlaneseq
    %v207 = vshrl.u32 %v206, 7
    %v208 = vsub.s32 %v205, %v207
    %v209 = vrot.slane %v63, %v208
    %v211 = vunpack.c.l.s4 1983009808
    %v212 = vunpack.c.0.s8 %v211
    %v213 = vlaneseq
    %v214 = vshrl.u32 %v213, 7
    %v215 = vsub.s32 %v212, %v214
    %v216 = vrot.slane %v202, %v215
    %v217 = vcombine.high %v209, %v209
    %v218 = vcombine.high %v216, %v216
    %v219 = vcombine.high %v64, %v64
    %v221 = vunpack.c.l.s4 1983009808
    %v222 = vunpack.c.0.s8 %v221
    %v223 = vlaneseq
    %v224 = vshrl.u32 %v223, 7
    %v225 = vsub.s32 %v222, %v224
    %v226 = vrot.slane %v64, %v225
    %v228 = vunpack.c.l.s4 1983009808
    %v229 = vunpack.c.0.s8 %v228
    %v230 = vlaneseq
    %v231 = vshrl.u32 %v230, 7
    %v232 = vsub.s32 %v229, %v231
    %v233 = vrot.slane %v219, %v232
    %v234 = vcombine.high %v226, %v226
    %v235 = vcombine.high %v233, %v233
    %244 = vmatprep.subr.mxu0 0.0
    %245 = vmatpush1.msra.mxu0 %v80
    %246 = vmatprep.subr.mxu0 0.0
    %247 = vmatpush1.msra.mxu0 %v79
    %248 = vmatprep.subr.mxu0 0.0
    %249 = vmatpush1.msra.mxu0 %v78
    %250 = vmatprep.subr.mxu0 0.0
    %251 = vmatpush1.msra.mxu0 %v77
    %252 = vmatprep.subr.mxu0 0.0
    %253 = vmatpush1.msra.mxu0 %v76
    %254 = vmatprep.subr.mxu0 0.0
    %255 = vmatpush1.msra.mxu0 %v75
    %256 = vmatprep.subr.mxu0 0.0
    %257 = vmatpush1.msra.mxu0 %v74
    %258 = vmatprep.subr.mxu0 0.0
    %259 = vmatpush1.msra.mxu0 %v73
    %260 = vmatprep.subr.mxu0 0.0
    %261 = vmatpush1.msra.mxu0 %v72
    %262 = vmatprep.subr.mxu0 0.0
    %263 = vmatpush1.msra.mxu0 %v71
    %264 = vmatprep.subr.mxu0 0.0
    %265 = vmatpush1.msra.mxu0 %v70
    %266 = vmatprep.subr.mxu0 0.0
    %267 = vmatpush1.msra.mxu0 %v69
    %268 = vmatprep.subr.mxu0 0.0
    %269 = vmatpush1.msra.mxu0 %v68
    %270 = vmatprep.subr.mxu0 0.0
    %271 = vmatpush1.msra.mxu0 %v67
    %272 = vmatprep.subr.mxu0 0.0
    %273 = vmatpush1.msra.mxu0 %v66
    %274 = vmatprep.subr.mxu0 0.0
    %275 = vmatpush1.msra.mxu0 %v65
    %276 = vmatprep.subr.mxu0 0.0
    %277 = vmatpush2.msra.mxu0 %v96
    %278 = vmatprep.subr.mxu0 0.0
    %279 = vmatpush2.msra.mxu0 %v95
    %280 = vmatprep.subr.mxu0 0.0
    %281 = vmatpush2.msra.mxu0 %v94
    %282 = vmatprep.subr.mxu0 0.0
    %283 = vmatpush2.msra.mxu0 %v93
    %284 = vmatprep.subr.mxu0 0.0
    %285 = vmatpush2.msra.mxu0 %v92
    %286 = vmatprep.subr.mxu0 0.0
    %287 = vmatpush2.msra.mxu0 %v91
    %288 = vmatprep.subr.mxu0 0.0
    %289 = vmatpush2.msra.mxu0 %v90
    %290 = vmatprep.subr.mxu0 0.0
    %291 = vmatpush2.msra.mxu0 %v89
    %292 = vmatprep.subr.mxu0 0.0
    %293 = vmatpush2.msra.mxu0 %v88
    %294 = vmatprep.subr.mxu0 0.0
    %295 = vmatpush2.msra.mxu0 %v87
    %296 = vmatprep.subr.mxu0 0.0
    %297 = vmatpush2.msra.mxu0 %v86
    %298 = vmatprep.subr.mxu0 0.0
    %299 = vmatpush2.msra.mxu0 %v85
    %300 = vmatprep.subr.mxu0 0.0
    %301 = vmatpush2.msra.mxu0 %v84
    %302 = vmatprep.subr.mxu0 0.0
    %303 = vmatpush2.msra.mxu0 %v83
    %304 = vmatprep.subr.mxu0 0.0
    %305 = vmatpush2.msra.mxu0 %v82
    %306 = vmatprep.subr.mxu0 0.0
    %307 = vmatpush2.msra.mxu0 %v81
    %308 = vmatprep.mubr.f32.mxu0 %v217
    %309 = vmatmul.mubr.f32.gmra.mxu0 %v209
    %v310 = vpop.f32.mrf.mxu0
    %v311 = vadd.f32 %v198, %v310
    %v312 = vpop.f32.mrf.mxu0
    %313 = vdwg.mxu0
    %314 = vmatprep.subr.mxu0 0.0
    %315 = vmatpush1.msra.mxu0 %v112
    %316 = vmatprep.subr.mxu0 0.0
    %317 = vmatpush1.msra.mxu0 %v111
    %318 = vmatprep.subr.mxu0 0.0
    %319 = vmatpush1.msra.mxu0 %v110
    %320 = vmatprep.subr.mxu0 0.0
    %321 = vmatpush1.msra.mxu0 %v109
    %322 = vmatprep.subr.mxu0 0.0
    %323 = vmatpush1.msra.mxu0 %v108
    %324 = vmatprep.subr.mxu0 0.0
    %325 = vmatpush1.msra.mxu0 %v107
    %326 = vmatprep.subr.mxu0 0.0
    %327 = vmatpush1.msra.mxu0 %v106
    %328 = vmatprep.subr.mxu0 0.0
    %329 = vmatpush1.msra.mxu0 %v105
    %330 = vmatprep.subr.mxu0 0.0
    %331 = vmatpush1.msra.mxu0 %v104
    %332 = vmatprep.subr.mxu0 0.0
    %333 = vmatpush1.msra.mxu0 %v103
    %334 = vmatprep.subr.mxu0 0.0
    %335 = vmatpush1.msra.mxu0 %v102
    %336 = vmatprep.subr.mxu0 0.0
    %337 = vmatpush1.msra.mxu0 %v101
    %338 = vmatprep.subr.mxu0 0.0
    %339 = vmatpush1.msra.mxu0 %v100
    %340 = vmatprep.subr.mxu0 0.0
    %341 = vmatpush1.msra.mxu0 %v99
    %342 = vmatprep.subr.mxu0 0.0
    %343 = vmatpush1.msra.mxu0 %v98
    %344 = vmatprep.subr.mxu0 0.0
    %345 = vmatpush1.msra.mxu0 %v97
    %346 = vmatprep.subr.mxu0 0.0
    %347 = vmatpush2.msra.mxu0 %v128
    %348 = vmatprep.subr.mxu0 0.0
    %349 = vmatpush2.msra.mxu0 %v127
    %350 = vmatprep.subr.mxu0 0.0
    %351 = vmatpush2.msra.mxu0 %v126
    %352 = vmatprep.subr.mxu0 0.0
    %353 = vmatpush2.msra.mxu0 %v125
    %354 = vmatprep.subr.mxu0 0.0
    %355 = vmatpush2.msra.mxu0 %v124
    %356 = vmatprep.subr.mxu0 0.0
    %357 = vmatpush2.msra.mxu0 %v123
    %358 = vmatprep.subr.mxu0 0.0
    %359 = vmatpush2.msra.mxu0 %v122
    %360 = vmatprep.subr.mxu0 0.0
    %361 = vmatpush2.msra.mxu0 %v121
    %362 = vmatprep.subr.mxu0 0.0
    %363 = vmatpush2.msra.mxu0 %v120
    %364 = vmatprep.subr.mxu0 0.0
    %365 = vmatpush2.msra.mxu0 %v119
    %366 = vmatprep.subr.mxu0 0.0
    %367 = vmatpush2.msra.mxu0 %v118
    %368 = vmatprep.subr.mxu0 0.0
    %369 = vmatpush2.msra.mxu0 %v117
    %370 = vmatprep.subr.mxu0 0.0
    %371 = vmatpush2.msra.mxu0 %v116
    %372 = vmatprep.subr.mxu0 0.0
    %373 = vmatpush2.msra.mxu0 %v115
    %374 = vmatprep.subr.mxu0 0.0
    %375 = vmatpush2.msra.mxu0 %v114
    %376 = vmatprep.subr.mxu0 0.0
    %377 = vmatpush2.msra.mxu0 %v113
    %378 = vmatprep.mubr.f32.mxu0 %v218
    %379 = vmatmul.mubr.f32.gmra.mxu0 %v216
    %v380 = vpop.f32.mrf.mxu0
    %v381 = vadd.f32 %v311, %v380
    %v382 = vpop.f32.mrf.mxu0
    %383 = vdwg.mxu0
    %384 = vmatprep.subr.mxu0 0.0
    %385 = vmatpush1.msra.mxu0 %v144
    %386 = vmatprep.subr.mxu0 0.0
    %387 = vmatpush1.msra.mxu0 %v143
    %388 = vmatprep.subr.mxu0 0.0
    %389 = vmatpush1.msra.mxu0 %v142
    %390 = vmatprep.subr.mxu0 0.0
    %391 = vmatpush1.msra.mxu0 %v141
    %392 = vmatprep.subr.mxu0 0.0
    %393 = vmatpush1.msra.mxu0 %v140
    %394 = vmatprep.subr.mxu0 0.0
    %395 = vmatpush1.msra.mxu0 %v139
    %396 = vmatprep.subr.mxu0 0.0
    %397 = vmatpush1.msra.mxu0 %v138
    %398 = vmatprep.subr.mxu0 0.0
    %399 = vmatpush1.msra.mxu0 %v137
    %400 = vmatprep.subr.mxu0 0.0
    %401 = vmatpush1.msra.mxu0 %v136
    %402 = vmatprep.subr.mxu0 0.0
    %403 = vmatpush1.msra.mxu0 %v135
    %404 = vmatprep.subr.mxu0 0.0
    %405 = vmatpush1.msra.mxu0 %v134
    %406 = vmatprep.subr.mxu0 0.0
    %407 = vmatpush1.msra.mxu0 %v133
    %408 = vmatprep.subr.mxu0 0.0
    %409 = vmatpush1.msra.mxu0 %v132
    %410 = vmatprep.subr.mxu0 0.0
    %411 = vmatpush1.msra.mxu0 %v131
    %412 = vmatprep.subr.mxu0 0.0
    %413 = vmatpush1.msra.mxu0 %v130
    %414 = vmatprep.subr.mxu0 0.0
    %415 = vmatpush1.msra.mxu0 %v129
    %416 = vmatprep.subr.mxu0 0.0
    %417 = vmatpush2.msra.mxu0 %v160
    %418 = vmatprep.subr.mxu0 0.0
    %419 = vmatpush2.msra.mxu0 %v159
    %420 = vmatprep.subr.mxu0 0.0
    %421 = vmatpush2.msra.mxu0 %v158
    %422 = vmatprep.subr.mxu0 0.0
    %423 = vmatpush2.msra.mxu0 %v157
    %424 = vmatprep.subr.mxu0 0.0
    %425 = vmatpush2.msra.mxu0 %v156
    %426 = vmatprep.subr.mxu0 0.0
    %427 = vmatpush2.msra.mxu0 %v155
    %428 = vmatprep.subr.mxu0 0.0
    %429 = vmatpush2.msra.mxu0 %v154
    %430 = vmatprep.subr.mxu0 0.0
    %431 = vmatpush2.msra.mxu0 %v153
    %432 = vmatprep.subr.mxu0 0.0
    %433 = vmatpush2.msra.mxu0 %v152
    %434 = vmatprep.subr.mxu0 0.0
    %435 = vmatpush2.msra.mxu0 %v151
    %436 = vmatprep.subr.mxu0 0.0
    %437 = vmatpush2.msra.mxu0 %v150
    %438 = vmatprep.subr.mxu0 0.0
    %439 = vmatpush2.msra.mxu0 %v149
    %440 = vmatprep.subr.mxu0 0.0
    %441 = vmatpush2.msra.mxu0 %v148
    %442 = vmatprep.subr.mxu0 0.0
    %443 = vmatpush2.msra.mxu0 %v147
    %444 = vmatprep.subr.mxu0 0.0
    %445 = vmatpush2.msra.mxu0 %v146
    %446 = vmatprep.subr.mxu0 0.0
    %447 = vmatpush2.msra.mxu0 %v145
    %448 = vmatprep.mubr.f32.mxu0 %v234
    %449 = vmatmul.mubr.f32.gmra.mxu0 %v226
    %v450 = vpop.f32.mrf.mxu0
    %v451 = vadd.f32 %v381, %v450
    %v452 = vpop.f32.mrf.mxu0
    %453 = vdwg.mxu0
    %454 = vmatprep.subr.mxu0 0.0
    %455 = vmatpush1.msra.mxu0 %v176
    %456 = vmatprep.subr.mxu0 0.0
    %457 = vmatpush1.msra.mxu0 %v175
    %458 = vmatprep.subr.mxu0 0.0
    %459 = vmatpush1.msra.mxu0 %v174
    %460 = vmatprep.subr.mxu0 0.0
    %461 = vmatpush1.msra.mxu0 %v173
    %462 = vmatprep.subr.mxu0 0.0
    %463 = vmatpush1.msra.mxu0 %v172
    %464 = vmatprep.subr.mxu0 0.0
    %465 = vmatpush1.msra.mxu0 %v171
    %466 = vmatprep.subr.mxu0 0.0
    %467 = vmatpush1.msra.mxu0 %v170
    %468 = vmatprep.subr.mxu0 0.0
    %469 = vmatpush1.msra.mxu0 %v169
    %470 = vmatprep.subr.mxu0 0.0
    %471 = vmatpush1.msra.mxu0 %v168
    %472 = vmatprep.subr.mxu0 0.0
    %473 = vmatpush1.msra.mxu0 %v167
    %474 = vmatprep.subr.mxu0 0.0
    %475 = vmatpush1.msra.mxu0 %v166
    %476 = vmatprep.subr.mxu0 0.0
    %477 = vmatpush1.msra.mxu0 %v165
    %478 = vmatprep.subr.mxu0 0.0
    %479 = vmatpush1.msra.mxu0 %v164
    %480 = vmatprep.subr.mxu0 0.0
    %481 = vmatpush1.msra.mxu0 %v163
    %482 = vmatprep.subr.mxu0 0.0
    %483 = vmatpush1.msra.mxu0 %v162
    %484 = vmatprep.subr.mxu0 0.0
    %485 = vmatpush1.msra.mxu0 %v161
    %486 = vmatprep.subr.mxu0 0.0
    %487 = vmatpush2.msra.mxu0 %v192
    %488 = vmatprep.subr.mxu0 0.0
    %489 = vmatpush2.msra.mxu0 %v191
    %490 = vmatprep.subr.mxu0 0.0
    %491 = vmatpush2.msra.mxu0 %v190
    %492 = vmatprep.subr.mxu0 0.0
    %493 = vmatpush2.msra.mxu0 %v189
    %494 = vmatprep.subr.mxu0 0.0
    %495 = vmatpush2.msra.mxu0 %v188
    %496 = vmatprep.subr.mxu0 0.0
    %497 = vmatpush2.msra.mxu0 %v187
    %498 = vmatprep.subr.mxu0 0.0
    %499 = vmatpush2.msra.mxu0 %v186
    %500 = vmatprep.subr.mxu0 0.0
    %501 = vmatpush2.msra.mxu0 %v185
    %502 = vmatprep.subr.mxu0 0.0
    %503 = vmatpush2.msra.mxu0 %v184
    %504 = vmatprep.subr.mxu0 0.0
    %505 = vmatpush2.msra.mxu0 %v183
    %506 = vmatprep.subr.mxu0 0.0
    %507 = vmatpush2.msra.mxu0 %v182
    %508 = vmatprep.subr.mxu0 0.0
    %509 = vmatpush2.msra.mxu0 %v181
    %510 = vmatprep.subr.mxu0 0.0
    %511 = vmatpush2.msra.mxu0 %v180
    %512 = vmatprep.subr.mxu0 0.0
    %513 = vmatpush2.msra.mxu0 %v179
    %514 = vmatprep.subr.mxu0 0.0
    %515 = vmatpush2.msra.mxu0 %v178
    %516 = vmatprep.subr.mxu0 0.0
    %517 = vmatpush2.msra.mxu0 %v177
    %518 = vmatprep.mubr.f32.mxu0 %v235
    %519 = vmatmul.mubr.f32.gmra.mxu0 %v233
    %v520 = vpop.f32.mrf.mxu0
    %v521 = vadd.f32 %v451, %v520
    %v522 = vpop.f32.mrf.mxu0
    %523 = vdwg.mxu0
    %v524 = vmax.f32 %v521, 0.0
    %v525 = vld [vmem:[%s1] sm:$0x3]
    %v526 = vld [vmem:[%s5] sm:$0xff]
    %v527 = vld [vmem:[%s5 + $0x8] sm:$0xff]
    %v528 = vld [vmem:[%s5 + $0x10] sm:$0xff]
    %v529 = vld [vmem:[%s5 + $0x18] sm:$0xff]
    %v530 = vld [vmem:[%s6] sm:$0x1]
    %v532 = vlaneseq
    %v533 = vshrl.u32 %v532, 7
    %v534 = vsub.s32 0, %v533
    %v535 = vrot.slane %v530, %v534
    %vm537 = vcmask 261120
    %v539 = vsel %vm537, %v525, 0
    %541 = vmatprep.subr.mxu0 0.0
    %542 = vmatpush1.msra.mxu0 0.0
    %543 = vmatprep.subr.mxu0 0.0
    %544 = vmatpush1.msra.mxu0 0.0
    %545 = vmatprep.subr.mxu0 0.0
    %546 = vmatpush1.msra.mxu0 0.0
    %547 = vmatprep.subr.mxu0 0.0
    %548 = vmatpush1.msra.mxu0 0.0
    %549 = vmatprep.subr.mxu0 0.0
    %550 = vmatpush1.msra.mxu0 0.0
    %551 = vmatprep.subr.mxu0 0.0
    %552 = vmatpush1.msra.mxu0 0.0
    %553 = vmatprep.subr.mxu0 0.0
    %554 = vmatpush1.msra.mxu0 0.0
    %555 = vmatprep.subr.mxu0 0.0
    %556 = vmatpush1.msra.mxu0 0.0
    %557 = vmatprep.subr.mxu0 0.0
    %558 = vmatpush1.msra.mxu0 0.0
    %559 = vmatprep.subr.mxu0 0.0
    %560 = vmatpush1.msra.mxu0 0.0
    %561 = vmatprep.subr.mxu0 0.0
    %562 = vmatpush1.msra.mxu0 0.0
    %563 = vmatprep.subr.mxu0 0.0
    %564 = vmatpush1.msra.mxu0 0.0
    %565 = vmatprep.subr.mxu0 0.0
    %566 = vmatpush1.msra.mxu0 %v529
    %567 = vmatprep.subr.mxu0 0.0
    %568 = vmatpush1.msra.mxu0 %v528
    %569 = vmatprep.subr.mxu0 0.0
    %570 = vmatpush1.msra.mxu0 %v527
    %571 = vmatprep.subr.mxu0 0.0
    %572 = vmatpush1.msra.mxu0 %v526
    %573 = vmatprep.subr.mxu0 0.0
    %574 = vmatpush2.msra.mxu0 0.0
    %575 = vmatprep.subr.mxu0 0.0
    %576 = vmatpush2.msra.mxu0 0.0
    %577 = vmatprep.subr.mxu0 0.0
    %578 = vmatpush2.msra.mxu0 0.0
    %579 = vmatprep.subr.mxu0 0.0
    %580 = vmatpush2.msra.mxu0 0.0
    %581 = vmatprep.subr.mxu0 0.0
    %582 = vmatpush2.msra.mxu0 0.0
    %583 = vmatprep.subr.mxu0 0.0
    %584 = vmatpush2.msra.mxu0 0.0
    %585 = vmatprep.subr.mxu0 0.0
    %586 = vmatpush2.msra.mxu0 0.0
    %587 = vmatprep.subr.mxu0 0.0
    %588 = vmatpush2.msra.mxu0 0.0
    %589 = vmatprep.subr.mxu0 0.0
    %590 = vmatpush2.msra.mxu0 0.0
    %591 = vmatprep.subr.mxu0 0.0
    %592 = vmatpush2.msra.mxu0 0.0
    %593 = vmatprep.subr.mxu0 0.0
    %594 = vmatpush2.msra.mxu0 0.0
    %595 = vmatprep.subr.mxu0 0.0
    %596 = vmatpush2.msra.mxu0 0.0
    %597 = vmatprep.subr.mxu0 0.0
    %598 = vmatpush2.msra.mxu0 0.0
    %599 = vmatprep.subr.mxu0 0.0
    %600 = vmatpush2.msra.mxu0 0.0
    %601 = vmatprep.subr.mxu0 0.0
    %602 = vmatpush2.msra.mxu0 0.0
    %603 = vmatprep.subr.mxu0 0.0
    %604 = vmatpush2.msra.mxu0 0.0
    %605 = vmatprep.mubr.f32.mxu0 0.0
    %606 = vmatmul.mubr.f32.gmra.mxu0 %v539
    %v607 = vpop.f32.mrf.mxu0
    %v608 = vadd.f32 %v535, %v607
    %v609 = vpop.f32.mrf.mxu0
    %610 = vdwg.mxu0
    %v611 = vmax.f32 %v608, 0.0
    %v612 = vld [vmem:[%s7] sm:$0xff]
    %v613 = vld [vmem:[%s7 + $0x8] sm:$0xff]
    %v614 = vld [vmem:[%s7 + $0x10] sm:$0xff]
    %v615 = vld [vmem:[%s7 + $0x18] sm:$0xff]
    %v616 = vld [vmem:[%s7 + $0x20] sm:$0xff]
    %v617 = vld [vmem:[%s7 + $0x28] sm:$0xff]
    %v618 = vld [vmem:[%s7 + $0x30] sm:$0xff]
    %v619 = vld [vmem:[%s7 + $0x38] sm:$0xff]
    %v620 = vld [vmem:[%s7 + $0x40] sm:$0xff]
    %v621 = vld [vmem:[%s7 + $0x48] sm:$0xff]
    %v622 = vld [vmem:[%s7 + $0x50] sm:$0xff]
    %v623 = vld [vmem:[%s7 + $0x58] sm:$0xff]
    %v624 = vld [vmem:[%s7 + $0x60] sm:$0xff]
    %v625 = vld [vmem:[%s7 + $0x68] sm:$0xff]
    %v626 = vld [vmem:[%s7 + $0x70] sm:$0xff]
    %v627 = vld [vmem:[%s7 + $0x78] sm:$0xff]
    %v628 = vld [vmem:[%s8] sm:$0xff]
    %v629 = vld [vmem:[%s8 + $0x8] sm:$0xff]
    %v630 = vld [vmem:[%s8 + $0x10] sm:$0xff]
    %v631 = vld [vmem:[%s8 + $0x18] sm:$0xff]
    %v632 = vld [vmem:[%s8 + $0x20] sm:$0xff]
    %v633 = vld [vmem:[%s8 + $0x28] sm:$0xff]
    %v634 = vld [vmem:[%s8 + $0x30] sm:$0xff]
    %v635 = vld [vmem:[%s8 + $0x38] sm:$0xff]
    %v636 = vld [vmem:[%s8 + $0x40] sm:$0xff]
    %v637 = vld [vmem:[%s8 + $0x48] sm:$0xff]
    %v638 = vld [vmem:[%s8 + $0x50] sm:$0xff]
    %v639 = vld [vmem:[%s8 + $0x58] sm:$0xff]
    %v640 = vld [vmem:[%s8 + $0x60] sm:$0xff]
    %v641 = vld [vmem:[%s8 + $0x68] sm:$0xff]
    %v642 = vld [vmem:[%s8 + $0x70] sm:$0xff]
    %v643 = vld [vmem:[%s8 + $0x78] sm:$0xff]
    %644 = vmatprep.subr.mxu0 0.0
    %645 = vmatpush1.msra.mxu0 %v643
    %646 = vmatprep.subr.mxu0 0.0
    %647 = vmatpush1.msra.mxu0 %v642
    %648 = vmatprep.subr.mxu0 0.0
    %649 = vmatpush1.msra.mxu0 %v641
    %650 = vmatprep.subr.mxu0 0.0
    %651 = vmatpush1.msra.mxu0 %v640
    %652 = vmatprep.subr.mxu0 0.0
    %653 = vmatpush1.msra.mxu0 %v639
    %654 = vmatprep.subr.mxu0 0.0
    %655 = vmatpush1.msra.mxu0 %v638
    %656 = vmatprep.subr.mxu0 0.0
    %657 = vmatpush1.msra.mxu0 %v637
    %658 = vmatprep.subr.mxu0 0.0
    %659 = vmatpush1.msra.mxu0 %v636
    %660 = vmatprep.subr.mxu0 0.0
    %661 = vmatpush1.msra.mxu0 %v635
    %662 = vmatprep.subr.mxu0 0.0
    %663 = vmatpush1.msra.mxu0 %v634
    %664 = vmatprep.subr.mxu0 0.0
    %665 = vmatpush1.msra.mxu0 %v633
    %666 = vmatprep.subr.mxu0 0.0
    %667 = vmatpush1.msra.mxu0 %v632
    %668 = vmatprep.subr.mxu0 0.0
    %669 = vmatpush1.msra.mxu0 %v631
    %670 = vmatprep.subr.mxu0 0.0
    %671 = vmatpush1.msra.mxu0 %v630
    %672 = vmatprep.subr.mxu0 0.0
    %673 = vmatpush1.msra.mxu0 %v629
    %674 = vmatprep.subr.mxu0 0.0
    %675 = vmatpush1.msra.mxu0 %v628
    %676 = vmatprep.subr.mxu0 0.0
    %677 = vmatpush2.msra.mxu0 0.0
    %678 = vmatprep.subr.mxu0 0.0
    %679 = vmatpush2.msra.mxu0 0.0
    %680 = vmatprep.subr.mxu0 0.0
    %681 = vmatpush2.msra.mxu0 0.0
    %682 = vmatprep.subr.mxu0 0.0
    %683 = vmatpush2.msra.mxu0 0.0
    %684 = vmatprep.subr.mxu0 0.0
    %685 = vmatpush2.msra.mxu0 0.0
    %686 = vmatprep.subr.mxu0 0.0
    %687 = vmatpush2.msra.mxu0 0.0
    %688 = vmatprep.subr.mxu0 0.0
    %689 = vmatpush2.msra.mxu0 0.0
    %690 = vmatprep.subr.mxu0 0.0
    %691 = vmatpush2.msra.mxu0 0.0
    %692 = vmatprep.subr.mxu0 0.0
    %693 = vmatpush2.msra.mxu0 0.0
    %694 = vmatprep.subr.mxu0 0.0
    %695 = vmatpush2.msra.mxu0 0.0
    %696 = vmatprep.subr.mxu0 0.0
    %697 = vmatpush2.msra.mxu0 0.0
    %698 = vmatprep.subr.mxu0 0.0
    %699 = vmatpush2.msra.mxu0 0.0
    %700 = vmatprep.subr.mxu0 0.0
    %701 = vmatpush2.msra.mxu0 0.0
    %702 = vmatprep.subr.mxu0 0.0
    %703 = vmatpush2.msra.mxu0 0.0
    %704 = vmatprep.subr.mxu0 0.0
    %705 = vmatpush2.msra.mxu0 0.0
    %706 = vmatprep.subr.mxu0 0.0
    %707 = vmatpush2.msra.mxu0 0.0
    %708 = vmatprep.mubr.f32.mxu0 0.0
    %709 = vmatmul.mubr.f32.gmra.mxu0 %v611
    %v710 = vpop.f32.mrf.mxu0
    %v711 = vadd.f32 0.0, %v710
    %v712 = vpop.f32.mrf.mxu0
    %713 = vdwg.mxu0
    %714 = vmatprep.subr.mxu0 0.0
    %715 = vmatpush1.msra.mxu0 %v627
    %716 = vmatprep.subr.mxu0 0.0
    %717 = vmatpush1.msra.mxu0 %v626
    %718 = vmatprep.subr.mxu0 0.0
    %719 = vmatpush1.msra.mxu0 %v625
    %720 = vmatprep.subr.mxu0 0.0
    %721 = vmatpush1.msra.mxu0 %v624
    %722 = vmatprep.subr.mxu0 0.0
    %723 = vmatpush1.msra.mxu0 %v623
    %724 = vmatprep.subr.mxu0 0.0
    %725 = vmatpush1.msra.mxu0 %v622
    %726 = vmatprep.subr.mxu0 0.0
    %727 = vmatpush1.msra.mxu0 %v621
    %728 = vmatprep.subr.mxu0 0.0
    %729 = vmatpush1.msra.mxu0 %v620
    %730 = vmatprep.subr.mxu0 0.0
    %731 = vmatpush1.msra.mxu0 %v619
    %732 = vmatprep.subr.mxu0 0.0
    %733 = vmatpush1.msra.mxu0 %v618
    %734 = vmatprep.subr.mxu0 0.0
    %735 = vmatpush1.msra.mxu0 %v617
    %736 = vmatprep.subr.mxu0 0.0
    %737 = vmatpush1.msra.mxu0 %v616
    %738 = vmatprep.subr.mxu0 0.0
    %739 = vmatpush1.msra.mxu0 %v615
    %740 = vmatprep.subr.mxu0 0.0
    %741 = vmatpush1.msra.mxu0 %v614
    %742 = vmatprep.subr.mxu0 0.0
    %743 = vmatpush1.msra.mxu0 %v613
    %744 = vmatprep.subr.mxu0 0.0
    %745 = vmatpush1.msra.mxu0 %v612
    %746 = vmatprep.subr.mxu0 0.0
    %747 = vmatpush2.msra.mxu0 0.0
    %748 = vmatprep.subr.mxu0 0.0
    %749 = vmatpush2.msra.mxu0 0.0
    %750 = vmatprep.subr.mxu0 0.0
    %751 = vmatpush2.msra.mxu0 0.0
    %752 = vmatprep.subr.mxu0 0.0
    %753 = vmatpush2.msra.mxu0 0.0
    %754 = vmatprep.subr.mxu0 0.0
    %755 = vmatpush2.msra.mxu0 0.0
    %756 = vmatprep.subr.mxu0 0.0
    %757 = vmatpush2.msra.mxu0 0.0
    %758 = vmatprep.subr.mxu0 0.0
    %759 = vmatpush2.msra.mxu0 0.0
    %760 = vmatprep.subr.mxu0 0.0
    %761 = vmatpush2.msra.mxu0 0.0
    %762 = vmatprep.subr.mxu0 0.0
    %763 = vmatpush2.msra.mxu0 0.0
    %764 = vmatprep.subr.mxu0 0.0
    %765 = vmatpush2.msra.mxu0 0.0
    %766 = vmatprep.subr.mxu0 0.0
    %767 = vmatpush2.msra.mxu0 0.0
    %768 = vmatprep.subr.mxu0 0.0
    %769 = vmatpush2.msra.mxu0 0.0
    %770 = vmatprep.subr.mxu0 0.0
    %771 = vmatpush2.msra.mxu0 0.0
    %772 = vmatprep.subr.mxu0 0.0
    %773 = vmatpush2.msra.mxu0 0.0
    %774 = vmatprep.subr.mxu0 0.0
    %775 = vmatpush2.msra.mxu0 0.0
    %776 = vmatprep.subr.mxu0 0.0
    %777 = vmatpush2.msra.mxu0 0.0
    %778 = vmatprep.mubr.f32.mxu0 0.0
    %779 = vmatmul.mubr.f32.gmra.mxu0 %v524
    %v780 = vpop.f32.mrf.mxu0
    %v781 = vadd.f32 %v711, %v780
    %v782 = vpop.f32.mrf.mxu0
    %783 = vdwg.mxu0
    %v784 = vld [vmem:[%s9] sm:$0x1]
    %v786 = vlaneseq
    %v787 = vshrl.u32 %v786, 7
    %v788 = vsub.s32 0, %v787
    %v789 = vrot.slane %v784, %v788
    %v791 = vadd.f32 %v781, %v789
    %v792 = vld [vmem:[#allocation2] sm:$0x3]
    %v793 = vld [vmem:[%s10] sm:$0xff]
    %v794 = vld [vmem:[%s10 + $0x8] sm:$0xff]
    %v795 = vld [vmem:[%s10 + $0x10] sm:$0xff]
    %v796 = vld [vmem:[%s10 + $0x18] sm:$0xff]
    %v797 = vld [vmem:[%s11] sm:$0x1]
    %v799 = vlaneseq
    %v800 = vshrl.u32 %v799, 7
    %v801 = vsub.s32 0, %v800
    %v802 = vrot.slane %v797, %v801
    %v805 = vsel %vm537, %v792, 0
    %807 = vmatprep.subr.mxu0 0.0
    %808 = vmatpush1.msra.mxu0 0.0
    %809 = vmatprep.subr.mxu0 0.0
    %810 = vmatpush1.msra.mxu0 0.0
    %811 = vmatprep.subr.mxu0 0.0
    %812 = vmatpush1.msra.mxu0 0.0
    %813 = vmatprep.subr.mxu0 0.0
    %814 = vmatpush1.msra.mxu0 0.0
    %815 = vmatprep.subr.mxu0 0.0
    %816 = vmatpush1.msra.mxu0 0.0
    %817 = vmatprep.subr.mxu0 0.0
    %818 = vmatpush1.msra.mxu0 0.0
    %819 = vmatprep.subr.mxu0 0.0
    %820 = vmatpush1.msra.mxu0 0.0
    %821 = vmatprep.subr.mxu0 0.0
    %822 = vmatpush1.msra.mxu0 0.0
    %823 = vmatprep.subr.mxu0 0.0
    %824 = vmatpush1.msra.mxu0 0.0
    %825 = vmatprep.subr.mxu0 0.0
    %826 = vmatpush1.msra.mxu0 0.0
    %827 = vmatprep.subr.mxu0 0.0
    %828 = vmatpush1.msra.mxu0 0.0
    %829 = vmatprep.subr.mxu0 0.0
    %830 = vmatpush1.msra.mxu0 0.0
    %831 = vmatprep.subr.mxu0 0.0
    %832 = vmatpush1.msra.mxu0 %v796
    %833 = vmatprep.subr.mxu0 0.0
    %834 = vmatpush1.msra.mxu0 %v795
    %835 = vmatprep.subr.mxu0 0.0
    %836 = vmatpush1.msra.mxu0 %v794
    %837 = vmatprep.subr.mxu0 0.0
    %838 = vmatpush1.msra.mxu0 %v793
    %839 = vmatprep.subr.mxu0 0.0
    %840 = vmatpush2.msra.mxu0 0.0
    %841 = vmatprep.subr.mxu0 0.0
    %842 = vmatpush2.msra.mxu0 0.0
    %843 = vmatprep.subr.mxu0 0.0
    %844 = vmatpush2.msra.mxu0 0.0
    %845 = vmatprep.subr.mxu0 0.0
    %846 = vmatpush2.msra.mxu0 0.0
    %847 = vmatprep.subr.mxu0 0.0
    %848 = vmatpush2.msra.mxu0 0.0
    %849 = vmatprep.subr.mxu0 0.0
    %850 = vmatpush2.msra.mxu0 0.0
    %851 = vmatprep.subr.mxu0 0.0
    %852 = vmatpush2.msra.mxu0 0.0
    %853 = vmatprep.subr.mxu0 0.0
    %854 = vmatpush2.msra.mxu0 0.0
    %855 = vmatprep.subr.mxu0 0.0
    %856 = vmatpush2.msra.mxu0 0.0
    %857 = vmatprep.subr.mxu0 0.0
    %858 = vmatpush2.msra.mxu0 0.0
    %859 = vmatprep.subr.mxu0 0.0
    %860 = vmatpush2.msra.mxu0 0.0
    %861 = vmatprep.subr.mxu0 0.0
    %862 = vmatpush2.msra.mxu0 0.0
    %863 = vmatprep.subr.mxu0 0.0
    %864 = vmatpush2.msra.mxu0 0.0
    %865 = vmatprep.subr.mxu0 0.0
    %866 = vmatpush2.msra.mxu0 0.0
    %867 = vmatprep.subr.mxu0 0.0
    %868 = vmatpush2.msra.mxu0 0.0
    %869 = vmatprep.subr.mxu0 0.0
    %870 = vmatpush2.msra.mxu0 0.0
    %871 = vmatprep.mubr.f32.mxu0 0.0
    %872 = vmatmul.mubr.f32.gmra.mxu0 %v805
    %v873 = vpop.f32.mrf.mxu0
    %v874 = vadd.f32 %v802, %v873
    %v875 = vpop.f32.mrf.mxu0
    %876 = vdwg.mxu0
    %v877 = vadd.f32 %v791, %v874
    %v878 = vxor.u32 %v877, 2147483648
    %v879 = vmul.f32 %v878, 1.442695
    %v880 = vpow.pop %v879
    %v881 = vadd.f32 %v880, 1.0
    %v882 = vrcp.pop %v881
    %v883 = vmul.f32 1.0, %v882
    %885 = vrot.lane.b32.xlu0 %v874, 64
    %v886 = vpop.permute.xlu0 %885
    %v888 = vmul.f32 %v883, %v886
    %890 = vrot.lane.b32.xlu0 %v888, 64
    %v891 = vpop.permute.xlu0 %890
    %v893 = vadd.f32 %v791, %v891
    %v894 = vtanh.pop %v893
    %v895 = vsub.f32 1.0, %v883
    %897 = vrot.lane.b32.xlu0 %v894, 96
    %v898 = vpop.permute.xlu0 %897
    %v900 = vmul.f32 %v895, %v898
    %901 = vrot.lane.b32.xlu0 %v792, 32
    %v902 = vpop.permute.xlu0 %901
    %v904 = vmul.f32 %v883, %v902
    %v905 = vadd.f32 %v900, %v904
    %907 = vrot.lane.b32.xlu0 %v905, 96
    %v908 = vpop.permute.xlu0 %907
    %vm910 = vcmask 254976
    %911 = vst.msk [vmem:[#allocation6] sm:$0x3] %vm910, %v908
    %v912 = vld [vmem:[%s12] sm:$0xff]
    %v913 = vld [vmem:[%s12 + $0x8] sm:$0xff]
    %v914 = vld [vmem:[%s12 + $0x10] sm:$0xff]
    %v915 = vld [vmem:[%s12 + $0x18] sm:$0xff]
    %v916 = vld [vmem:[%s13] sm:$0x1]
    %v918 = vlaneseq
    %v919 = vshrl.u32 %v918, 7
    %v920 = vsub.s32 0, %v919
    %v921 = vrot.slane %v916, %v920
    %v923 = vsel %vm537, %v908, 0
    %925 = vmatprep.subr.mxu0 0.0
    %926 = vmatpush1.msra.mxu0 0.0
    %927 = vmatprep.subr.mxu0 0.0
    %928 = vmatpush1.msra.mxu0 0.0
    %929 = vmatprep.subr.mxu0 0.0
    %930 = vmatpush1.msra.mxu0 0.0
    %931 = vmatprep.subr.mxu0 0.0
    %932 = vmatpush1.msra.mxu0 0.0
    %933 = vmatprep.subr.mxu0 0.0
    %934 = vmatpush1.msra.mxu0 0.0
    %935 = vmatprep.subr.mxu0 0.0
    %936 = vmatpush1.msra.mxu0 0.0
    %937 = vmatprep.subr.mxu0 0.0
    %938 = vmatpush1.msra.mxu0 0.0
    %939 = vmatprep.subr.mxu0 0.0
    %940 = vmatpush1.msra.mxu0 0.0
    %941 = vmatprep.subr.mxu0 0.0
    %942 = vmatpush1.msra.mxu0 0.0
    %943 = vmatprep.subr.mxu0 0.0
    %944 = vmatpush1.msra.mxu0 0.0
    %945 = vmatprep.subr.mxu0 0.0
    %946 = vmatpush1.msra.mxu0 0.0
    %947 = vmatprep.subr.mxu0 0.0
    %948 = vmatpush1.msra.mxu0 0.0
    %949 = vmatprep.subr.mxu0 0.0
    %950 = vmatpush1.msra.mxu0 %v915
    %951 = vmatprep.subr.mxu0 0.0
    %952 = vmatpush1.msra.mxu0 %v914
    %953 = vmatprep.subr.mxu0 0.0
    %954 = vmatpush1.msra.mxu0 %v913
    %955 = vmatprep.subr.mxu0 0.0
    %956 = vmatpush1.msra.mxu0 %v912
    %957 = vmatprep.subr.mxu0 0.0
    %958 = vmatpush2.msra.mxu0 0.0
    %959 = vmatprep.subr.mxu0 0.0
    %960 = vmatpush2.msra.mxu0 0.0
    %961 = vmatprep.subr.mxu0 0.0
    %962 = vmatpush2.msra.mxu0 0.0
    %963 = vmatprep.subr.mxu0 0.0
    %964 = vmatpush2.msra.mxu0 0.0
    %965 = vmatprep.subr.mxu0 0.0
    %966 = vmatpush2.msra.mxu0 0.0
    %967 = vmatprep.subr.mxu0 0.0
    %968 = vmatpush2.msra.mxu0 0.0
    %969 = vmatprep.subr.mxu0 0.0
    %970 = vmatpush2.msra.mxu0 0.0
    %971 = vmatprep.subr.mxu0 0.0
    %972 = vmatpush2.msra.mxu0 0.0
    %973 = vmatprep.subr.mxu0 0.0
    %974 = vmatpush2.msra.mxu0 0.0
    %975 = vmatprep.subr.mxu0 0.0
    %976 = vmatpush2.msra.mxu0 0.0
    %977 = vmatprep.subr.mxu0 0.0
    %978 = vmatpush2.msra.mxu0 0.0
    %979 = vmatprep.subr.mxu0 0.0
    %980 = vmatpush2.msra.mxu0 0.0
    %981 = vmatprep.subr.mxu0 0.0
    %982 = vmatpush2.msra.mxu0 0.0
    %983 = vmatprep.subr.mxu0 0.0
    %984 = vmatpush2.msra.mxu0 0.0
    %985 = vmatprep.subr.mxu0 0.0
    %986 = vmatpush2.msra.mxu0 0.0
    %987 = vmatprep.subr.mxu0 0.0
    %988 = vmatpush2.msra.mxu0 0.0
    %989 = vmatprep.mubr.f32.mxu0 0.0
    %990 = vmatmul.mubr.f32.gmra.mxu0 %v923
    %v991 = vpop.f32.mrf.mxu0
    %v992 = vadd.f32 %v921, %v991
    %v993 = vpop.f32.mrf.mxu0
    %994 = vdwg.mxu0
    %vm995 = vcmask 115712
    %996 = vst.msk [vmem:[#allocation5] sm:$0x3] %vm995, %v992
    // Predicated region
    $region62: #{rnn_agent_forward.3} parent=1 // pred_check
      _
    $region63: #{rnn_agent_forward.3} parent=1 // pred_check_branch
      %998 = sbr.rel (0) target = $region65
    $region64: #{rnn_agent_forward.3} parent=1 // pred_region
      %s1000 = ssub.s32 32, 32
      %1001 = vsyncadd [#allocation4], %s1000
      %s1003 = sshll.u32 [#allocation5], 4
      %s1004 = int_to_ptr.vmem [resolvable:$true] %s1003
      %1006 = dma.vmem_to_hbm [thread:$0]  %s1004, 32, %s14, [#allocation4]
    $region65: #{rnn_agent_forward.3} parent=1 // pred_fallthru
      _
    // Predicated region
    $region66: #{rnn_agent_forward.3} parent=1 // pred_check
      _
    $region67: #{rnn_agent_forward.3} parent=1 // pred_check_branch
      %1008 = sbr.rel (0) target = $region69
    $region68: #{rnn_agent_forward.3} parent=1 // pred_region
      %s1010 = ssub.s32 32, 32
      %1011 = vsyncadd [#allocation7], %s1010
      %s1013 = sshll.u32 [#allocation6], 4
      %s1014 = int_to_ptr.vmem [resolvable:$true] %s1013
      %1016 = dma.vmem_to_hbm [thread:$0]  %s1014, 32, %s15, [#allocation7]
    $region69: #{rnn_agent_forward.3} parent=1 // pred_fallthru
      _
    // Predicated region
    $region70: #{rnn_agent_forward.3} parent=1 // pred_check
      _
    $region71: #{rnn_agent_forward.3} parent=1 // pred_check_branch
      %1018 = sbr.rel (0) target = $region73
    $region72: #{rnn_agent_forward.3} parent=1 // pred_region
      %1019 = dma.done [#allocation4], 32
    $region73: #{rnn_agent_forward.3} parent=1 // pred_fallthru
      _
    // Predicated region
    $region74: #{rnn_agent_forward.3} parent=1 // pred_check
      _
    $region75: #{rnn_agent_forward.3} parent=1 // pred_check_branch
      %1021 = sbr.rel (0) target = $region77
    $region76: #{rnn_agent_forward.3} parent=1 // pred_region
      %1022 = dma.done [#allocation7], 32
    $region77: #{rnn_agent_forward.3} parent=1 // pred_fallthru
      _
    %1023 = vsyncpa [#allocation3], 1
    %1024 = vsyncpa [#allocation4], 1
    %1025 = vsyncpa [#allocation7], 1

// kernel: rnn_agent_forward.2
$region0: #{rnn_agent_forward.2}
  #allocation0 [shape = 'u32[]', space=smem, size = 0x4, offset = 0x4, fixed_abs, tag = 'smem constant byte address 0x4 - core index']
  #allocation1 [shape = 'u32[144,128]{1,0:T(1,128)}', space=vmem, size = 0x12000, scoped, tag = 'internal scratch']
  #allocation2 [shape = 'f32[372,32]{1,0:T(8,128)}', space=vmem, size = 0x2f000, scoped, tag = 'scratch operand']
  %s0 = inlined_call_operand.vmem [shape: f32[2,372,4], index: 0, kind: input, shape index: {}]
  %s1 = inlined_call_operand.vmem [shape: f32[9,4,32], index: 1, kind: input, shape index: {}]
  %s2 = inlined_call_operand.vmem [shape: f32[1,32], index: 2, kind: input, shape index: {}]
  %s3 = inlined_call_operand.vmem [shape: f32[9,32,64], index: 3, kind: input, shape index: {}]
  %s4 = inlined_call_operand.vmem [shape: f32[1,64], index: 4, kind: input, shape index: {}]
  %s5 = inlined_call_operand.vmem [shape: f32[324,1], index: 5, kind: input, shape index: {}]
  %s6 = inlined_call_operand.vmem [shape: f32[16,324], index: 6, kind: input, shape index: {}]
  %s7 = inlined_call_operand.vmem [shape: f32[2,16,64], index: 7, kind: output, shape index: {}]
  %s8 = sld [smem:[#allocation0]]
  $region61: #{rnn_agent_forward.2} parent=0
    _
  %s10 = ssub.s32 1, %s8
  %s11 = scalar_select 0, %s10, %s8
  loop: start=0, step=1, limit=4
  $region2: #{rnn_agent_forward.2} parent=0 // loop_pre_header
    _
  $region3: #{rnn_agent_forward.2} parent=0 // loop_header
    %s13 = sphi 0, %s17
    %p14 = scmp.ge.s32.totalorder %s13, 4
    %s23 = sphi 0, %s25
    %s26 = sphi 0, %s23
    %s27 = sphi 0, %s26
    %s43 = sphi 0, %s27
    %s47 = sphi 0, %s47
    %s49 = sphi 0, %s47
    %s50 = sphi 0, %s49
    %s64 = sphi 0, %s50
    %s68 = sphi 0, %s68
    %s70 = sphi 0, %s68
    %s71 = sphi 0, %s70
    %s85 = sphi 0, %s71
    %s89 = sphi 0, %s89
    %s91 = sphi 0, %s89
    %s92 = sphi 0, %s91
    %s106 = sphi 0, %s92
    %s110 = sphi 0, %s110
    %s112 = sphi 0, %s110
    %s113 = sphi 0, %s112
    %s127 = sphi 0, %s113
    %s131 = sphi 0, %s131
    %s133 = sphi 0, %s131
    %s134 = sphi 0, %s133
    %s148 = sphi 0, %s134
    %s152 = sphi 0, %s152
    %s154 = sphi 0, %s152
    %s155 = sphi 0, %s154
    %s169 = sphi 0, %s155
    %s175 = sphi 0, %s177
    %s178 = sphi 0, %s175
    %s179 = sphi 0, %s178
    %s195 = sphi 0, %s179
  $region4: #{rnn_agent_forward.2} parent=0 // loop_header_branch
    %16 = sbr.rel (%p14) target = $region8
  $region5: #{rnn_agent_forward.2} parent=0 // loop_body
    %s18 = ssub.s32 %s13, 1
    %s19 = ssub.s32 %s13, 2
    %s20 = sadd.s32 %s13, 1
    %s21 = ssub.s32 %s13, %s20
    %p22 = scmp.eq.s32.totalorder %s21, 0
    %s24 = sadd.s32 %s23, 1
    %s25 = scalar_select %p22, %s23, %s24
    %p28 = pneg %p22
    %p29 = scmp.eq.s32.totalorder %s13, 1
    %p30 = por %p28, %p29
    %p31 = scmp.ne.s32.totalorder %s23, %s26
    %p32 = scmp.eq.s32.totalorder %s13, 0
    %p33 = por %p31, %p32
    %p34 = scmp.ne.s32.totalorder %s23, %s26
    %p35 = scmp.eq.s32.totalorder %s18, 1
    %p36 = por %p34, %p35
    %p37 = scmp.ne.s32.totalorder %s26, %s27
    %p38 = scmp.eq.s32.totalorder %s18, 0
    %p39 = por %p37, %p38
    %p40 = scmp.ne.s32.totalorder %s26, %s27
    %p41 = scmp.eq.s32.totalorder %s19, 1
    %p42 = por %p40, %p41
    %p44 = scmp.ne.s32.totalorder %s27, %s43
    %p45 = scmp.eq.s32.totalorder %s19, 0
    %p46 = por %p44, %p45
    %s48 = sadd.s32 %s47, 1
    %p51 = scmp.eq.s32.totalorder %s13, 1
    %p52 = scmp.ne.s32.totalorder %s47, %s49
    %p53 = scmp.eq.s32.totalorder %s13, 0
    %p54 = por %p52, %p53
    %p55 = scmp.ne.s32.totalorder %s47, %s49
    %p56 = scmp.eq.s32.totalorder %s18, 1
    %p57 = por %p55, %p56
    %p58 = scmp.ne.s32.totalorder %s49, %s50
    %p59 = scmp.eq.s32.totalorder %s18, 0
    %p60 = por %p58, %p59
    %p61 = scmp.ne.s32.totalorder %s49, %s50
    %p62 = scmp.eq.s32.totalorder %s19, 1
    %p63 = por %p61, %p62
    %p65 = scmp.ne.s32.totalorder %s50, %s64
    %p66 = scmp.eq.s32.totalorder %s19, 0
    %p67 = por %p65, %p66
    %s69 = sadd.s32 %s68, 1
    %p72 = scmp.eq.s32.totalorder %s13, 1
    %p73 = scmp.ne.s32.totalorder %s68, %s70
    %p74 = scmp.eq.s32.totalorder %s13, 0
    %p75 = por %p73, %p74
    %p76 = scmp.ne.s32.totalorder %s68, %s70
    %p77 = scmp.eq.s32.totalorder %s18, 1
    %p78 = por %p76, %p77
    %p79 = scmp.ne.s32.totalorder %s70, %s71
    %p80 = scmp.eq.s32.totalorder %s18, 0
    %p81 = por %p79, %p80
    %p82 = scmp.ne.s32.totalorder %s70, %s71
    %p83 = scmp.eq.s32.totalorder %s19, 1
    %p84 = por %p82, %p83
    %p86 = scmp.ne.s32.totalorder %s71, %s85
    %p87 = scmp.eq.s32.totalorder %s19, 0
    %p88 = por %p86, %p87
    %s90 = sadd.s32 %s89, 1
    %p93 = scmp.eq.s32.totalorder %s13, 1
    %p94 = scmp.ne.s32.totalorder %s89, %s91
    %p95 = scmp.eq.s32.totalorder %s13, 0
    %p96 = por %p94, %p95
    %p97 = scmp.ne.s32.totalorder %s89, %s91
    %p98 = scmp.eq.s32.totalorder %s18, 1
    %p99 = por %p97, %p98
    %p100 = scmp.ne.s32.totalorder %s91, %s92
    %p101 = scmp.eq.s32.totalorder %s18, 0
    %p102 = por %p100, %p101
    %p103 = scmp.ne.s32.totalorder %s91, %s92
    %p104 = scmp.eq.s32.totalorder %s19, 1
    %p105 = por %p103, %p104
    %p107 = scmp.ne.s32.totalorder %s92, %s106
    %p108 = scmp.eq.s32.totalorder %s19, 0
    %p109 = por %p107, %p108
    %s111 = sadd.s32 %s110, 1
    %p114 = scmp.eq.s32.totalorder %s13, 1
    %p115 = scmp.ne.s32.totalorder %s110, %s112
    %p116 = scmp.eq.s32.totalorder %s13, 0
    %p117 = por %p115, %p116
    %p118 = scmp.ne.s32.totalorder %s110, %s112
    %p119 = scmp.eq.s32.totalorder %s18, 1
    %p120 = por %p118, %p119
    %p121 = scmp.ne.s32.totalorder %s112, %s113
    %p122 = scmp.eq.s32.totalorder %s18, 0
    %p123 = por %p121, %p122
    %p124 = scmp.ne.s32.totalorder %s112, %s113
    %p125 = scmp.eq.s32.totalorder %s19, 1
    %p126 = por %p124, %p125
    %p128 = scmp.ne.s32.totalorder %s113, %s127
    %p129 = scmp.eq.s32.totalorder %s19, 0
    %p130 = por %p128, %p129
    %s132 = sadd.s32 %s131, 1
    %p135 = scmp.eq.s32.totalorder %s13, 1
    %p136 = scmp.ne.s32.totalorder %s131, %s133
    %p137 = scmp.eq.s32.totalorder %s13, 0
    %p138 = por %p136, %p137
    %p139 = scmp.ne.s32.totalorder %s131, %s133
    %p140 = scmp.eq.s32.totalorder %s18, 1
    %p141 = por %p139, %p140
    %p142 = scmp.ne.s32.totalorder %s133, %s134
    %p143 = scmp.eq.s32.totalorder %s18, 0
    %p144 = por %p142, %p143
    %p145 = scmp.ne.s32.totalorder %s133, %s134
    %p146 = scmp.eq.s32.totalorder %s19, 1
    %p147 = por %p145, %p146
    %p149 = scmp.ne.s32.totalorder %s134, %s148
    %p150 = scmp.eq.s32.totalorder %s19, 0
    %p151 = por %p149, %p150
    %s153 = sadd.s32 %s152, 1
    %p156 = scmp.eq.s32.totalorder %s13, 1
    %p157 = scmp.ne.s32.totalorder %s152, %s154
    %p158 = scmp.eq.s32.totalorder %s13, 0
    %p159 = por %p157, %p158
    %p160 = scmp.ne.s32.totalorder %s152, %s154
    %p161 = scmp.eq.s32.totalorder %s18, 1
    %p162 = por %p160, %p161
    %p163 = scmp.ne.s32.totalorder %s154, %s155
    %p164 = scmp.eq.s32.totalorder %s18, 0
    %p165 = por %p163, %p164
    %p166 = scmp.ne.s32.totalorder %s154, %s155
    %p167 = scmp.eq.s32.totalorder %s19, 1
    %p168 = por %p166, %p167
    %p170 = scmp.ne.s32.totalorder %s155, %s169
    %p171 = scmp.eq.s32.totalorder %s19, 0
    %p172 = por %p170, %p171
    %s173 = ssub.s32 %s13, %s20
    %p174 = scmp.eq.s32.totalorder %s173, 0
    %s176 = sadd.s32 %s175, 1
    %s177 = scalar_select %p174, %s175, %s176
    %p180 = pneg %p174
    %p181 = scmp.eq.s32.totalorder %s13, 1
    %p182 = por %p180, %p181
    %p183 = scmp.ne.s32.totalorder %s175, %s178
    %p184 = scmp.eq.s32.totalorder %s13, 0
    %p185 = por %p183, %p184
    %p186 = scmp.ne.s32.totalorder %s175, %s178
    %p187 = scmp.eq.s32.totalorder %s18, 1
    %p188 = por %p186, %p187
    %p189 = scmp.ne.s32.totalorder %s178, %s179
    %p190 = scmp.eq.s32.totalorder %s18, 0
    %p191 = por %p189, %p190
    %p192 = scmp.ne.s32.totalorder %s178, %s179
    %p193 = scmp.eq.s32.totalorder %s19, 1
    %p194 = por %p192, %p193
    %p196 = scmp.ne.s32.totalorder %s179, %s195
    %p197 = scmp.eq.s32.totalorder %s19, 0
    %p198 = por %p196, %p197
    %p199 = scmp.le.s32.totalorder 1, %s13
    %p200 = scmp.lt.s32.totalorder %s13, 3
    %p201 = pnand %p199, %p200
    %p202 = pneg %p201
    // Predicated region
    $region9: #{rnn_agent_forward.2} parent=5 // pred_check
      _
    $region10: #{rnn_agent_forward.2} parent=5 // pred_check_branch
      %204 = sbr.rel (%p201) target = $region12
    $region11: #{rnn_agent_forward.2} parent=5 // pred_region
      %s205 = ssub.s32 %s13, 1
      // Predicated region
      $region13: #{rnn_agent_forward.2} parent=11 // pred_check
        %p206 = pneg %p60
      $region14: #{rnn_agent_forward.2} parent=11 // pred_check_branch
        %208 = sbr.rel (%p206) target = $region16
      $region15: #{rnn_agent_forward.2} parent=11 // pred_region
        _
      $region16: #{rnn_agent_forward.2} parent=11 // pred_fallthru
        _
      // Predicated region
      $region17: #{rnn_agent_forward.2} parent=11 // pred_check
        %p209 = pneg %p81
      $region18: #{rnn_agent_forward.2} parent=11 // pred_check_branch
        %211 = sbr.rel (%p209) target = $region20
      $region19: #{rnn_agent_forward.2} parent=11 // pred_region
        _
      $region20: #{rnn_agent_forward.2} parent=11 // pred_fallthru
        _
      // Predicated region
      $region21: #{rnn_agent_forward.2} parent=11 // pred_check
        %p212 = pneg %p102
      $region22: #{rnn_agent_forward.2} parent=11 // pred_check_branch
        %214 = sbr.rel (%p212) target = $region24
      $region23: #{rnn_agent_forward.2} parent=11 // pred_region
        _
      $region24: #{rnn_agent_forward.2} parent=11 // pred_fallthru
        _
      // Predicated region
      $region25: #{rnn_agent_forward.2} parent=11 // pred_check
        %p215 = pneg %p123
      $region26: #{rnn_agent_forward.2} parent=11 // pred_check_branch
        %217 = sbr.rel (%p215) target = $region28
      $region27: #{rnn_agent_forward.2} parent=11 // pred_region
        _
      $region28: #{rnn_agent_forward.2} parent=11 // pred_fallthru
        _
      // Predicated region
      $region29: #{rnn_agent_forward.2} parent=11 // pred_check
        %p218 = pneg %p144
      $region30: #{rnn_agent_forward.2} parent=11 // pred_check_branch
        %220 = sbr.rel (%p218) target = $region32
      $region31: #{rnn_agent_forward.2} parent=11 // pred_region
        _
      $region32: #{rnn_agent_forward.2} parent=11 // pred_fallthru
        _
      // Predicated region
      $region33: #{rnn_agent_forward.2} parent=11 // pred_check
        %p221 = pneg %p165
      $region34: #{rnn_agent_forward.2} parent=11 // pred_check_branch
        %223 = sbr.rel (%p221) target = $region36
      $region35: #{rnn_agent_forward.2} parent=11 // pred_region
        _
      $region36: #{rnn_agent_forward.2} parent=11 // pred_fallthru
        _
    $region12: #{rnn_agent_forward.2} parent=5 // pred_fallthru
      _
    %p224 = scmp.lt.s32.totalorder %s13, 2
    // Predicated region
    $region37: #{rnn_agent_forward.2} parent=5 // pred_check
      %p225 = pneg %p224
    $region38: #{rnn_agent_forward.2} parent=5 // pred_check_branch
      %227 = sbr.rel (%p225) target = $region40
    $region39: #{rnn_agent_forward.2} parent=5 // pred_region
      // Predicated region
      $region41: #{rnn_agent_forward.2} parent=39 // pred_check
        %p228 = pneg %p33
      $region42: #{rnn_agent_forward.2} parent=39 // pred_check_branch
        %230 = sbr.rel (%p228) target = $region44
      $region43: #{rnn_agent_forward.2} parent=39 // pred_region
        %p231 = scmp.lt.s32.totalorder %s13, 1
        %s232 = scalar_select %p231, %s13, 1
        %s233 = smul.addr %s232, 47
        %s234 = smul.addr %s233, 8
        %s235 = scalar_lea.vmem %s0, %s234
      $region44: #{rnn_agent_forward.2} parent=39 // pred_fallthru
        _
    $region40: #{rnn_agent_forward.2} parent=5 // pred_fallthru
      _
    %p236 = scmp.le.s32.totalorder 1, %s13
    %p237 = scmp.lt.s32.totalorder %s13, 3
    %p238 = pnand %p236, %p237
    %p239 = pneg %p238
    // Predicated region
    $region45: #{rnn_agent_forward.2} parent=5 // pred_check
      _
    $region46: #{rnn_agent_forward.2} parent=5 // pred_check_branch
      %241 = sbr.rel (%p238) target = $region48
    $region47: #{rnn_agent_forward.2} parent=5 // pred_region
      %s242 = ssub.s32 %s13, 1
      %p243 = scmp.lt.s32.totalorder %s18, 1
      %s244 = scalar_select %p243, %s18, 1
      %s245 = smul.addr %s244, 47
      %s246 = smul.addr %s245, 8
      %s247 = scalar_lea.vmem %s0, %s246
      %p248 = pneg %p39
      %p249 = pneg %p36
      %p250 = pneg %p60
      %p251 = pneg %p57
      %p252 = pneg %p81
      %p253 = pneg %p78
      %p254 = pneg %p102
      %p255 = pneg %p99
      %p256 = pneg %p123
      %p257 = pneg %p120
      %p258 = pneg %p144
      %p259 = pneg %p141
      %p260 = pneg %p165
      %p261 = pneg %p162
      %p262 = pneg %p191
      %p263 = pneg %p188
      %p264 = scmp.lt.s32.totalorder %s18, 1
      %s265 = scalar_select %p264, %s18, 1
      %s266 = smul.addr %s265, 2
      %s267 = smul.addr %s266, 8
      %s268 = scalar_lea.vmem %s7, %s267
      %p269 = scmp.lt.s32.totalorder %s18, 1
      %s270 = scalar_select %p269, %s18, 1
      %s271 = smul.addr %s270, 47
      %s272 = smul.addr %s271, 8
      %s273 = scalar_lea.vmem %s0, %s272
      %p274 = scmp.lt.s32.totalorder %s18, 1
      %s275 = scalar_select %p274, %s18, 1
      %s276 = smul.addr %s275, 2
      %s277 = smul.addr %s276, 8
      %s278 = scalar_lea.vmem %s7, %s277
      %v279 = vld [vmem:[%s273 + $0x5] sm:$0xff]
      %v280 = vld [vmem:[%s273 + $0xd] sm:$0xff]
      %v281 = vld [vmem:[%s273 + $0x15] sm:$0xff]
      %v282 = vld [vmem:[%s273 + $0x1d] sm:$0xff]
      %v283 = vld [vmem:[%s273 + $0x25] sm:$0xff]
      %v284 = vld [vmem:[%s273 + $0x2d] sm:$0xff]
      %v285 = vld [vmem:[%s273 + $0x35] sm:$0xff]
      %v286 = vld [vmem:[%s273 + $0x3d] sm:$0xff]
      %v287 = vld [vmem:[%s273 + $0x45] sm:$0xff]
      %v288 = vld [vmem:[%s273 + $0x4d] sm:$0xff]
      %v289 = vld [vmem:[%s273 + $0x55] sm:$0xff]
      %v290 = vld [vmem:[%s273 + $0x5d] sm:$0xff]
      %v291 = vld [vmem:[%s273 + $0x65] sm:$0xff]
      %v292 = vld [vmem:[%s273 + $0x6d] sm:$0xff]
      %v293 = vld [vmem:[%s273 + $0x75] sm:$0xff]
      %v294 = vld [vmem:[%s273 + $0x7d] sm:$0xff]
      %v295 = vld [vmem:[%s273 + $0x85] sm:$0xff]
      %v296 = vld [vmem:[%s273 + $0x8d] sm:$0xff]
      %v297 = vld [vmem:[%s273 + $0x95] sm:$0xff]
      %v298 = vld [vmem:[%s273 + $0x9d] sm:$0xff]
      %v299 = vld [vmem:[%s273 + $0xa5] sm:$0xff]
      %v300 = vld [vmem:[%s273 + $0xad] sm:$0xff]
      %v301 = vld [vmem:[%s273 + $0xb5] sm:$0xff]
      %v302 = vld [vmem:[%s273 + $0xbd] sm:$0xff]
      %v303 = vld [vmem:[%s273 + $0xc5] sm:$0xff]
      %v304 = vld [vmem:[%s273 + $0xcd] sm:$0xff]
      %v305 = vld [vmem:[%s273 + $0xd5] sm:$0xff]
      %v306 = vld [vmem:[%s273 + $0xdd] sm:$0xff]
      %v307 = vld [vmem:[%s273 + $0xe5] sm:$0xff]
      %v308 = vld [vmem:[%s273 + $0xed] sm:$0xff]
      %v309 = vld [vmem:[%s273 + $0xf5] sm:$0xff]
      %v310 = vld [vmem:[%s273 + $0xfd] sm:$0xff]
      %v311 = vld [vmem:[%s273 + $0x105] sm:$0xff]
      %v312 = vld [vmem:[%s273 + $0x10d] sm:$0xff]
      %v313 = vld [vmem:[%s273 + $0x115] sm:$0xff]
      %v314 = vld [vmem:[%s273 + $0x11d] sm:$0xff]
      %v315 = vld [vmem:[%s273 + $0x125] sm:$0xff]
      %v316 = vld [vmem:[%s273 + $0x12d] sm:$0xff]
      %v317 = vld [vmem:[%s273 + $0x135] sm:$0xff]
      %v318 = vld [vmem:[%s273 + $0x13d] sm:$0xff]
      %v319 = vld [vmem:[%s273 + $0x145] sm:$0xf]
      %v320 = vld [vmem:[%s1] sm:$0xf]
      %v321 = vld [vmem:[%s273 + $0x6] sm:$0xff]
      %v322 = vld [vmem:[%s273 + $0xe] sm:$0xff]
      %v323 = vld [vmem:[%s273 + $0x16] sm:$0xff]
      %v324 = vld [vmem:[%s273 + $0x1e] sm:$0xff]
      %v325 = vld [vmem:[%s273 + $0x26] sm:$0xff]
      %v326 = vld [vmem:[%s273 + $0x2e] sm:$0xff]
      %v327 = vld [vmem:[%s273 + $0x36] sm:$0xff]
      %v328 = vld [vmem:[%s273 + $0x3e] sm:$0xff]
      %v329 = vld [vmem:[%s273 + $0x46] sm:$0xff]
      %v330 = vld [vmem:[%s273 + $0x4e] sm:$0xff]
      %v331 = vld [vmem:[%s273 + $0x56] sm:$0xff]
      %v332 = vld [vmem:[%s273 + $0x5e] sm:$0xff]
      %v333 = vld [vmem:[%s273 + $0x66] sm:$0xff]
      %v334 = vld [vmem:[%s273 + $0x6e] sm:$0xff]
      %v335 = vld [vmem:[%s273 + $0x76] sm:$0xff]
      %v336 = vld [vmem:[%s273 + $0x7e] sm:$0xff]
      %v337 = vld [vmem:[%s273 + $0x86] sm:$0xff]
      %v338 = vld [vmem:[%s273 + $0x8e] sm:$0xff]
      %v339 = vld [vmem:[%s273 + $0x96] sm:$0xff]
      %v340 = vld [vmem:[%s273 + $0x9e] sm:$0xff]
      %v341 = vld [vmem:[%s273 + $0xa6] sm:$0xff]
      %v342 = vld [vmem:[%s273 + $0xae] sm:$0xff]
      %v343 = vld [vmem:[%s273 + $0xb6] sm:$0xff]
      %v344 = vld [vmem:[%s273 + $0xbe] sm:$0xff]
      %v345 = vld [vmem:[%s273 + $0xc6] sm:$0xff]
      %v346 = vld [vmem:[%s273 + $0xce] sm:$0xff]
      %v347 = vld [vmem:[%s273 + $0xd6] sm:$0xff]
      %v348 = vld [vmem:[%s273 + $0xde] sm:$0xff]
      %v349 = vld [vmem:[%s273 + $0xe6] sm:$0xff]
      %v350 = vld [vmem:[%s273 + $0xee] sm:$0xff]
      %v351 = vld [vmem:[%s273 + $0xf6] sm:$0xff]
      %v352 = vld [vmem:[%s273 + $0xfe] sm:$0xff]
      %v353 = vld [vmem:[%s273 + $0x106] sm:$0xff]
      %v354 = vld [vmem:[%s273 + $0x10e] sm:$0xff]
      %v355 = vld [vmem:[%s273 + $0x116] sm:$0xff]
      %v356 = vld [vmem:[%s273 + $0x11e] sm:$0xff]
      %v357 = vld [vmem:[%s273 + $0x126] sm:$0xff]
      %v358 = vld [vmem:[%s273 + $0x12e] sm:$0xff]
      %v359 = vld [vmem:[%s273 + $0x136] sm:$0xff]
      %v360 = vld [vmem:[%s273 + $0x13e] sm:$0xff]
      %v361 = vld [vmem:[%s273 + $0x146] sm:$0xf]
      %s362 = scalar_lea.vmem %s1, 4
      %v363 = vld [vmem:[%s362] sm:$0xf]
      %vm364 = vcmask 31744
      %v366 = vsel %vm364, %v321, 0
      %v369 = vsel %vm364, %v322, 0
      %v372 = vsel %vm364, %v323, 0
      %v375 = vsel %vm364, %v324, 0
      %v378 = vsel %vm364, %v325, 0
      %v381 = vsel %vm364, %v326, 0
      %v384 = vsel %vm364, %v327, 0
      %v387 = vsel %vm364, %v328, 0
      %v390 = vsel %vm364, %v329, 0
      %v393 = vsel %vm364, %v330, 0
      %v396 = vsel %vm364, %v331, 0
      %v399 = vsel %vm364, %v332, 0
      %v402 = vsel %vm364, %v333, 0
      %v405 = vsel %vm364, %v334, 0
      %v408 = vsel %vm364, %v335, 0
      %v411 = vsel %vm364, %v336, 0
      %v414 = vsel %vm364, %v337, 0
      %v417 = vsel %vm364, %v338, 0
      %v420 = vsel %vm364, %v339, 0
      %v423 = vsel %vm364, %v340, 0
      %v426 = vsel %vm364, %v341, 0
      %v429 = vsel %vm364, %v342, 0
      %v432 = vsel %vm364, %v343, 0
      %v435 = vsel %vm364, %v344, 0
      %v438 = vsel %vm364, %v345, 0
      %v441 = vsel %vm364, %v346, 0
      %v444 = vsel %vm364, %v347, 0
      %v447 = vsel %vm364, %v348, 0
      %v450 = vsel %vm364, %v349, 0
      %v453 = vsel %vm364, %v350, 0
      %v456 = vsel %vm364, %v351, 0
      %v459 = vsel %vm364, %v352, 0
      %v462 = vsel %vm364, %v353, 0
      %v465 = vsel %vm364, %v354, 0
      %v468 = vsel %vm364, %v355, 0
      %v471 = vsel %vm364, %v356, 0
      %v474 = vsel %vm364, %v357, 0
      %v477 = vsel %vm364, %v358, 0
      %v480 = vsel %vm364, %v359, 0
      %v483 = vsel %vm364, %v360, 0
      %v486 = vsel %vm364, %v361, 0
      %vm488 = vcmask 1043456
      %v490 = vsel %vm488, %v363, 0
      %492 = vmatprep.subr.mxu0 0.0
      %493 = vmatpush1.msra.mxu0 0.0
      %494 = vmatprep.subr.mxu0 0.0
      %495 = vmatpush1.msra.mxu0 0.0
      %496 = vmatprep.subr.mxu0 0.0
      %497 = vmatpush1.msra.mxu0 0.0
      %498 = vmatprep.subr.mxu0 0.0
      %499 = vmatpush1.msra.mxu0 0.0
      %500 = vmatprep.subr.mxu0 0.0
      %501 = vmatpush1.msra.mxu0 0.0
      %502 = vmatprep.subr.mxu0 0.0
      %503 = vmatpush1.msra.mxu0 0.0
      %504 = vmatprep.subr.mxu0 0.0
      %505 = vmatpush1.msra.mxu0 0.0
      %506 = vmatprep.subr.mxu0 0.0
      %507 = vmatpush1.msra.mxu0 0.0
      %508 = vmatprep.subr.mxu0 0.0
      %509 = vmatpush1.msra.mxu0 0.0
      %510 = vmatprep.subr.mxu0 0.0
      %511 = vmatpush1.msra.mxu0 0.0
      %512 = vmatprep.subr.mxu0 0.0
      %513 = vmatpush1.msra.mxu0 0.0
      %514 = vmatprep.subr.mxu0 0.0
      %515 = vmatpush1.msra.mxu0 0.0
      %516 = vmatprep.subr.mxu0 0.0
      %517 = vmatpush1.msra.mxu0 0.0
      %518 = vmatprep.subr.mxu0 0.0
      %519 = vmatpush1.msra.mxu0 0.0
      %520 = vmatprep.subr.mxu0 0.0
      %521 = vmatpush1.msra.mxu0 0.0
      %522 = vmatprep.subr.mxu0 0.0
      %523 = vmatpush1.msra.mxu0 %v490
      %524 = vmatprep.subr.mxu0 0.0
      %525 = vmatpush2.msra.mxu0 0.0
      %526 = vmatprep.subr.mxu0 0.0
      %527 = vmatpush2.msra.mxu0 0.0
      %528 = vmatprep.subr.mxu0 0.0
      %529 = vmatpush2.msra.mxu0 0.0
      %530 = vmatprep.subr.mxu0 0.0
      %531 = vmatpush2.msra.mxu0 0.0
      %532 = vmatprep.subr.mxu0 0.0
      %533 = vmatpush2.msra.mxu0 0.0
      %534 = vmatprep.subr.mxu0 0.0
      %535 = vmatpush2.msra.mxu0 0.0
      %536 = vmatprep.subr.mxu0 0.0
      %537 = vmatpush2.msra.mxu0 0.0
      %538 = vmatprep.subr.mxu0 0.0
      %539 = vmatpush2.msra.mxu0 0.0
      %540 = vmatprep.subr.mxu0 0.0
      %541 = vmatpush2.msra.mxu0 0.0
      %542 = vmatprep.subr.mxu0 0.0
      %543 = vmatpush2.msra.mxu0 0.0
      %544 = vmatprep.subr.mxu0 0.0
      %545 = vmatpush2.msra.mxu0 0.0
      %546 = vmatprep.subr.mxu0 0.0
      %547 = vmatpush2.msra.mxu0 0.0
      %548 = vmatprep.subr.mxu0 0.0
      %549 = vmatpush2.msra.mxu0 0.0
      %550 = vmatprep.subr.mxu0 0.0
      %551 = vmatpush2.msra.mxu0 0.0
      %552 = vmatprep.subr.mxu0 0.0
      %553 = vmatpush2.msra.mxu0 0.0
      %554 = vmatprep.subr.mxu0 0.0
      %555 = vmatpush2.msra.mxu0 0.0
      %556 = vmatprep.mubr.f32.mxu0 0.0
      %557 = vmatmul.mubr.f32.gmra.mxu0 %v366
      %v558 = vpop.f32.mrf.mxu0
      %v559 = vadd.f32 0.0, %v558
      %v560 = vpop.f32.mrf.mxu0
      %561 = vmatprep.mubr.f32.mxu0 0.0
      %562 = vmatmul.mubr.f32.gmra.mxu0 %v369
      %v563 = vpop.f32.mrf.mxu0
      %v564 = vadd.f32 0.0, %v563
      %v565 = vpop.f32.mrf.mxu0
      %566 = vmatprep.mubr.f32.mxu0 0.0
      %567 = vmatmul.mubr.f32.gmra.mxu0 %v372
      %v568 = vpop.f32.mrf.mxu0
      %v569 = vadd.f32 0.0, %v568
      %v570 = vpop.f32.mrf.mxu0
      %571 = vmatprep.mubr.f32.mxu0 0.0
      %572 = vmatmul.mubr.f32.gmra.mxu0 %v375
      %v573 = vpop.f32.mrf.mxu0
      %v574 = vadd.f32 0.0, %v573
      %v575 = vpop.f32.mrf.mxu0
      %576 = vmatprep.mubr.f32.mxu0 0.0
      %577 = vmatmul.mubr.f32.gmra.mxu0 %v378
      %v578 = vpop.f32.mrf.mxu0
      %v579 = vadd.f32 0.0, %v578
      %v580 = vpop.f32.mrf.mxu0
      %581 = vmatprep.mubr.f32.mxu0 0.0
      %582 = vmatmul.mubr.f32.gmra.mxu0 %v381
      %v583 = vpop.f32.mrf.mxu0
      %v584 = vadd.f32 0.0, %v583
      %v585 = vpop.f32.mrf.mxu0
      %586 = vmatprep.mubr.f32.mxu0 0.0
      %587 = vmatmul.mubr.f32.gmra.mxu0 %v384
      %v588 = vpop.f32.mrf.mxu0
      %v589 = vadd.f32 0.0, %v588
      %v590 = vpop.f32.mrf.mxu0
      %591 = vmatprep.mubr.f32.mxu0 0.0
      %592 = vmatmul.mubr.f32.gmra.mxu0 %v387
      %v593 = vpop.f32.mrf.mxu0
      %v594 = vadd.f32 0.0, %v593
      %v595 = vpop.f32.mrf.mxu0
      %596 = vmatprep.mubr.f32.mxu0 0.0
      %597 = vmatmul.mubr.f32.gmra.mxu0 %v390
      %v598 = vpop.f32.mrf.mxu0
      %v599 = vadd.f32 0.0, %v598
      %v600 = vpop.f32.mrf.mxu0
      %601 = vmatprep.mubr.f32.mxu0 0.0
      %602 = vmatmul.mubr.f32.gmra.mxu0 %v393
      %v603 = vpop.f32.mrf.mxu0
      %v604 = vadd.f32 0.0, %v603
      %v605 = vpop.f32.mrf.mxu0
      %606 = vmatprep.mubr.f32.mxu0 0.0
      %607 = vmatmul.mubr.f32.gmra.mxu0 %v396
      %v608 = vpop.f32.mrf.mxu0
      %v609 = vadd.f32 0.0, %v608
      %v610 = vpop.f32.mrf.mxu0
      %611 = vmatprep.mubr.f32.mxu0 0.0
      %612 = vmatmul.mubr.f32.gmra.mxu0 %v399
      %v613 = vpop.f32.mrf.mxu0
      %v614 = vadd.f32 0.0, %v613
      %v615 = vpop.f32.mrf.mxu0
      %616 = vmatprep.mubr.f32.mxu0 0.0
      %617 = vmatmul.mubr.f32.gmra.mxu0 %v402
      %v618 = vpop.f32.mrf.mxu0
      %v619 = vadd.f32 0.0, %v618
      %v620 = vpop.f32.mrf.mxu0
      %621 = vmatprep.mubr.f32.mxu0 0.0
      %622 = vmatmul.mubr.f32.gmra.mxu0 %v405
      %v623 = vpop.f32.mrf.mxu0
      %v624 = vadd.f32 0.0, %v623
      %v625 = vpop.f32.mrf.mxu0
      %626 = vmatprep.mubr.f32.mxu0 0.0
      %627 = vmatmul.mubr.f32.gmra.mxu0 %v408
      %v628 = vpop.f32.mrf.mxu0
      %v629 = vadd.f32 0.0, %v628
      %v630 = vpop.f32.mrf.mxu0
      %631 = vmatprep.mubr.f32.mxu0 0.0
      %632 = vmatmul.mubr.f32.gmra.mxu0 %v411
      %v633 = vpop.f32.mrf.mxu0
      %v634 = vadd.f32 0.0, %v633
      %v635 = vpop.f32.mrf.mxu0
      %636 = vmatprep.mubr.f32.mxu0 0.0
      %637 = vmatmul.mubr.f32.gmra.mxu0 %v414
      %v638 = vpop.f32.mrf.mxu0
      %v639 = vadd.f32 0.0, %v638
      %v640 = vpop.f32.mrf.mxu0
      %641 = vmatprep.mubr.f32.mxu0 0.0
      %642 = vmatmul.mubr.f32.gmra.mxu0 %v417
      %v643 = vpop.f32.mrf.mxu0
      %v644 = vadd.f32 0.0, %v643
      %v645 = vpop.f32.mrf.mxu0
      %646 = vmatprep.mubr.f32.mxu0 0.0
      %647 = vmatmul.mubr.f32.gmra.mxu0 %v420
      %v648 = vpop.f32.mrf.mxu0
      %v649 = vadd.f32 0.0, %v648
      %v650 = vpop.f32.mrf.mxu0
      %651 = vmatprep.mubr.f32.mxu0 0.0
      %652 = vmatmul.mubr.f32.gmra.mxu0 %v423
      %v653 = vpop.f32.mrf.mxu0
      %v654 = vadd.f32 0.0, %v653
      %v655 = vpop.f32.mrf.mxu0
      %656 = vmatprep.mubr.f32.mxu0 0.0
      %657 = vmatmul.mubr.f32.gmra.mxu0 %v426
      %v658 = vpop.f32.mrf.mxu0
      %v659 = vadd.f32 0.0, %v658
      %v660 = vpop.f32.mrf.mxu0
      %661 = vmatprep.mubr.f32.mxu0 0.0
      %662 = vmatmul.mubr.f32.gmra.mxu0 %v429
      %v663 = vpop.f32.mrf.mxu0
      %v664 = vadd.f32 0.0, %v663
      %v665 = vpop.f32.mrf.mxu0
      %666 = vmatprep.mubr.f32.mxu0 0.0
      %667 = vmatmul.mubr.f32.gmra.mxu0 %v432
      %v668 = vpop.f32.mrf.mxu0
      %v669 = vadd.f32 0.0, %v668
      %v670 = vpop.f32.mrf.mxu0
      %671 = vmatprep.mubr.f32.mxu0 0.0
      %672 = vmatmul.mubr.f32.gmra.mxu0 %v435
      %v673 = vpop.f32.mrf.mxu0
      %v674 = vadd.f32 0.0, %v673
      %v675 = vpop.f32.mrf.mxu0
      %676 = vmatprep.mubr.f32.mxu0 0.0
      %677 = vmatmul.mubr.f32.gmra.mxu0 %v438
      %v678 = vpop.f32.mrf.mxu0
      %v679 = vadd.f32 0.0, %v678
      %v680 = vpop.f32.mrf.mxu0
      %681 = vmatprep.mubr.f32.mxu0 0.0
      %682 = vmatmul.mubr.f32.gmra.mxu0 %v441
      %v683 = vpop.f32.mrf.mxu0
      %v684 = vadd.f32 0.0, %v683
      %v685 = vpop.f32.mrf.mxu0
      %686 = vmatprep.mubr.f32.mxu0 0.0
      %687 = vmatmul.mubr.f32.gmra.mxu0 %v444
      %v688 = vpop.f32.mrf.mxu0
      %v689 = vadd.f32 0.0, %v688
      %v690 = vpop.f32.mrf.mxu0
      %691 = vmatprep.mubr.f32.mxu0 0.0
      %692 = vmatmul.mubr.f32.gmra.mxu0 %v447
      %v693 = vpop.f32.mrf.mxu0
      %v694 = vadd.f32 0.0, %v693
      %v695 = vpop.f32.mrf.mxu0
      %696 = vmatprep.mubr.f32.mxu0 0.0
      %697 = vmatmul.mubr.f32.gmra.mxu0 %v450
      %v698 = vpop.f32.mrf.mxu0
      %v699 = vadd.f32 0.0, %v698
      %v700 = vpop.f32.mrf.mxu0
      %701 = vmatprep.mubr.f32.mxu0 0.0
      %702 = vmatmul.mubr.f32.gmra.mxu0 %v453
      %v703 = vpop.f32.mrf.mxu0
      %v704 = vadd.f32 0.0, %v703
      %v705 = vpop.f32.mrf.mxu0
      %706 = vmatprep.mubr.f32.mxu0 0.0
      %707 = vmatmul.mubr.f32.gmra.mxu0 %v456
      %v708 = vpop.f32.mrf.mxu0
      %v709 = vadd.f32 0.0, %v708
      %v710 = vpop.f32.mrf.mxu0
      %711 = vmatprep.mubr.f32.mxu0 0.0
      %712 = vmatmul.mubr.f32.gmra.mxu0 %v459
      %v713 = vpop.f32.mrf.mxu0
      %v714 = vadd.f32 0.0, %v713
      %v715 = vpop.f32.mrf.mxu0
      %716 = vmatprep.mubr.f32.mxu0 0.0
      %717 = vmatmul.mubr.f32.gmra.mxu0 %v462
      %v718 = vpop.f32.mrf.mxu0
      %v719 = vadd.f32 0.0, %v718
      %v720 = vpop.f32.mrf.mxu0
      %721 = vmatprep.mubr.f32.mxu0 0.0
      %722 = vmatmul.mubr.f32.gmra.mxu0 %v465
      %v723 = vpop.f32.mrf.mxu0
      %v724 = vadd.f32 0.0, %v723
      %v725 = vpop.f32.mrf.mxu0
      %726 = vmatprep.mubr.f32.mxu0 0.0
      %727 = vmatmul.mubr.f32.gmra.mxu0 %v468
      %v728 = vpop.f32.mrf.mxu0
      %v729 = vadd.f32 0.0, %v728
      %v730 = vpop.f32.mrf.mxu0
      %731 = vmatprep.mubr.f32.mxu0 0.0
      %732 = vmatmul.mubr.f32.gmra.mxu0 %v471
      %v733 = vpop.f32.mrf.mxu0
      %v734 = vadd.f32 0.0, %v733
      %v735 = vpop.f32.mrf.mxu0
      %736 = vmatprep.mubr.f32.mxu0 0.0
      %737 = vmatmul.mubr.f32.gmra.mxu0 %v474
      %v738 = vpop.f32.mrf.mxu0
      %v739 = vadd.f32 0.0, %v738
      %v740 = vpop.f32.mrf.mxu0
      %741 = vmatprep.mubr.f32.mxu0 0.0
      %742 = vmatmul.mubr.f32.gmra.mxu0 %v477
      %v743 = vpop.f32.mrf.mxu0
      %v744 = vadd.f32 0.0, %v743
      %v745 = vpop.f32.mrf.mxu0
      %746 = vmatprep.mubr.f32.mxu0 0.0
      %747 = vmatmul.mubr.f32.gmra.mxu0 %v480
      %v748 = vpop.f32.mrf.mxu0
      %v749 = vadd.f32 0.0, %v748
      %v750 = vpop.f32.mrf.mxu0
      %751 = vmatprep.mubr.f32.mxu0 0.0
      %752 = vmatmul.mubr.f32.gmra.mxu0 %v483
      %v753 = vpop.f32.mrf.mxu0
      %v754 = vadd.f32 0.0, %v753
      %v755 = vpop.f32.mrf.mxu0
      %756 = vmatprep.mubr.f32.mxu0 0.0
      %757 = vmatmul.mubr.f32.gmra.mxu0 %v486
      %v758 = vpop.f32.mrf.mxu0
      %v759 = vadd.f32 0.0, %v758
      %v760 = vpop.f32.mrf.mxu0
      %761 = vdwg.mxu0
      %v763 = vsel %vm364, %v279, 0
      %v766 = vsel %vm364, %v280, 0
      %v769 = vsel %vm364, %v281, 0
      %v772 = vsel %vm364, %v282, 0
      %v775 = vsel %vm364, %v283, 0
      %v778 = vsel %vm364, %v284, 0
      %v781 = vsel %vm364, %v285, 0
      %v784 = vsel %vm364, %v286, 0
      %v787 = vsel %vm364, %v287, 0
      %v790 = vsel %vm364, %v288, 0
      %v793 = vsel %vm364, %v289, 0
      %v796 = vsel %vm364, %v290, 0
      %v799 = vsel %vm364, %v291, 0
      %v802 = vsel %vm364, %v292, 0
      %v805 = vsel %vm364, %v293, 0
      %v808 = vsel %vm364, %v294, 0
      %v811 = vsel %vm364, %v295, 0
      %v814 = vsel %vm364, %v296, 0
      %v817 = vsel %vm364, %v297, 0
      %v820 = vsel %vm364, %v298, 0
      %v823 = vsel %vm364, %v299, 0
      %v826 = vsel %vm364, %v300, 0
      %v829 = vsel %vm364, %v301, 0
      %v832 = vsel %vm364, %v302, 0
      %v835 = vsel %vm364, %v303, 0
      %v838 = vsel %vm364, %v304, 0
      %v841 = vsel %vm364, %v305, 0
      %v844 = vsel %vm364, %v306, 0
      %v847 = vsel %vm364, %v307, 0
      %v850 = vsel %vm364, %v308, 0
      %v853 = vsel %vm364, %v309, 0
      %v856 = vsel %vm364, %v310, 0
      %v859 = vsel %vm364, %v311, 0
      %v862 = vsel %vm364, %v312, 0
      %v865 = vsel %vm364, %v313, 0
      %v868 = vsel %vm364, %v314, 0
      %v871 = vsel %vm364, %v315, 0
      %v874 = vsel %vm364, %v316, 0
      %v877 = vsel %vm364, %v317, 0
      %v880 = vsel %vm364, %v318, 0
      %v883 = vsel %vm364, %v319, 0
      %v886 = vsel %vm488, %v320, 0
      %888 = vmatprep.subr.mxu0 0.0
      %889 = vmatpush1.msra.mxu0 0.0
      %890 = vmatprep.subr.mxu0 0.0
      %891 = vmatpush1.msra.mxu0 0.0
      %892 = vmatprep.subr.mxu0 0.0
      %893 = vmatpush1.msra.mxu0 0.0
      %894 = vmatprep.subr.mxu0 0.0
      %895 = vmatpush1.msra.mxu0 0.0
      %896 = vmatprep.subr.mxu0 0.0
      %897 = vmatpush1.msra.mxu0 0.0
      %898 = vmatprep.subr.mxu0 0.0
      %899 = vmatpush1.msra.mxu0 0.0
      %900 = vmatprep.subr.mxu0 0.0
      %901 = vmatpush1.msra.mxu0 0.0
      %902 = vmatprep.subr.mxu0 0.0
      %903 = vmatpush1.msra.mxu0 0.0
      %904 = vmatprep.subr.mxu0 0.0
      %905 = vmatpush1.msra.mxu0 0.0
      %906 = vmatprep.subr.mxu0 0.0
      %907 = vmatpush1.msra.mxu0 0.0
      %908 = vmatprep.subr.mxu0 0.0
      %909 = vmatpush1.msra.mxu0 0.0
      %910 = vmatprep.subr.mxu0 0.0
      %911 = vmatpush1.msra.mxu0 0.0
      %912 = vmatprep.subr.mxu0 0.0
      %913 = vmatpush1.msra.mxu0 0.0
      %914 = vmatprep.subr.mxu0 0.0
      %915 = vmatpush1.msra.mxu0 0.0
      %916 = vmatprep.subr.mxu0 0.0
      %917 = vmatpush1.msra.mxu0 0.0
      %918 = vmatprep.subr.mxu0 0.0
      %919 = vmatpush1.msra.mxu0 %v886
      %920 = vmatprep.subr.mxu0 0.0
      %921 = vmatpush2.msra.mxu0 0.0
      %922 = vmatprep.subr.mxu0 0.0
      %923 = vmatpush2.msra.mxu0 0.0
      %924 = vmatprep.subr.mxu0 0.0
      %925 = vmatpush2.msra.mxu0 0.0
      %926 = vmatprep.subr.mxu0 0.0
      %927 = vmatpush2.msra.mxu0 0.0
      %928 = vmatprep.subr.mxu0 0.0
      %929 = vmatpush2.msra.mxu0 0.0
      %930 = vmatprep.subr.mxu0 0.0
      %931 = vmatpush2.msra.mxu0 0.0
      %932 = vmatprep.subr.mxu0 0.0
      %933 = vmatpush2.msra.mxu0 0.0
      %934 = vmatprep.subr.mxu0 0.0
      %935 = vmatpush2.msra.mxu0 0.0
      %936 = vmatprep.subr.mxu0 0.0
      %937 = vmatpush2.msra.mxu0 0.0
      %938 = vmatprep.subr.mxu0 0.0
      %939 = vmatpush2.msra.mxu0 0.0
      %940 = vmatprep.subr.mxu0 0.0
      %941 = vmatpush2.msra.mxu0 0.0
      %942 = vmatprep.subr.mxu0 0.0
      %943 = vmatpush2.msra.mxu0 0.0
      %944 = vmatprep.subr.mxu0 0.0
      %945 = vmatpush2.msra.mxu0 0.0
      %946 = vmatprep.subr.mxu0 0.0
      %947 = vmatpush2.msra.mxu0 0.0
      %948 = vmatprep.subr.mxu0 0.0
      %949 = vmatpush2.msra.mxu0 0.0
      %950 = vmatprep.subr.mxu0 0.0
      %951 = vmatpush2.msra.mxu0 0.0
      %952 = vmatprep.mubr.f32.mxu0 0.0
      %953 = vmatmul.mubr.f32.gmra.mxu0 %v763
      %v954 = vpop.f32.mrf.mxu0
      %v955 = vadd.f32 %v559, %v954
      %v956 = vpop.f32.mrf.mxu0
      %957 = vmatprep.mubr.f32.mxu0 0.0
      %958 = vmatmul.mubr.f32.gmra.mxu0 %v766
      %v959 = vpop.f32.mrf.mxu0
      %v960 = vadd.f32 %v564, %v959
      %v961 = vpop.f32.mrf.mxu0
      %962 = vmatprep.mubr.f32.mxu0 0.0
      %963 = vmatmul.mubr.f32.gmra.mxu0 %v769
      %v964 = vpop.f32.mrf.mxu0
      %v965 = vadd.f32 %v569, %v964
      %v966 = vpop.f32.mrf.mxu0
      %967 = vmatprep.mubr.f32.mxu0 0.0
      %968 = vmatmul.mubr.f32.gmra.mxu0 %v772
      %v969 = vpop.f32.mrf.mxu0
      %v970 = vadd.f32 %v574, %v969
      %v971 = vpop.f32.mrf.mxu0
      %972 = vmatprep.mubr.f32.mxu0 0.0
      %973 = vmatmul.mubr.f32.gmra.mxu0 %v775
      %v974 = vpop.f32.mrf.mxu0
      %v975 = vadd.f32 %v579, %v974
      %v976 = vpop.f32.mrf.mxu0
      %977 = vmatprep.mubr.f32.mxu0 0.0
      %978 = vmatmul.mubr.f32.gmra.mxu0 %v778
      %v979 = vpop.f32.mrf.mxu0
      %v980 = vadd.f32 %v584, %v979
      %v981 = vpop.f32.mrf.mxu0
      %982 = vmatprep.mubr.f32.mxu0 0.0
      %983 = vmatmul.mubr.f32.gmra.mxu0 %v781
      %v984 = vpop.f32.mrf.mxu0
      %v985 = vadd.f32 %v589, %v984
      %v986 = vpop.f32.mrf.mxu0
      %987 = vmatprep.mubr.f32.mxu0 0.0
      %988 = vmatmul.mubr.f32.gmra.mxu0 %v784
      %v989 = vpop.f32.mrf.mxu0
      %v990 = vadd.f32 %v594, %v989
      %v991 = vpop.f32.mrf.mxu0
      %992 = vmatprep.mubr.f32.mxu0 0.0
      %993 = vmatmul.mubr.f32.gmra.mxu0 %v787
      %v994 = vpop.f32.mrf.mxu0
      %v995 = vadd.f32 %v599, %v994
      %v996 = vpop.f32.mrf.mxu0
      %997 = vmatprep.mubr.f32.mxu0 0.0
      %998 = vmatmul.mubr.f32.gmra.mxu0 %v790
      %v999 = vpop.f32.mrf.mxu0
      %v1000 = vadd.f32 %v604, %v999
      %v1001 = vpop.f32.mrf.mxu0
      %1002 = vmatprep.mubr.f32.mxu0 0.0
      %1003 = vmatmul.mubr.f32.gmra.mxu0 %v793
      %v1004 = vpop.f32.mrf.mxu0
      %v1005 = vadd.f32 %v609, %v1004
      %v1006 = vpop.f32.mrf.mxu0
      %1007 = vmatprep.mubr.f32.mxu0 0.0
      %1008 = vmatmul.mubr.f32.gmra.mxu0 %v796
      %v1009 = vpop.f32.mrf.mxu0
      %v1010 = vadd.f32 %v614, %v1009
      %v1011 = vpop.f32.mrf.mxu0
      %1012 = vmatprep.mubr.f32.mxu0 0.0
      %1013 = vmatmul.mubr.f32.gmra.mxu0 %v799
      %v1014 = vpop.f32.mrf.mxu0
      %v1015 = vadd.f32 %v619, %v1014
      %v1016 = vpop.f32.mrf.mxu0
      %1017 = vmatprep.mubr.f32.mxu0 0.0
      %1018 = vmatmul.mubr.f32.gmra.mxu0 %v802
      %v1019 = vpop.f32.mrf.mxu0
      %v1020 = vadd.f32 %v624, %v1019
      %v1021 = vpop.f32.mrf.mxu0
      %1022 = vmatprep.mubr.f32.mxu0 0.0
      %1023 = vmatmul.mubr.f32.gmra.mxu0 %v805
      %v1024 = vpop.f32.mrf.mxu0
      %v1025 = vadd.f32 %v629, %v1024
      %v1026 = vpop.f32.mrf.mxu0
      %1027 = vmatprep.mubr.f32.mxu0 0.0
      %1028 = vmatmul.mubr.f32.gmra.mxu0 %v808
      %v1029 = vpop.f32.mrf.mxu0
      %v1030 = vadd.f32 %v634, %v1029
      %v1031 = vpop.f32.mrf.mxu0
      %1032 = vmatprep.mubr.f32.mxu0 0.0
      %1033 = vmatmul.mubr.f32.gmra.mxu0 %v811
      %v1034 = vpop.f32.mrf.mxu0
      %v1035 = vadd.f32 %v639, %v1034
      %v1036 = vpop.f32.mrf.mxu0
      %1037 = vmatprep.mubr.f32.mxu0 0.0
      %1038 = vmatmul.mubr.f32.gmra.mxu0 %v814
      %v1039 = vpop.f32.mrf.mxu0
      %v1040 = vadd.f32 %v644, %v1039
      %v1041 = vpop.f32.mrf.mxu0
      %1042 = vmatprep.mubr.f32.mxu0 0.0
      %1043 = vmatmul.mubr.f32.gmra.mxu0 %v817
      %v1044 = vpop.f32.mrf.mxu0
      %v1045 = vadd.f32 %v649, %v1044
      %v1046 = vpop.f32.mrf.mxu0
      %1047 = vmatprep.mubr.f32.mxu0 0.0
      %1048 = vmatmul.mubr.f32.gmra.mxu0 %v820
      %v1049 = vpop.f32.mrf.mxu0
      %v1050 = vadd.f32 %v654, %v1049
      %v1051 = vpop.f32.mrf.mxu0
      %1052 = vmatprep.mubr.f32.mxu0 0.0
      %1053 = vmatmul.mubr.f32.gmra.mxu0 %v823
      %v1054 = vpop.f32.mrf.mxu0
      %v1055 = vadd.f32 %v659, %v1054
      %v1056 = vpop.f32.mrf.mxu0
      %1057 = vmatprep.mubr.f32.mxu0 0.0
      %1058 = vmatmul.mubr.f32.gmra.mxu0 %v826
      %v1059 = vpop.f32.mrf.mxu0
      %v1060 = vadd.f32 %v664, %v1059
      %v1061 = vpop.f32.mrf.mxu0
      %1062 = vmatprep.mubr.f32.mxu0 0.0
      %1063 = vmatmul.mubr.f32.gmra.mxu0 %v829
      %v1064 = vpop.f32.mrf.mxu0
      %v1065 = vadd.f32 %v669, %v1064
      %v1066 = vpop.f32.mrf.mxu0
      %1067 = vmatprep.mubr.f32.mxu0 0.0
      %1068 = vmatmul.mubr.f32.gmra.mxu0 %v832
      %v1069 = vpop.f32.mrf.mxu0
      %v1070 = vadd.f32 %v674, %v1069
      %v1071 = vpop.f32.mrf.mxu0
      %1072 = vmatprep.mubr.f32.mxu0 0.0
      %1073 = vmatmul.mubr.f32.gmra.mxu0 %v835
      %v1074 = vpop.f32.mrf.mxu0
      %v1075 = vadd.f32 %v679, %v1074
      %v1076 = vpop.f32.mrf.mxu0
      %1077 = vmatprep.mubr.f32.mxu0 0.0
      %1078 = vmatmul.mubr.f32.gmra.mxu0 %v838
      %v1079 = vpop.f32.mrf.mxu0
      %v1080 = vadd.f32 %v684, %v1079
      %v1081 = vpop.f32.mrf.mxu0
      %1082 = vmatprep.mubr.f32.mxu0 0.0
      %1083 = vmatmul.mubr.f32.gmra.mxu0 %v841
      %v1084 = vpop.f32.mrf.mxu0
      %v1085 = vadd.f32 %v689, %v1084
      %v1086 = vpop.f32.mrf.mxu0
      %1087 = vmatprep.mubr.f32.mxu0 0.0
      %1088 = vmatmul.mubr.f32.gmra.mxu0 %v844
      %v1089 = vpop.f32.mrf.mxu0
      %v1090 = vadd.f32 %v694, %v1089
      %v1091 = vpop.f32.mrf.mxu0
      %1092 = vmatprep.mubr.f32.mxu0 0.0
      %1093 = vmatmul.mubr.f32.gmra.mxu0 %v847
      %v1094 = vpop.f32.mrf.mxu0
      %v1095 = vadd.f32 %v699, %v1094
      %v1096 = vpop.f32.mrf.mxu0
      %1097 = vmatprep.mubr.f32.mxu0 0.0
      %1098 = vmatmul.mubr.f32.gmra.mxu0 %v850
      %v1099 = vpop.f32.mrf.mxu0
      %v1100 = vadd.f32 %v704, %v1099
      %v1101 = vpop.f32.mrf.mxu0
      %1102 = vmatprep.mubr.f32.mxu0 0.0
      %1103 = vmatmul.mubr.f32.gmra.mxu0 %v853
      %v1104 = vpop.f32.mrf.mxu0
      %v1105 = vadd.f32 %v709, %v1104
      %v1106 = vpop.f32.mrf.mxu0
      %1107 = vmatprep.mubr.f32.mxu0 0.0
      %1108 = vmatmul.mubr.f32.gmra.mxu0 %v856
      %v1109 = vpop.f32.mrf.mxu0
      %v1110 = vadd.f32 %v714, %v1109
      %v1111 = vpop.f32.mrf.mxu0
      %1112 = vmatprep.mubr.f32.mxu0 0.0
      %1113 = vmatmul.mubr.f32.gmra.mxu0 %v859
      %v1114 = vpop.f32.mrf.mxu0
      %v1115 = vadd.f32 %v719, %v1114
      %v1116 = vpop.f32.mrf.mxu0
      %1117 = vmatprep.mubr.f32.mxu0 0.0
      %1118 = vmatmul.mubr.f32.gmra.mxu0 %v862
      %v1119 = vpop.f32.mrf.mxu0
      %v1120 = vadd.f32 %v724, %v1119
      %v1121 = vpop.f32.mrf.mxu0
      %1122 = vmatprep.mubr.f32.mxu0 0.0
      %1123 = vmatmul.mubr.f32.gmra.mxu0 %v865
      %v1124 = vpop.f32.mrf.mxu0
      %v1125 = vadd.f32 %v729, %v1124
      %v1126 = vpop.f32.mrf.mxu0
      %1127 = vmatprep.mubr.f32.mxu0 0.0
      %1128 = vmatmul.mubr.f32.gmra.mxu0 %v868
      %v1129 = vpop.f32.mrf.mxu0
      %v1130 = vadd.f32 %v734, %v1129
      %v1131 = vpop.f32.mrf.mxu0
      %1132 = vmatprep.mubr.f32.mxu0 0.0
      %1133 = vmatmul.mubr.f32.gmra.mxu0 %v871
      %v1134 = vpop.f32.mrf.mxu0
      %v1135 = vadd.f32 %v739, %v1134
      %v1136 = vpop.f32.mrf.mxu0
      %1137 = vmatprep.mubr.f32.mxu0 0.0
      %1138 = vmatmul.mubr.f32.gmra.mxu0 %v874
      %v1139 = vpop.f32.mrf.mxu0
      %v1140 = vadd.f32 %v744, %v1139
      %v1141 = vpop.f32.mrf.mxu0
      %1142 = vmatprep.mubr.f32.mxu0 0.0
      %1143 = vmatmul.mubr.f32.gmra.mxu0 %v877
      %v1144 = vpop.f32.mrf.mxu0
      %v1145 = vadd.f32 %v749, %v1144
      %v1146 = vpop.f32.mrf.mxu0
      %1147 = vmatprep.mubr.f32.mxu0 0.0
      %1148 = vmatmul.mubr.f32.gmra.mxu0 %v880
      %v1149 = vpop.f32.mrf.mxu0
      %v1150 = vadd.f32 %v754, %v1149
      %v1151 = vpop.f32.mrf.mxu0
      %1152 = vmatprep.mubr.f32.mxu0 0.0
      %1153 = vmatmul.mubr.f32.gmra.mxu0 %v883
      %v1154 = vpop.f32.mrf.mxu0
      %v1155 = vadd.f32 %v759, %v1154
      %v1156 = vpop.f32.mrf.mxu0
      %1157 = vdwg.mxu0
      %v1158 = vld [vmem:[%s273 + $0x7] sm:$0xff]
      %v1159 = vld [vmem:[%s273 + $0xf] sm:$0xff]
      %v1160 = vld [vmem:[%s273 + $0x17] sm:$0xff]
      %v1161 = vld [vmem:[%s273 + $0x1f] sm:$0xff]
      %v1162 = vld [vmem:[%s273 + $0x27] sm:$0xff]
      %v1163 = vld [vmem:[%s273 + $0x2f] sm:$0xff]
      %v1164 = vld [vmem:[%s273 + $0x37] sm:$0xff]
      %v1165 = vld [vmem:[%s273 + $0x3f] sm:$0xff]
      %v1166 = vld [vmem:[%s273 + $0x47] sm:$0xff]
      %v1167 = vld [vmem:[%s273 + $0x4f] sm:$0xff]
      %v1168 = vld [vmem:[%s273 + $0x57] sm:$0xff]
      %v1169 = vld [vmem:[%s273 + $0x5f] sm:$0xff]
      %v1170 = vld [vmem:[%s273 + $0x67] sm:$0xff]
      %v1171 = vld [vmem:[%s273 + $0x6f] sm:$0xff]
      %v1172 = vld [vmem:[%s273 + $0x77] sm:$0xff]
      %v1173 = vld [vmem:[%s273 + $0x7f] sm:$0xff]
      %v1174 = vld [vmem:[%s273 + $0x87] sm:$0xff]
      %v1175 = vld [vmem:[%s273 + $0x8f] sm:$0xff]
      %v1176 = vld [vmem:[%s273 + $0x97] sm:$0xff]
      %v1177 = vld [vmem:[%s273 + $0x9f] sm:$0xff]
      %v1178 = vld [vmem:[%s273 + $0xa7] sm:$0xff]
      %v1179 = vld [vmem:[%s273 + $0xaf] sm:$0xff]
      %v1180 = vld [vmem:[%s273 + $0xb7] sm:$0xff]
      %v1181 = vld [vmem:[%s273 + $0xbf] sm:$0xff]
      %v1182 = vld [vmem:[%s273 + $0xc7] sm:$0xff]
      %v1183 = vld [vmem:[%s273 + $0xcf] sm:$0xff]
      %v1184 = vld [vmem:[%s273 + $0xd7] sm:$0xff]
      %v1185 = vld [vmem:[%s273 + $0xdf] sm:$0xff]
      %v1186 = vld [vmem:[%s273 + $0xe7] sm:$0xff]
      %v1187 = vld [vmem:[%s273 + $0xef] sm:$0xff]
      %v1188 = vld [vmem:[%s273 + $0xf7] sm:$0xff]
      %v1189 = vld [vmem:[%s273 + $0xff] sm:$0xff]
      %v1190 = vld [vmem:[%s273 + $0x107] sm:$0xff]
      %v1191 = vld [vmem:[%s273 + $0x10f] sm:$0xff]
      %v1192 = vld [vmem:[%s273 + $0x117] sm:$0xff]
      %v1193 = vld [vmem:[%s273 + $0x11f] sm:$0xff]
      %v1194 = vld [vmem:[%s273 + $0x127] sm:$0xff]
      %v1195 = vld [vmem:[%s273 + $0x12f] sm:$0xff]
      %v1196 = vld [vmem:[%s273 + $0x137] sm:$0xff]
      %v1197 = vld [vmem:[%s273 + $0x13f] sm:$0xff]
      %v1198 = vld [vmem:[%s273 + $0x147] sm:$0xf]
      %s1199 = scalar_lea.vmem %s1, 8
      %v1200 = vld [vmem:[%s1199] sm:$0xf]
      %v1202 = vsel %vm364, %v1158, 0
      %v1205 = vsel %vm364, %v1159, 0
      %v1208 = vsel %vm364, %v1160, 0
      %v1211 = vsel %vm364, %v1161, 0
      %v1214 = vsel %vm364, %v1162, 0
      %v1217 = vsel %vm364, %v1163, 0
      %v1220 = vsel %vm364, %v1164, 0
      %v1223 = vsel %vm364, %v1165, 0
      %v1226 = vsel %vm364, %v1166, 0
      %v1229 = vsel %vm364, %v1167, 0
      %v1232 = vsel %vm364, %v1168, 0
      %v1235 = vsel %vm364, %v1169, 0
      %v1238 = vsel %vm364, %v1170, 0
      %v1241 = vsel %vm364, %v1171, 0
      %v1244 = vsel %vm364, %v1172, 0
      %v1247 = vsel %vm364, %v1173, 0
      %v1250 = vsel %vm364, %v1174, 0
      %v1253 = vsel %vm364, %v1175, 0
      %v1256 = vsel %vm364, %v1176, 0
      %v1259 = vsel %vm364, %v1177, 0
      %v1262 = vsel %vm364, %v1178, 0
      %v1265 = vsel %vm364, %v1179, 0
      %v1268 = vsel %vm364, %v1180, 0
      %v1271 = vsel %vm364, %v1181, 0
      %v1274 = vsel %vm364, %v1182, 0
      %v1277 = vsel %vm364, %v1183, 0
      %v1280 = vsel %vm364, %v1184, 0
      %v1283 = vsel %vm364, %v1185, 0
      %v1286 = vsel %vm364, %v1186, 0
      %v1289 = vsel %vm364, %v1187, 0
      %v1292 = vsel %vm364, %v1188, 0
      %v1295 = vsel %vm364, %v1189, 0
      %v1298 = vsel %vm364, %v1190, 0
      %v1301 = vsel %vm364, %v1191, 0
      %v1304 = vsel %vm364, %v1192, 0
      %v1307 = vsel %vm364, %v1193, 0
      %v1310 = vsel %vm364, %v1194, 0
      %v1313 = vsel %vm364, %v1195, 0
      %v1316 = vsel %vm364, %v1196, 0
      %v1319 = vsel %vm364, %v1197, 0
      %v1322 = vsel %vm364, %v1198, 0
      %v1325 = vsel %vm488, %v1200, 0
      %1327 = vmatprep.subr.mxu0 0.0
      %1328 = vmatpush1.msra.mxu0 0.0
      %1329 = vmatprep.subr.mxu0 0.0
      %1330 = vmatpush1.msra.mxu0 0.0
      %1331 = vmatprep.subr.mxu0 0.0
      %1332 = vmatpush1.msra.mxu0 0.0
      %1333 = vmatprep.subr.mxu0 0.0
      %1334 = vmatpush1.msra.mxu0 0.0
      %1335 = vmatprep.subr.mxu0 0.0
      %1336 = vmatpush1.msra.mxu0 0.0
      %1337 = vmatprep.subr.mxu0 0.0
      %1338 = vmatpush1.msra.mxu0 0.0
      %1339 = vmatprep.subr.mxu0 0.0
      %1340 = vmatpush1.msra.mxu0 0.0
      %1341 = vmatprep.subr.mxu0 0.0
      %1342 = vmatpush1.msra.mxu0 0.0
      %1343 = vmatprep.subr.mxu0 0.0
      %1344 = vmatpush1.msra.mxu0 0.0
      %1345 = vmatprep.subr.mxu0 0.0
      %1346 = vmatpush1.msra.mxu0 0.0
      %1347 = vmatprep.subr.mxu0 0.0
      %1348 = vmatpush1.msra.mxu0 0.0
      %1349 = vmatprep.subr.mxu0 0.0
      %1350 = vmatpush1.msra.mxu0 0.0
      %1351 = vmatprep.subr.mxu0 0.0
      %1352 = vmatpush1.msra.mxu0 0.0
      %1353 = vmatprep.subr.mxu0 0.0
      %1354 = vmatpush1.msra.mxu0 0.0
      %1355 = vmatprep.subr.mxu0 0.0
      %1356 = vmatpush1.msra.mxu0 0.0
      %1357 = vmatprep.subr.mxu0 0.0
      %1358 = vmatpush1.msra.mxu0 %v1325
      %1359 = vmatprep.subr.mxu0 0.0
      %1360 = vmatpush2.msra.mxu0 0.0
      %1361 = vmatprep.subr.mxu0 0.0
      %1362 = vmatpush2.msra.mxu0 0.0
      %1363 = vmatprep.subr.mxu0 0.0
      %1364 = vmatpush2.msra.mxu0 0.0
      %1365 = vmatprep.subr.mxu0 0.0
      %1366 = vmatpush2.msra.mxu0 0.0
      %1367 = vmatprep.subr.mxu0 0.0
      %1368 = vmatpush2.msra.mxu0 0.0
      %1369 = vmatprep.subr.mxu0 0.0
      %1370 = vmatpush2.msra.mxu0 0.0
      %1371 = vmatprep.subr.mxu0 0.0
      %1372 = vmatpush2.msra.mxu0 0.0
      %1373 = vmatprep.subr.mxu0 0.0
      %1374 = vmatpush2.msra.mxu0 0.0
      %1375 = vmatprep.subr.mxu0 0.0
      %1376 = vmatpush2.msra.mxu0 0.0
      %1377 = vmatprep.subr.mxu0 0.0
      %1378 = vmatpush2.msra.mxu0 0.0
      %1379 = vmatprep.subr.mxu0 0.0
      %1380 = vmatpush2.msra.mxu0 0.0
      %1381 = vmatprep.subr.mxu0 0.0
      %1382 = vmatpush2.msra.mxu0 0.0
      %1383 = vmatprep.subr.mxu0 0.0
      %1384 = vmatpush2.msra.mxu0 0.0
      %1385 = vmatprep.subr.mxu0 0.0
      %1386 = vmatpush2.msra.mxu0 0.0
      %1387 = vmatprep.subr.mxu0 0.0
      %1388 = vmatpush2.msra.mxu0 0.0
      %1389 = vmatprep.subr.mxu0 0.0
      %1390 = vmatpush2.msra.mxu0 0.0
      %1391 = vmatprep.mubr.f32.mxu0 0.0
      %1392 = vmatmul.mubr.f32.gmra.mxu0 %v1202
      %v1393 = vpop.f32.mrf.mxu0
      %v1394 = vadd.f32 0.0, %v1393
      %v1395 = vpop.f32.mrf.mxu0
      %1396 = vmatprep.mubr.f32.mxu0 0.0
      %1397 = vmatmul.mubr.f32.gmra.mxu0 %v1205
      %v1398 = vpop.f32.mrf.mxu0
      %v1399 = vadd.f32 0.0, %v1398
      %v1400 = vpop.f32.mrf.mxu0
      %1401 = vmatprep.mubr.f32.mxu0 0.0
      %1402 = vmatmul.mubr.f32.gmra.mxu0 %v1208
      %v1403 = vpop.f32.mrf.mxu0
      %v1404 = vadd.f32 0.0, %v1403
      %v1405 = vpop.f32.mrf.mxu0
      %1406 = vmatprep.mubr.f32.mxu0 0.0
      %1407 = vmatmul.mubr.f32.gmra.mxu0 %v1211
      %v1408 = vpop.f32.mrf.mxu0
      %v1409 = vadd.f32 0.0, %v1408
      %v1410 = vpop.f32.mrf.mxu0
      %1411 = vmatprep.mubr.f32.mxu0 0.0
      %1412 = vmatmul.mubr.f32.gmra.mxu0 %v1214
      %v1413 = vpop.f32.mrf.mxu0
      %v1414 = vadd.f32 0.0, %v1413
      %v1415 = vpop.f32.mrf.mxu0
      %1416 = vmatprep.mubr.f32.mxu0 0.0
      %1417 = vmatmul.mubr.f32.gmra.mxu0 %v1217
      %v1418 = vpop.f32.mrf.mxu0
      %v1419 = vadd.f32 0.0, %v1418
      %v1420 = vpop.f32.mrf.mxu0
      %1421 = vmatprep.mubr.f32.mxu0 0.0
      %1422 = vmatmul.mubr.f32.gmra.mxu0 %v1220
      %v1423 = vpop.f32.mrf.mxu0
      %v1424 = vadd.f32 0.0, %v1423
      %v1425 = vpop.f32.mrf.mxu0
      %1426 = vmatprep.mubr.f32.mxu0 0.0
      %1427 = vmatmul.mubr.f32.gmra.mxu0 %v1223
      %v1428 = vpop.f32.mrf.mxu0
      %v1429 = vadd.f32 0.0, %v1428
      %v1430 = vpop.f32.mrf.mxu0
      %1431 = vmatprep.mubr.f32.mxu0 0.0
      %1432 = vmatmul.mubr.f32.gmra.mxu0 %v1226
      %v1433 = vpop.f32.mrf.mxu0
      %v1434 = vadd.f32 0.0, %v1433
      %v1435 = vpop.f32.mrf.mxu0
      %1436 = vmatprep.mubr.f32.mxu0 0.0
      %1437 = vmatmul.mubr.f32.gmra.mxu0 %v1229
      %v1438 = vpop.f32.mrf.mxu0
      %v1439 = vadd.f32 0.0, %v1438
      %v1440 = vpop.f32.mrf.mxu0
      %1441 = vmatprep.mubr.f32.mxu0 0.0
      %1442 = vmatmul.mubr.f32.gmra.mxu0 %v1232
      %v1443 = vpop.f32.mrf.mxu0
      %v1444 = vadd.f32 0.0, %v1443
      %v1445 = vpop.f32.mrf.mxu0
      %1446 = vmatprep.mubr.f32.mxu0 0.0
      %1447 = vmatmul.mubr.f32.gmra.mxu0 %v1235
      %v1448 = vpop.f32.mrf.mxu0
      %v1449 = vadd.f32 0.0, %v1448
      %v1450 = vpop.f32.mrf.mxu0
      %1451 = vmatprep.mubr.f32.mxu0 0.0
      %1452 = vmatmul.mubr.f32.gmra.mxu0 %v1238
      %v1453 = vpop.f32.mrf.mxu0
      %v1454 = vadd.f32 0.0, %v1453
      %v1455 = vpop.f32.mrf.mxu0
      %1456 = vmatprep.mubr.f32.mxu0 0.0
      %1457 = vmatmul.mubr.f32.gmra.mxu0 %v1241
      %v1458 = vpop.f32.mrf.mxu0
      %v1459 = vadd.f32 0.0, %v1458
      %v1460 = vpop.f32.mrf.mxu0
      %1461 = vmatprep.mubr.f32.mxu0 0.0
      %1462 = vmatmul.mubr.f32.gmra.mxu0 %v1244
      %v1463 = vpop.f32.mrf.mxu0
      %v1464 = vadd.f32 0.0, %v1463
      %v1465 = vpop.f32.mrf.mxu0
      %1466 = vmatprep.mubr.f32.mxu0 0.0
      %1467 = vmatmul.mubr.f32.gmra.mxu0 %v1247
      %v1468 = vpop.f32.mrf.mxu0
      %v1469 = vadd.f32 0.0, %v1468
      %v1470 = vpop.f32.mrf.mxu0
      %1471 = vmatprep.mubr.f32.mxu0 0.0
      %1472 = vmatmul.mubr.f32.gmra.mxu0 %v1250
      %v1473 = vpop.f32.mrf.mxu0
      %v1474 = vadd.f32 0.0, %v1473
      %v1475 = vpop.f32.mrf.mxu0
      %1476 = vmatprep.mubr.f32.mxu0 0.0
      %1477 = vmatmul.mubr.f32.gmra.mxu0 %v1253
      %v1478 = vpop.f32.mrf.mxu0
      %v1479 = vadd.f32 0.0, %v1478
      %v1480 = vpop.f32.mrf.mxu0
      %1481 = vmatprep.mubr.f32.mxu0 0.0
      %1482 = vmatmul.mubr.f32.gmra.mxu0 %v1256
      %v1483 = vpop.f32.mrf.mxu0
      %v1484 = vadd.f32 0.0, %v1483
      %v1485 = vpop.f32.mrf.mxu0
      %1486 = vmatprep.mubr.f32.mxu0 0.0
      %1487 = vmatmul.mubr.f32.gmra.mxu0 %v1259
      %v1488 = vpop.f32.mrf.mxu0
      %v1489 = vadd.f32 0.0, %v1488
      %v1490 = vpop.f32.mrf.mxu0
      %1491 = vmatprep.mubr.f32.mxu0 0.0
      %1492 = vmatmul.mubr.f32.gmra.mxu0 %v1262
      %v1493 = vpop.f32.mrf.mxu0
      %v1494 = vadd.f32 0.0, %v1493
      %v1495 = vpop.f32.mrf.mxu0
      %1496 = vmatprep.mubr.f32.mxu0 0.0
      %1497 = vmatmul.mubr.f32.gmra.mxu0 %v1265
      %v1498 = vpop.f32.mrf.mxu0
      %v1499 = vadd.f32 0.0, %v1498
      %v1500 = vpop.f32.mrf.mxu0
      %1501 = vmatprep.mubr.f32.mxu0 0.0
      %1502 = vmatmul.mubr.f32.gmra.mxu0 %v1268
      %v1503 = vpop.f32.mrf.mxu0
      %v1504 = vadd.f32 0.0, %v1503
      %v1505 = vpop.f32.mrf.mxu0
      %1506 = vmatprep.mubr.f32.mxu0 0.0
      %1507 = vmatmul.mubr.f32.gmra.mxu0 %v1271
      %v1508 = vpop.f32.mrf.mxu0
      %v1509 = vadd.f32 0.0, %v1508
      %v1510 = vpop.f32.mrf.mxu0
      %1511 = vmatprep.mubr.f32.mxu0 0.0
      %1512 = vmatmul.mubr.f32.gmra.mxu0 %v1274
      %v1513 = vpop.f32.mrf.mxu0
      %v1514 = vadd.f32 0.0, %v1513
      %v1515 = vpop.f32.mrf.mxu0
      %1516 = vmatprep.mubr.f32.mxu0 0.0
      %1517 = vmatmul.mubr.f32.gmra.mxu0 %v1277
      %v1518 = vpop.f32.mrf.mxu0
      %v1519 = vadd.f32 0.0, %v1518
      %v1520 = vpop.f32.mrf.mxu0
      %1521 = vmatprep.mubr.f32.mxu0 0.0
      %1522 = vmatmul.mubr.f32.gmra.mxu0 %v1280
      %v1523 = vpop.f32.mrf.mxu0
      %v1524 = vadd.f32 0.0, %v1523
      %v1525 = vpop.f32.mrf.mxu0
      %1526 = vmatprep.mubr.f32.mxu0 0.0
      %1527 = vmatmul.mubr.f32.gmra.mxu0 %v1283
      %v1528 = vpop.f32.mrf.mxu0
      %v1529 = vadd.f32 0.0, %v1528
      %v1530 = vpop.f32.mrf.mxu0
      %1531 = vmatprep.mubr.f32.mxu0 0.0
      %1532 = vmatmul.mubr.f32.gmra.mxu0 %v1286
      %v1533 = vpop.f32.mrf.mxu0
      %v1534 = vadd.f32 0.0, %v1533
      %v1535 = vpop.f32.mrf.mxu0
      %1536 = vmatprep.mubr.f32.mxu0 0.0
      %1537 = vmatmul.mubr.f32.gmra.mxu0 %v1289
      %v1538 = vpop.f32.mrf.mxu0
      %v1539 = vadd.f32 0.0, %v1538
      %v1540 = vpop.f32.mrf.mxu0
      %1541 = vmatprep.mubr.f32.mxu0 0.0
      %1542 = vmatmul.mubr.f32.gmra.mxu0 %v1292
      %v1543 = vpop.f32.mrf.mxu0
      %v1544 = vadd.f32 0.0, %v1543
      %v1545 = vpop.f32.mrf.mxu0
      %1546 = vmatprep.mubr.f32.mxu0 0.0
      %1547 = vmatmul.mubr.f32.gmra.mxu0 %v1295
      %v1548 = vpop.f32.mrf.mxu0
      %v1549 = vadd.f32 0.0, %v1548
      %v1550 = vpop.f32.mrf.mxu0
      %1551 = vmatprep.mubr.f32.mxu0 0.0
      %1552 = vmatmul.mubr.f32.gmra.mxu0 %v1298
      %v1553 = vpop.f32.mrf.mxu0
      %v1554 = vadd.f32 0.0, %v1553
      %v1555 = vpop.f32.mrf.mxu0
      %1556 = vmatprep.mubr.f32.mxu0 0.0
      %1557 = vmatmul.mubr.f32.gmra.mxu0 %v1301
      %v1558 = vpop.f32.mrf.mxu0
      %v1559 = vadd.f32 0.0, %v1558
      %v1560 = vpop.f32.mrf.mxu0
      %1561 = vmatprep.mubr.f32.mxu0 0.0
      %1562 = vmatmul.mubr.f32.gmra.mxu0 %v1304
      %v1563 = vpop.f32.mrf.mxu0
      %v1564 = vadd.f32 0.0, %v1563
      %v1565 = vpop.f32.mrf.mxu0
      %1566 = vmatprep.mubr.f32.mxu0 0.0
      %1567 = vmatmul.mubr.f32.gmra.mxu0 %v1307
      %v1568 = vpop.f32.mrf.mxu0
      %v1569 = vadd.f32 0.0, %v1568
      %v1570 = vpop.f32.mrf.mxu0
      %1571 = vmatprep.mubr.f32.mxu0 0.0
      %1572 = vmatmul.mubr.f32.gmra.mxu0 %v1310
      %v1573 = vpop.f32.mrf.mxu0
      %v1574 = vadd.f32 0.0, %v1573
      %v1575 = vpop.f32.mrf.mxu0
      %1576 = vmatprep.mubr.f32.mxu0 0.0
      %1577 = vmatmul.mubr.f32.gmra.mxu0 %v1313
      %v1578 = vpop.f32.mrf.mxu0
      %v1579 = vadd.f32 0.0, %v1578
      %v1580 = vpop.f32.mrf.mxu0
      %1581 = vmatprep.mubr.f32.mxu0 0.0
      %1582 = vmatmul.mubr.f32.gmra.mxu0 %v1316
      %v1583 = vpop.f32.mrf.mxu0
      %v1584 = vadd.f32 0.0, %v1583
      %v1585 = vpop.f32.mrf.mxu0
      %1586 = vmatprep.mubr.f32.mxu0 0.0
      %1587 = vmatmul.mubr.f32.gmra.mxu0 %v1319
      %v1588 = vpop.f32.mrf.mxu0
      %v1589 = vadd.f32 0.0, %v1588
      %v1590 = vpop.f32.mrf.mxu0
      %1591 = vmatprep.mubr.f32.mxu0 0.0
      %1592 = vmatmul.mubr.f32.gmra.mxu0 %v1322
      %v1593 = vpop.f32.mrf.mxu0
      %v1594 = vadd.f32 0.0, %v1593
      %v1595 = vpop.f32.mrf.mxu0
      %1596 = vdwg.mxu0
      %v1597 = vadd.f32 %v955, %v1394
      %v1598 = vadd.f32 %v960, %v1399
      %v1599 = vadd.f32 %v965, %v1404
      %v1600 = vadd.f32 %v970, %v1409
      %v1601 = vadd.f32 %v975, %v1414
      %v1602 = vadd.f32 %v980, %v1419
      %v1603 = vadd.f32 %v985, %v1424
      %v1604 = vadd.f32 %v990, %v1429
      %v1605 = vadd.f32 %v995, %v1434
      %v1606 = vadd.f32 %v1000, %v1439
      %v1607 = vadd.f32 %v1005, %v1444
      %v1608 = vadd.f32 %v1010, %v1449
      %v1609 = vadd.f32 %v1015, %v1454
      %v1610 = vadd.f32 %v1020, %v1459
      %v1611 = vadd.f32 %v1025, %v1464
      %v1612 = vadd.f32 %v1030, %v1469
      %v1613 = vadd.f32 %v1035, %v1474
      %v1614 = vadd.f32 %v1040, %v1479
      %v1615 = vadd.f32 %v1045, %v1484
      %v1616 = vadd.f32 %v1050, %v1489
      %v1617 = vadd.f32 %v1055, %v1494
      %v1618 = vadd.f32 %v1060, %v1499
      %v1619 = vadd.f32 %v1065, %v1504
      %v1620 = vadd.f32 %v1070, %v1509
      %v1621 = vadd.f32 %v1075, %v1514
      %v1622 = vadd.f32 %v1080, %v1519
      %v1623 = vadd.f32 %v1085, %v1524
      %v1624 = vadd.f32 %v1090, %v1529
      %v1625 = vadd.f32 %v1095, %v1534
      %v1626 = vadd.f32 %v1100, %v1539
      %v1627 = vadd.f32 %v1105, %v1544
      %v1628 = vadd.f32 %v1110, %v1549
      %v1629 = vadd.f32 %v1115, %v1554
      %v1630 = vadd.f32 %v1120, %v1559
      %v1631 = vadd.f32 %v1125, %v1564
      %v1632 = vadd.f32 %v1130, %v1569
      %v1633 = vadd.f32 %v1135, %v1574
      %v1634 = vadd.f32 %v1140, %v1579
      %v1635 = vadd.f32 %v1145, %v1584
      %v1636 = vadd.f32 %v1150, %v1589
      %v1637 = vadd.f32 %v1155, %v1594
      %v1638 = vld [vmem:[%s273 + $0x17] sm:$0xff]
      %v1639 = vld [vmem:[%s273 + $0x1f] sm:$0xff]
      %v1640 = vld [vmem:[%s273 + $0x27] sm:$0xff]
      %v1641 = vld [vmem:[%s273 + $0x2f] sm:$0xff]
      %v1642 = vld [vmem:[%s273 + $0x37] sm:$0xff]
      %v1643 = vld [vmem:[%s273 + $0x3f] sm:$0xff]
      %v1644 = vld [vmem:[%s273 + $0x47] sm:$0xff]
      %v1645 = vld [vmem:[%s273 + $0x4f] sm:$0xff]
      %v1646 = vld [vmem:[%s273 + $0x57] sm:$0xff]
      %v1647 = vld [vmem:[%s273 + $0x5f] sm:$0xff]
      %v1648 = vld [vmem:[%s273 + $0x67] sm:$0xff]
      %v1649 = vld [vmem:[%s273 + $0x6f] sm:$0xff]
      %v1650 = vld [vmem:[%s273 + $0x77] sm:$0xff]
      %v1651 = vld [vmem:[%s273 + $0x7f] sm:$0xff]
      %v1652 = vld [vmem:[%s273 + $0x87] sm:$0xff]
      %v1653 = vld [vmem:[%s273 + $0x8f] sm:$0xff]
      %v1654 = vld [vmem:[%s273 + $0x97] sm:$0xff]
      %v1655 = vld [vmem:[%s273 + $0x9f] sm:$0xff]
      %v1656 = vld [vmem:[%s273 + $0xa7] sm:$0xff]
      %v1657 = vld [vmem:[%s273 + $0xaf] sm:$0xff]
      %v1658 = vld [vmem:[%s273 + $0xb7] sm:$0xff]
      %v1659 = vld [vmem:[%s273 + $0xbf] sm:$0xff]
      %v1660 = vld [vmem:[%s273 + $0xc7] sm:$0xff]
      %v1661 = vld [vmem:[%s273 + $0xcf] sm:$0xff]
      %v1662 = vld [vmem:[%s273 + $0xd7] sm:$0xff]
      %v1663 = vld [vmem:[%s273 + $0xdf] sm:$0xff]
      %v1664 = vld [vmem:[%s273 + $0xe7] sm:$0xff]
      %v1665 = vld [vmem:[%s273 + $0xef] sm:$0xff]
      %v1666 = vld [vmem:[%s273 + $0xf7] sm:$0xff]
      %v1667 = vld [vmem:[%s273 + $0xff] sm:$0xff]
      %v1668 = vld [vmem:[%s273 + $0x107] sm:$0xff]
      %v1669 = vld [vmem:[%s273 + $0x10f] sm:$0xff]
      %v1670 = vld [vmem:[%s273 + $0x117] sm:$0xff]
      %v1671 = vld [vmem:[%s273 + $0x11f] sm:$0xff]
      %v1672 = vld [vmem:[%s273 + $0x127] sm:$0xff]
      %v1673 = vld [vmem:[%s273 + $0x12f] sm:$0xff]
      %v1674 = vld [vmem:[%s273 + $0x137] sm:$0xff]
      %v1675 = vld [vmem:[%s273 + $0x13f] sm:$0xff]
      %v1676 = vld [vmem:[%s273 + $0x147] sm:$0xff]
      %v1677 = vld [vmem:[%s273 + $0x14f] sm:$0xff]
      %v1678 = vld [vmem:[%s273 + $0x157] sm:$0xf]
      %s1679 = scalar_lea.vmem %s1, 12
      %v1680 = vld [vmem:[%s1679] sm:$0xf]
      %v1682 = vsel %vm364, %v1638, 0
      %v1685 = vsel %vm364, %v1639, 0
      %v1688 = vsel %vm364, %v1640, 0
      %v1691 = vsel %vm364, %v1641, 0
      %v1694 = vsel %vm364, %v1642, 0
      %v1697 = vsel %vm364, %v1643, 0
      %v1700 = vsel %vm364, %v1644, 0
      %v1703 = vsel %vm364, %v1645, 0
      %v1706 = vsel %vm364, %v1646, 0
      %v1709 = vsel %vm364, %v1647, 0
      %v1712 = vsel %vm364, %v1648, 0
      %v1715 = vsel %vm364, %v1649, 0
      %v1718 = vsel %vm364, %v1650, 0
      %v1721 = vsel %vm364, %v1651, 0
      %v1724 = vsel %vm364, %v1652, 0
      %v1727 = vsel %vm364, %v1653, 0
      %v1730 = vsel %vm364, %v1654, 0
      %v1733 = vsel %vm364, %v1655, 0
      %v1736 = vsel %vm364, %v1656, 0
      %v1739 = vsel %vm364, %v1657, 0
      %v1742 = vsel %vm364, %v1658, 0
      %v1745 = vsel %vm364, %v1659, 0
      %v1748 = vsel %vm364, %v1660, 0
      %v1751 = vsel %vm364, %v1661, 0
      %v1754 = vsel %vm364, %v1662, 0
      %v1757 = vsel %vm364, %v1663, 0
      %v1760 = vsel %vm364, %v1664, 0
      %v1763 = vsel %vm364, %v1665, 0
      %v1766 = vsel %vm364, %v1666, 0
      %v1769 = vsel %vm364, %v1667, 0
      %v1772 = vsel %vm364, %v1668, 0
      %v1775 = vsel %vm364, %v1669, 0
      %v1778 = vsel %vm364, %v1670, 0
      %v1781 = vsel %vm364, %v1671, 0
      %v1784 = vsel %vm364, %v1672, 0
      %v1787 = vsel %vm364, %v1673, 0
      %v1790 = vsel %vm364, %v1674, 0
      %v1793 = vsel %vm364, %v1675, 0
      %v1796 = vsel %vm364, %v1676, 0
      %v1799 = vsel %vm364, %v1677, 0
      %v1802 = vsel %vm364, %v1678, 0
      %v1805 = vsel %vm488, %v1680, 0
      %1807 = vmatprep.subr.mxu0 0.0
      %1808 = vmatpush1.msra.mxu0 0.0
      %1809 = vmatprep.subr.mxu0 0.0
      %1810 = vmatpush1.msra.mxu0 0.0
      %1811 = vmatprep.subr.mxu0 0.0
      %1812 = vmatpush1.msra.mxu0 0.0
      %1813 = vmatprep.subr.mxu0 0.0
      %1814 = vmatpush1.msra.mxu0 0.0
      %1815 = vmatprep.subr.mxu0 0.0
      %1816 = vmatpush1.msra.mxu0 0.0
      %1817 = vmatprep.subr.mxu0 0.0
      %1818 = vmatpush1.msra.mxu0 0.0
      %1819 = vmatprep.subr.mxu0 0.0
      %1820 = vmatpush1.msra.mxu0 0.0
      %1821 = vmatprep.subr.mxu0 0.0
      %1822 = vmatpush1.msra.mxu0 0.0
      %1823 = vmatprep.subr.mxu0 0.0
      %1824 = vmatpush1.msra.mxu0 0.0
      %1825 = vmatprep.subr.mxu0 0.0
      %1826 = vmatpush1.msra.mxu0 0.0
      %1827 = vmatprep.subr.mxu0 0.0
      %1828 = vmatpush1.msra.mxu0 0.0
      %1829 = vmatprep.subr.mxu0 0.0
      %1830 = vmatpush1.msra.mxu0 0.0
      %1831 = vmatprep.subr.mxu0 0.0
      %1832 = vmatpush1.msra.mxu0 0.0
      %1833 = vmatprep.subr.mxu0 0.0
      %1834 = vmatpush1.msra.mxu0 0.0
      %1835 = vmatprep.subr.mxu0 0.0
      %1836 = vmatpush1.msra.mxu0 0.0
      %1837 = vmatprep.subr.mxu0 0.0
      %1838 = vmatpush1.msra.mxu0 %v1805
      %1839 = vmatprep.subr.mxu0 0.0
      %1840 = vmatpush2.msra.mxu0 0.0
      %1841 = vmatprep.subr.mxu0 0.0
      %1842 = vmatpush2.msra.mxu0 0.0
      %1843 = vmatprep.subr.mxu0 0.0
      %1844 = vmatpush2.msra.mxu0 0.0
      %1845 = vmatprep.subr.mxu0 0.0
      %1846 = vmatpush2.msra.mxu0 0.0
      %1847 = vmatprep.subr.mxu0 0.0
      %1848 = vmatpush2.msra.mxu0 0.0
      %1849 = vmatprep.subr.mxu0 0.0
      %1850 = vmatpush2.msra.mxu0 0.0
      %1851 = vmatprep.subr.mxu0 0.0
      %1852 = vmatpush2.msra.mxu0 0.0
      %1853 = vmatprep.subr.mxu0 0.0
      %1854 = vmatpush2.msra.mxu0 0.0
      %1855 = vmatprep.subr.mxu0 0.0
      %1856 = vmatpush2.msra.mxu0 0.0
      %1857 = vmatprep.subr.mxu0 0.0
      %1858 = vmatpush2.msra.mxu0 0.0
      %1859 = vmatprep.subr.mxu0 0.0
      %1860 = vmatpush2.msra.mxu0 0.0
      %1861 = vmatprep.subr.mxu0 0.0
      %1862 = vmatpush2.msra.mxu0 0.0
      %1863 = vmatprep.subr.mxu0 0.0
      %1864 = vmatpush2.msra.mxu0 0.0
      %1865 = vmatprep.subr.mxu0 0.0
      %1866 = vmatpush2.msra.mxu0 0.0
      %1867 = vmatprep.subr.mxu0 0.0
      %1868 = vmatpush2.msra.mxu0 0.0
      %1869 = vmatprep.subr.mxu0 0.0
      %1870 = vmatpush2.msra.mxu0 0.0
      %1871 = vmatprep.mubr.f32.mxu0 0.0
      %1872 = vmatmul.mubr.f32.gmra.mxu0 %v1682
      %v1873 = vpop.f32.mrf.mxu0
      %v1874 = vadd.f32 0.0, %v1873
      %v1875 = vpop.f32.mrf.mxu0
      %1876 = vmatprep.mubr.f32.mxu0 0.0
      %1877 = vmatmul.mubr.f32.gmra.mxu0 %v1685
      %v1878 = vpop.f32.mrf.mxu0
      %v1879 = vadd.f32 0.0, %v1878
      %v1880 = vpop.f32.mrf.mxu0
      %1881 = vmatprep.mubr.f32.mxu0 0.0
      %1882 = vmatmul.mubr.f32.gmra.mxu0 %v1688
      %v1883 = vpop.f32.mrf.mxu0
      %v1884 = vadd.f32 0.0, %v1883
      %v1885 = vpop.f32.mrf.mxu0
      %1886 = vmatprep.mubr.f32.mxu0 0.0
      %1887 = vmatmul.mubr.f32.gmra.mxu0 %v1691
      %v1888 = vpop.f32.mrf.mxu0
      %v1889 = vadd.f32 0.0, %v1888
      %v1890 = vpop.f32.mrf.mxu0
      %1891 = vmatprep.mubr.f32.mxu0 0.0
      %1892 = vmatmul.mubr.f32.gmra.mxu0 %v1694
      %v1893 = vpop.f32.mrf.mxu0
      %v1894 = vadd.f32 0.0, %v1893
      %v1895 = vpop.f32.mrf.mxu0
      %1896 = vmatprep.mubr.f32.mxu0 0.0
      %1897 = vmatmul.mubr.f32.gmra.mxu0 %v1697
      %v1898 = vpop.f32.mrf.mxu0
      %v1899 = vadd.f32 0.0, %v1898
      %v1900 = vpop.f32.mrf.mxu0
      %1901 = vmatprep.mubr.f32.mxu0 0.0
      %1902 = vmatmul.mubr.f32.gmra.mxu0 %v1700
      %v1903 = vpop.f32.mrf.mxu0
      %v1904 = vadd.f32 0.0, %v1903
      %v1905 = vpop.f32.mrf.mxu0
      %1906 = vmatprep.mubr.f32.mxu0 0.0
      %1907 = vmatmul.mubr.f32.gmra.mxu0 %v1703
      %v1908 = vpop.f32.mrf.mxu0
      %v1909 = vadd.f32 0.0, %v1908
      %v1910 = vpop.f32.mrf.mxu0
      %1911 = vmatprep.mubr.f32.mxu0 0.0
      %1912 = vmatmul.mubr.f32.gmra.mxu0 %v1706
      %v1913 = vpop.f32.mrf.mxu0
      %v1914 = vadd.f32 0.0, %v1913
      %v1915 = vpop.f32.mrf.mxu0
      %1916 = vmatprep.mubr.f32.mxu0 0.0
      %1917 = vmatmul.mubr.f32.gmra.mxu0 %v1709
      %v1918 = vpop.f32.mrf.mxu0
      %v1919 = vadd.f32 0.0, %v1918
      %v1920 = vpop.f32.mrf.mxu0
      %1921 = vmatprep.mubr.f32.mxu0 0.0
      %1922 = vmatmul.mubr.f32.gmra.mxu0 %v1712
      %v1923 = vpop.f32.mrf.mxu0
      %v1924 = vadd.f32 0.0, %v1923
      %v1925 = vpop.f32.mrf.mxu0
      %1926 = vmatprep.mubr.f32.mxu0 0.0
      %1927 = vmatmul.mubr.f32.gmra.mxu0 %v1715
      %v1928 = vpop.f32.mrf.mxu0
      %v1929 = vadd.f32 0.0, %v1928
      %v1930 = vpop.f32.mrf.mxu0
      %1931 = vmatprep.mubr.f32.mxu0 0.0
      %1932 = vmatmul.mubr.f32.gmra.mxu0 %v1718
      %v1933 = vpop.f32.mrf.mxu0
      %v1934 = vadd.f32 0.0, %v1933
      %v1935 = vpop.f32.mrf.mxu0
      %1936 = vmatprep.mubr.f32.mxu0 0.0
      %1937 = vmatmul.mubr.f32.gmra.mxu0 %v1721
      %v1938 = vpop.f32.mrf.mxu0
      %v1939 = vadd.f32 0.0, %v1938
      %v1940 = vpop.f32.mrf.mxu0
      %1941 = vmatprep.mubr.f32.mxu0 0.0
      %1942 = vmatmul.mubr.f32.gmra.mxu0 %v1724
      %v1943 = vpop.f32.mrf.mxu0
      %v1944 = vadd.f32 0.0, %v1943
      %v1945 = vpop.f32.mrf.mxu0
      %1946 = vmatprep.mubr.f32.mxu0 0.0
      %1947 = vmatmul.mubr.f32.gmra.mxu0 %v1727
      %v1948 = vpop.f32.mrf.mxu0
      %v1949 = vadd.f32 0.0, %v1948
      %v1950 = vpop.f32.mrf.mxu0
      %1951 = vmatprep.mubr.f32.mxu0 0.0
      %1952 = vmatmul.mubr.f32.gmra.mxu0 %v1730
      %v1953 = vpop.f32.mrf.mxu0
      %v1954 = vadd.f32 0.0, %v1953
      %v1955 = vpop.f32.mrf.mxu0
      %1956 = vmatprep.mubr.f32.mxu0 0.0
      %1957 = vmatmul.mubr.f32.gmra.mxu0 %v1733
      %v1958 = vpop.f32.mrf.mxu0
      %v1959 = vadd.f32 0.0, %v1958
      %v1960 = vpop.f32.mrf.mxu0
      %1961 = vmatprep.mubr.f32.mxu0 0.0
      %1962 = vmatmul.mubr.f32.gmra.mxu0 %v1736
      %v1963 = vpop.f32.mrf.mxu0
      %v1964 = vadd.f32 0.0, %v1963
      %v1965 = vpop.f32.mrf.mxu0
      %1966 = vmatprep.mubr.f32.mxu0 0.0
      %1967 = vmatmul.mubr.f32.gmra.mxu0 %v1739
      %v1968 = vpop.f32.mrf.mxu0
      %v1969 = vadd.f32 0.0, %v1968
      %v1970 = vpop.f32.mrf.mxu0
      %1971 = vmatprep.mubr.f32.mxu0 0.0
      %1972 = vmatmul.mubr.f32.gmra.mxu0 %v1742
      %v1973 = vpop.f32.mrf.mxu0
      %v1974 = vadd.f32 0.0, %v1973
      %v1975 = vpop.f32.mrf.mxu0
      %1976 = vmatprep.mubr.f32.mxu0 0.0
      %1977 = vmatmul.mubr.f32.gmra.mxu0 %v1745
      %v1978 = vpop.f32.mrf.mxu0
      %v1979 = vadd.f32 0.0, %v1978
      %v1980 = vpop.f32.mrf.mxu0
      %1981 = vmatprep.mubr.f32.mxu0 0.0
      %1982 = vmatmul.mubr.f32.gmra.mxu0 %v1748
      %v1983 = vpop.f32.mrf.mxu0
      %v1984 = vadd.f32 0.0, %v1983
      %v1985 = vpop.f32.mrf.mxu0
      %1986 = vmatprep.mubr.f32.mxu0 0.0
      %1987 = vmatmul.mubr.f32.gmra.mxu0 %v1751
      %v1988 = vpop.f32.mrf.mxu0
      %v1989 = vadd.f32 0.0, %v1988
      %v1990 = vpop.f32.mrf.mxu0
      %1991 = vmatprep.mubr.f32.mxu0 0.0
      %1992 = vmatmul.mubr.f32.gmra.mxu0 %v1754
      %v1993 = vpop.f32.mrf.mxu0
      %v1994 = vadd.f32 0.0, %v1993
      %v1995 = vpop.f32.mrf.mxu0
      %1996 = vmatprep.mubr.f32.mxu0 0.0
      %1997 = vmatmul.mubr.f32.gmra.mxu0 %v1757
      %v1998 = vpop.f32.mrf.mxu0
      %v1999 = vadd.f32 0.0, %v1998
      %v2000 = vpop.f32.mrf.mxu0
      %2001 = vmatprep.mubr.f32.mxu0 0.0
      %2002 = vmatmul.mubr.f32.gmra.mxu0 %v1760
      %v2003 = vpop.f32.mrf.mxu0
      %v2004 = vadd.f32 0.0, %v2003
      %v2005 = vpop.f32.mrf.mxu0
      %2006 = vmatprep.mubr.f32.mxu0 0.0
      %2007 = vmatmul.mubr.f32.gmra.mxu0 %v1763
      %v2008 = vpop.f32.mrf.mxu0
      %v2009 = vadd.f32 0.0, %v2008
      %v2010 = vpop.f32.mrf.mxu0
      %2011 = vmatprep.mubr.f32.mxu0 0.0
      %2012 = vmatmul.mubr.f32.gmra.mxu0 %v1766
      %v2013 = vpop.f32.mrf.mxu0
      %v2014 = vadd.f32 0.0, %v2013
      %v2015 = vpop.f32.mrf.mxu0
      %2016 = vmatprep.mubr.f32.mxu0 0.0
      %2017 = vmatmul.mubr.f32.gmra.mxu0 %v1769
      %v2018 = vpop.f32.mrf.mxu0
      %v2019 = vadd.f32 0.0, %v2018
      %v2020 = vpop.f32.mrf.mxu0
      %2021 = vmatprep.mubr.f32.mxu0 0.0
      %2022 = vmatmul.mubr.f32.gmra.mxu0 %v1772
      %v2023 = vpop.f32.mrf.mxu0
      %v2024 = vadd.f32 0.0, %v2023
      %v2025 = vpop.f32.mrf.mxu0
      %2026 = vmatprep.mubr.f32.mxu0 0.0
      %2027 = vmatmul.mubr.f32.gmra.mxu0 %v1775
      %v2028 = vpop.f32.mrf.mxu0
      %v2029 = vadd.f32 0.0, %v2028
      %v2030 = vpop.f32.mrf.mxu0
      %2031 = vmatprep.mubr.f32.mxu0 0.0
      %2032 = vmatmul.mubr.f32.gmra.mxu0 %v1778
      %v2033 = vpop.f32.mrf.mxu0
      %v2034 = vadd.f32 0.0, %v2033
      %v2035 = vpop.f32.mrf.mxu0
      %2036 = vmatprep.mubr.f32.mxu0 0.0
      %2037 = vmatmul.mubr.f32.gmra.mxu0 %v1781
      %v2038 = vpop.f32.mrf.mxu0
      %v2039 = vadd.f32 0.0, %v2038
      %v2040 = vpop.f32.mrf.mxu0
      %2041 = vmatprep.mubr.f32.mxu0 0.0
      %2042 = vmatmul.mubr.f32.gmra.mxu0 %v1784
      %v2043 = vpop.f32.mrf.mxu0
      %v2044 = vadd.f32 0.0, %v2043
      %v2045 = vpop.f32.mrf.mxu0
      %2046 = vmatprep.mubr.f32.mxu0 0.0
      %2047 = vmatmul.mubr.f32.gmra.mxu0 %v1787
      %v2048 = vpop.f32.mrf.mxu0
      %v2049 = vadd.f32 0.0, %v2048
      %v2050 = vpop.f32.mrf.mxu0
      %2051 = vmatprep.mubr.f32.mxu0 0.0
      %2052 = vmatmul.mubr.f32.gmra.mxu0 %v1790
      %v2053 = vpop.f32.mrf.mxu0
      %v2054 = vadd.f32 0.0, %v2053
      %v2055 = vpop.f32.mrf.mxu0
      %2056 = vmatprep.mubr.f32.mxu0 0.0
      %2057 = vmatmul.mubr.f32.gmra.mxu0 %v1793
      %v2058 = vpop.f32.mrf.mxu0
      %v2059 = vadd.f32 0.0, %v2058
      %v2060 = vpop.f32.mrf.mxu0
      %2061 = vmatprep.mubr.f32.mxu0 0.0
      %2062 = vmatmul.mubr.f32.gmra.mxu0 %v1796
      %v2063 = vpop.f32.mrf.mxu0
      %v2064 = vadd.f32 0.0, %v2063
      %v2065 = vpop.f32.mrf.mxu0
      %2066 = vmatprep.mubr.f32.mxu0 0.0
      %2067 = vmatmul.mubr.f32.gmra.mxu0 %v1799
      %v2068 = vpop.f32.mrf.mxu0
      %v2069 = vadd.f32 0.0, %v2068
      %v2070 = vpop.f32.mrf.mxu0
      %2071 = vmatprep.mubr.f32.mxu0 0.0
      %2072 = vmatmul.mubr.f32.gmra.mxu0 %v1802
      %v2073 = vpop.f32.mrf.mxu0
      %v2074 = vadd.f32 0.0, %v2073
      %v2075 = vpop.f32.mrf.mxu0
      %2076 = vdwg.mxu0
      %v2077 = vadd.f32 %v1597, %v1874
      %v2078 = vadd.f32 %v1598, %v1879
      %v2079 = vadd.f32 %v1599, %v1884
      %v2080 = vadd.f32 %v1600, %v1889
      %v2081 = vadd.f32 %v1601, %v1894
      %v2082 = vadd.f32 %v1602, %v1899
      %v2083 = vadd.f32 %v1603, %v1904
      %v2084 = vadd.f32 %v1604, %v1909
      %v2085 = vadd.f32 %v1605, %v1914
      %v2086 = vadd.f32 %v1606, %v1919
      %v2087 = vadd.f32 %v1607, %v1924
      %v2088 = vadd.f32 %v1608, %v1929
      %v2089 = vadd.f32 %v1609, %v1934
      %v2090 = vadd.f32 %v1610, %v1939
      %v2091 = vadd.f32 %v1611, %v1944
      %v2092 = vadd.f32 %v1612, %v1949
      %v2093 = vadd.f32 %v1613, %v1954
      %v2094 = vadd.f32 %v1614, %v1959
      %v2095 = vadd.f32 %v1615, %v1964
      %v2096 = vadd.f32 %v1616, %v1969
      %v2097 = vadd.f32 %v1617, %v1974
      %v2098 = vadd.f32 %v1618, %v1979
      %v2099 = vadd.f32 %v1619, %v1984
      %v2100 = vadd.f32 %v1620, %v1989
      %v2101 = vadd.f32 %v1621, %v1994
      %v2102 = vadd.f32 %v1622, %v1999
      %v2103 = vadd.f32 %v1623, %v2004
      %v2104 = vadd.f32 %v1624, %v2009
      %v2105 = vadd.f32 %v1625, %v2014
      %v2106 = vadd.f32 %v1626, %v2019
      %v2107 = vadd.f32 %v1627, %v2024
      %v2108 = vadd.f32 %v1628, %v2029
      %v2109 = vadd.f32 %v1629, %v2034
      %v2110 = vadd.f32 %v1630, %v2039
      %v2111 = vadd.f32 %v1631, %v2044
      %v2112 = vadd.f32 %v1632, %v2049
      %v2113 = vadd.f32 %v1633, %v2054
      %v2114 = vadd.f32 %v1634, %v2059
      %v2115 = vadd.f32 %v1635, %v2064
      %v2116 = vadd.f32 %v1636, %v2069
      %v2117 = vadd.f32 %v1637, %v2074
      %v2118 = vld [vmem:[%s273 + $0x18] sm:$0xff]
      %v2119 = vld [vmem:[%s273 + $0x20] sm:$0xff]
      %v2120 = vld [vmem:[%s273 + $0x28] sm:$0xff]
      %v2121 = vld [vmem:[%s273 + $0x30] sm:$0xff]
      %v2122 = vld [vmem:[%s273 + $0x38] sm:$0xff]
      %v2123 = vld [vmem:[%s273 + $0x40] sm:$0xff]
      %v2124 = vld [vmem:[%s273 + $0x48] sm:$0xff]
      %v2125 = vld [vmem:[%s273 + $0x50] sm:$0xff]
      %v2126 = vld [vmem:[%s273 + $0x58] sm:$0xff]
      %v2127 = vld [vmem:[%s273 + $0x60] sm:$0xff]
      %v2128 = vld [vmem:[%s273 + $0x68] sm:$0xff]
      %v2129 = vld [vmem:[%s273 + $0x70] sm:$0xff]
      %v2130 = vld [vmem:[%s273 + $0x78] sm:$0xff]
      %v2131 = vld [vmem:[%s273 + $0x80] sm:$0xff]
      %v2132 = vld [vmem:[%s273 + $0x88] sm:$0xff]
      %v2133 = vld [vmem:[%s273 + $0x90] sm:$0xff]
      %v2134 = vld [vmem:[%s273 + $0x98] sm:$0xff]
      %v2135 = vld [vmem:[%s273 + $0xa0] sm:$0xff]
      %v2136 = vld [vmem:[%s273 + $0xa8] sm:$0xff]
      %v2137 = vld [vmem:[%s273 + $0xb0] sm:$0xff]
      %v2138 = vld [vmem:[%s273 + $0xb8] sm:$0xff]
      %v2139 = vld [vmem:[%s273 + $0xc0] sm:$0xff]
      %v2140 = vld [vmem:[%s273 + $0xc8] sm:$0xff]
      %v2141 = vld [vmem:[%s273 + $0xd0] sm:$0xff]
      %v2142 = vld [vmem:[%s273 + $0xd8] sm:$0xff]
      %v2143 = vld [vmem:[%s273 + $0xe0] sm:$0xff]
      %v2144 = vld [vmem:[%s273 + $0xe8] sm:$0xff]
      %v2145 = vld [vmem:[%s273 + $0xf0] sm:$0xff]
      %v2146 = vld [vmem:[%s273 + $0xf8] sm:$0xff]
      %v2147 = vld [vmem:[%s273 + $0x100] sm:$0xff]
      %v2148 = vld [vmem:[%s273 + $0x108] sm:$0xff]
      %v2149 = vld [vmem:[%s273 + $0x110] sm:$0xff]
      %v2150 = vld [vmem:[%s273 + $0x118] sm:$0xff]
      %v2151 = vld [vmem:[%s273 + $0x120] sm:$0xff]
      %v2152 = vld [vmem:[%s273 + $0x128] sm:$0xff]
      %v2153 = vld [vmem:[%s273 + $0x130] sm:$0xff]
      %v2154 = vld [vmem:[%s273 + $0x138] sm:$0xff]
      %v2155 = vld [vmem:[%s273 + $0x140] sm:$0xff]
      %v2156 = vld [vmem:[%s273 + $0x148] sm:$0xff]
      %v2157 = vld [vmem:[%s273 + $0x150] sm:$0xff]
      %v2158 = vld [vmem:[%s273 + $0x158] sm:$0xf]
      %s2159 = scalar_lea.vmem %s1, 16
      %v2160 = vld [vmem:[%s2159] sm:$0xf]
      %v2162 = vsel %vm364, %v2118, 0
      %v2165 = vsel %vm364, %v2119, 0
      %v2168 = vsel %vm364, %v2120, 0
      %v2171 = vsel %vm364, %v2121, 0
      %v2174 = vsel %vm364, %v2122, 0
      %v2177 = vsel %vm364, %v2123, 0
      %v2180 = vsel %vm364, %v2124, 0
      %v2183 = vsel %vm364, %v2125, 0
      %v2186 = vsel %vm364, %v2126, 0
      %v2189 = vsel %vm364, %v2127, 0
      %v2192 = vsel %vm364, %v2128, 0
      %v2195 = vsel %vm364, %v2129, 0
      %v2198 = vsel %vm364, %v2130, 0
      %v2201 = vsel %vm364, %v2131, 0
      %v2204 = vsel %vm364, %v2132, 0
      %v2207 = vsel %vm364, %v2133, 0
      %v2210 = vsel %vm364, %v2134, 0
      %v2213 = vsel %vm364, %v2135, 0
      %v2216 = vsel %vm364, %v2136, 0
      %v2219 = vsel %vm364, %v2137, 0
      %v2222 = vsel %vm364, %v2138, 0
      %v2225 = vsel %vm364, %v2139, 0
      %v2228 = vsel %vm364, %v2140, 0
      %v2231 = vsel %vm364, %v2141, 0
      %v2234 = vsel %vm364, %v2142, 0
      %v2237 = vsel %vm364, %v2143, 0
      %v2240 = vsel %vm364, %v2144, 0
      %v2243 = vsel %vm364, %v2145, 0
      %v2246 = vsel %vm364, %v2146, 0
      %v2249 = vsel %vm364, %v2147, 0
      %v2252 = vsel %vm364, %v2148, 0
      %v2255 = vsel %vm364, %v2149, 0
      %v2258 = vsel %vm364, %v2150, 0
      %v2261 = vsel %vm364, %v2151, 0
      %v2264 = vsel %vm364, %v2152, 0
      %v2267 = vsel %vm364, %v2153, 0
      %v2270 = vsel %vm364, %v2154, 0
      %v2273 = vsel %vm364, %v2155, 0
      %v2276 = vsel %vm364, %v2156, 0
      %v2279 = vsel %vm364, %v2157, 0
      %v2282 = vsel %vm364, %v2158, 0
      %v2285 = vsel %vm488, %v2160, 0
      %2287 = vmatprep.subr.mxu0 0.0
      %2288 = vmatpush1.msra.mxu0 0.0
      %2289 = vmatprep.subr.mxu0 0.0
      %2290 = vmatpush1.msra.mxu0 0.0
      %2291 = vmatprep.subr.mxu0 0.0
      %2292 = vmatpush1.msra.mxu0 0.0
      %2293 = vmatprep.subr.mxu0 0.0
      %2294 = vmatpush1.msra.mxu0 0.0
      %2295 = vmatprep.subr.mxu0 0.0
      %2296 = vmatpush1.msra.mxu0 0.0
      %2297 = vmatprep.subr.mxu0 0.0
      %2298 = vmatpush1.msra.mxu0 0.0
      %2299 = vmatprep.subr.mxu0 0.0
      %2300 = vmatpush1.msra.mxu0 0.0
      %2301 = vmatprep.subr.mxu0 0.0
      %2302 = vmatpush1.msra.mxu0 0.0
      %2303 = vmatprep.subr.mxu0 0.0
      %2304 = vmatpush1.msra.mxu0 0.0
      %2305 = vmatprep.subr.mxu0 0.0
      %2306 = vmatpush1.msra.mxu0 0.0
      %2307 = vmatprep.subr.mxu0 0.0
      %2308 = vmatpush1.msra.mxu0 0.0
      %2309 = vmatprep.subr.mxu0 0.0
      %2310 = vmatpush1.msra.mxu0 0.0
      %2311 = vmatprep.subr.mxu0 0.0
      %2312 = vmatpush1.msra.mxu0 0.0
      %2313 = vmatprep.subr.mxu0 0.0
      %2314 = vmatpush1.msra.mxu0 0.0
      %2315 = vmatprep.subr.mxu0 0.0
      %2316 = vmatpush1.msra.mxu0 0.0
      %2317 = vmatprep.subr.mxu0 0.0
      %2318 = vmatpush1.msra.mxu0 %v2285
      %2319 = vmatprep.subr.mxu0 0.0
      %2320 = vmatpush2.msra.mxu0 0.0
      %2321 = vmatprep.subr.mxu0 0.0
      %2322 = vmatpush2.msra.mxu0 0.0
      %2323 = vmatprep.subr.mxu0 0.0
      %2324 = vmatpush2.msra.mxu0 0.0
      %2325 = vmatprep.subr.mxu0 0.0
      %2326 = vmatpush2.msra.mxu0 0.0
      %2327 = vmatprep.subr.mxu0 0.0
      %2328 = vmatpush2.msra.mxu0 0.0
      %2329 = vmatprep.subr.mxu0 0.0
      %2330 = vmatpush2.msra.mxu0 0.0
      %2331 = vmatprep.subr.mxu0 0.0
      %2332 = vmatpush2.msra.mxu0 0.0
      %2333 = vmatprep.subr.mxu0 0.0
      %2334 = vmatpush2.msra.mxu0 0.0
      %2335 = vmatprep.subr.mxu0 0.0
      %2336 = vmatpush2.msra.mxu0 0.0
      %2337 = vmatprep.subr.mxu0 0.0
      %2338 = vmatpush2.msra.mxu0 0.0
      %2339 = vmatprep.subr.mxu0 0.0
      %2340 = vmatpush2.msra.mxu0 0.0
      %2341 = vmatprep.subr.mxu0 0.0
      %2342 = vmatpush2.msra.mxu0 0.0
      %2343 = vmatprep.subr.mxu0 0.0
      %2344 = vmatpush2.msra.mxu0 0.0
      %2345 = vmatprep.subr.mxu0 0.0
      %2346 = vmatpush2.msra.mxu0 0.0
      %2347 = vmatprep.subr.mxu0 0.0
      %2348 = vmatpush2.msra.mxu0 0.0
      %2349 = vmatprep.subr.mxu0 0.0
      %2350 = vmatpush2.msra.mxu0 0.0
      %2351 = vmatprep.mubr.f32.mxu0 0.0
      %2352 = vmatmul.mubr.f32.gmra.mxu0 %v2162
      %v2353 = vpop.f32.mrf.mxu0
      %v2354 = vadd.f32 0.0, %v2353
      %v2355 = vpop.f32.mrf.mxu0
      %2356 = vmatprep.mubr.f32.mxu0 0.0
      %2357 = vmatmul.mubr.f32.gmra.mxu0 %v2165
      %v2358 = vpop.f32.mrf.mxu0
      %v2359 = vadd.f32 0.0, %v2358
      %v2360 = vpop.f32.mrf.mxu0
      %2361 = vmatprep.mubr.f32.mxu0 0.0
      %2362 = vmatmul.mubr.f32.gmra.mxu0 %v2168
      %v2363 = vpop.f32.mrf.mxu0
      %v2364 = vadd.f32 0.0, %v2363
      %v2365 = vpop.f32.mrf.mxu0
      %2366 = vmatprep.mubr.f32.mxu0 0.0
      %2367 = vmatmul.mubr.f32.gmra.mxu0 %v2171
      %v2368 = vpop.f32.mrf.mxu0
      %v2369 = vadd.f32 0.0, %v2368
      %v2370 = vpop.f32.mrf.mxu0
      %2371 = vmatprep.mubr.f32.mxu0 0.0
      %2372 = vmatmul.mubr.f32.gmra.mxu0 %v2174
      %v2373 = vpop.f32.mrf.mxu0
      %v2374 = vadd.f32 0.0, %v2373
      %v2375 = vpop.f32.mrf.mxu0
      %2376 = vmatprep.mubr.f32.mxu0 0.0
      %2377 = vmatmul.mubr.f32.gmra.mxu0 %v2177
      %v2378 = vpop.f32.mrf.mxu0
      %v2379 = vadd.f32 0.0, %v2378
      %v2380 = vpop.f32.mrf.mxu0
      %2381 = vmatprep.mubr.f32.mxu0 0.0
      %2382 = vmatmul.mubr.f32.gmra.mxu0 %v2180
      %v2383 = vpop.f32.mrf.mxu0
      %v2384 = vadd.f32 0.0, %v2383
      %v2385 = vpop.f32.mrf.mxu0
      %2386 = vmatprep.mubr.f32.mxu0 0.0
      %2387 = vmatmul.mubr.f32.gmra.mxu0 %v2183
      %v2388 = vpop.f32.mrf.mxu0
      %v2389 = vadd.f32 0.0, %v2388
      %v2390 = vpop.f32.mrf.mxu0
      %2391 = vmatprep.mubr.f32.mxu0 0.0
      %2392 = vmatmul.mubr.f32.gmra.mxu0 %v2186
      %v2393 = vpop.f32.mrf.mxu0
      %v2394 = vadd.f32 0.0, %v2393
      %v2395 = vpop.f32.mrf.mxu0
      %2396 = vmatprep.mubr.f32.mxu0 0.0
      %2397 = vmatmul.mubr.f32.gmra.mxu0 %v2189
      %v2398 = vpop.f32.mrf.mxu0
      %v2399 = vadd.f32 0.0, %v2398
      %v2400 = vpop.f32.mrf.mxu0
      %2401 = vmatprep.mubr.f32.mxu0 0.0
      %2402 = vmatmul.mubr.f32.gmra.mxu0 %v2192
      %v2403 = vpop.f32.mrf.mxu0
      %v2404 = vadd.f32 0.0, %v2403
      %v2405 = vpop.f32.mrf.mxu0
      %2406 = vmatprep.mubr.f32.mxu0 0.0
      %2407 = vmatmul.mubr.f32.gmra.mxu0 %v2195
      %v2408 = vpop.f32.mrf.mxu0
      %v2409 = vadd.f32 0.0, %v2408
      %v2410 = vpop.f32.mrf.mxu0
      %2411 = vmatprep.mubr.f32.mxu0 0.0
      %2412 = vmatmul.mubr.f32.gmra.mxu0 %v2198
      %v2413 = vpop.f32.mrf.mxu0
      %v2414 = vadd.f32 0.0, %v2413
      %v2415 = vpop.f32.mrf.mxu0
      %2416 = vmatprep.mubr.f32.mxu0 0.0
      %2417 = vmatmul.mubr.f32.gmra.mxu0 %v2201
      %v2418 = vpop.f32.mrf.mxu0
      %v2419 = vadd.f32 0.0, %v2418
      %v2420 = vpop.f32.mrf.mxu0
      %2421 = vmatprep.mubr.f32.mxu0 0.0
      %2422 = vmatmul.mubr.f32.gmra.mxu0 %v2204
      %v2423 = vpop.f32.mrf.mxu0
      %v2424 = vadd.f32 0.0, %v2423
      %v2425 = vpop.f32.mrf.mxu0
      %2426 = vmatprep.mubr.f32.mxu0 0.0
      %2427 = vmatmul.mubr.f32.gmra.mxu0 %v2207
      %v2428 = vpop.f32.mrf.mxu0
      %v2429 = vadd.f32 0.0, %v2428
      %v2430 = vpop.f32.mrf.mxu0
      %2431 = vmatprep.mubr.f32.mxu0 0.0
      %2432 = vmatmul.mubr.f32.gmra.mxu0 %v2210
      %v2433 = vpop.f32.mrf.mxu0
      %v2434 = vadd.f32 0.0, %v2433
      %v2435 = vpop.f32.mrf.mxu0
      %2436 = vmatprep.mubr.f32.mxu0 0.0
      %2437 = vmatmul.mubr.f32.gmra.mxu0 %v2213
      %v2438 = vpop.f32.mrf.mxu0
      %v2439 = vadd.f32 0.0, %v2438
      %v2440 = vpop.f32.mrf.mxu0
      %2441 = vmatprep.mubr.f32.mxu0 0.0
      %2442 = vmatmul.mubr.f32.gmra.mxu0 %v2216
      %v2443 = vpop.f32.mrf.mxu0
      %v2444 = vadd.f32 0.0, %v2443
      %v2445 = vpop.f32.mrf.mxu0
      %2446 = vmatprep.mubr.f32.mxu0 0.0
      %2447 = vmatmul.mubr.f32.gmra.mxu0 %v2219
      %v2448 = vpop.f32.mrf.mxu0
      %v2449 = vadd.f32 0.0, %v2448
      %v2450 = vpop.f32.mrf.mxu0
      %2451 = vmatprep.mubr.f32.mxu0 0.0
      %2452 = vmatmul.mubr.f32.gmra.mxu0 %v2222
      %v2453 = vpop.f32.mrf.mxu0
      %v2454 = vadd.f32 0.0, %v2453
      %v2455 = vpop.f32.mrf.mxu0
      %2456 = vmatprep.mubr.f32.mxu0 0.0
      %2457 = vmatmul.mubr.f32.gmra.mxu0 %v2225
      %v2458 = vpop.f32.mrf.mxu0
      %v2459 = vadd.f32 0.0, %v2458
      %v2460 = vpop.f32.mrf.mxu0
      %2461 = vmatprep.mubr.f32.mxu0 0.0
      %2462 = vmatmul.mubr.f32.gmra.mxu0 %v2228
      %v2463 = vpop.f32.mrf.mxu0
      %v2464 = vadd.f32 0.0, %v2463
      %v2465 = vpop.f32.mrf.mxu0
      %2466 = vmatprep.mubr.f32.mxu0 0.0
      %2467 = vmatmul.mubr.f32.gmra.mxu0 %v2231
      %v2468 = vpop.f32.mrf.mxu0
      %v2469 = vadd.f32 0.0, %v2468
      %v2470 = vpop.f32.mrf.mxu0
      %2471 = vmatprep.mubr.f32.mxu0 0.0
      %2472 = vmatmul.mubr.f32.gmra.mxu0 %v2234
      %v2473 = vpop.f32.mrf.mxu0
      %v2474 = vadd.f32 0.0, %v2473
      %v2475 = vpop.f32.mrf.mxu0
      %2476 = vmatprep.mubr.f32.mxu0 0.0
      %2477 = vmatmul.mubr.f32.gmra.mxu0 %v2237
      %v2478 = vpop.f32.mrf.mxu0
      %v2479 = vadd.f32 0.0, %v2478
      %v2480 = vpop.f32.mrf.mxu0
      %2481 = vmatprep.mubr.f32.mxu0 0.0
      %2482 = vmatmul.mubr.f32.gmra.mxu0 %v2240
      %v2483 = vpop.f32.mrf.mxu0
      %v2484 = vadd.f32 0.0, %v2483
      %v2485 = vpop.f32.mrf.mxu0
      %2486 = vmatprep.mubr.f32.mxu0 0.0
      %2487 = vmatmul.mubr.f32.gmra.mxu0 %v2243
      %v2488 = vpop.f32.mrf.mxu0
      %v2489 = vadd.f32 0.0, %v2488
      %v2490 = vpop.f32.mrf.mxu0
      %2491 = vmatprep.mubr.f32.mxu0 0.0
      %2492 = vmatmul.mubr.f32.gmra.mxu0 %v2246
      %v2493 = vpop.f32.mrf.mxu0
      %v2494 = vadd.f32 0.0, %v2493
      %v2495 = vpop.f32.mrf.mxu0
      %2496 = vmatprep.mubr.f32.mxu0 0.0
      %2497 = vmatmul.mubr.f32.gmra.mxu0 %v2249
      %v2498 = vpop.f32.mrf.mxu0
      %v2499 = vadd.f32 0.0, %v2498
      %v2500 = vpop.f32.mrf.mxu0
      %2501 = vmatprep.mubr.f32.mxu0 0.0
      %2502 = vmatmul.mubr.f32.gmra.mxu0 %v2252
      %v2503 = vpop.f32.mrf.mxu0
      %v2504 = vadd.f32 0.0, %v2503
      %v2505 = vpop.f32.mrf.mxu0
      %2506 = vmatprep.mubr.f32.mxu0 0.0
      %2507 = vmatmul.mubr.f32.gmra.mxu0 %v2255
      %v2508 = vpop.f32.mrf.mxu0
      %v2509 = vadd.f32 0.0, %v2508
      %v2510 = vpop.f32.mrf.mxu0
      %2511 = vmatprep.mubr.f32.mxu0 0.0
      %2512 = vmatmul.mubr.f32.gmra.mxu0 %v2258
      %v2513 = vpop.f32.mrf.mxu0
      %v2514 = vadd.f32 0.0, %v2513
      %v2515 = vpop.f32.mrf.mxu0
      %2516 = vmatprep.mubr.f32.mxu0 0.0
      %2517 = vmatmul.mubr.f32.gmra.mxu0 %v2261
      %v2518 = vpop.f32.mrf.mxu0
      %v2519 = vadd.f32 0.0, %v2518
      %v2520 = vpop.f32.mrf.mxu0
      %2521 = vmatprep.mubr.f32.mxu0 0.0
      %2522 = vmatmul.mubr.f32.gmra.mxu0 %v2264
      %v2523 = vpop.f32.mrf.mxu0
      %v2524 = vadd.f32 0.0, %v2523
      %v2525 = vpop.f32.mrf.mxu0
      %2526 = vmatprep.mubr.f32.mxu0 0.0
      %2527 = vmatmul.mubr.f32.gmra.mxu0 %v2267
      %v2528 = vpop.f32.mrf.mxu0
      %v2529 = vadd.f32 0.0, %v2528
      %v2530 = vpop.f32.mrf.mxu0
      %2531 = vmatprep.mubr.f32.mxu0 0.0
      %2532 = vmatmul.mubr.f32.gmra.mxu0 %v2270
      %v2533 = vpop.f32.mrf.mxu0
      %v2534 = vadd.f32 0.0, %v2533
      %v2535 = vpop.f32.mrf.mxu0
      %2536 = vmatprep.mubr.f32.mxu0 0.0
      %2537 = vmatmul.mubr.f32.gmra.mxu0 %v2273
      %v2538 = vpop.f32.mrf.mxu0
      %v2539 = vadd.f32 0.0, %v2538
      %v2540 = vpop.f32.mrf.mxu0
      %2541 = vmatprep.mubr.f32.mxu0 0.0
      %2542 = vmatmul.mubr.f32.gmra.mxu0 %v2276
      %v2543 = vpop.f32.mrf.mxu0
      %v2544 = vadd.f32 0.0, %v2543
      %v2545 = vpop.f32.mrf.mxu0
      %2546 = vmatprep.mubr.f32.mxu0 0.0
      %2547 = vmatmul.mubr.f32.gmra.mxu0 %v2279
      %v2548 = vpop.f32.mrf.mxu0
      %v2549 = vadd.f32 0.0, %v2548
      %v2550 = vpop.f32.mrf.mxu0
      %2551 = vmatprep.mubr.f32.mxu0 0.0
      %2552 = vmatmul.mubr.f32.gmra.mxu0 %v2282
      %v2553 = vpop.f32.mrf.mxu0
      %v2554 = vadd.f32 0.0, %v2553
      %v2555 = vpop.f32.mrf.mxu0
      %2556 = vdwg.mxu0
      %v2557 = vadd.f32 %v2077, %v2354
      %v2558 = vadd.f32 %v2078, %v2359
      %v2559 = vadd.f32 %v2079, %v2364
      %v2560 = vadd.f32 %v2080, %v2369
      %v2561 = vadd.f32 %v2081, %v2374
      %v2562 = vadd.f32 %v2082, %v2379
      %v2563 = vadd.f32 %v2083, %v2384
      %v2564 = vadd.f32 %v2084, %v2389
      %v2565 = vadd.f32 %v2085, %v2394
      %v2566 = vadd.f32 %v2086, %v2399
      %v2567 = vadd.f32 %v2087, %v2404
      %v2568 = vadd.f32 %v2088, %v2409
      %v2569 = vadd.f32 %v2089, %v2414
      %v2570 = vadd.f32 %v2090, %v2419
      %v2571 = vadd.f32 %v2091, %v2424
      %v2572 = vadd.f32 %v2092, %v2429
      %v2573 = vadd.f32 %v2093, %v2434
      %v2574 = vadd.f32 %v2094, %v2439
      %v2575 = vadd.f32 %v2095, %v2444
      %v2576 = vadd.f32 %v2096, %v2449
      %v2577 = vadd.f32 %v2097, %v2454
      %v2578 = vadd.f32 %v2098, %v2459
      %v2579 = vadd.f32 %v2099, %v2464
      %v2580 = vadd.f32 %v2100, %v2469
      %v2581 = vadd.f32 %v2101, %v2474
      %v2582 = vadd.f32 %v2102, %v2479
      %v2583 = vadd.f32 %v2103, %v2484
      %v2584 = vadd.f32 %v2104, %v2489
      %v2585 = vadd.f32 %v2105, %v2494
      %v2586 = vadd.f32 %v2106, %v2499
      %v2587 = vadd.f32 %v2107, %v2504
      %v2588 = vadd.f32 %v2108, %v2509
      %v2589 = vadd.f32 %v2109, %v2514
      %v2590 = vadd.f32 %v2110, %v2519
      %v2591 = vadd.f32 %v2111, %v2524
      %v2592 = vadd.f32 %v2112, %v2529
      %v2593 = vadd.f32 %v2113, %v2534
      %v2594 = vadd.f32 %v2114, %v2539
      %v2595 = vadd.f32 %v2115, %v2544
      %v2596 = vadd.f32 %v2116, %v2549
      %v2597 = vadd.f32 %v2117, %v2554
      %v2598 = vld [vmem:[%s273 + $0x19] sm:$0xff]
      %v2599 = vld [vmem:[%s273 + $0x21] sm:$0xff]
      %v2600 = vld [vmem:[%s273 + $0x29] sm:$0xff]
      %v2601 = vld [vmem:[%s273 + $0x31] sm:$0xff]
      %v2602 = vld [vmem:[%s273 + $0x39] sm:$0xff]
      %v2603 = vld [vmem:[%s273 + $0x41] sm:$0xff]
      %v2604 = vld [vmem:[%s273 + $0x49] sm:$0xff]
      %v2605 = vld [vmem:[%s273 + $0x51] sm:$0xff]
      %v2606 = vld [vmem:[%s273 + $0x59] sm:$0xff]
      %v2607 = vld [vmem:[%s273 + $0x61] sm:$0xff]
      %v2608 = vld [vmem:[%s273 + $0x69] sm:$0xff]
      %v2609 = vld [vmem:[%s273 + $0x71] sm:$0xff]
      %v2610 = vld [vmem:[%s273 + $0x79] sm:$0xff]
      %v2611 = vld [vmem:[%s273 + $0x81] sm:$0xff]
      %v2612 = vld [vmem:[%s273 + $0x89] sm:$0xff]
      %v2613 = vld [vmem:[%s273 + $0x91] sm:$0xff]
      %v2614 = vld [vmem:[%s273 + $0x99] sm:$0xff]
      %v2615 = vld [vmem:[%s273 + $0xa1] sm:$0xff]
      %v2616 = vld [vmem:[%s273 + $0xa9] sm:$0xff]
      %v2617 = vld [vmem:[%s273 + $0xb1] sm:$0xff]
      %v2618 = vld [vmem:[%s273 + $0xb9] sm:$0xff]
      %v2619 = vld [vmem:[%s273 + $0xc1] sm:$0xff]
      %v2620 = vld [vmem:[%s273 + $0xc9] sm:$0xff]
      %v2621 = vld [vmem:[%s273 + $0xd1] sm:$0xff]
      %v2622 = vld [vmem:[%s273 + $0xd9] sm:$0xff]
      %v2623 = vld [vmem:[%s273 + $0xe1] sm:$0xff]
      %v2624 = vld [vmem:[%s273 + $0xe9] sm:$0xff]
      %v2625 = vld [vmem:[%s273 + $0xf1] sm:$0xff]
      %v2626 = vld [vmem:[%s273 + $0xf9] sm:$0xff]
      %v2627 = vld [vmem:[%s273 + $0x101] sm:$0xff]
      %v2628 = vld [vmem:[%s273 + $0x109] sm:$0xff]
      %v2629 = vld [vmem:[%s273 + $0x111] sm:$0xff]
      %v2630 = vld [vmem:[%s273 + $0x119] sm:$0xff]
      %v2631 = vld [vmem:[%s273 + $0x121] sm:$0xff]
      %v2632 = vld [vmem:[%s273 + $0x129] sm:$0xff]
      %v2633 = vld [vmem:[%s273 + $0x131] sm:$0xff]
      %v2634 = vld [vmem:[%s273 + $0x139] sm:$0xff]
      %v2635 = vld [vmem:[%s273 + $0x141] sm:$0xff]
      %v2636 = vld [vmem:[%s273 + $0x149] sm:$0xff]
      %v2637 = vld [vmem:[%s273 + $0x151] sm:$0xff]
      %v2638 = vld [vmem:[%s273 + $0x159] sm:$0xf]
      %s2639 = scalar_lea.vmem %s1, 20
      %v2640 = vld [vmem:[%s2639] sm:$0xf]
      %v2642 = vsel %vm364, %v2598, 0
      %v2645 = vsel %vm364, %v2599, 0
      %v2648 = vsel %vm364, %v2600, 0
      %v2651 = vsel %vm364, %v2601, 0
      %v2654 = vsel %vm364, %v2602, 0
      %v2657 = vsel %vm364, %v2603, 0
      %v2660 = vsel %vm364, %v2604, 0
      %v2663 = vsel %vm364, %v2605, 0
      %v2666 = vsel %vm364, %v2606, 0
      %v2669 = vsel %vm364, %v2607, 0
      %v2672 = vsel %vm364, %v2608, 0
      %v2675 = vsel %vm364, %v2609, 0
      %v2678 = vsel %vm364, %v2610, 0
      %v2681 = vsel %vm364, %v2611, 0
      %v2684 = vsel %vm364, %v2612, 0
      %v2687 = vsel %vm364, %v2613, 0
      %v2690 = vsel %vm364, %v2614, 0
      %v2693 = vsel %vm364, %v2615, 0
      %v2696 = vsel %vm364, %v2616, 0
      %v2699 = vsel %vm364, %v2617, 0
      %v2702 = vsel %vm364, %v2618, 0
      %v2705 = vsel %vm364, %v2619, 0
      %v2708 = vsel %vm364, %v2620, 0
      %v2711 = vsel %vm364, %v2621, 0
      %v2714 = vsel %vm364, %v2622, 0
      %v2717 = vsel %vm364, %v2623, 0
      %v2720 = vsel %vm364, %v2624, 0
      %v2723 = vsel %vm364, %v2625, 0
      %v2726 = vsel %vm364, %v2626, 0
      %v2729 = vsel %vm364, %v2627, 0
      %v2732 = vsel %vm364, %v2628, 0
      %v2735 = vsel %vm364, %v2629, 0
      %v2738 = vsel %vm364, %v2630, 0
      %v2741 = vsel %vm364, %v2631, 0
      %v2744 = vsel %vm364, %v2632, 0
      %v2747 = vsel %vm364, %v2633, 0
      %v2750 = vsel %vm364, %v2634, 0
      %v2753 = vsel %vm364, %v2635, 0
      %v2756 = vsel %vm364, %v2636, 0
      %v2759 = vsel %vm364, %v2637, 0
      %v2762 = vsel %vm364, %v2638, 0
      %v2765 = vsel %vm488, %v2640, 0
      %2767 = vmatprep.subr.mxu0 0.0
      %2768 = vmatpush1.msra.mxu0 0.0
      %2769 = vmatprep.subr.mxu0 0.0
      %2770 = vmatpush1.msra.mxu0 0.0
      %2771 = vmatprep.subr.mxu0 0.0
      %2772 = vmatpush1.msra.mxu0 0.0
      %2773 = vmatprep.subr.mxu0 0.0
      %2774 = vmatpush1.msra.mxu0 0.0
      %2775 = vmatprep.subr.mxu0 0.0
      %2776 = vmatpush1.msra.mxu0 0.0
      %2777 = vmatprep.subr.mxu0 0.0
      %2778 = vmatpush1.msra.mxu0 0.0
      %2779 = vmatprep.subr.mxu0 0.0
      %2780 = vmatpush1.msra.mxu0 0.0
      %2781 = vmatprep.subr.mxu0 0.0
      %2782 = vmatpush1.msra.mxu0 0.0
      %2783 = vmatprep.subr.mxu0 0.0
      %2784 = vmatpush1.msra.mxu0 0.0
      %2785 = vmatprep.subr.mxu0 0.0
      %2786 = vmatpush1.msra.mxu0 0.0
      %2787 = vmatprep.subr.mxu0 0.0
      %2788 = vmatpush1.msra.mxu0 0.0
      %2789 = vmatprep.subr.mxu0 0.0
      %2790 = vmatpush1.msra.mxu0 0.0
      %2791 = vmatprep.subr.mxu0 0.0
      %2792 = vmatpush1.msra.mxu0 0.0
      %2793 = vmatprep.subr.mxu0 0.0
      %2794 = vmatpush1.msra.mxu0 0.0
      %2795 = vmatprep.subr.mxu0 0.0
      %2796 = vmatpush1.msra.mxu0 0.0
      %2797 = vmatprep.subr.mxu0 0.0
      %2798 = vmatpush1.msra.mxu0 %v2765
      %2799 = vmatprep.subr.mxu0 0.0
      %2800 = vmatpush2.msra.mxu0 0.0
      %2801 = vmatprep.subr.mxu0 0.0
      %2802 = vmatpush2.msra.mxu0 0.0
      %2803 = vmatprep.subr.mxu0 0.0
      %2804 = vmatpush2.msra.mxu0 0.0
      %2805 = vmatprep.subr.mxu0 0.0
      %2806 = vmatpush2.msra.mxu0 0.0
      %2807 = vmatprep.subr.mxu0 0.0
      %2808 = vmatpush2.msra.mxu0 0.0
      %2809 = vmatprep.subr.mxu0 0.0
      %2810 = vmatpush2.msra.mxu0 0.0
      %2811 = vmatprep.subr.mxu0 0.0
      %2812 = vmatpush2.msra.mxu0 0.0
      %2813 = vmatprep.subr.mxu0 0.0
      %2814 = vmatpush2.msra.mxu0 0.0
      %2815 = vmatprep.subr.mxu0 0.0
      %2816 = vmatpush2.msra.mxu0 0.0
      %2817 = vmatprep.subr.mxu0 0.0
      %2818 = vmatpush2.msra.mxu0 0.0
      %2819 = vmatprep.subr.mxu0 0.0
      %2820 = vmatpush2.msra.mxu0 0.0
      %2821 = vmatprep.subr.mxu0 0.0
      %2822 = vmatpush2.msra.mxu0 0.0
      %2823 = vmatprep.subr.mxu0 0.0
      %2824 = vmatpush2.msra.mxu0 0.0
      %2825 = vmatprep.subr.mxu0 0.0
      %2826 = vmatpush2.msra.mxu0 0.0
      %2827 = vmatprep.subr.mxu0 0.0
      %2828 = vmatpush2.msra.mxu0 0.0
      %2829 = vmatprep.subr.mxu0 0.0
      %2830 = vmatpush2.msra.mxu0 0.0
      %2831 = vmatprep.mubr.f32.mxu0 0.0
      %2832 = vmatmul.mubr.f32.gmra.mxu0 %v2642
      %v2833 = vpop.f32.mrf.mxu0
      %v2834 = vadd.f32 0.0, %v2833
      %v2835 = vpop.f32.mrf.mxu0
      %2836 = vmatprep.mubr.f32.mxu0 0.0
      %2837 = vmatmul.mubr.f32.gmra.mxu0 %v2645
      %v2838 = vpop.f32.mrf.mxu0
      %v2839 = vadd.f32 0.0, %v2838
      %v2840 = vpop.f32.mrf.mxu0
      %2841 = vmatprep.mubr.f32.mxu0 0.0
      %2842 = vmatmul.mubr.f32.gmra.mxu0 %v2648
      %v2843 = vpop.f32.mrf.mxu0
      %v2844 = vadd.f32 0.0, %v2843
      %v2845 = vpop.f32.mrf.mxu0
      %2846 = vmatprep.mubr.f32.mxu0 0.0
      %2847 = vmatmul.mubr.f32.gmra.mxu0 %v2651
      %v2848 = vpop.f32.mrf.mxu0
      %v2849 = vadd.f32 0.0, %v2848
      %v2850 = vpop.f32.mrf.mxu0
      %2851 = vmatprep.mubr.f32.mxu0 0.0
      %2852 = vmatmul.mubr.f32.gmra.mxu0 %v2654
      %v2853 = vpop.f32.mrf.mxu0
      %v2854 = vadd.f32 0.0, %v2853
      %v2855 = vpop.f32.mrf.mxu0
      %2856 = vmatprep.mubr.f32.mxu0 0.0
      %2857 = vmatmul.mubr.f32.gmra.mxu0 %v2657
      %v2858 = vpop.f32.mrf.mxu0
      %v2859 = vadd.f32 0.0, %v2858
      %v2860 = vpop.f32.mrf.mxu0
      %2861 = vmatprep.mubr.f32.mxu0 0.0
      %2862 = vmatmul.mubr.f32.gmra.mxu0 %v2660
      %v2863 = vpop.f32.mrf.mxu0
      %v2864 = vadd.f32 0.0, %v2863
      %v2865 = vpop.f32.mrf.mxu0
      %2866 = vmatprep.mubr.f32.mxu0 0.0
      %2867 = vmatmul.mubr.f32.gmra.mxu0 %v2663
      %v2868 = vpop.f32.mrf.mxu0
      %v2869 = vadd.f32 0.0, %v2868
      %v2870 = vpop.f32.mrf.mxu0
      %2871 = vmatprep.mubr.f32.mxu0 0.0
      %2872 = vmatmul.mubr.f32.gmra.mxu0 %v2666
      %v2873 = vpop.f32.mrf.mxu0
      %v2874 = vadd.f32 0.0, %v2873
      %v2875 = vpop.f32.mrf.mxu0
      %2876 = vmatprep.mubr.f32.mxu0 0.0
      %2877 = vmatmul.mubr.f32.gmra.mxu0 %v2669
      %v2878 = vpop.f32.mrf.mxu0
      %v2879 = vadd.f32 0.0, %v2878
      %v2880 = vpop.f32.mrf.mxu0
      %2881 = vmatprep.mubr.f32.mxu0 0.0
      %2882 = vmatmul.mubr.f32.gmra.mxu0 %v2672
      %v2883 = vpop.f32.mrf.mxu0
      %v2884 = vadd.f32 0.0, %v2883
      %v2885 = vpop.f32.mrf.mxu0
      %2886 = vmatprep.mubr.f32.mxu0 0.0
      %2887 = vmatmul.mubr.f32.gmra.mxu0 %v2675
      %v2888 = vpop.f32.mrf.mxu0
      %v2889 = vadd.f32 0.0, %v2888
      %v2890 = vpop.f32.mrf.mxu0
      %2891 = vmatprep.mubr.f32.mxu0 0.0
      %2892 = vmatmul.mubr.f32.gmra.mxu0 %v2678
      %v2893 = vpop.f32.mrf.mxu0
      %v2894 = vadd.f32 0.0, %v2893
      %v2895 = vpop.f32.mrf.mxu0
      %2896 = vmatprep.mubr.f32.mxu0 0.0
      %2897 = vmatmul.mubr.f32.gmra.mxu0 %v2681
      %v2898 = vpop.f32.mrf.mxu0
      %v2899 = vadd.f32 0.0, %v2898
      %v2900 = vpop.f32.mrf.mxu0
      %2901 = vmatprep.mubr.f32.mxu0 0.0
      %2902 = vmatmul.mubr.f32.gmra.mxu0 %v2684
      %v2903 = vpop.f32.mrf.mxu0
      %v2904 = vadd.f32 0.0, %v2903
      %v2905 = vpop.f32.mrf.mxu0
      %2906 = vmatprep.mubr.f32.mxu0 0.0
      %2907 = vmatmul.mubr.f32.gmra.mxu0 %v2687
      %v2908 = vpop.f32.mrf.mxu0
      %v2909 = vadd.f32 0.0, %v2908
      %v2910 = vpop.f32.mrf.mxu0
      %2911 = vmatprep.mubr.f32.mxu0 0.0
      %2912 = vmatmul.mubr.f32.gmra.mxu0 %v2690
      %v2913 = vpop.f32.mrf.mxu0
      %v2914 = vadd.f32 0.0, %v2913
      %v2915 = vpop.f32.mrf.mxu0
      %2916 = vmatprep.mubr.f32.mxu0 0.0
      %2917 = vmatmul.mubr.f32.gmra.mxu0 %v2693
      %v2918 = vpop.f32.mrf.mxu0
      %v2919 = vadd.f32 0.0, %v2918
      %v2920 = vpop.f32.mrf.mxu0
      %2921 = vmatprep.mubr.f32.mxu0 0.0
      %2922 = vmatmul.mubr.f32.gmra.mxu0 %v2696
      %v2923 = vpop.f32.mrf.mxu0
      %v2924 = vadd.f32 0.0, %v2923
      %v2925 = vpop.f32.mrf.mxu0
      %2926 = vmatprep.mubr.f32.mxu0 0.0
      %2927 = vmatmul.mubr.f32.gmra.mxu0 %v2699
      %v2928 = vpop.f32.mrf.mxu0
      %v2929 = vadd.f32 0.0, %v2928
      %v2930 = vpop.f32.mrf.mxu0
      %2931 = vmatprep.mubr.f32.mxu0 0.0
      %2932 = vmatmul.mubr.f32.gmra.mxu0 %v2702
      %v2933 = vpop.f32.mrf.mxu0
      %v2934 = vadd.f32 0.0, %v2933
      %v2935 = vpop.f32.mrf.mxu0
      %2936 = vmatprep.mubr.f32.mxu0 0.0
      %2937 = vmatmul.mubr.f32.gmra.mxu0 %v2705
      %v2938 = vpop.f32.mrf.mxu0
      %v2939 = vadd.f32 0.0, %v2938
      %v2940 = vpop.f32.mrf.mxu0
      %2941 = vmatprep.mubr.f32.mxu0 0.0
      %2942 = vmatmul.mubr.f32.gmra.mxu0 %v2708
      %v2943 = vpop.f32.mrf.mxu0
      %v2944 = vadd.f32 0.0, %v2943
      %v2945 = vpop.f32.mrf.mxu0
      %2946 = vmatprep.mubr.f32.mxu0 0.0
      %2947 = vmatmul.mubr.f32.gmra.mxu0 %v2711
      %v2948 = vpop.f32.mrf.mxu0
      %v2949 = vadd.f32 0.0, %v2948
      %v2950 = vpop.f32.mrf.mxu0
      %2951 = vmatprep.mubr.f32.mxu0 0.0
      %2952 = vmatmul.mubr.f32.gmra.mxu0 %v2714
      %v2953 = vpop.f32.mrf.mxu0
      %v2954 = vadd.f32 0.0, %v2953
      %v2955 = vpop.f32.mrf.mxu0
      %2956 = vmatprep.mubr.f32.mxu0 0.0
      %2957 = vmatmul.mubr.f32.gmra.mxu0 %v2717
      %v2958 = vpop.f32.mrf.mxu0
      %v2959 = vadd.f32 0.0, %v2958
      %v2960 = vpop.f32.mrf.mxu0
      %2961 = vmatprep.mubr.f32.mxu0 0.0
      %2962 = vmatmul.mubr.f32.gmra.mxu0 %v2720
      %v2963 = vpop.f32.mrf.mxu0
      %v2964 = vadd.f32 0.0, %v2963
      %v2965 = vpop.f32.mrf.mxu0
      %2966 = vmatprep.mubr.f32.mxu0 0.0
      %2967 = vmatmul.mubr.f32.gmra.mxu0 %v2723
      %v2968 = vpop.f32.mrf.mxu0
      %v2969 = vadd.f32 0.0, %v2968
      %v2970 = vpop.f32.mrf.mxu0
      %2971 = vmatprep.mubr.f32.mxu0 0.0
      %2972 = vmatmul.mubr.f32.gmra.mxu0 %v2726
      %v2973 = vpop.f32.mrf.mxu0
      %v2974 = vadd.f32 0.0, %v2973
      %v2975 = vpop.f32.mrf.mxu0
      %2976 = vmatprep.mubr.f32.mxu0 0.0
      %2977 = vmatmul.mubr.f32.gmra.mxu0 %v2729
      %v2978 = vpop.f32.mrf.mxu0
      %v2979 = vadd.f32 0.0, %v2978
      %v2980 = vpop.f32.mrf.mxu0
      %2981 = vmatprep.mubr.f32.mxu0 0.0
      %2982 = vmatmul.mubr.f32.gmra.mxu0 %v2732
      %v2983 = vpop.f32.mrf.mxu0
      %v2984 = vadd.f32 0.0, %v2983
      %v2985 = vpop.f32.mrf.mxu0
      %2986 = vmatprep.mubr.f32.mxu0 0.0
      %2987 = vmatmul.mubr.f32.gmra.mxu0 %v2735
      %v2988 = vpop.f32.mrf.mxu0
      %v2989 = vadd.f32 0.0, %v2988
      %v2990 = vpop.f32.mrf.mxu0
      %2991 = vmatprep.mubr.f32.mxu0 0.0
      %2992 = vmatmul.mubr.f32.gmra.mxu0 %v2738
      %v2993 = vpop.f32.mrf.mxu0
      %v2994 = vadd.f32 0.0, %v2993
      %v2995 = vpop.f32.mrf.mxu0
      %2996 = vmatprep.mubr.f32.mxu0 0.0
      %2997 = vmatmul.mubr.f32.gmra.mxu0 %v2741
      %v2998 = vpop.f32.mrf.mxu0
      %v2999 = vadd.f32 0.0, %v2998
      %v3000 = vpop.f32.mrf.mxu0
      %3001 = vmatprep.mubr.f32.mxu0 0.0
      %3002 = vmatmul.mubr.f32.gmra.mxu0 %v2744
      %v3003 = vpop.f32.mrf.mxu0
      %v3004 = vadd.f32 0.0, %v3003
      %v3005 = vpop.f32.mrf.mxu0
      %3006 = vmatprep.mubr.f32.mxu0 0.0
      %3007 = vmatmul.mubr.f32.gmra.mxu0 %v2747
      %v3008 = vpop.f32.mrf.mxu0
      %v3009 = vadd.f32 0.0, %v3008
      %v3010 = vpop.f32.mrf.mxu0
      %3011 = vmatprep.mubr.f32.mxu0 0.0
      %3012 = vmatmul.mubr.f32.gmra.mxu0 %v2750
      %v3013 = vpop.f32.mrf.mxu0
      %v3014 = vadd.f32 0.0, %v3013
      %v3015 = vpop.f32.mrf.mxu0
      %3016 = vmatprep.mubr.f32.mxu0 0.0
      %3017 = vmatmul.mubr.f32.gmra.mxu0 %v2753
      %v3018 = vpop.f32.mrf.mxu0
      %v3019 = vadd.f32 0.0, %v3018
      %v3020 = vpop.f32.mrf.mxu0
      %3021 = vmatprep.mubr.f32.mxu0 0.0
      %3022 = vmatmul.mubr.f32.gmra.mxu0 %v2756
      %v3023 = vpop.f32.mrf.mxu0
      %v3024 = vadd.f32 0.0, %v3023
      %v3025 = vpop.f32.mrf.mxu0
      %3026 = vmatprep.mubr.f32.mxu0 0.0
      %3027 = vmatmul.mubr.f32.gmra.mxu0 %v2759
      %v3028 = vpop.f32.mrf.mxu0
      %v3029 = vadd.f32 0.0, %v3028
      %v3030 = vpop.f32.mrf.mxu0
      %3031 = vmatprep.mubr.f32.mxu0 0.0
      %3032 = vmatmul.mubr.f32.gmra.mxu0 %v2762
      %v3033 = vpop.f32.mrf.mxu0
      %v3034 = vadd.f32 0.0, %v3033
      %v3035 = vpop.f32.mrf.mxu0
      %3036 = vdwg.mxu0
      %v3037 = vadd.f32 %v2557, %v2834
      %v3038 = vadd.f32 %v2558, %v2839
      %v3039 = vadd.f32 %v2559, %v2844
      %v3040 = vadd.f32 %v2560, %v2849
      %v3041 = vadd.f32 %v2561, %v2854
      %v3042 = vadd.f32 %v2562, %v2859
      %v3043 = vadd.f32 %v2563, %v2864
      %v3044 = vadd.f32 %v2564, %v2869
      %v3045 = vadd.f32 %v2565, %v2874
      %v3046 = vadd.f32 %v2566, %v2879
      %v3047 = vadd.f32 %v2567, %v2884
      %v3048 = vadd.f32 %v2568, %v2889
      %v3049 = vadd.f32 %v2569, %v2894
      %v3050 = vadd.f32 %v2570, %v2899
      %v3051 = vadd.f32 %v2571, %v2904
      %v3052 = vadd.f32 %v2572, %v2909
      %v3053 = vadd.f32 %v2573, %v2914
      %v3054 = vadd.f32 %v2574, %v2919
      %v3055 = vadd.f32 %v2575, %v2924
      %v3056 = vadd.f32 %v2576, %v2929
      %v3057 = vadd.f32 %v2577, %v2934
      %v3058 = vadd.f32 %v2578, %v2939
      %v3059 = vadd.f32 %v2579, %v2944
      %v3060 = vadd.f32 %v2580, %v2949
      %v3061 = vadd.f32 %v2581, %v2954
      %v3062 = vadd.f32 %v2582, %v2959
      %v3063 = vadd.f32 %v2583, %v2964
      %v3064 = vadd.f32 %v2584, %v2969
      %v3065 = vadd.f32 %v2585, %v2974
      %v3066 = vadd.f32 %v2586, %v2979
      %v3067 = vadd.f32 %v2587, %v2984
      %v3068 = vadd.f32 %v2588, %v2989
      %v3069 = vadd.f32 %v2589, %v2994
      %v3070 = vadd.f32 %v2590, %v2999
      %v3071 = vadd.f32 %v2591, %v3004
      %v3072 = vadd.f32 %v2592, %v3009
      %v3073 = vadd.f32 %v2593, %v3014
      %v3074 = vadd.f32 %v2594, %v3019
      %v3075 = vadd.f32 %v2595, %v3024
      %v3076 = vadd.f32 %v2596, %v3029
      %v3077 = vadd.f32 %v2597, %v3034
      %v3078 = vld [vmem:[%s273 + $0x29] sm:$0xff]
      %v3079 = vld [vmem:[%s273 + $0x31] sm:$0xff]
      %v3080 = vld [vmem:[%s273 + $0x39] sm:$0xff]
      %v3081 = vld [vmem:[%s273 + $0x41] sm:$0xff]
      %v3082 = vld [vmem:[%s273 + $0x49] sm:$0xff]
      %v3083 = vld [vmem:[%s273 + $0x51] sm:$0xff]
      %v3084 = vld [vmem:[%s273 + $0x59] sm:$0xff]
      %v3085 = vld [vmem:[%s273 + $0x61] sm:$0xff]
      %v3086 = vld [vmem:[%s273 + $0x69] sm:$0xff]
      %v3087 = vld [vmem:[%s273 + $0x71] sm:$0xff]
      %v3088 = vld [vmem:[%s273 + $0x79] sm:$0xff]
      %v3089 = vld [vmem:[%s273 + $0x81] sm:$0xff]
      %v3090 = vld [vmem:[%s273 + $0x89] sm:$0xff]
      %v3091 = vld [vmem:[%s273 + $0x91] sm:$0xff]
      %v3092 = vld [vmem:[%s273 + $0x99] sm:$0xff]
      %v3093 = vld [vmem:[%s273 + $0xa1] sm:$0xff]
      %v3094 = vld [vmem:[%s273 + $0xa9] sm:$0xff]
      %v3095 = vld [vmem:[%s273 + $0xb1] sm:$0xff]
      %v3096 = vld [vmem:[%s273 + $0xb9] sm:$0xff]
      %v3097 = vld [vmem:[%s273 + $0xc1] sm:$0xff]
      %v3098 = vld [vmem:[%s273 + $0xc9] sm:$0xff]
      %v3099 = vld [vmem:[%s273 + $0xd1] sm:$0xff]
      %v3100 = vld [vmem:[%s273 + $0xd9] sm:$0xff]
      %v3101 = vld [vmem:[%s273 + $0xe1] sm:$0xff]
      %v3102 = vld [vmem:[%s273 + $0xe9] sm:$0xff]
      %v3103 = vld [vmem:[%s273 + $0xf1] sm:$0xff]
      %v3104 = vld [vmem:[%s273 + $0xf9] sm:$0xff]
      %v3105 = vld [vmem:[%s273 + $0x101] sm:$0xff]
      %v3106 = vld [vmem:[%s273 + $0x109] sm:$0xff]
      %v3107 = vld [vmem:[%s273 + $0x111] sm:$0xff]
      %v3108 = vld [vmem:[%s273 + $0x119] sm:$0xff]
      %v3109 = vld [vmem:[%s273 + $0x121] sm:$0xff]
      %v3110 = vld [vmem:[%s273 + $0x129] sm:$0xff]
      %v3111 = vld [vmem:[%s273 + $0x131] sm:$0xff]
      %v3112 = vld [vmem:[%s273 + $0x139] sm:$0xff]
      %v3113 = vld [vmem:[%s273 + $0x141] sm:$0xff]
      %v3114 = vld [vmem:[%s273 + $0x149] sm:$0xff]
      %v3115 = vld [vmem:[%s273 + $0x151] sm:$0xff]
      %v3116 = vld [vmem:[%s273 + $0x159] sm:$0xff]
      %v3117 = vld [vmem:[%s273 + $0x161] sm:$0xff]
      %v3118 = vld [vmem:[%s273 + $0x169] sm:$0xf]
      %s3119 = scalar_lea.vmem %s1, 24
      %v3120 = vld [vmem:[%s3119] sm:$0xf]
      %v3122 = vsel %vm364, %v3078, 0
      %v3125 = vsel %vm364, %v3079, 0
      %v3128 = vsel %vm364, %v3080, 0
      %v3131 = vsel %vm364, %v3081, 0
      %v3134 = vsel %vm364, %v3082, 0
      %v3137 = vsel %vm364, %v3083, 0
      %v3140 = vsel %vm364, %v3084, 0
      %v3143 = vsel %vm364, %v3085, 0
      %v3146 = vsel %vm364, %v3086, 0
      %v3149 = vsel %vm364, %v3087, 0
      %v3152 = vsel %vm364, %v3088, 0
      %v3155 = vsel %vm364, %v3089, 0
      %v3158 = vsel %vm364, %v3090, 0
      %v3161 = vsel %vm364, %v3091, 0
      %v3164 = vsel %vm364, %v3092, 0
      %v3167 = vsel %vm364, %v3093, 0
      %v3170 = vsel %vm364, %v3094, 0
      %v3173 = vsel %vm364, %v3095, 0
      %v3176 = vsel %vm364, %v3096, 0
      %v3179 = vsel %vm364, %v3097, 0
      %v3182 = vsel %vm364, %v3098, 0
      %v3185 = vsel %vm364, %v3099, 0
      %v3188 = vsel %vm364, %v3100, 0
      %v3191 = vsel %vm364, %v3101, 0
      %v3194 = vsel %vm364, %v3102, 0
      %v3197 = vsel %vm364, %v3103, 0
      %v3200 = vsel %vm364, %v3104, 0
      %v3203 = vsel %vm364, %v3105, 0
      %v3206 = vsel %vm364, %v3106, 0
      %v3209 = vsel %vm364, %v3107, 0
      %v3212 = vsel %vm364, %v3108, 0
      %v3215 = vsel %vm364, %v3109, 0
      %v3218 = vsel %vm364, %v3110, 0
      %v3221 = vsel %vm364, %v3111, 0
      %v3224 = vsel %vm364, %v3112, 0
      %v3227 = vsel %vm364, %v3113, 0
      %v3230 = vsel %vm364, %v3114, 0
      %v3233 = vsel %vm364, %v3115, 0
      %v3236 = vsel %vm364, %v3116, 0
      %v3239 = vsel %vm364, %v3117, 0
      %v3242 = vsel %vm364, %v3118, 0
      %v3245 = vsel %vm488, %v3120, 0
      %3247 = vmatprep.subr.mxu0 0.0
      %3248 = vmatpush1.msra.mxu0 0.0
      %3249 = vmatprep.subr.mxu0 0.0
      %3250 = vmatpush1.msra.mxu0 0.0
      %3251 = vmatprep.subr.mxu0 0.0
      %3252 = vmatpush1.msra.mxu0 0.0
      %3253 = vmatprep.subr.mxu0 0.0
      %3254 = vmatpush1.msra.mxu0 0.0
      %3255 = vmatprep.subr.mxu0 0.0
      %3256 = vmatpush1.msra.mxu0 0.0
      %3257 = vmatprep.subr.mxu0 0.0
      %3258 = vmatpush1.msra.mxu0 0.0
      %3259 = vmatprep.subr.mxu0 0.0
      %3260 = vmatpush1.msra.mxu0 0.0
      %3261 = vmatprep.subr.mxu0 0.0
      %3262 = vmatpush1.msra.mxu0 0.0
      %3263 = vmatprep.subr.mxu0 0.0
      %3264 = vmatpush1.msra.mxu0 0.0
      %3265 = vmatprep.subr.mxu0 0.0
      %3266 = vmatpush1.msra.mxu0 0.0
      %3267 = vmatprep.subr.mxu0 0.0
      %3268 = vmatpush1.msra.mxu0 0.0
      %3269 = vmatprep.subr.mxu0 0.0
      %3270 = vmatpush1.msra.mxu0 0.0
      %3271 = vmatprep.subr.mxu0 0.0
      %3272 = vmatpush1.msra.mxu0 0.0
      %3273 = vmatprep.subr.mxu0 0.0
      %3274 = vmatpush1.msra.mxu0 0.0
      %3275 = vmatprep.subr.mxu0 0.0
      %3276 = vmatpush1.msra.mxu0 0.0
      %3277 = vmatprep.subr.mxu0 0.0
      %3278 = vmatpush1.msra.mxu0 %v3245
      %3279 = vmatprep.subr.mxu0 0.0
      %3280 = vmatpush2.msra.mxu0 0.0
      %3281 = vmatprep.subr.mxu0 0.0
      %3282 = vmatpush2.msra.mxu0 0.0
      %3283 = vmatprep.subr.mxu0 0.0
      %3284 = vmatpush2.msra.mxu0 0.0
      %3285 = vmatprep.subr.mxu0 0.0
      %3286 = vmatpush2.msra.mxu0 0.0
      %3287 = vmatprep.subr.mxu0 0.0
      %3288 = vmatpush2.msra.mxu0 0.0
      %3289 = vmatprep.subr.mxu0 0.0
      %3290 = vmatpush2.msra.mxu0 0.0
      %3291 = vmatprep.subr.mxu0 0.0
      %3292 = vmatpush2.msra.mxu0 0.0
      %3293 = vmatprep.subr.mxu0 0.0
      %3294 = vmatpush2.msra.mxu0 0.0
      %3295 = vmatprep.subr.mxu0 0.0
      %3296 = vmatpush2.msra.mxu0 0.0
      %3297 = vmatprep.subr.mxu0 0.0
      %3298 = vmatpush2.msra.mxu0 0.0
      %3299 = vmatprep.subr.mxu0 0.0
      %3300 = vmatpush2.msra.mxu0 0.0
      %3301 = vmatprep.subr.mxu0 0.0
      %3302 = vmatpush2.msra.mxu0 0.0
      %3303 = vmatprep.subr.mxu0 0.0
      %3304 = vmatpush2.msra.mxu0 0.0
      %3305 = vmatprep.subr.mxu0 0.0
      %3306 = vmatpush2.msra.mxu0 0.0
      %3307 = vmatprep.subr.mxu0 0.0
      %3308 = vmatpush2.msra.mxu0 0.0
      %3309 = vmatprep.subr.mxu0 0.0
      %3310 = vmatpush2.msra.mxu0 0.0
      %3311 = vmatprep.mubr.f32.mxu0 0.0
      %3312 = vmatmul.mubr.f32.gmra.mxu0 %v3122
      %v3313 = vpop.f32.mrf.mxu0
      %v3314 = vadd.f32 0.0, %v3313
      %v3315 = vpop.f32.mrf.mxu0
      %3316 = vmatprep.mubr.f32.mxu0 0.0
      %3317 = vmatmul.mubr.f32.gmra.mxu0 %v3125
      %v3318 = vpop.f32.mrf.mxu0
      %v3319 = vadd.f32 0.0, %v3318
      %v3320 = vpop.f32.mrf.mxu0
      %3321 = vmatprep.mubr.f32.mxu0 0.0
      %3322 = vmatmul.mubr.f32.gmra.mxu0 %v3128
      %v3323 = vpop.f32.mrf.mxu0
      %v3324 = vadd.f32 0.0, %v3323
      %v3325 = vpop.f32.mrf.mxu0
      %3326 = vmatprep.mubr.f32.mxu0 0.0
      %3327 = vmatmul.mubr.f32.gmra.mxu0 %v3131
      %v3328 = vpop.f32.mrf.mxu0
      %v3329 = vadd.f32 0.0, %v3328
      %v3330 = vpop.f32.mrf.mxu0
      %3331 = vmatprep.mubr.f32.mxu0 0.0
      %3332 = vmatmul.mubr.f32.gmra.mxu0 %v3134
      %v3333 = vpop.f32.mrf.mxu0
      %v3334 = vadd.f32 0.0, %v3333
      %v3335 = vpop.f32.mrf.mxu0
      %3336 = vmatprep.mubr.f32.mxu0 0.0
      %3337 = vmatmul.mubr.f32.gmra.mxu0 %v3137
      %v3338 = vpop.f32.mrf.mxu0
      %v3339 = vadd.f32 0.0, %v3338
      %v3340 = vpop.f32.mrf.mxu0
      %3341 = vmatprep.mubr.f32.mxu0 0.0
      %3342 = vmatmul.mubr.f32.gmra.mxu0 %v3140
      %v3343 = vpop.f32.mrf.mxu0
      %v3344 = vadd.f32 0.0, %v3343
      %v3345 = vpop.f32.mrf.mxu0
      %3346 = vmatprep.mubr.f32.mxu0 0.0
      %3347 = vmatmul.mubr.f32.gmra.mxu0 %v3143
      %v3348 = vpop.f32.mrf.mxu0
      %v3349 = vadd.f32 0.0, %v3348
      %v3350 = vpop.f32.mrf.mxu0
      %3351 = vmatprep.mubr.f32.mxu0 0.0
      %3352 = vmatmul.mubr.f32.gmra.mxu0 %v3146
      %v3353 = vpop.f32.mrf.mxu0
      %v3354 = vadd.f32 0.0, %v3353
      %v3355 = vpop.f32.mrf.mxu0
      %3356 = vmatprep.mubr.f32.mxu0 0.0
      %3357 = vmatmul.mubr.f32.gmra.mxu0 %v3149
      %v3358 = vpop.f32.mrf.mxu0
      %v3359 = vadd.f32 0.0, %v3358
      %v3360 = vpop.f32.mrf.mxu0
      %3361 = vmatprep.mubr.f32.mxu0 0.0
      %3362 = vmatmul.mubr.f32.gmra.mxu0 %v3152
      %v3363 = vpop.f32.mrf.mxu0
      %v3364 = vadd.f32 0.0, %v3363
      %v3365 = vpop.f32.mrf.mxu0
      %3366 = vmatprep.mubr.f32.mxu0 0.0
      %3367 = vmatmul.mubr.f32.gmra.mxu0 %v3155
      %v3368 = vpop.f32.mrf.mxu0
      %v3369 = vadd.f32 0.0, %v3368
      %v3370 = vpop.f32.mrf.mxu0
      %3371 = vmatprep.mubr.f32.mxu0 0.0
      %3372 = vmatmul.mubr.f32.gmra.mxu0 %v3158
      %v3373 = vpop.f32.mrf.mxu0
      %v3374 = vadd.f32 0.0, %v3373
      %v3375 = vpop.f32.mrf.mxu0
      %3376 = vmatprep.mubr.f32.mxu0 0.0
      %3377 = vmatmul.mubr.f32.gmra.mxu0 %v3161
      %v3378 = vpop.f32.mrf.mxu0
      %v3379 = vadd.f32 0.0, %v3378
      %v3380 = vpop.f32.mrf.mxu0
      %3381 = vmatprep.mubr.f32.mxu0 0.0
      %3382 = vmatmul.mubr.f32.gmra.mxu0 %v3164
      %v3383 = vpop.f32.mrf.mxu0
      %v3384 = vadd.f32 0.0, %v3383
      %v3385 = vpop.f32.mrf.mxu0
      %3386 = vmatprep.mubr.f32.mxu0 0.0
      %3387 = vmatmul.mubr.f32.gmra.mxu0 %v3167
      %v3388 = vpop.f32.mrf.mxu0
      %v3389 = vadd.f32 0.0, %v3388
      %v3390 = vpop.f32.mrf.mxu0
      %3391 = vmatprep.mubr.f32.mxu0 0.0
      %3392 = vmatmul.mubr.f32.gmra.mxu0 %v3170
      %v3393 = vpop.f32.mrf.mxu0
      %v3394 = vadd.f32 0.0, %v3393
      %v3395 = vpop.f32.mrf.mxu0
      %3396 = vmatprep.mubr.f32.mxu0 0.0
      %3397 = vmatmul.mubr.f32.gmra.mxu0 %v3173
      %v3398 = vpop.f32.mrf.mxu0
      %v3399 = vadd.f32 0.0, %v3398
      %v3400 = vpop.f32.mrf.mxu0
      %3401 = vmatprep.mubr.f32.mxu0 0.0
      %3402 = vmatmul.mubr.f32.gmra.mxu0 %v3176
      %v3403 = vpop.f32.mrf.mxu0
      %v3404 = vadd.f32 0.0, %v3403
      %v3405 = vpop.f32.mrf.mxu0
      %3406 = vmatprep.mubr.f32.mxu0 0.0
      %3407 = vmatmul.mubr.f32.gmra.mxu0 %v3179
      %v3408 = vpop.f32.mrf.mxu0
      %v3409 = vadd.f32 0.0, %v3408
      %v3410 = vpop.f32.mrf.mxu0
      %3411 = vmatprep.mubr.f32.mxu0 0.0
      %3412 = vmatmul.mubr.f32.gmra.mxu0 %v3182
      %v3413 = vpop.f32.mrf.mxu0
      %v3414 = vadd.f32 0.0, %v3413
      %v3415 = vpop.f32.mrf.mxu0
      %3416 = vmatprep.mubr.f32.mxu0 0.0
      %3417 = vmatmul.mubr.f32.gmra.mxu0 %v3185
      %v3418 = vpop.f32.mrf.mxu0
      %v3419 = vadd.f32 0.0, %v3418
      %v3420 = vpop.f32.mrf.mxu0
      %3421 = vmatprep.mubr.f32.mxu0 0.0
      %3422 = vmatmul.mubr.f32.gmra.mxu0 %v3188
      %v3423 = vpop.f32.mrf.mxu0
      %v3424 = vadd.f32 0.0, %v3423
      %v3425 = vpop.f32.mrf.mxu0
      %3426 = vmatprep.mubr.f32.mxu0 0.0
      %3427 = vmatmul.mubr.f32.gmra.mxu0 %v3191
      %v3428 = vpop.f32.mrf.mxu0
      %v3429 = vadd.f32 0.0, %v3428
      %v3430 = vpop.f32.mrf.mxu0
      %3431 = vmatprep.mubr.f32.mxu0 0.0
      %3432 = vmatmul.mubr.f32.gmra.mxu0 %v3194
      %v3433 = vpop.f32.mrf.mxu0
      %v3434 = vadd.f32 0.0, %v3433
      %v3435 = vpop.f32.mrf.mxu0
      %3436 = vmatprep.mubr.f32.mxu0 0.0
      %3437 = vmatmul.mubr.f32.gmra.mxu0 %v3197
      %v3438 = vpop.f32.mrf.mxu0
      %v3439 = vadd.f32 0.0, %v3438
      %v3440 = vpop.f32.mrf.mxu0
      %3441 = vmatprep.mubr.f32.mxu0 0.0
      %3442 = vmatmul.mubr.f32.gmra.mxu0 %v3200
      %v3443 = vpop.f32.mrf.mxu0
      %v3444 = vadd.f32 0.0, %v3443
      %v3445 = vpop.f32.mrf.mxu0
      %3446 = vmatprep.mubr.f32.mxu0 0.0
      %3447 = vmatmul.mubr.f32.gmra.mxu0 %v3203
      %v3448 = vpop.f32.mrf.mxu0
      %v3449 = vadd.f32 0.0, %v3448
      %v3450 = vpop.f32.mrf.mxu0
      %3451 = vmatprep.mubr.f32.mxu0 0.0
      %3452 = vmatmul.mubr.f32.gmra.mxu0 %v3206
      %v3453 = vpop.f32.mrf.mxu0
      %v3454 = vadd.f32 0.0, %v3453
      %v3455 = vpop.f32.mrf.mxu0
      %3456 = vmatprep.mubr.f32.mxu0 0.0
      %3457 = vmatmul.mubr.f32.gmra.mxu0 %v3209
      %v3458 = vpop.f32.mrf.mxu0
      %v3459 = vadd.f32 0.0, %v3458
      %v3460 = vpop.f32.mrf.mxu0
      %3461 = vmatprep.mubr.f32.mxu0 0.0
      %3462 = vmatmul.mubr.f32.gmra.mxu0 %v3212
      %v3463 = vpop.f32.mrf.mxu0
      %v3464 = vadd.f32 0.0, %v3463
      %v3465 = vpop.f32.mrf.mxu0
      %3466 = vmatprep.mubr.f32.mxu0 0.0
      %3467 = vmatmul.mubr.f32.gmra.mxu0 %v3215
      %v3468 = vpop.f32.mrf.mxu0
      %v3469 = vadd.f32 0.0, %v3468
      %v3470 = vpop.f32.mrf.mxu0
      %3471 = vmatprep.mubr.f32.mxu0 0.0
      %3472 = vmatmul.mubr.f32.gmra.mxu0 %v3218
      %v3473 = vpop.f32.mrf.mxu0
      %v3474 = vadd.f32 0.0, %v3473
      %v3475 = vpop.f32.mrf.mxu0
      %3476 = vmatprep.mubr.f32.mxu0 0.0
      %3477 = vmatmul.mubr.f32.gmra.mxu0 %v3221
      %v3478 = vpop.f32.mrf.mxu0
      %v3479 = vadd.f32 0.0, %v3478
      %v3480 = vpop.f32.mrf.mxu0
      %3481 = vmatprep.mubr.f32.mxu0 0.0
      %3482 = vmatmul.mubr.f32.gmra.mxu0 %v3224
      %v3483 = vpop.f32.mrf.mxu0
      %v3484 = vadd.f32 0.0, %v3483
      %v3485 = vpop.f32.mrf.mxu0
      %3486 = vmatprep.mubr.f32.mxu0 0.0
      %3487 = vmatmul.mubr.f32.gmra.mxu0 %v3227
      %v3488 = vpop.f32.mrf.mxu0
      %v3489 = vadd.f32 0.0, %v3488
      %v3490 = vpop.f32.mrf.mxu0
      %3491 = vmatprep.mubr.f32.mxu0 0.0
      %3492 = vmatmul.mubr.f32.gmra.mxu0 %v3230
      %v3493 = vpop.f32.mrf.mxu0
      %v3494 = vadd.f32 0.0, %v3493
      %v3495 = vpop.f32.mrf.mxu0
      %3496 = vmatprep.mubr.f32.mxu0 0.0
      %3497 = vmatmul.mubr.f32.gmra.mxu0 %v3233
      %v3498 = vpop.f32.mrf.mxu0
      %v3499 = vadd.f32 0.0, %v3498
      %v3500 = vpop.f32.mrf.mxu0
      %3501 = vmatprep.mubr.f32.mxu0 0.0
      %3502 = vmatmul.mubr.f32.gmra.mxu0 %v3236
      %v3503 = vpop.f32.mrf.mxu0
      %v3504 = vadd.f32 0.0, %v3503
      %v3505 = vpop.f32.mrf.mxu0
      %3506 = vmatprep.mubr.f32.mxu0 0.0
      %3507 = vmatmul.mubr.f32.gmra.mxu0 %v3239
      %v3508 = vpop.f32.mrf.mxu0
      %v3509 = vadd.f32 0.0, %v3508
      %v3510 = vpop.f32.mrf.mxu0
      %3511 = vmatprep.mubr.f32.mxu0 0.0
      %3512 = vmatmul.mubr.f32.gmra.mxu0 %v3242
      %v3513 = vpop.f32.mrf.mxu0
      %v3514 = vadd.f32 0.0, %v3513
      %v3515 = vpop.f32.mrf.mxu0
      %3516 = vdwg.mxu0
      %v3517 = vadd.f32 %v3037, %v3314
      %v3518 = vadd.f32 %v3038, %v3319
      %v3519 = vadd.f32 %v3039, %v3324
      %v3520 = vadd.f32 %v3040, %v3329
      %v3521 = vadd.f32 %v3041, %v3334
      %v3522 = vadd.f32 %v3042, %v3339
      %v3523 = vadd.f32 %v3043, %v3344
      %v3524 = vadd.f32 %v3044, %v3349
      %v3525 = vadd.f32 %v3045, %v3354
      %v3526 = vadd.f32 %v3046, %v3359
      %v3527 = vadd.f32 %v3047, %v3364
      %v3528 = vadd.f32 %v3048, %v3369
      %v3529 = vadd.f32 %v3049, %v3374
      %v3530 = vadd.f32 %v3050, %v3379
      %v3531 = vadd.f32 %v3051, %v3384
      %v3532 = vadd.f32 %v3052, %v3389
      %v3533 = vadd.f32 %v3053, %v3394
      %v3534 = vadd.f32 %v3054, %v3399
      %v3535 = vadd.f32 %v3055, %v3404
      %v3536 = vadd.f32 %v3056, %v3409
      %v3537 = vadd.f32 %v3057, %v3414
      %v3538 = vadd.f32 %v3058, %v3419
      %v3539 = vadd.f32 %v3059, %v3424
      %v3540 = vadd.f32 %v3060, %v3429
      %v3541 = vadd.f32 %v3061, %v3434
      %v3542 = vadd.f32 %v3062, %v3439
      %v3543 = vadd.f32 %v3063, %v3444
      %v3544 = vadd.f32 %v3064, %v3449
      %v3545 = vadd.f32 %v3065, %v3454
      %v3546 = vadd.f32 %v3066, %v3459
      %v3547 = vadd.f32 %v3067, %v3464
      %v3548 = vadd.f32 %v3068, %v3469
      %v3549 = vadd.f32 %v3069, %v3474
      %v3550 = vadd.f32 %v3070, %v3479
      %v3551 = vadd.f32 %v3071, %v3484
      %v3552 = vadd.f32 %v3072, %v3489
      %v3553 = vadd.f32 %v3073, %v3494
      %v3554 = vadd.f32 %v3074, %v3499
      %v3555 = vadd.f32 %v3075, %v3504
      %v3556 = vadd.f32 %v3076, %v3509
      %v3557 = vadd.f32 %v3077, %v3514
      %v3558 = vld [vmem:[%s273 + $0x2a] sm:$0xff]
      %v3559 = vld [vmem:[%s273 + $0x32] sm:$0xff]
      %v3560 = vld [vmem:[%s273 + $0x3a] sm:$0xff]
      %v3561 = vld [vmem:[%s273 + $0x42] sm:$0xff]
      %v3562 = vld [vmem:[%s273 + $0x4a] sm:$0xff]
      %v3563 = vld [vmem:[%s273 + $0x52] sm:$0xff]
      %v3564 = vld [vmem:[%s273 + $0x5a] sm:$0xff]
      %v3565 = vld [vmem:[%s273 + $0x62] sm:$0xff]
      %v3566 = vld [vmem:[%s273 + $0x6a] sm:$0xff]
      %v3567 = vld [vmem:[%s273 + $0x72] sm:$0xff]
      %v3568 = vld [vmem:[%s273 + $0x7a] sm:$0xff]
      %v3569 = vld [vmem:[%s273 + $0x82] sm:$0xff]
      %v3570 = vld [vmem:[%s273 + $0x8a] sm:$0xff]
      %v3571 = vld [vmem:[%s273 + $0x92] sm:$0xff]
      %v3572 = vld [vmem:[%s273 + $0x9a] sm:$0xff]
      %v3573 = vld [vmem:[%s273 + $0xa2] sm:$0xff]
      %v3574 = vld [vmem:[%s273 + $0xaa] sm:$0xff]
      %v3575 = vld [vmem:[%s273 + $0xb2] sm:$0xff]
      %v3576 = vld [vmem:[%s273 + $0xba] sm:$0xff]
      %v3577 = vld [vmem:[%s273 + $0xc2] sm:$0xff]
      %v3578 = vld [vmem:[%s273 + $0xca] sm:$0xff]
      %v3579 = vld [vmem:[%s273 + $0xd2] sm:$0xff]
      %v3580 = vld [vmem:[%s273 + $0xda] sm:$0xff]
      %v3581 = vld [vmem:[%s273 + $0xe2] sm:$0xff]
      %v3582 = vld [vmem:[%s273 + $0xea] sm:$0xff]
      %v3583 = vld [vmem:[%s273 + $0xf2] sm:$0xff]
      %v3584 = vld [vmem:[%s273 + $0xfa] sm:$0xff]
      %v3585 = vld [vmem:[%s273 + $0x102] sm:$0xff]
      %v3586 = vld [vmem:[%s273 + $0x10a] sm:$0xff]
      %v3587 = vld [vmem:[%s273 + $0x112] sm:$0xff]
      %v3588 = vld [vmem:[%s273 + $0x11a] sm:$0xff]
      %v3589 = vld [vmem:[%s273 + $0x122] sm:$0xff]
      %v3590 = vld [vmem:[%s273 + $0x12a] sm:$0xff]
      %v3591 = vld [vmem:[%s273 + $0x132] sm:$0xff]
      %v3592 = vld [vmem:[%s273 + $0x13a] sm:$0xff]
      %v3593 = vld [vmem:[%s273 + $0x142] sm:$0xff]
      %v3594 = vld [vmem:[%s273 + $0x14a] sm:$0xff]
      %v3595 = vld [vmem:[%s273 + $0x152] sm:$0xff]
      %v3596 = vld [vmem:[%s273 + $0x15a] sm:$0xff]
      %v3597 = vld [vmem:[%s273 + $0x162] sm:$0xff]
      %v3598 = vld [vmem:[%s273 + $0x16a] sm:$0xf]
      %s3599 = scalar_lea.vmem %s1, 28
      %v3600 = vld [vmem:[%s3599] sm:$0xf]
      %v3602 = vsel %vm364, %v3558, 0
      %v3605 = vsel %vm364, %v3559, 0
      %v3608 = vsel %vm364, %v3560, 0
      %v3611 = vsel %vm364, %v3561, 0
      %v3614 = vsel %vm364, %v3562, 0
      %v3617 = vsel %vm364, %v3563, 0
      %v3620 = vsel %vm364, %v3564, 0
      %v3623 = vsel %vm364, %v3565, 0
      %v3626 = vsel %vm364, %v3566, 0
      %v3629 = vsel %vm364, %v3567, 0
      %v3632 = vsel %vm364, %v3568, 0
      %v3635 = vsel %vm364, %v3569, 0
      %v3638 = vsel %vm364, %v3570, 0
      %v3641 = vsel %vm364, %v3571, 0
      %v3644 = vsel %vm364, %v3572, 0
      %v3647 = vsel %vm364, %v3573, 0
      %v3650 = vsel %vm364, %v3574, 0
      %v3653 = vsel %vm364, %v3575, 0
      %v3656 = vsel %vm364, %v3576, 0
      %v3659 = vsel %vm364, %v3577, 0
      %v3662 = vsel %vm364, %v3578, 0
      %v3665 = vsel %vm364, %v3579, 0
      %v3668 = vsel %vm364, %v3580, 0
      %v3671 = vsel %vm364, %v3581, 0
      %v3674 = vsel %vm364, %v3582, 0
      %v3677 = vsel %vm364, %v3583, 0
      %v3680 = vsel %vm364, %v3584, 0
      %v3683 = vsel %vm364, %v3585, 0
      %v3686 = vsel %vm364, %v3586, 0
      %v3689 = vsel %vm364, %v3587, 0
      %v3692 = vsel %vm364, %v3588, 0
      %v3695 = vsel %vm364, %v3589, 0
      %v3698 = vsel %vm364, %v3590, 0
      %v3701 = vsel %vm364, %v3591, 0
      %v3704 = vsel %vm364, %v3592, 0
      %v3707 = vsel %vm364, %v3593, 0
      %v3710 = vsel %vm364, %v3594, 0
      %v3713 = vsel %vm364, %v3595, 0
      %v3716 = vsel %vm364, %v3596, 0
      %v3719 = vsel %vm364, %v3597, 0
      %v3722 = vsel %vm364, %v3598, 0
      %v3725 = vsel %vm488, %v3600, 0
      %3727 = vmatprep.subr.mxu0 0.0
      %3728 = vmatpush1.msra.mxu0 0.0
      %3729 = vmatprep.subr.mxu0 0.0
      %3730 = vmatpush1.msra.mxu0 0.0
      %3731 = vmatprep.subr.mxu0 0.0
      %3732 = vmatpush1.msra.mxu0 0.0
      %3733 = vmatprep.subr.mxu0 0.0
      %3734 = vmatpush1.msra.mxu0 0.0
      %3735 = vmatprep.subr.mxu0 0.0
      %3736 = vmatpush1.msra.mxu0 0.0
      %3737 = vmatprep.subr.mxu0 0.0
      %3738 = vmatpush1.msra.mxu0 0.0
      %3739 = vmatprep.subr.mxu0 0.0
      %3740 = vmatpush1.msra.mxu0 0.0
      %3741 = vmatprep.subr.mxu0 0.0
      %3742 = vmatpush1.msra.mxu0 0.0
      %3743 = vmatprep.subr.mxu0 0.0
      %3744 = vmatpush1.msra.mxu0 0.0
      %3745 = vmatprep.subr.mxu0 0.0
      %3746 = vmatpush1.msra.mxu0 0.0
      %3747 = vmatprep.subr.mxu0 0.0
      %3748 = vmatpush1.msra.mxu0 0.0
      %3749 = vmatprep.subr.mxu0 0.0
      %3750 = vmatpush1.msra.mxu0 0.0
      %3751 = vmatprep.subr.mxu0 0.0
      %3752 = vmatpush1.msra.mxu0 0.0
      %3753 = vmatprep.subr.mxu0 0.0
      %3754 = vmatpush1.msra.mxu0 0.0
      %3755 = vmatprep.subr.mxu0 0.0
      %3756 = vmatpush1.msra.mxu0 0.0
      %3757 = vmatprep.subr.mxu0 0.0
      %3758 = vmatpush1.msra.mxu0 %v3725
      %3759 = vmatprep.subr.mxu0 0.0
      %3760 = vmatpush2.msra.mxu0 0.0
      %3761 = vmatprep.subr.mxu0 0.0
      %3762 = vmatpush2.msra.mxu0 0.0
      %3763 = vmatprep.subr.mxu0 0.0
      %3764 = vmatpush2.msra.mxu0 0.0
      %3765 = vmatprep.subr.mxu0 0.0
      %3766 = vmatpush2.msra.mxu0 0.0
      %3767 = vmatprep.subr.mxu0 0.0
      %3768 = vmatpush2.msra.mxu0 0.0
      %3769 = vmatprep.subr.mxu0 0.0
      %3770 = vmatpush2.msra.mxu0 0.0
      %3771 = vmatprep.subr.mxu0 0.0
      %3772 = vmatpush2.msra.mxu0 0.0
      %3773 = vmatprep.subr.mxu0 0.0
      %3774 = vmatpush2.msra.mxu0 0.0
      %3775 = vmatprep.subr.mxu0 0.0
      %3776 = vmatpush2.msra.mxu0 0.0
      %3777 = vmatprep.subr.mxu0 0.0
      %3778 = vmatpush2.msra.mxu0 0.0
      %3779 = vmatprep.subr.mxu0 0.0
      %3780 = vmatpush2.msra.mxu0 0.0
      %3781 = vmatprep.subr.mxu0 0.0
      %3782 = vmatpush2.msra.mxu0 0.0
      %3783 = vmatprep.subr.mxu0 0.0
      %3784 = vmatpush2.msra.mxu0 0.0
      %3785 = vmatprep.subr.mxu0 0.0
      %3786 = vmatpush2.msra.mxu0 0.0
      %3787 = vmatprep.subr.mxu0 0.0
      %3788 = vmatpush2.msra.mxu0 0.0
      %3789 = vmatprep.subr.mxu0 0.0
      %3790 = vmatpush2.msra.mxu0 0.0
      %3791 = vmatprep.mubr.f32.mxu0 0.0
      %3792 = vmatmul.mubr.f32.gmra.mxu0 %v3602
      %v3793 = vpop.f32.mrf.mxu0
      %v3794 = vadd.f32 0.0, %v3793
      %v3795 = vpop.f32.mrf.mxu0
      %3796 = vmatprep.mubr.f32.mxu0 0.0
      %3797 = vmatmul.mubr.f32.gmra.mxu0 %v3605
      %v3798 = vpop.f32.mrf.mxu0
      %v3799 = vadd.f32 0.0, %v3798
      %v3800 = vpop.f32.mrf.mxu0
      %3801 = vmatprep.mubr.f32.mxu0 0.0
      %3802 = vmatmul.mubr.f32.gmra.mxu0 %v3608
      %v3803 = vpop.f32.mrf.mxu0
      %v3804 = vadd.f32 0.0, %v3803
      %v3805 = vpop.f32.mrf.mxu0
      %3806 = vmatprep.mubr.f32.mxu0 0.0
      %3807 = vmatmul.mubr.f32.gmra.mxu0 %v3611
      %v3808 = vpop.f32.mrf.mxu0
      %v3809 = vadd.f32 0.0, %v3808
      %v3810 = vpop.f32.mrf.mxu0
      %3811 = vmatprep.mubr.f32.mxu0 0.0
      %3812 = vmatmul.mubr.f32.gmra.mxu0 %v3614
      %v3813 = vpop.f32.mrf.mxu0
      %v3814 = vadd.f32 0.0, %v3813
      %v3815 = vpop.f32.mrf.mxu0
      %3816 = vmatprep.mubr.f32.mxu0 0.0
      %3817 = vmatmul.mubr.f32.gmra.mxu0 %v3617
      %v3818 = vpop.f32.mrf.mxu0
      %v3819 = vadd.f32 0.0, %v3818
      %v3820 = vpop.f32.mrf.mxu0
      %3821 = vmatprep.mubr.f32.mxu0 0.0
      %3822 = vmatmul.mubr.f32.gmra.mxu0 %v3620
      %v3823 = vpop.f32.mrf.mxu0
      %v3824 = vadd.f32 0.0, %v3823
      %v3825 = vpop.f32.mrf.mxu0
      %3826 = vmatprep.mubr.f32.mxu0 0.0
      %3827 = vmatmul.mubr.f32.gmra.mxu0 %v3623
      %v3828 = vpop.f32.mrf.mxu0
      %v3829 = vadd.f32 0.0, %v3828
      %v3830 = vpop.f32.mrf.mxu0
      %3831 = vmatprep.mubr.f32.mxu0 0.0
      %3832 = vmatmul.mubr.f32.gmra.mxu0 %v3626
      %v3833 = vpop.f32.mrf.mxu0
      %v3834 = vadd.f32 0.0, %v3833
      %v3835 = vpop.f32.mrf.mxu0
      %3836 = vmatprep.mubr.f32.mxu0 0.0
      %3837 = vmatmul.mubr.f32.gmra.mxu0 %v3629
      %v3838 = vpop.f32.mrf.mxu0
      %v3839 = vadd.f32 0.0, %v3838
      %v3840 = vpop.f32.mrf.mxu0
      %3841 = vmatprep.mubr.f32.mxu0 0.0
      %3842 = vmatmul.mubr.f32.gmra.mxu0 %v3632
      %v3843 = vpop.f32.mrf.mxu0
      %v3844 = vadd.f32 0.0, %v3843
      %v3845 = vpop.f32.mrf.mxu0
      %3846 = vmatprep.mubr.f32.mxu0 0.0
      %3847 = vmatmul.mubr.f32.gmra.mxu0 %v3635
      %v3848 = vpop.f32.mrf.mxu0
      %v3849 = vadd.f32 0.0, %v3848
      %v3850 = vpop.f32.mrf.mxu0
      %3851 = vmatprep.mubr.f32.mxu0 0.0
      %3852 = vmatmul.mubr.f32.gmra.mxu0 %v3638
      %v3853 = vpop.f32.mrf.mxu0
      %v3854 = vadd.f32 0.0, %v3853
      %v3855 = vpop.f32.mrf.mxu0
      %3856 = vmatprep.mubr.f32.mxu0 0.0
      %3857 = vmatmul.mubr.f32.gmra.mxu0 %v3641
      %v3858 = vpop.f32.mrf.mxu0
      %v3859 = vadd.f32 0.0, %v3858
      %v3860 = vpop.f32.mrf.mxu0
      %3861 = vmatprep.mubr.f32.mxu0 0.0
      %3862 = vmatmul.mubr.f32.gmra.mxu0 %v3644
      %v3863 = vpop.f32.mrf.mxu0
      %v3864 = vadd.f32 0.0, %v3863
      %v3865 = vpop.f32.mrf.mxu0
      %3866 = vmatprep.mubr.f32.mxu0 0.0
      %3867 = vmatmul.mubr.f32.gmra.mxu0 %v3647
      %v3868 = vpop.f32.mrf.mxu0
      %v3869 = vadd.f32 0.0, %v3868
      %v3870 = vpop.f32.mrf.mxu0
      %3871 = vmatprep.mubr.f32.mxu0 0.0
      %3872 = vmatmul.mubr.f32.gmra.mxu0 %v3650
      %v3873 = vpop.f32.mrf.mxu0
      %v3874 = vadd.f32 0.0, %v3873
      %v3875 = vpop.f32.mrf.mxu0
      %3876 = vmatprep.mubr.f32.mxu0 0.0
      %3877 = vmatmul.mubr.f32.gmra.mxu0 %v3653
      %v3878 = vpop.f32.mrf.mxu0
      %v3879 = vadd.f32 0.0, %v3878
      %v3880 = vpop.f32.mrf.mxu0
      %3881 = vmatprep.mubr.f32.mxu0 0.0
      %3882 = vmatmul.mubr.f32.gmra.mxu0 %v3656
      %v3883 = vpop.f32.mrf.mxu0
      %v3884 = vadd.f32 0.0, %v3883
      %v3885 = vpop.f32.mrf.mxu0
      %3886 = vmatprep.mubr.f32.mxu0 0.0
      %3887 = vmatmul.mubr.f32.gmra.mxu0 %v3659
      %v3888 = vpop.f32.mrf.mxu0
      %v3889 = vadd.f32 0.0, %v3888
      %v3890 = vpop.f32.mrf.mxu0
      %3891 = vmatprep.mubr.f32.mxu0 0.0
      %3892 = vmatmul.mubr.f32.gmra.mxu0 %v3662
      %v3893 = vpop.f32.mrf.mxu0
      %v3894 = vadd.f32 0.0, %v3893
      %v3895 = vpop.f32.mrf.mxu0
      %3896 = vmatprep.mubr.f32.mxu0 0.0
      %3897 = vmatmul.mubr.f32.gmra.mxu0 %v3665
      %v3898 = vpop.f32.mrf.mxu0
      %v3899 = vadd.f32 0.0, %v3898
      %v3900 = vpop.f32.mrf.mxu0
      %3901 = vmatprep.mubr.f32.mxu0 0.0
      %3902 = vmatmul.mubr.f32.gmra.mxu0 %v3668
      %v3903 = vpop.f32.mrf.mxu0
      %v3904 = vadd.f32 0.0, %v3903
      %v3905 = vpop.f32.mrf.mxu0
      %3906 = vmatprep.mubr.f32.mxu0 0.0
      %3907 = vmatmul.mubr.f32.gmra.mxu0 %v3671
      %v3908 = vpop.f32.mrf.mxu0
      %v3909 = vadd.f32 0.0, %v3908
      %v3910 = vpop.f32.mrf.mxu0
      %3911 = vmatprep.mubr.f32.mxu0 0.0
      %3912 = vmatmul.mubr.f32.gmra.mxu0 %v3674
      %v3913 = vpop.f32.mrf.mxu0
      %v3914 = vadd.f32 0.0, %v3913
      %v3915 = vpop.f32.mrf.mxu0
      %3916 = vmatprep.mubr.f32.mxu0 0.0
      %3917 = vmatmul.mubr.f32.gmra.mxu0 %v3677
      %v3918 = vpop.f32.mrf.mxu0
      %v3919 = vadd.f32 0.0, %v3918
      %v3920 = vpop.f32.mrf.mxu0
      %3921 = vmatprep.mubr.f32.mxu0 0.0
      %3922 = vmatmul.mubr.f32.gmra.mxu0 %v3680
      %v3923 = vpop.f32.mrf.mxu0
      %v3924 = vadd.f32 0.0, %v3923
      %v3925 = vpop.f32.mrf.mxu0
      %3926 = vmatprep.mubr.f32.mxu0 0.0
      %3927 = vmatmul.mubr.f32.gmra.mxu0 %v3683
      %v3928 = vpop.f32.mrf.mxu0
      %v3929 = vadd.f32 0.0, %v3928
      %v3930 = vpop.f32.mrf.mxu0
      %3931 = vmatprep.mubr.f32.mxu0 0.0
      %3932 = vmatmul.mubr.f32.gmra.mxu0 %v3686
      %v3933 = vpop.f32.mrf.mxu0
      %v3934 = vadd.f32 0.0, %v3933
      %v3935 = vpop.f32.mrf.mxu0
      %3936 = vmatprep.mubr.f32.mxu0 0.0
      %3937 = vmatmul.mubr.f32.gmra.mxu0 %v3689
      %v3938 = vpop.f32.mrf.mxu0
      %v3939 = vadd.f32 0.0, %v3938
      %v3940 = vpop.f32.mrf.mxu0
      %3941 = vmatprep.mubr.f32.mxu0 0.0
      %3942 = vmatmul.mubr.f32.gmra.mxu0 %v3692
      %v3943 = vpop.f32.mrf.mxu0
      %v3944 = vadd.f32 0.0, %v3943
      %v3945 = vpop.f32.mrf.mxu0
      %3946 = vmatprep.mubr.f32.mxu0 0.0
      %3947 = vmatmul.mubr.f32.gmra.mxu0 %v3695
      %v3948 = vpop.f32.mrf.mxu0
      %v3949 = vadd.f32 0.0, %v3948
      %v3950 = vpop.f32.mrf.mxu0
      %3951 = vmatprep.mubr.f32.mxu0 0.0
      %3952 = vmatmul.mubr.f32.gmra.mxu0 %v3698
      %v3953 = vpop.f32.mrf.mxu0
      %v3954 = vadd.f32 0.0, %v3953
      %v3955 = vpop.f32.mrf.mxu0
      %3956 = vmatprep.mubr.f32.mxu0 0.0
      %3957 = vmatmul.mubr.f32.gmra.mxu0 %v3701
      %v3958 = vpop.f32.mrf.mxu0
      %v3959 = vadd.f32 0.0, %v3958
      %v3960 = vpop.f32.mrf.mxu0
      %3961 = vmatprep.mubr.f32.mxu0 0.0
      %3962 = vmatmul.mubr.f32.gmra.mxu0 %v3704
      %v3963 = vpop.f32.mrf.mxu0
      %v3964 = vadd.f32 0.0, %v3963
      %v3965 = vpop.f32.mrf.mxu0
      %3966 = vmatprep.mubr.f32.mxu0 0.0
      %3967 = vmatmul.mubr.f32.gmra.mxu0 %v3707
      %v3968 = vpop.f32.mrf.mxu0
      %v3969 = vadd.f32 0.0, %v3968
      %v3970 = vpop.f32.mrf.mxu0
      %3971 = vmatprep.mubr.f32.mxu0 0.0
      %3972 = vmatmul.mubr.f32.gmra.mxu0 %v3710
      %v3973 = vpop.f32.mrf.mxu0
      %v3974 = vadd.f32 0.0, %v3973
      %v3975 = vpop.f32.mrf.mxu0
      %3976 = vmatprep.mubr.f32.mxu0 0.0
      %3977 = vmatmul.mubr.f32.gmra.mxu0 %v3713
      %v3978 = vpop.f32.mrf.mxu0
      %v3979 = vadd.f32 0.0, %v3978
      %v3980 = vpop.f32.mrf.mxu0
      %3981 = vmatprep.mubr.f32.mxu0 0.0
      %3982 = vmatmul.mubr.f32.gmra.mxu0 %v3716
      %v3983 = vpop.f32.mrf.mxu0
      %v3984 = vadd.f32 0.0, %v3983
      %v3985 = vpop.f32.mrf.mxu0
      %3986 = vmatprep.mubr.f32.mxu0 0.0
      %3987 = vmatmul.mubr.f32.gmra.mxu0 %v3719
      %v3988 = vpop.f32.mrf.mxu0
      %v3989 = vadd.f32 0.0, %v3988
      %v3990 = vpop.f32.mrf.mxu0
      %3991 = vmatprep.mubr.f32.mxu0 0.0
      %3992 = vmatmul.mubr.f32.gmra.mxu0 %v3722
      %v3993 = vpop.f32.mrf.mxu0
      %v3994 = vadd.f32 0.0, %v3993
      %v3995 = vpop.f32.mrf.mxu0
      %3996 = vdwg.mxu0
      %v3997 = vadd.f32 %v3517, %v3794
      %v3998 = vadd.f32 %v3518, %v3799
      %v3999 = vadd.f32 %v3519, %v3804
      %v4000 = vadd.f32 %v3520, %v3809
      %v4001 = vadd.f32 %v3521, %v3814
      %v4002 = vadd.f32 %v3522, %v3819
      %v4003 = vadd.f32 %v3523, %v3824
      %v4004 = vadd.f32 %v3524, %v3829
      %v4005 = vadd.f32 %v3525, %v3834
      %v4006 = vadd.f32 %v3526, %v3839
      %v4007 = vadd.f32 %v3527, %v3844
      %v4008 = vadd.f32 %v3528, %v3849
      %v4009 = vadd.f32 %v3529, %v3854
      %v4010 = vadd.f32 %v3530, %v3859
      %v4011 = vadd.f32 %v3531, %v3864
      %v4012 = vadd.f32 %v3532, %v3869
      %v4013 = vadd.f32 %v3533, %v3874
      %v4014 = vadd.f32 %v3534, %v3879
      %v4015 = vadd.f32 %v3535, %v3884
      %v4016 = vadd.f32 %v3536, %v3889
      %v4017 = vadd.f32 %v3537, %v3894
      %v4018 = vadd.f32 %v3538, %v3899
      %v4019 = vadd.f32 %v3539, %v3904
      %v4020 = vadd.f32 %v3540, %v3909
      %v4021 = vadd.f32 %v3541, %v3914
      %v4022 = vadd.f32 %v3542, %v3919
      %v4023 = vadd.f32 %v3543, %v3924
      %v4024 = vadd.f32 %v3544, %v3929
      %v4025 = vadd.f32 %v3545, %v3934
      %v4026 = vadd.f32 %v3546, %v3939
      %v4027 = vadd.f32 %v3547, %v3944
      %v4028 = vadd.f32 %v3548, %v3949
      %v4029 = vadd.f32 %v3549, %v3954
      %v4030 = vadd.f32 %v3550, %v3959
      %v4031 = vadd.f32 %v3551, %v3964
      %v4032 = vadd.f32 %v3552, %v3969
      %v4033 = vadd.f32 %v3553, %v3974
      %v4034 = vadd.f32 %v3554, %v3979
      %v4035 = vadd.f32 %v3555, %v3984
      %v4036 = vadd.f32 %v3556, %v3989
      %v4037 = vadd.f32 %v3557, %v3994
      %v4038 = vld [vmem:[%s273 + $0x2b] sm:$0xff]
      %v4039 = vld [vmem:[%s273 + $0x33] sm:$0xff]
      %v4040 = vld [vmem:[%s273 + $0x3b] sm:$0xff]
      %v4041 = vld [vmem:[%s273 + $0x43] sm:$0xff]
      %v4042 = vld [vmem:[%s273 + $0x4b] sm:$0xff]
      %v4043 = vld [vmem:[%s273 + $0x53] sm:$0xff]
      %v4044 = vld [vmem:[%s273 + $0x5b] sm:$0xff]
      %v4045 = vld [vmem:[%s273 + $0x63] sm:$0xff]
      %v4046 = vld [vmem:[%s273 + $0x6b] sm:$0xff]
      %v4047 = vld [vmem:[%s273 + $0x73] sm:$0xff]
      %v4048 = vld [vmem:[%s273 + $0x7b] sm:$0xff]
      %v4049 = vld [vmem:[%s273 + $0x83] sm:$0xff]
      %v4050 = vld [vmem:[%s273 + $0x8b] sm:$0xff]
      %v4051 = vld [vmem:[%s273 + $0x93] sm:$0xff]
      %v4052 = vld [vmem:[%s273 + $0x9b] sm:$0xff]
      %v4053 = vld [vmem:[%s273 + $0xa3] sm:$0xff]
      %v4054 = vld [vmem:[%s273 + $0xab] sm:$0xff]
      %v4055 = vld [vmem:[%s273 + $0xb3] sm:$0xff]
      %v4056 = vld [vmem:[%s273 + $0xbb] sm:$0xff]
      %v4057 = vld [vmem:[%s273 + $0xc3] sm:$0xff]
      %v4058 = vld [vmem:[%s273 + $0xcb] sm:$0xff]
      %v4059 = vld [vmem:[%s273 + $0xd3] sm:$0xff]
      %v4060 = vld [vmem:[%s273 + $0xdb] sm:$0xff]
      %v4061 = vld [vmem:[%s273 + $0xe3] sm:$0xff]
      %v4062 = vld [vmem:[%s273 + $0xeb] sm:$0xff]
      %v4063 = vld [vmem:[%s273 + $0xf3] sm:$0xff]
      %v4064 = vld [vmem:[%s273 + $0xfb] sm:$0xff]
      %v4065 = vld [vmem:[%s273 + $0x103] sm:$0xff]
      %v4066 = vld [vmem:[%s273 + $0x10b] sm:$0xff]
      %v4067 = vld [vmem:[%s273 + $0x113] sm:$0xff]
      %v4068 = vld [vmem:[%s273 + $0x11b] sm:$0xff]
      %v4069 = vld [vmem:[%s273 + $0x123] sm:$0xff]
      %v4070 = vld [vmem:[%s273 + $0x12b] sm:$0xff]
      %v4071 = vld [vmem:[%s273 + $0x133] sm:$0xff]
      %v4072 = vld [vmem:[%s273 + $0x13b] sm:$0xff]
      %v4073 = vld [vmem:[%s273 + $0x143] sm:$0xff]
      %v4074 = vld [vmem:[%s273 + $0x14b] sm:$0xff]
      %v4075 = vld [vmem:[%s273 + $0x153] sm:$0xff]
      %v4076 = vld [vmem:[%s273 + $0x15b] sm:$0xff]
      %v4077 = vld [vmem:[%s273 + $0x163] sm:$0xff]
      %v4078 = vld [vmem:[%s273 + $0x16b] sm:$0xf]
      %s4079 = scalar_lea.vmem %s1, 32
      %v4080 = vld [vmem:[%s4079] sm:$0xf]
      %v4082 = vsel %vm364, %v4038, 0
      %v4085 = vsel %vm364, %v4039, 0
      %v4088 = vsel %vm364, %v4040, 0
      %v4091 = vsel %vm364, %v4041, 0
      %v4094 = vsel %vm364, %v4042, 0
      %v4097 = vsel %vm364, %v4043, 0
      %v4100 = vsel %vm364, %v4044, 0
      %v4103 = vsel %vm364, %v4045, 0
      %v4106 = vsel %vm364, %v4046, 0
      %v4109 = vsel %vm364, %v4047, 0
      %v4112 = vsel %vm364, %v4048, 0
      %v4115 = vsel %vm364, %v4049, 0
      %v4118 = vsel %vm364, %v4050, 0
      %v4121 = vsel %vm364, %v4051, 0
      %v4124 = vsel %vm364, %v4052, 0
      %v4127 = vsel %vm364, %v4053, 0
      %v4130 = vsel %vm364, %v4054, 0
      %v4133 = vsel %vm364, %v4055, 0
      %v4136 = vsel %vm364, %v4056, 0
      %v4139 = vsel %vm364, %v4057, 0
      %v4142 = vsel %vm364, %v4058, 0
      %v4145 = vsel %vm364, %v4059, 0
      %v4148 = vsel %vm364, %v4060, 0
      %v4151 = vsel %vm364, %v4061, 0
      %v4154 = vsel %vm364, %v4062, 0
      %v4157 = vsel %vm364, %v4063, 0
      %v4160 = vsel %vm364, %v4064, 0
      %v4163 = vsel %vm364, %v4065, 0
      %v4166 = vsel %vm364, %v4066, 0
      %v4169 = vsel %vm364, %v4067, 0
      %v4172 = vsel %vm364, %v4068, 0
      %v4175 = vsel %vm364, %v4069, 0
      %v4178 = vsel %vm364, %v4070, 0
      %v4181 = vsel %vm364, %v4071, 0
      %v4184 = vsel %vm364, %v4072, 0
      %v4187 = vsel %vm364, %v4073, 0
      %v4190 = vsel %vm364, %v4074, 0
      %v4193 = vsel %vm364, %v4075, 0
      %v4196 = vsel %vm364, %v4076, 0
      %v4199 = vsel %vm364, %v4077, 0
      %v4202 = vsel %vm364, %v4078, 0
      %v4205 = vsel %vm488, %v4080, 0
      %4207 = vmatprep.subr.mxu0 0.0
      %4208 = vmatpush1.msra.mxu0 0.0
      %4209 = vmatprep.subr.mxu0 0.0
      %4210 = vmatpush1.msra.mxu0 0.0
      %4211 = vmatprep.subr.mxu0 0.0
      %4212 = vmatpush1.msra.mxu0 0.0
      %4213 = vmatprep.subr.mxu0 0.0
      %4214 = vmatpush1.msra.mxu0 0.0
      %4215 = vmatprep.subr.mxu0 0.0
      %4216 = vmatpush1.msra.mxu0 0.0
      %4217 = vmatprep.subr.mxu0 0.0
      %4218 = vmatpush1.msra.mxu0 0.0
      %4219 = vmatprep.subr.mxu0 0.0
      %4220 = vmatpush1.msra.mxu0 0.0
      %4221 = vmatprep.subr.mxu0 0.0
      %4222 = vmatpush1.msra.mxu0 0.0
      %4223 = vmatprep.subr.mxu0 0.0
      %4224 = vmatpush1.msra.mxu0 0.0
      %4225 = vmatprep.subr.mxu0 0.0
      %4226 = vmatpush1.msra.mxu0 0.0
      %4227 = vmatprep.subr.mxu0 0.0
      %4228 = vmatpush1.msra.mxu0 0.0
      %4229 = vmatprep.subr.mxu0 0.0
      %4230 = vmatpush1.msra.mxu0 0.0
      %4231 = vmatprep.subr.mxu0 0.0
      %4232 = vmatpush1.msra.mxu0 0.0
      %4233 = vmatprep.subr.mxu0 0.0
      %4234 = vmatpush1.msra.mxu0 0.0
      %4235 = vmatprep.subr.mxu0 0.0
      %4236 = vmatpush1.msra.mxu0 0.0
      %4237 = vmatprep.subr.mxu0 0.0
      %4238 = vmatpush1.msra.mxu0 %v4205
      %4239 = vmatprep.subr.mxu0 0.0
      %4240 = vmatpush2.msra.mxu0 0.0
      %4241 = vmatprep.subr.mxu0 0.0
      %4242 = vmatpush2.msra.mxu0 0.0
      %4243 = vmatprep.subr.mxu0 0.0
      %4244 = vmatpush2.msra.mxu0 0.0
      %4245 = vmatprep.subr.mxu0 0.0
      %4246 = vmatpush2.msra.mxu0 0.0
      %4247 = vmatprep.subr.mxu0 0.0
      %4248 = vmatpush2.msra.mxu0 0.0
      %4249 = vmatprep.subr.mxu0 0.0
      %4250 = vmatpush2.msra.mxu0 0.0
      %4251 = vmatprep.subr.mxu0 0.0
      %4252 = vmatpush2.msra.mxu0 0.0
      %4253 = vmatprep.subr.mxu0 0.0
      %4254 = vmatpush2.msra.mxu0 0.0
      %4255 = vmatprep.subr.mxu0 0.0
      %4256 = vmatpush2.msra.mxu0 0.0
      %4257 = vmatprep.subr.mxu0 0.0
      %4258 = vmatpush2.msra.mxu0 0.0
      %4259 = vmatprep.subr.mxu0 0.0
      %4260 = vmatpush2.msra.mxu0 0.0
      %4261 = vmatprep.subr.mxu0 0.0
      %4262 = vmatpush2.msra.mxu0 0.0
      %4263 = vmatprep.subr.mxu0 0.0
      %4264 = vmatpush2.msra.mxu0 0.0
      %4265 = vmatprep.subr.mxu0 0.0
      %4266 = vmatpush2.msra.mxu0 0.0
      %4267 = vmatprep.subr.mxu0 0.0
      %4268 = vmatpush2.msra.mxu0 0.0
      %4269 = vmatprep.subr.mxu0 0.0
      %4270 = vmatpush2.msra.mxu0 0.0
      %4271 = vmatprep.mubr.f32.mxu0 0.0
      %4272 = vmatmul.mubr.f32.gmra.mxu0 %v4082
      %v4273 = vpop.f32.mrf.mxu0
      %v4274 = vadd.f32 0.0, %v4273
      %v4275 = vpop.f32.mrf.mxu0
      %4276 = vmatprep.mubr.f32.mxu0 0.0
      %4277 = vmatmul.mubr.f32.gmra.mxu0 %v4085
      %v4278 = vpop.f32.mrf.mxu0
      %v4279 = vadd.f32 0.0, %v4278
      %v4280 = vpop.f32.mrf.mxu0
      %4281 = vmatprep.mubr.f32.mxu0 0.0
      %4282 = vmatmul.mubr.f32.gmra.mxu0 %v4088
      %v4283 = vpop.f32.mrf.mxu0
      %v4284 = vadd.f32 0.0, %v4283
      %v4285 = vpop.f32.mrf.mxu0
      %4286 = vmatprep.mubr.f32.mxu0 0.0
      %4287 = vmatmul.mubr.f32.gmra.mxu0 %v4091
      %v4288 = vpop.f32.mrf.mxu0
      %v4289 = vadd.f32 0.0, %v4288
      %v4290 = vpop.f32.mrf.mxu0
      %4291 = vmatprep.mubr.f32.mxu0 0.0
      %4292 = vmatmul.mubr.f32.gmra.mxu0 %v4094
      %v4293 = vpop.f32.mrf.mxu0
      %v4294 = vadd.f32 0.0, %v4293
      %v4295 = vpop.f32.mrf.mxu0
      %4296 = vmatprep.mubr.f32.mxu0 0.0
      %4297 = vmatmul.mubr.f32.gmra.mxu0 %v4097
      %v4298 = vpop.f32.mrf.mxu0
      %v4299 = vadd.f32 0.0, %v4298
      %v4300 = vpop.f32.mrf.mxu0
      %4301 = vmatprep.mubr.f32.mxu0 0.0
      %4302 = vmatmul.mubr.f32.gmra.mxu0 %v4100
      %v4303 = vpop.f32.mrf.mxu0
      %v4304 = vadd.f32 0.0, %v4303
      %v4305 = vpop.f32.mrf.mxu0
      %4306 = vmatprep.mubr.f32.mxu0 0.0
      %4307 = vmatmul.mubr.f32.gmra.mxu0 %v4103
      %v4308 = vpop.f32.mrf.mxu0
      %v4309 = vadd.f32 0.0, %v4308
      %v4310 = vpop.f32.mrf.mxu0
      %4311 = vmatprep.mubr.f32.mxu0 0.0
      %4312 = vmatmul.mubr.f32.gmra.mxu0 %v4106
      %v4313 = vpop.f32.mrf.mxu0
      %v4314 = vadd.f32 0.0, %v4313
      %v4315 = vpop.f32.mrf.mxu0
      %4316 = vmatprep.mubr.f32.mxu0 0.0
      %4317 = vmatmul.mubr.f32.gmra.mxu0 %v4109
      %v4318 = vpop.f32.mrf.mxu0
      %v4319 = vadd.f32 0.0, %v4318
      %v4320 = vpop.f32.mrf.mxu0
      %4321 = vmatprep.mubr.f32.mxu0 0.0
      %4322 = vmatmul.mubr.f32.gmra.mxu0 %v4112
      %v4323 = vpop.f32.mrf.mxu0
      %v4324 = vadd.f32 0.0, %v4323
      %v4325 = vpop.f32.mrf.mxu0
      %4326 = vmatprep.mubr.f32.mxu0 0.0
      %4327 = vmatmul.mubr.f32.gmra.mxu0 %v4115
      %v4328 = vpop.f32.mrf.mxu0
      %v4329 = vadd.f32 0.0, %v4328
      %v4330 = vpop.f32.mrf.mxu0
      %4331 = vmatprep.mubr.f32.mxu0 0.0
      %4332 = vmatmul.mubr.f32.gmra.mxu0 %v4118
      %v4333 = vpop.f32.mrf.mxu0
      %v4334 = vadd.f32 0.0, %v4333
      %v4335 = vpop.f32.mrf.mxu0
      %4336 = vmatprep.mubr.f32.mxu0 0.0
      %4337 = vmatmul.mubr.f32.gmra.mxu0 %v4121
      %v4338 = vpop.f32.mrf.mxu0
      %v4339 = vadd.f32 0.0, %v4338
      %v4340 = vpop.f32.mrf.mxu0
      %4341 = vmatprep.mubr.f32.mxu0 0.0
      %4342 = vmatmul.mubr.f32.gmra.mxu0 %v4124
      %v4343 = vpop.f32.mrf.mxu0
      %v4344 = vadd.f32 0.0, %v4343
      %v4345 = vpop.f32.mrf.mxu0
      %4346 = vmatprep.mubr.f32.mxu0 0.0
      %4347 = vmatmul.mubr.f32.gmra.mxu0 %v4127
      %v4348 = vpop.f32.mrf.mxu0
      %v4349 = vadd.f32 0.0, %v4348
      %v4350 = vpop.f32.mrf.mxu0
      %4351 = vmatprep.mubr.f32.mxu0 0.0
      %4352 = vmatmul.mubr.f32.gmra.mxu0 %v4130
      %v4353 = vpop.f32.mrf.mxu0
      %v4354 = vadd.f32 0.0, %v4353
      %v4355 = vpop.f32.mrf.mxu0
      %4356 = vmatprep.mubr.f32.mxu0 0.0
      %4357 = vmatmul.mubr.f32.gmra.mxu0 %v4133
      %v4358 = vpop.f32.mrf.mxu0
      %v4359 = vadd.f32 0.0, %v4358
      %v4360 = vpop.f32.mrf.mxu0
      %4361 = vmatprep.mubr.f32.mxu0 0.0
      %4362 = vmatmul.mubr.f32.gmra.mxu0 %v4136
      %v4363 = vpop.f32.mrf.mxu0
      %v4364 = vadd.f32 0.0, %v4363
      %v4365 = vpop.f32.mrf.mxu0
      %4366 = vmatprep.mubr.f32.mxu0 0.0
      %4367 = vmatmul.mubr.f32.gmra.mxu0 %v4139
      %v4368 = vpop.f32.mrf.mxu0
      %v4369 = vadd.f32 0.0, %v4368
      %v4370 = vpop.f32.mrf.mxu0
      %4371 = vmatprep.mubr.f32.mxu0 0.0
      %4372 = vmatmul.mubr.f32.gmra.mxu0 %v4142
      %v4373 = vpop.f32.mrf.mxu0
      %v4374 = vadd.f32 0.0, %v4373
      %v4375 = vpop.f32.mrf.mxu0
      %4376 = vmatprep.mubr.f32.mxu0 0.0
      %4377 = vmatmul.mubr.f32.gmra.mxu0 %v4145
      %v4378 = vpop.f32.mrf.mxu0
      %v4379 = vadd.f32 0.0, %v4378
      %v4380 = vpop.f32.mrf.mxu0
      %4381 = vmatprep.mubr.f32.mxu0 0.0
      %4382 = vmatmul.mubr.f32.gmra.mxu0 %v4148
      %v4383 = vpop.f32.mrf.mxu0
      %v4384 = vadd.f32 0.0, %v4383
      %v4385 = vpop.f32.mrf.mxu0
      %4386 = vmatprep.mubr.f32.mxu0 0.0
      %4387 = vmatmul.mubr.f32.gmra.mxu0 %v4151
      %v4388 = vpop.f32.mrf.mxu0
      %v4389 = vadd.f32 0.0, %v4388
      %v4390 = vpop.f32.mrf.mxu0
      %4391 = vmatprep.mubr.f32.mxu0 0.0
      %4392 = vmatmul.mubr.f32.gmra.mxu0 %v4154
      %v4393 = vpop.f32.mrf.mxu0
      %v4394 = vadd.f32 0.0, %v4393
      %v4395 = vpop.f32.mrf.mxu0
      %4396 = vmatprep.mubr.f32.mxu0 0.0
      %4397 = vmatmul.mubr.f32.gmra.mxu0 %v4157
      %v4398 = vpop.f32.mrf.mxu0
      %v4399 = vadd.f32 0.0, %v4398
      %v4400 = vpop.f32.mrf.mxu0
      %4401 = vmatprep.mubr.f32.mxu0 0.0
      %4402 = vmatmul.mubr.f32.gmra.mxu0 %v4160
      %v4403 = vpop.f32.mrf.mxu0
      %v4404 = vadd.f32 0.0, %v4403
      %v4405 = vpop.f32.mrf.mxu0
      %4406 = vmatprep.mubr.f32.mxu0 0.0
      %4407 = vmatmul.mubr.f32.gmra.mxu0 %v4163
      %v4408 = vpop.f32.mrf.mxu0
      %v4409 = vadd.f32 0.0, %v4408
      %v4410 = vpop.f32.mrf.mxu0
      %4411 = vmatprep.mubr.f32.mxu0 0.0
      %4412 = vmatmul.mubr.f32.gmra.mxu0 %v4166
      %v4413 = vpop.f32.mrf.mxu0
      %v4414 = vadd.f32 0.0, %v4413
      %v4415 = vpop.f32.mrf.mxu0
      %4416 = vmatprep.mubr.f32.mxu0 0.0
      %4417 = vmatmul.mubr.f32.gmra.mxu0 %v4169
      %v4418 = vpop.f32.mrf.mxu0
      %v4419 = vadd.f32 0.0, %v4418
      %v4420 = vpop.f32.mrf.mxu0
      %4421 = vmatprep.mubr.f32.mxu0 0.0
      %4422 = vmatmul.mubr.f32.gmra.mxu0 %v4172
      %v4423 = vpop.f32.mrf.mxu0
      %v4424 = vadd.f32 0.0, %v4423
      %v4425 = vpop.f32.mrf.mxu0
      %4426 = vmatprep.mubr.f32.mxu0 0.0
      %4427 = vmatmul.mubr.f32.gmra.mxu0 %v4175
      %v4428 = vpop.f32.mrf.mxu0
      %v4429 = vadd.f32 0.0, %v4428
      %v4430 = vpop.f32.mrf.mxu0
      %4431 = vmatprep.mubr.f32.mxu0 0.0
      %4432 = vmatmul.mubr.f32.gmra.mxu0 %v4178
      %v4433 = vpop.f32.mrf.mxu0
      %v4434 = vadd.f32 0.0, %v4433
      %v4435 = vpop.f32.mrf.mxu0
      %4436 = vmatprep.mubr.f32.mxu0 0.0
      %4437 = vmatmul.mubr.f32.gmra.mxu0 %v4181
      %v4438 = vpop.f32.mrf.mxu0
      %v4439 = vadd.f32 0.0, %v4438
      %v4440 = vpop.f32.mrf.mxu0
      %4441 = vmatprep.mubr.f32.mxu0 0.0
      %4442 = vmatmul.mubr.f32.gmra.mxu0 %v4184
      %v4443 = vpop.f32.mrf.mxu0
      %v4444 = vadd.f32 0.0, %v4443
      %v4445 = vpop.f32.mrf.mxu0
      %4446 = vmatprep.mubr.f32.mxu0 0.0
      %4447 = vmatmul.mubr.f32.gmra.mxu0 %v4187
      %v4448 = vpop.f32.mrf.mxu0
      %v4449 = vadd.f32 0.0, %v4448
      %v4450 = vpop.f32.mrf.mxu0
      %4451 = vmatprep.mubr.f32.mxu0 0.0
      %4452 = vmatmul.mubr.f32.gmra.mxu0 %v4190
      %v4453 = vpop.f32.mrf.mxu0
      %v4454 = vadd.f32 0.0, %v4453
      %v4455 = vpop.f32.mrf.mxu0
      %4456 = vmatprep.mubr.f32.mxu0 0.0
      %4457 = vmatmul.mubr.f32.gmra.mxu0 %v4193
      %v4458 = vpop.f32.mrf.mxu0
      %v4459 = vadd.f32 0.0, %v4458
      %v4460 = vpop.f32.mrf.mxu0
      %4461 = vmatprep.mubr.f32.mxu0 0.0
      %4462 = vmatmul.mubr.f32.gmra.mxu0 %v4196
      %v4463 = vpop.f32.mrf.mxu0
      %v4464 = vadd.f32 0.0, %v4463
      %v4465 = vpop.f32.mrf.mxu0
      %4466 = vmatprep.mubr.f32.mxu0 0.0
      %4467 = vmatmul.mubr.f32.gmra.mxu0 %v4199
      %v4468 = vpop.f32.mrf.mxu0
      %v4469 = vadd.f32 0.0, %v4468
      %v4470 = vpop.f32.mrf.mxu0
      %4471 = vmatprep.mubr.f32.mxu0 0.0
      %4472 = vmatmul.mubr.f32.gmra.mxu0 %v4202
      %v4473 = vpop.f32.mrf.mxu0
      %v4474 = vadd.f32 0.0, %v4473
      %v4475 = vpop.f32.mrf.mxu0
      %4476 = vdwg.mxu0
      %v4477 = vadd.f32 %v3997, %v4274
      %v4478 = vadd.f32 %v3998, %v4279
      %v4479 = vadd.f32 %v3999, %v4284
      %v4480 = vadd.f32 %v4000, %v4289
      %v4481 = vadd.f32 %v4001, %v4294
      %v4482 = vadd.f32 %v4002, %v4299
      %v4483 = vadd.f32 %v4003, %v4304
      %v4484 = vadd.f32 %v4004, %v4309
      %v4485 = vadd.f32 %v4005, %v4314
      %v4486 = vadd.f32 %v4006, %v4319
      %v4487 = vadd.f32 %v4007, %v4324
      %v4488 = vadd.f32 %v4008, %v4329
      %v4489 = vadd.f32 %v4009, %v4334
      %v4490 = vadd.f32 %v4010, %v4339
      %v4491 = vadd.f32 %v4011, %v4344
      %v4492 = vadd.f32 %v4012, %v4349
      %v4493 = vadd.f32 %v4013, %v4354
      %v4494 = vadd.f32 %v4014, %v4359
      %v4495 = vadd.f32 %v4015, %v4364
      %v4496 = vadd.f32 %v4016, %v4369
      %v4497 = vadd.f32 %v4017, %v4374
      %v4498 = vadd.f32 %v4018, %v4379
      %v4499 = vadd.f32 %v4019, %v4384
      %v4500 = vadd.f32 %v4020, %v4389
      %v4501 = vadd.f32 %v4021, %v4394
      %v4502 = vadd.f32 %v4022, %v4399
      %v4503 = vadd.f32 %v4023, %v4404
      %v4504 = vadd.f32 %v4024, %v4409
      %v4505 = vadd.f32 %v4025, %v4414
      %v4506 = vadd.f32 %v4026, %v4419
      %v4507 = vadd.f32 %v4027, %v4424
      %v4508 = vadd.f32 %v4028, %v4429
      %v4509 = vadd.f32 %v4029, %v4434
      %v4510 = vadd.f32 %v4030, %v4439
      %v4511 = vadd.f32 %v4031, %v4444
      %v4512 = vadd.f32 %v4032, %v4449
      %v4513 = vadd.f32 %v4033, %v4454
      %v4514 = vadd.f32 %v4034, %v4459
      %v4515 = vadd.f32 %v4035, %v4464
      %v4516 = vadd.f32 %v4036, %v4469
      %v4517 = vadd.f32 %v4037, %v4474
      %v4518 = vld [vmem:[%s2] sm:$0x1]
      %v4520 = vlaneseq
      %v4521 = vshrl.u32 %v4520, 7
      %v4522 = vsub.s32 0, %v4521
      %v4523 = vrot.slane %v4518, %v4522
      %v4525 = vadd.f32 %v4477, %v4523
      %v4526 = vadd.f32 %v4478, %v4523
      %v4527 = vadd.f32 %v4479, %v4523
      %v4528 = vadd.f32 %v4480, %v4523
      %v4529 = vadd.f32 %v4481, %v4523
      %v4530 = vadd.f32 %v4482, %v4523
      %v4531 = vadd.f32 %v4483, %v4523
      %v4532 = vadd.f32 %v4484, %v4523
      %v4533 = vadd.f32 %v4485, %v4523
      %v4534 = vadd.f32 %v4486, %v4523
      %v4535 = vadd.f32 %v4487, %v4523
      %v4536 = vadd.f32 %v4488, %v4523
      %v4537 = vadd.f32 %v4489, %v4523
      %v4538 = vadd.f32 %v4490, %v4523
      %v4539 = vadd.f32 %v4491, %v4523
      %v4540 = vadd.f32 %v4492, %v4523
      %v4541 = vadd.f32 %v4493, %v4523
      %v4542 = vadd.f32 %v4494, %v4523
      %v4543 = vadd.f32 %v4495, %v4523
      %v4544 = vadd.f32 %v4496, %v4523
      %v4545 = vadd.f32 %v4497, %v4523
      %v4546 = vadd.f32 %v4498, %v4523
      %v4547 = vadd.f32 %v4499, %v4523
      %v4548 = vadd.f32 %v4500, %v4523
      %v4549 = vadd.f32 %v4501, %v4523
      %v4550 = vadd.f32 %v4502, %v4523
      %v4551 = vadd.f32 %v4503, %v4523
      %v4552 = vadd.f32 %v4504, %v4523
      %v4553 = vadd.f32 %v4505, %v4523
      %v4554 = vadd.f32 %v4506, %v4523
      %v4555 = vadd.f32 %v4507, %v4523
      %v4556 = vadd.f32 %v4508, %v4523
      %v4557 = vadd.f32 %v4509, %v4523
      %v4558 = vadd.f32 %v4510, %v4523
      %v4559 = vadd.f32 %v4511, %v4523
      %v4560 = vadd.f32 %v4512, %v4523
      %v4561 = vadd.f32 %v4513, %v4523
      %v4562 = vadd.f32 %v4514, %v4523
      %v4563 = vadd.f32 %v4515, %v4523
      %v4564 = vadd.f32 %v4516, %v4523
      %v4565 = vadd.f32 %v4517, %v4523
      %v4566 = vmax.f32 %v4525, 0.0
      %v4567 = vmax.f32 %v4526, 0.0
      %v4568 = vmax.f32 %v4527, 0.0
      %v4569 = vmax.f32 %v4528, 0.0
      %v4570 = vmax.f32 %v4529, 0.0
      %v4571 = vmax.f32 %v4530, 0.0
      %v4572 = vmax.f32 %v4531, 0.0
      %v4573 = vmax.f32 %v4532, 0.0
      %v4574 = vmax.f32 %v4533, 0.0
      %v4575 = vmax.f32 %v4534, 0.0
      %v4576 = vmax.f32 %v4535, 0.0
      %v4577 = vmax.f32 %v4536, 0.0
      %v4578 = vmax.f32 %v4537, 0.0
      %v4579 = vmax.f32 %v4538, 0.0
      %v4580 = vmax.f32 %v4539, 0.0
      %v4581 = vmax.f32 %v4540, 0.0
      %v4582 = vmax.f32 %v4541, 0.0
      %v4583 = vmax.f32 %v4542, 0.0
      %v4584 = vmax.f32 %v4543, 0.0
      %v4585 = vmax.f32 %v4544, 0.0
      %v4586 = vmax.f32 %v4545, 0.0
      %v4587 = vmax.f32 %v4546, 0.0
      %v4588 = vmax.f32 %v4547, 0.0
      %v4589 = vmax.f32 %v4548, 0.0
      %v4590 = vmax.f32 %v4549, 0.0
      %v4591 = vmax.f32 %v4550, 0.0
      %v4592 = vmax.f32 %v4551, 0.0
      %v4593 = vmax.f32 %v4552, 0.0
      %v4594 = vmax.f32 %v4553, 0.0
      %v4595 = vmax.f32 %v4554, 0.0
      %v4596 = vmax.f32 %v4555, 0.0
      %v4597 = vmax.f32 %v4556, 0.0
      %v4598 = vmax.f32 %v4557, 0.0
      %v4599 = vmax.f32 %v4558, 0.0
      %v4600 = vmax.f32 %v4559, 0.0
      %v4601 = vmax.f32 %v4560, 0.0
      %v4602 = vmax.f32 %v4561, 0.0
      %v4603 = vmax.f32 %v4562, 0.0
      %v4604 = vmax.f32 %v4563, 0.0
      %v4605 = vmax.f32 %v4564, 0.0
      %v4606 = vmax.f32 %v4565, 0.0
      %v4607 = vld [vmem:[%s5] sm:$0xff]
      %v4608 = vld [vmem:[%s5 + $0x8] sm:$0xff]
      %v4609 = vld [vmem:[%s5 + $0x10] sm:$0xff]
      %v4610 = vld [vmem:[%s5 + $0x18] sm:$0xff]
      %v4611 = vld [vmem:[%s5 + $0x20] sm:$0xff]
      %v4612 = vld [vmem:[%s5 + $0x28] sm:$0xff]
      %v4613 = vld [vmem:[%s5 + $0x30] sm:$0xff]
      %v4614 = vld [vmem:[%s5 + $0x38] sm:$0xff]
      %v4615 = vld [vmem:[%s5 + $0x40] sm:$0xff]
      %v4616 = vld [vmem:[%s5 + $0x48] sm:$0xff]
      %v4617 = vld [vmem:[%s5 + $0x50] sm:$0xff]
      %v4618 = vld [vmem:[%s5 + $0x58] sm:$0xff]
      %v4619 = vld [vmem:[%s5 + $0x60] sm:$0xff]
      %v4620 = vld [vmem:[%s5 + $0x68] sm:$0xff]
      %v4621 = vld [vmem:[%s5 + $0x70] sm:$0xff]
      %v4622 = vld [vmem:[%s5 + $0x78] sm:$0xff]
      %v4623 = vld [vmem:[%s5 + $0x80] sm:$0xff]
      %v4624 = vld [vmem:[%s5 + $0x88] sm:$0xff]
      %v4625 = vld [vmem:[%s5 + $0x90] sm:$0xff]
      %v4626 = vld [vmem:[%s5 + $0x98] sm:$0xff]
      %v4627 = vld [vmem:[%s5 + $0xa0] sm:$0xff]
      %v4628 = vld [vmem:[%s5 + $0xa8] sm:$0xff]
      %v4629 = vld [vmem:[%s5 + $0xb0] sm:$0xff]
      %v4630 = vld [vmem:[%s5 + $0xb8] sm:$0xff]
      %v4631 = vld [vmem:[%s5 + $0xc0] sm:$0xff]
      %v4632 = vld [vmem:[%s5 + $0xc8] sm:$0xff]
      %v4633 = vld [vmem:[%s5 + $0xd0] sm:$0xff]
      %v4634 = vld [vmem:[%s5 + $0xd8] sm:$0xff]
      %v4635 = vld [vmem:[%s5 + $0xe0] sm:$0xff]
      %v4636 = vld [vmem:[%s5 + $0xe8] sm:$0xff]
      %v4637 = vld [vmem:[%s5 + $0xf0] sm:$0xff]
      %v4638 = vld [vmem:[%s5 + $0xf8] sm:$0xff]
      %v4639 = vld [vmem:[%s5 + $0x100] sm:$0xff]
      %v4640 = vld [vmem:[%s5 + $0x108] sm:$0xff]
      %v4641 = vld [vmem:[%s5 + $0x110] sm:$0xff]
      %v4642 = vld [vmem:[%s5 + $0x118] sm:$0xff]
      %v4643 = vld [vmem:[%s5 + $0x120] sm:$0xff]
      %v4644 = vld [vmem:[%s5 + $0x128] sm:$0xff]
      %v4645 = vld [vmem:[%s5 + $0x130] sm:$0xff]
      %v4646 = vld [vmem:[%s5 + $0x138] sm:$0xff]
      %v4647 = vld [vmem:[%s5 + $0x140] sm:$0xf]
      %4649 = vset.pattern.permute.xlu0 0
      %4650 = vperm.xlu0 %4649, %v4607
      %v4651 = vpop.permute.xlu0 %4650
      %4654 = vset.pattern.permute.xlu0 0
      %4655 = vperm.xlu0 %4654, %v4608
      %v4656 = vpop.permute.xlu0 %4655
      %4659 = vset.pattern.permute.xlu0 0
      %4660 = vperm.xlu0 %4659, %v4609
      %v4661 = vpop.permute.xlu0 %4660
      %4664 = vset.pattern.permute.xlu0 0
      %4665 = vperm.xlu0 %4664, %v4610
      %v4666 = vpop.permute.xlu0 %4665
      %4669 = vset.pattern.permute.xlu0 0
      %4670 = vperm.xlu0 %4669, %v4611
      %v4671 = vpop.permute.xlu0 %4670
      %4674 = vset.pattern.permute.xlu0 0
      %4675 = vperm.xlu0 %4674, %v4612
      %v4676 = vpop.permute.xlu0 %4675
      %4679 = vset.pattern.permute.xlu0 0
      %4680 = vperm.xlu0 %4679, %v4613
      %v4681 = vpop.permute.xlu0 %4680
      %4684 = vset.pattern.permute.xlu0 0
      %4685 = vperm.xlu0 %4684, %v4614
      %v4686 = vpop.permute.xlu0 %4685
      %4689 = vset.pattern.permute.xlu0 0
      %4690 = vperm.xlu0 %4689, %v4615
      %v4691 = vpop.permute.xlu0 %4690
      %4694 = vset.pattern.permute.xlu0 0
      %4695 = vperm.xlu0 %4694, %v4616
      %v4696 = vpop.permute.xlu0 %4695
      %4699 = vset.pattern.permute.xlu0 0
      %4700 = vperm.xlu0 %4699, %v4617
      %v4701 = vpop.permute.xlu0 %4700
      %4704 = vset.pattern.permute.xlu0 0
      %4705 = vperm.xlu0 %4704, %v4618
      %v4706 = vpop.permute.xlu0 %4705
      %4709 = vset.pattern.permute.xlu0 0
      %4710 = vperm.xlu0 %4709, %v4619
      %v4711 = vpop.permute.xlu0 %4710
      %4714 = vset.pattern.permute.xlu0 0
      %4715 = vperm.xlu0 %4714, %v4620
      %v4716 = vpop.permute.xlu0 %4715
      %4719 = vset.pattern.permute.xlu0 0
      %4720 = vperm.xlu0 %4719, %v4621
      %v4721 = vpop.permute.xlu0 %4720
      %4724 = vset.pattern.permute.xlu0 0
      %4725 = vperm.xlu0 %4724, %v4622
      %v4726 = vpop.permute.xlu0 %4725
      %4729 = vset.pattern.permute.xlu0 0
      %4730 = vperm.xlu0 %4729, %v4623
      %v4731 = vpop.permute.xlu0 %4730
      %4734 = vset.pattern.permute.xlu0 0
      %4735 = vperm.xlu0 %4734, %v4624
      %v4736 = vpop.permute.xlu0 %4735
      %4739 = vset.pattern.permute.xlu0 0
      %4740 = vperm.xlu0 %4739, %v4625
      %v4741 = vpop.permute.xlu0 %4740
      %4744 = vset.pattern.permute.xlu0 0
      %4745 = vperm.xlu0 %4744, %v4626
      %v4746 = vpop.permute.xlu0 %4745
      %4749 = vset.pattern.permute.xlu0 0
      %4750 = vperm.xlu0 %4749, %v4627
      %v4751 = vpop.permute.xlu0 %4750
      %4754 = vset.pattern.permute.xlu0 0
      %4755 = vperm.xlu0 %4754, %v4628
      %v4756 = vpop.permute.xlu0 %4755
      %4759 = vset.pattern.permute.xlu0 0
      %4760 = vperm.xlu0 %4759, %v4629
      %v4761 = vpop.permute.xlu0 %4760
      %4764 = vset.pattern.permute.xlu0 0
      %4765 = vperm.xlu0 %4764, %v4630
      %v4766 = vpop.permute.xlu0 %4765
      %4769 = vset.pattern.permute.xlu0 0
      %4770 = vperm.xlu0 %4769, %v4631
      %v4771 = vpop.permute.xlu0 %4770
      %4774 = vset.pattern.permute.xlu0 0
      %4775 = vperm.xlu0 %4774, %v4632
      %v4776 = vpop.permute.xlu0 %4775
      %4779 = vset.pattern.permute.xlu0 0
      %4780 = vperm.xlu0 %4779, %v4633
      %v4781 = vpop.permute.xlu0 %4780
      %4784 = vset.pattern.permute.xlu0 0
      %4785 = vperm.xlu0 %4784, %v4634
      %v4786 = vpop.permute.xlu0 %4785
      %4789 = vset.pattern.permute.xlu0 0
      %4790 = vperm.xlu0 %4789, %v4635
      %v4791 = vpop.permute.xlu0 %4790
      %4794 = vset.pattern.permute.xlu0 0
      %4795 = vperm.xlu0 %4794, %v4636
      %v4796 = vpop.permute.xlu0 %4795
      %4799 = vset.pattern.permute.xlu0 0
      %4800 = vperm.xlu0 %4799, %v4637
      %v4801 = vpop.permute.xlu0 %4800
      %4804 = vset.pattern.permute.xlu0 0
      %4805 = vperm.xlu0 %4804, %v4638
      %v4806 = vpop.permute.xlu0 %4805
      %4809 = vset.pattern.permute.xlu0 0
      %4810 = vperm.xlu0 %4809, %v4639
      %v4811 = vpop.permute.xlu0 %4810
      %4814 = vset.pattern.permute.xlu0 0
      %4815 = vperm.xlu0 %4814, %v4640
      %v4816 = vpop.permute.xlu0 %4815
      %4819 = vset.pattern.permute.xlu0 0
      %4820 = vperm.xlu0 %4819, %v4641
      %v4821 = vpop.permute.xlu0 %4820
      %4824 = vset.pattern.permute.xlu0 0
      %4825 = vperm.xlu0 %4824, %v4642
      %v4826 = vpop.permute.xlu0 %4825
      %4829 = vset.pattern.permute.xlu0 0
      %4830 = vperm.xlu0 %4829, %v4643
      %v4831 = vpop.permute.xlu0 %4830
      %4834 = vset.pattern.permute.xlu0 0
      %4835 = vperm.xlu0 %4834, %v4644
      %v4836 = vpop.permute.xlu0 %4835
      %4839 = vset.pattern.permute.xlu0 0
      %4840 = vperm.xlu0 %4839, %v4645
      %v4841 = vpop.permute.xlu0 %4840
      %4844 = vset.pattern.permute.xlu0 0
      %4845 = vperm.xlu0 %4844, %v4646
      %v4846 = vpop.permute.xlu0 %4845
      %4849 = vset.pattern.permute.xlu0 0
      %4850 = vperm.xlu0 %4849, %v4647
      %v4851 = vpop.permute.xlu0 %4850
      %v4853 = vmul.f32 %v4566, %v4651
      %v4854 = vmul.f32 %v4567, %v4656
      %v4855 = vmul.f32 %v4568, %v4661
      %v4856 = vmul.f32 %v4569, %v4666
      %v4857 = vmul.f32 %v4570, %v4671
      %v4858 = vmul.f32 %v4571, %v4676
      %v4859 = vmul.f32 %v4572, %v4681
      %v4860 = vmul.f32 %v4573, %v4686
      %v4861 = vmul.f32 %v4574, %v4691
      %v4862 = vmul.f32 %v4575, %v4696
      %v4863 = vmul.f32 %v4576, %v4701
      %v4864 = vmul.f32 %v4577, %v4706
      %v4865 = vmul.f32 %v4578, %v4711
      %v4866 = vmul.f32 %v4579, %v4716
      %v4867 = vmul.f32 %v4580, %v4721
      %v4868 = vmul.f32 %v4581, %v4726
      %v4869 = vmul.f32 %v4582, %v4731
      %v4870 = vmul.f32 %v4583, %v4736
      %v4871 = vmul.f32 %v4584, %v4741
      %v4872 = vmul.f32 %v4585, %v4746
      %v4873 = vmul.f32 %v4586, %v4751
      %v4874 = vmul.f32 %v4587, %v4756
      %v4875 = vmul.f32 %v4588, %v4761
      %v4876 = vmul.f32 %v4589, %v4766
      %v4877 = vmul.f32 %v4590, %v4771
      %v4878 = vmul.f32 %v4591, %v4776
      %v4879 = vmul.f32 %v4592, %v4781
      %v4880 = vmul.f32 %v4593, %v4786
      %v4881 = vmul.f32 %v4594, %v4791
      %v4882 = vmul.f32 %v4595, %v4796
      %v4883 = vmul.f32 %v4596, %v4801
      %v4884 = vmul.f32 %v4597, %v4806
      %v4885 = vmul.f32 %v4598, %v4811
      %v4886 = vmul.f32 %v4599, %v4816
      %v4887 = vmul.f32 %v4600, %v4821
      %v4888 = vmul.f32 %v4601, %v4826
      %v4889 = vmul.f32 %v4602, %v4831
      %v4890 = vmul.f32 %v4603, %v4836
      %v4891 = vmul.f32 %v4604, %v4841
      %v4892 = vmul.f32 %v4605, %v4846
      %v4893 = vmul.f32 %v4606, %v4851
      %vm4894 = vcmask 261120
      %4895 = vst.msk [vmem:[#allocation2] sm:$0xff] %vm4894, 0.0
      %4896 = vst.msk [vmem:[#allocation2 + $0x8] sm:$0xff] %vm4894, 0.0
      %4897 = vst.msk [vmem:[#allocation2 + $0x10] sm:$0xff] %vm4894, 0.0
      %4898 = vst.msk [vmem:[#allocation2 + $0x15c] sm:$0xff] %vm4894, 0.0
      %4899 = vst.msk [vmem:[#allocation2 + $0x164] sm:$0xff] %vm4894, 0.0
      %4900 = vst.msk [vmem:[#allocation2 + $0x16c] sm:$0xff] %vm4894, 0.0
      %4901 = vst.msk [vmem:[#allocation2 + $0x18] sm:$0xff] %vm4894, %v4853
      %4902 = vst.msk [vmem:[#allocation2 + $0x20] sm:$0xff] %vm4894, %v4854
      %4903 = vst.msk [vmem:[#allocation2 + $0x28] sm:$0xff] %vm4894, %v4855
      %4904 = vst.msk [vmem:[#allocation2 + $0x30] sm:$0xff] %vm4894, %v4856
      %4905 = vst.msk [vmem:[#allocation2 + $0x38] sm:$0xff] %vm4894, %v4857
      %4906 = vst.msk [vmem:[#allocation2 + $0x40] sm:$0xff] %vm4894, %v4858
      %4907 = vst.msk [vmem:[#allocation2 + $0x48] sm:$0xff] %vm4894, %v4859
      %4908 = vst.msk [vmem:[#allocation2 + $0x50] sm:$0xff] %vm4894, %v4860
      %4909 = vst.msk [vmem:[#allocation2 + $0x58] sm:$0xff] %vm4894, %v4861
      %4910 = vst.msk [vmem:[#allocation2 + $0x60] sm:$0xff] %vm4894, %v4862
      %4911 = vst.msk [vmem:[#allocation2 + $0x68] sm:$0xff] %vm4894, %v4863
      %4912 = vst.msk [vmem:[#allocation2 + $0x70] sm:$0xff] %vm4894, %v4864
      %4913 = vst.msk [vmem:[#allocation2 + $0x78] sm:$0xff] %vm4894, %v4865
      %4914 = vst.msk [vmem:[#allocation2 + $0x80] sm:$0xff] %vm4894, %v4866
      %4915 = vst.msk [vmem:[#allocation2 + $0x88] sm:$0xff] %vm4894, %v4867
      %4916 = vst.msk [vmem:[#allocation2 + $0x90] sm:$0xff] %vm4894, %v4868
      %4917 = vst.msk [vmem:[#allocation2 + $0x98] sm:$0xff] %vm4894, %v4869
      %4918 = vst.msk [vmem:[#allocation2 + $0xa0] sm:$0xff] %vm4894, %v4870
      %4919 = vst.msk [vmem:[#allocation2 + $0xa8] sm:$0xff] %vm4894, %v4871
      %4920 = vst.msk [vmem:[#allocation2 + $0xb0] sm:$0xff] %vm4894, %v4872
      %4921 = vst.msk [vmem:[#allocation2 + $0xb8] sm:$0xff] %vm4894, %v4873
      %4922 = vst.msk [vmem:[#allocation2 + $0xc0] sm:$0xff] %vm4894, %v4874
      %4923 = vst.msk [vmem:[#allocation2 + $0xc8] sm:$0xff] %vm4894, %v4875
      %4924 = vst.msk [vmem:[#allocation2 + $0xd0] sm:$0xff] %vm4894, %v4876
      %4925 = vst.msk [vmem:[#allocation2 + $0xd8] sm:$0xff] %vm4894, %v4877
      %4926 = vst.msk [vmem:[#allocation2 + $0xe0] sm:$0xff] %vm4894, %v4878
      %4927 = vst.msk [vmem:[#allocation2 + $0xe8] sm:$0xff] %vm4894, %v4879
      %4928 = vst.msk [vmem:[#allocation2 + $0xf0] sm:$0xff] %vm4894, %v4880
      %4929 = vst.msk [vmem:[#allocation2 + $0xf8] sm:$0xff] %vm4894, %v4881
      %4930 = vst.msk [vmem:[#allocation2 + $0x100] sm:$0xff] %vm4894, %v4882
      %4931 = vst.msk [vmem:[#allocation2 + $0x108] sm:$0xff] %vm4894, %v4883
      %4932 = vst.msk [vmem:[#allocation2 + $0x110] sm:$0xff] %vm4894, %v4884
      %4933 = vst.msk [vmem:[#allocation2 + $0x118] sm:$0xff] %vm4894, %v4885
      %4934 = vst.msk [vmem:[#allocation2 + $0x120] sm:$0xff] %vm4894, %v4886
      %4935 = vst.msk [vmem:[#allocation2 + $0x128] sm:$0xff] %vm4894, %v4887
      %4936 = vst.msk [vmem:[#allocation2 + $0x130] sm:$0xff] %vm4894, %v4888
      %4937 = vst.msk [vmem:[#allocation2 + $0x138] sm:$0xff] %vm4894, %v4889
      %4938 = vst.msk [vmem:[#allocation2 + $0x140] sm:$0xff] %vm4894, %v4890
      %4939 = vst.msk [vmem:[#allocation2 + $0x148] sm:$0xff] %vm4894, %v4891
      %4940 = vst.msk [vmem:[#allocation2 + $0x150] sm:$0xff] %vm4894, %v4892
      %vm4941 = vcmask 257024
      %4942 = vst.msk [vmem:[#allocation2 + $0x158] sm:$0xf] %vm4941, %v4893
      %v4943 = vld [vmem:[#allocation2 + $0x5] sm:$0xff]
      %v4944 = vld [vmem:[#allocation2 + $0xd] sm:$0xff]
      %v4945 = vld [vmem:[#allocation2 + $0x15] sm:$0xff]
      %v4946 = vld [vmem:[#allocation2 + $0x1d] sm:$0xff]
      %v4947 = vld [vmem:[#allocation2 + $0x25] sm:$0xff]
      %v4948 = vld [vmem:[#allocation2 + $0x2d] sm:$0xff]
      %v4949 = vld [vmem:[#allocation2 + $0x35] sm:$0xff]
      %v4950 = vld [vmem:[#allocation2 + $0x3d] sm:$0xff]
      %v4951 = vld [vmem:[#allocation2 + $0x45] sm:$0xff]
      %v4952 = vld [vmem:[#allocation2 + $0x4d] sm:$0xff]
      %v4953 = vld [vmem:[#allocation2 + $0x55] sm:$0xff]
      %v4954 = vld [vmem:[#allocation2 + $0x5d] sm:$0xff]
      %v4955 = vld [vmem:[#allocation2 + $0x65] sm:$0xff]
      %v4956 = vld [vmem:[#allocation2 + $0x6d] sm:$0xff]
      %v4957 = vld [vmem:[#allocation2 + $0x75] sm:$0xff]
      %v4958 = vld [vmem:[#allocation2 + $0x7d] sm:$0xff]
      %v4959 = vld [vmem:[#allocation2 + $0x85] sm:$0xff]
      %v4960 = vld [vmem:[#allocation2 + $0x8d] sm:$0xff]
      %v4961 = vld [vmem:[#allocation2 + $0x95] sm:$0xff]
      %v4962 = vld [vmem:[#allocation2 + $0x9d] sm:$0xff]
      %v4963 = vld [vmem:[#allocation2 + $0xa5] sm:$0xff]
      %v4964 = vld [vmem:[#allocation2 + $0xad] sm:$0xff]
      %v4965 = vld [vmem:[#allocation2 + $0xb5] sm:$0xff]
      %v4966 = vld [vmem:[#allocation2 + $0xbd] sm:$0xff]
      %v4967 = vld [vmem:[#allocation2 + $0xc5] sm:$0xff]
      %v4968 = vld [vmem:[#allocation2 + $0xcd] sm:$0xff]
      %v4969 = vld [vmem:[#allocation2 + $0xd5] sm:$0xff]
      %v4970 = vld [vmem:[#allocation2 + $0xdd] sm:$0xff]
      %v4971 = vld [vmem:[#allocation2 + $0xe5] sm:$0xff]
      %v4972 = vld [vmem:[#allocation2 + $0xed] sm:$0xff]
      %v4973 = vld [vmem:[#allocation2 + $0xf5] sm:$0xff]
      %v4974 = vld [vmem:[#allocation2 + $0xfd] sm:$0xff]
      %v4975 = vld [vmem:[#allocation2 + $0x105] sm:$0xff]
      %v4976 = vld [vmem:[#allocation2 + $0x10d] sm:$0xff]
      %v4977 = vld [vmem:[#allocation2 + $0x115] sm:$0xff]
      %v4978 = vld [vmem:[#allocation2 + $0x11d] sm:$0xff]
      %v4979 = vld [vmem:[#allocation2 + $0x125] sm:$0xff]
      %v4980 = vld [vmem:[#allocation2 + $0x12d] sm:$0xff]
      %v4981 = vld [vmem:[#allocation2 + $0x135] sm:$0xff]
      %v4982 = vld [vmem:[#allocation2 + $0x13d] sm:$0xff]
      %v4983 = vld [vmem:[#allocation2 + $0x145] sm:$0xf]
      %v4984 = vld [vmem:[%s3] sm:$0xff]
      %v4985 = vld [vmem:[%s3 + $0x8] sm:$0xff]
      %v4986 = vld [vmem:[%s3 + $0x10] sm:$0xff]
      %v4987 = vld [vmem:[%s3 + $0x18] sm:$0xff]
      %v4988 = vld [vmem:[#allocation2 + $0x6] sm:$0xff]
      %v4989 = vld [vmem:[#allocation2 + $0xe] sm:$0xff]
      %v4990 = vld [vmem:[#allocation2 + $0x16] sm:$0xff]
      %v4991 = vld [vmem:[#allocation2 + $0x1e] sm:$0xff]
      %v4992 = vld [vmem:[#allocation2 + $0x26] sm:$0xff]
      %v4993 = vld [vmem:[#allocation2 + $0x2e] sm:$0xff]
      %v4994 = vld [vmem:[#allocation2 + $0x36] sm:$0xff]
      %v4995 = vld [vmem:[#allocation2 + $0x3e] sm:$0xff]
      %v4996 = vld [vmem:[#allocation2 + $0x46] sm:$0xff]
      %v4997 = vld [vmem:[#allocation2 + $0x4e] sm:$0xff]
      %v4998 = vld [vmem:[#allocation2 + $0x56] sm:$0xff]
      %v4999 = vld [vmem:[#allocation2 + $0x5e] sm:$0xff]
      %v5000 = vld [vmem:[#allocation2 + $0x66] sm:$0xff]
      %v5001 = vld [vmem:[#allocation2 + $0x6e] sm:$0xff]
      %v5002 = vld [vmem:[#allocation2 + $0x76] sm:$0xff]
      %v5003 = vld [vmem:[#allocation2 + $0x7e] sm:$0xff]
      %v5004 = vld [vmem:[#allocation2 + $0x86] sm:$0xff]
      %v5005 = vld [vmem:[#allocation2 + $0x8e] sm:$0xff]
      %v5006 = vld [vmem:[#allocation2 + $0x96] sm:$0xff]
      %v5007 = vld [vmem:[#allocation2 + $0x9e] sm:$0xff]
      %v5008 = vld [vmem:[#allocation2 + $0xa6] sm:$0xff]
      %v5009 = vld [vmem:[#allocation2 + $0xae] sm:$0xff]
      %v5010 = vld [vmem:[#allocation2 + $0xb6] sm:$0xff]
      %v5011 = vld [vmem:[#allocation2 + $0xbe] sm:$0xff]
      %v5012 = vld [vmem:[#allocation2 + $0xc6] sm:$0xff]
      %v5013 = vld [vmem:[#allocation2 + $0xce] sm:$0xff]
      %v5014 = vld [vmem:[#allocation2 + $0xd6] sm:$0xff]
      %v5015 = vld [vmem:[#allocation2 + $0xde] sm:$0xff]
      %v5016 = vld [vmem:[#allocation2 + $0xe6] sm:$0xff]
      %v5017 = vld [vmem:[#allocation2 + $0xee] sm:$0xff]
      %v5018 = vld [vmem:[#allocation2 + $0xf6] sm:$0xff]
      %v5019 = vld [vmem:[#allocation2 + $0xfe] sm:$0xff]
      %v5020 = vld [vmem:[#allocation2 + $0x106] sm:$0xff]
      %v5021 = vld [vmem:[#allocation2 + $0x10e] sm:$0xff]
      %v5022 = vld [vmem:[#allocation2 + $0x116] sm:$0xff]
      %v5023 = vld [vmem:[#allocation2 + $0x11e] sm:$0xff]
      %v5024 = vld [vmem:[#allocation2 + $0x126] sm:$0xff]
      %v5025 = vld [vmem:[#allocation2 + $0x12e] sm:$0xff]
      %v5026 = vld [vmem:[#allocation2 + $0x136] sm:$0xff]
      %v5027 = vld [vmem:[#allocation2 + $0x13e] sm:$0xff]
      %v5028 = vld [vmem:[#allocation2 + $0x146] sm:$0xf]
      %s5029 = scalar_lea.vmem %s3, 32
      %v5030 = vld [vmem:[%s5029] sm:$0xff]
      %v5031 = vld [vmem:[%s5029 + $0x8] sm:$0xff]
      %v5032 = vld [vmem:[%s5029 + $0x10] sm:$0xff]
      %v5033 = vld [vmem:[%s5029 + $0x18] sm:$0xff]
      %v5035 = vsel %vm4894, %v4988, 0
      %v5038 = vsel %vm4894, %v4989, 0
      %v5041 = vsel %vm4894, %v4990, 0
      %v5044 = vsel %vm4894, %v4991, 0
      %v5047 = vsel %vm4894, %v4992, 0
      %v5050 = vsel %vm4894, %v4993, 0
      %v5053 = vsel %vm4894, %v4994, 0
      %v5056 = vsel %vm4894, %v4995, 0
      %v5059 = vsel %vm4894, %v4996, 0
      %v5062 = vsel %vm4894, %v4997, 0
      %v5065 = vsel %vm4894, %v4998, 0
      %v5068 = vsel %vm4894, %v4999, 0
      %v5071 = vsel %vm4894, %v5000, 0
      %v5074 = vsel %vm4894, %v5001, 0
      %v5077 = vsel %vm4894, %v5002, 0
      %v5080 = vsel %vm4894, %v5003, 0
      %v5083 = vsel %vm4894, %v5004, 0
      %v5086 = vsel %vm4894, %v5005, 0
      %v5089 = vsel %vm4894, %v5006, 0
      %v5092 = vsel %vm4894, %v5007, 0
      %v5095 = vsel %vm4894, %v5008, 0
      %v5098 = vsel %vm4894, %v5009, 0
      %v5101 = vsel %vm4894, %v5010, 0
      %v5104 = vsel %vm4894, %v5011, 0
      %v5107 = vsel %vm4894, %v5012, 0
      %v5110 = vsel %vm4894, %v5013, 0
      %v5113 = vsel %vm4894, %v5014, 0
      %v5116 = vsel %vm4894, %v5015, 0
      %v5119 = vsel %vm4894, %v5016, 0
      %v5122 = vsel %vm4894, %v5017, 0
      %v5125 = vsel %vm4894, %v5018, 0
      %v5128 = vsel %vm4894, %v5019, 0
      %v5131 = vsel %vm4894, %v5020, 0
      %v5134 = vsel %vm4894, %v5021, 0
      %v5137 = vsel %vm4894, %v5022, 0
      %v5140 = vsel %vm4894, %v5023, 0
      %v5143 = vsel %vm4894, %v5024, 0
      %v5146 = vsel %vm4894, %v5025, 0
      %v5149 = vsel %vm4894, %v5026, 0
      %v5152 = vsel %vm4894, %v5027, 0
      %v5155 = vsel %vm4894, %v5028, 0
      %5157 = vmatprep.subr.mxu0 0.0
      %5158 = vmatpush1.msra.mxu0 0.0
      %5159 = vmatprep.subr.mxu0 0.0
      %5160 = vmatpush1.msra.mxu0 0.0
      %5161 = vmatprep.subr.mxu0 0.0
      %5162 = vmatpush1.msra.mxu0 0.0
      %5163 = vmatprep.subr.mxu0 0.0
      %5164 = vmatpush1.msra.mxu0 0.0
      %5165 = vmatprep.subr.mxu0 0.0
      %5166 = vmatpush1.msra.mxu0 0.0
      %5167 = vmatprep.subr.mxu0 0.0
      %5168 = vmatpush1.msra.mxu0 0.0
      %5169 = vmatprep.subr.mxu0 0.0
      %5170 = vmatpush1.msra.mxu0 0.0
      %5171 = vmatprep.subr.mxu0 0.0
      %5172 = vmatpush1.msra.mxu0 0.0
      %5173 = vmatprep.subr.mxu0 0.0
      %5174 = vmatpush1.msra.mxu0 0.0
      %5175 = vmatprep.subr.mxu0 0.0
      %5176 = vmatpush1.msra.mxu0 0.0
      %5177 = vmatprep.subr.mxu0 0.0
      %5178 = vmatpush1.msra.mxu0 0.0
      %5179 = vmatprep.subr.mxu0 0.0
      %5180 = vmatpush1.msra.mxu0 0.0
      %5181 = vmatprep.subr.mxu0 0.0
      %5182 = vmatpush1.msra.mxu0 %v5033
      %5183 = vmatprep.subr.mxu0 0.0
      %5184 = vmatpush1.msra.mxu0 %v5032
      %5185 = vmatprep.subr.mxu0 0.0
      %5186 = vmatpush1.msra.mxu0 %v5031
      %5187 = vmatprep.subr.mxu0 0.0
      %5188 = vmatpush1.msra.mxu0 %v5030
      %5189 = vmatprep.subr.mxu0 0.0
      %5190 = vmatpush2.msra.mxu0 0.0
      %5191 = vmatprep.subr.mxu0 0.0
      %5192 = vmatpush2.msra.mxu0 0.0
      %5193 = vmatprep.subr.mxu0 0.0
      %5194 = vmatpush2.msra.mxu0 0.0
      %5195 = vmatprep.subr.mxu0 0.0
      %5196 = vmatpush2.msra.mxu0 0.0
      %5197 = vmatprep.subr.mxu0 0.0
      %5198 = vmatpush2.msra.mxu0 0.0
      %5199 = vmatprep.subr.mxu0 0.0
      %5200 = vmatpush2.msra.mxu0 0.0
      %5201 = vmatprep.subr.mxu0 0.0
      %5202 = vmatpush2.msra.mxu0 0.0
      %5203 = vmatprep.subr.mxu0 0.0
      %5204 = vmatpush2.msra.mxu0 0.0
      %5205 = vmatprep.subr.mxu0 0.0
      %5206 = vmatpush2.msra.mxu0 0.0
      %5207 = vmatprep.subr.mxu0 0.0
      %5208 = vmatpush2.msra.mxu0 0.0
      %5209 = vmatprep.subr.mxu0 0.0
      %5210 = vmatpush2.msra.mxu0 0.0
      %5211 = vmatprep.subr.mxu0 0.0
      %5212 = vmatpush2.msra.mxu0 0.0
      %5213 = vmatprep.subr.mxu0 0.0
      %5214 = vmatpush2.msra.mxu0 0.0
      %5215 = vmatprep.subr.mxu0 0.0
      %5216 = vmatpush2.msra.mxu0 0.0
      %5217 = vmatprep.subr.mxu0 0.0
      %5218 = vmatpush2.msra.mxu0 0.0
      %5219 = vmatprep.subr.mxu0 0.0
      %5220 = vmatpush2.msra.mxu0 0.0
      %5221 = vmatprep.mubr.f32.mxu0 0.0
      %5222 = vmatmul.mubr.f32.gmra.mxu0 %v5035
      %v5223 = vpop.f32.mrf.mxu0
      %v5224 = vadd.f32 0.0, %v5223
      %v5225 = vpop.f32.mrf.mxu0
      %5226 = vmatprep.mubr.f32.mxu0 0.0
      %5227 = vmatmul.mubr.f32.gmra.mxu0 %v5038
      %v5228 = vpop.f32.mrf.mxu0
      %v5229 = vadd.f32 0.0, %v5228
      %v5230 = vpop.f32.mrf.mxu0
      %5231 = vmatprep.mubr.f32.mxu0 0.0
      %5232 = vmatmul.mubr.f32.gmra.mxu0 %v5041
      %v5233 = vpop.f32.mrf.mxu0
      %v5234 = vadd.f32 0.0, %v5233
      %v5235 = vpop.f32.mrf.mxu0
      %5236 = vmatprep.mubr.f32.mxu0 0.0
      %5237 = vmatmul.mubr.f32.gmra.mxu0 %v5044
      %v5238 = vpop.f32.mrf.mxu0
      %v5239 = vadd.f32 0.0, %v5238
      %v5240 = vpop.f32.mrf.mxu0
      %5241 = vmatprep.mubr.f32.mxu0 0.0
      %5242 = vmatmul.mubr.f32.gmra.mxu0 %v5047
      %v5243 = vpop.f32.mrf.mxu0
      %v5244 = vadd.f32 0.0, %v5243
      %v5245 = vpop.f32.mrf.mxu0
      %5246 = vmatprep.mubr.f32.mxu0 0.0
      %5247 = vmatmul.mubr.f32.gmra.mxu0 %v5050
      %v5248 = vpop.f32.mrf.mxu0
      %v5249 = vadd.f32 0.0, %v5248
      %v5250 = vpop.f32.mrf.mxu0
      %5251 = vmatprep.mubr.f32.mxu0 0.0
      %5252 = vmatmul.mubr.f32.gmra.mxu0 %v5053
      %v5253 = vpop.f32.mrf.mxu0
      %v5254 = vadd.f32 0.0, %v5253
      %v5255 = vpop.f32.mrf.mxu0
      %5256 = vmatprep.mubr.f32.mxu0 0.0
      %5257 = vmatmul.mubr.f32.gmra.mxu0 %v5056
      %v5258 = vpop.f32.mrf.mxu0
      %v5259 = vadd.f32 0.0, %v5258
      %v5260 = vpop.f32.mrf.mxu0
      %5261 = vmatprep.mubr.f32.mxu0 0.0
      %5262 = vmatmul.mubr.f32.gmra.mxu0 %v5059
      %v5263 = vpop.f32.mrf.mxu0
      %v5264 = vadd.f32 0.0, %v5263
      %v5265 = vpop.f32.mrf.mxu0
      %5266 = vmatprep.mubr.f32.mxu0 0.0
      %5267 = vmatmul.mubr.f32.gmra.mxu0 %v5062
      %v5268 = vpop.f32.mrf.mxu0
      %v5269 = vadd.f32 0.0, %v5268
      %v5270 = vpop.f32.mrf.mxu0
      %5271 = vmatprep.mubr.f32.mxu0 0.0
      %5272 = vmatmul.mubr.f32.gmra.mxu0 %v5065
      %v5273 = vpop.f32.mrf.mxu0
      %v5274 = vadd.f32 0.0, %v5273
      %v5275 = vpop.f32.mrf.mxu0
      %5276 = vmatprep.mubr.f32.mxu0 0.0
      %5277 = vmatmul.mubr.f32.gmra.mxu0 %v5068
      %v5278 = vpop.f32.mrf.mxu0
      %v5279 = vadd.f32 0.0, %v5278
      %v5280 = vpop.f32.mrf.mxu0
      %5281 = vmatprep.mubr.f32.mxu0 0.0
      %5282 = vmatmul.mubr.f32.gmra.mxu0 %v5071
      %v5283 = vpop.f32.mrf.mxu0
      %v5284 = vadd.f32 0.0, %v5283
      %v5285 = vpop.f32.mrf.mxu0
      %5286 = vmatprep.mubr.f32.mxu0 0.0
      %5287 = vmatmul.mubr.f32.gmra.mxu0 %v5074
      %v5288 = vpop.f32.mrf.mxu0
      %v5289 = vadd.f32 0.0, %v5288
      %v5290 = vpop.f32.mrf.mxu0
      %5291 = vmatprep.mubr.f32.mxu0 0.0
      %5292 = vmatmul.mubr.f32.gmra.mxu0 %v5077
      %v5293 = vpop.f32.mrf.mxu0
      %v5294 = vadd.f32 0.0, %v5293
      %v5295 = vpop.f32.mrf.mxu0
      %5296 = vmatprep.mubr.f32.mxu0 0.0
      %5297 = vmatmul.mubr.f32.gmra.mxu0 %v5080
      %v5298 = vpop.f32.mrf.mxu0
      %v5299 = vadd.f32 0.0, %v5298
      %v5300 = vpop.f32.mrf.mxu0
      %5301 = vmatprep.mubr.f32.mxu0 0.0
      %5302 = vmatmul.mubr.f32.gmra.mxu0 %v5083
      %v5303 = vpop.f32.mrf.mxu0
      %v5304 = vadd.f32 0.0, %v5303
      %v5305 = vpop.f32.mrf.mxu0
      %5306 = vmatprep.mubr.f32.mxu0 0.0
      %5307 = vmatmul.mubr.f32.gmra.mxu0 %v5086
      %v5308 = vpop.f32.mrf.mxu0
      %v5309 = vadd.f32 0.0, %v5308
      %v5310 = vpop.f32.mrf.mxu0
      %5311 = vmatprep.mubr.f32.mxu0 0.0
      %5312 = vmatmul.mubr.f32.gmra.mxu0 %v5089
      %v5313 = vpop.f32.mrf.mxu0
      %v5314 = vadd.f32 0.0, %v5313
      %v5315 = vpop.f32.mrf.mxu0
      %5316 = vmatprep.mubr.f32.mxu0 0.0
      %5317 = vmatmul.mubr.f32.gmra.mxu0 %v5092
      %v5318 = vpop.f32.mrf.mxu0
      %v5319 = vadd.f32 0.0, %v5318
      %v5320 = vpop.f32.mrf.mxu0
      %5321 = vmatprep.mubr.f32.mxu0 0.0
      %5322 = vmatmul.mubr.f32.gmra.mxu0 %v5095
      %v5323 = vpop.f32.mrf.mxu0
      %v5324 = vadd.f32 0.0, %v5323
      %v5325 = vpop.f32.mrf.mxu0
      %5326 = vmatprep.mubr.f32.mxu0 0.0
      %5327 = vmatmul.mubr.f32.gmra.mxu0 %v5098
      %v5328 = vpop.f32.mrf.mxu0
      %v5329 = vadd.f32 0.0, %v5328
      %v5330 = vpop.f32.mrf.mxu0
      %5331 = vmatprep.mubr.f32.mxu0 0.0
      %5332 = vmatmul.mubr.f32.gmra.mxu0 %v5101
      %v5333 = vpop.f32.mrf.mxu0
      %v5334 = vadd.f32 0.0, %v5333
      %v5335 = vpop.f32.mrf.mxu0
      %5336 = vmatprep.mubr.f32.mxu0 0.0
      %5337 = vmatmul.mubr.f32.gmra.mxu0 %v5104
      %v5338 = vpop.f32.mrf.mxu0
      %v5339 = vadd.f32 0.0, %v5338
      %v5340 = vpop.f32.mrf.mxu0
      %5341 = vmatprep.mubr.f32.mxu0 0.0
      %5342 = vmatmul.mubr.f32.gmra.mxu0 %v5107
      %v5343 = vpop.f32.mrf.mxu0
      %v5344 = vadd.f32 0.0, %v5343
      %v5345 = vpop.f32.mrf.mxu0
      %5346 = vmatprep.mubr.f32.mxu0 0.0
      %5347 = vmatmul.mubr.f32.gmra.mxu0 %v5110
      %v5348 = vpop.f32.mrf.mxu0
      %v5349 = vadd.f32 0.0, %v5348
      %v5350 = vpop.f32.mrf.mxu0
      %5351 = vmatprep.mubr.f32.mxu0 0.0
      %5352 = vmatmul.mubr.f32.gmra.mxu0 %v5113
      %v5353 = vpop.f32.mrf.mxu0
      %v5354 = vadd.f32 0.0, %v5353
      %v5355 = vpop.f32.mrf.mxu0
      %5356 = vmatprep.mubr.f32.mxu0 0.0
      %5357 = vmatmul.mubr.f32.gmra.mxu0 %v5116
      %v5358 = vpop.f32.mrf.mxu0
      %v5359 = vadd.f32 0.0, %v5358
      %v5360 = vpop.f32.mrf.mxu0
      %5361 = vmatprep.mubr.f32.mxu0 0.0
      %5362 = vmatmul.mubr.f32.gmra.mxu0 %v5119
      %v5363 = vpop.f32.mrf.mxu0
      %v5364 = vadd.f32 0.0, %v5363
      %v5365 = vpop.f32.mrf.mxu0
      %5366 = vmatprep.mubr.f32.mxu0 0.0
      %5367 = vmatmul.mubr.f32.gmra.mxu0 %v5122
      %v5368 = vpop.f32.mrf.mxu0
      %v5369 = vadd.f32 0.0, %v5368
      %v5370 = vpop.f32.mrf.mxu0
      %5371 = vmatprep.mubr.f32.mxu0 0.0
      %5372 = vmatmul.mubr.f32.gmra.mxu0 %v5125
      %v5373 = vpop.f32.mrf.mxu0
      %v5374 = vadd.f32 0.0, %v5373
      %v5375 = vpop.f32.mrf.mxu0
      %5376 = vmatprep.mubr.f32.mxu0 0.0
      %5377 = vmatmul.mubr.f32.gmra.mxu0 %v5128
      %v5378 = vpop.f32.mrf.mxu0
      %v5379 = vadd.f32 0.0, %v5378
      %v5380 = vpop.f32.mrf.mxu0
      %5381 = vmatprep.mubr.f32.mxu0 0.0
      %5382 = vmatmul.mubr.f32.gmra.mxu0 %v5131
      %v5383 = vpop.f32.mrf.mxu0
      %v5384 = vadd.f32 0.0, %v5383
      %v5385 = vpop.f32.mrf.mxu0
      %5386 = vmatprep.mubr.f32.mxu0 0.0
      %5387 = vmatmul.mubr.f32.gmra.mxu0 %v5134
      %v5388 = vpop.f32.mrf.mxu0
      %v5389 = vadd.f32 0.0, %v5388
      %v5390 = vpop.f32.mrf.mxu0
      %5391 = vmatprep.mubr.f32.mxu0 0.0
      %5392 = vmatmul.mubr.f32.gmra.mxu0 %v5137
      %v5393 = vpop.f32.mrf.mxu0
      %v5394 = vadd.f32 0.0, %v5393
      %v5395 = vpop.f32.mrf.mxu0
      %5396 = vmatprep.mubr.f32.mxu0 0.0
      %5397 = vmatmul.mubr.f32.gmra.mxu0 %v5140
      %v5398 = vpop.f32.mrf.mxu0
      %v5399 = vadd.f32 0.0, %v5398
      %v5400 = vpop.f32.mrf.mxu0
      %5401 = vmatprep.mubr.f32.mxu0 0.0
      %5402 = vmatmul.mubr.f32.gmra.mxu0 %v5143
      %v5403 = vpop.f32.mrf.mxu0
      %v5404 = vadd.f32 0.0, %v5403
      %v5405 = vpop.f32.mrf.mxu0
      %5406 = vmatprep.mubr.f32.mxu0 0.0
      %5407 = vmatmul.mubr.f32.gmra.mxu0 %v5146
      %v5408 = vpop.f32.mrf.mxu0
      %v5409 = vadd.f32 0.0, %v5408
      %v5410 = vpop.f32.mrf.mxu0
      %5411 = vmatprep.mubr.f32.mxu0 0.0
      %5412 = vmatmul.mubr.f32.gmra.mxu0 %v5149
      %v5413 = vpop.f32.mrf.mxu0
      %v5414 = vadd.f32 0.0, %v5413
      %v5415 = vpop.f32.mrf.mxu0
      %5416 = vmatprep.mubr.f32.mxu0 0.0
      %5417 = vmatmul.mubr.f32.gmra.mxu0 %v5152
      %v5418 = vpop.f32.mrf.mxu0
      %v5419 = vadd.f32 0.0, %v5418
      %v5420 = vpop.f32.mrf.mxu0
      %5421 = vmatprep.mubr.f32.mxu0 0.0
      %5422 = vmatmul.mubr.f32.gmra.mxu0 %v5155
      %v5423 = vpop.f32.mrf.mxu0
      %v5424 = vadd.f32 0.0, %v5423
      %v5425 = vpop.f32.mrf.mxu0
      %5426 = vdwg.mxu0
      %v5428 = vsel %vm4894, %v4943, 0
      %v5431 = vsel %vm4894, %v4944, 0
      %v5434 = vsel %vm4894, %v4945, 0
      %v5437 = vsel %vm4894, %v4946, 0
      %v5440 = vsel %vm4894, %v4947, 0
      %v5443 = vsel %vm4894, %v4948, 0
      %v5446 = vsel %vm4894, %v4949, 0
      %v5449 = vsel %vm4894, %v4950, 0
      %v5452 = vsel %vm4894, %v4951, 0
      %v5455 = vsel %vm4894, %v4952, 0
      %v5458 = vsel %vm4894, %v4953, 0
      %v5461 = vsel %vm4894, %v4954, 0
      %v5464 = vsel %vm4894, %v4955, 0
      %v5467 = vsel %vm4894, %v4956, 0
      %v5470 = vsel %vm4894, %v4957, 0
      %v5473 = vsel %vm4894, %v4958, 0
      %v5476 = vsel %vm4894, %v4959, 0
      %v5479 = vsel %vm4894, %v4960, 0
      %v5482 = vsel %vm4894, %v4961, 0
      %v5485 = vsel %vm4894, %v4962, 0
      %v5488 = vsel %vm4894, %v4963, 0
      %v5491 = vsel %vm4894, %v4964, 0
      %v5494 = vsel %vm4894, %v4965, 0
      %v5497 = vsel %vm4894, %v4966, 0
      %v5500 = vsel %vm4894, %v4967, 0
      %v5503 = vsel %vm4894, %v4968, 0
      %v5506 = vsel %vm4894, %v4969, 0
      %v5509 = vsel %vm4894, %v4970, 0
      %v5512 = vsel %vm4894, %v4971, 0
      %v5515 = vsel %vm4894, %v4972, 0
      %v5518 = vsel %vm4894, %v4973, 0
      %v5521 = vsel %vm4894, %v4974, 0
      %v5524 = vsel %vm4894, %v4975, 0
      %v5527 = vsel %vm4894, %v4976, 0
      %v5530 = vsel %vm4894, %v4977, 0
      %v5533 = vsel %vm4894, %v4978, 0
      %v5536 = vsel %vm4894, %v4979, 0
      %v5539 = vsel %vm4894, %v4980, 0
      %v5542 = vsel %vm4894, %v4981, 0
      %v5545 = vsel %vm4894, %v4982, 0
      %v5548 = vsel %vm4894, %v4983, 0
      %5550 = vmatprep.subr.mxu0 0.0
      %5551 = vmatpush1.msra.mxu0 0.0
      %5552 = vmatprep.subr.mxu0 0.0
      %5553 = vmatpush1.msra.mxu0 0.0
      %5554 = vmatprep.subr.mxu0 0.0
      %5555 = vmatpush1.msra.mxu0 0.0
      %5556 = vmatprep.subr.mxu0 0.0
      %5557 = vmatpush1.msra.mxu0 0.0
      %5558 = vmatprep.subr.mxu0 0.0
      %5559 = vmatpush1.msra.mxu0 0.0
      %5560 = vmatprep.subr.mxu0 0.0
      %5561 = vmatpush1.msra.mxu0 0.0
      %5562 = vmatprep.subr.mxu0 0.0
      %5563 = vmatpush1.msra.mxu0 0.0
      %5564 = vmatprep.subr.mxu0 0.0
      %5565 = vmatpush1.msra.mxu0 0.0
      %5566 = vmatprep.subr.mxu0 0.0
      %5567 = vmatpush1.msra.mxu0 0.0
      %5568 = vmatprep.subr.mxu0 0.0
      %5569 = vmatpush1.msra.mxu0 0.0
      %5570 = vmatprep.subr.mxu0 0.0
      %5571 = vmatpush1.msra.mxu0 0.0
      %5572 = vmatprep.subr.mxu0 0.0
      %5573 = vmatpush1.msra.mxu0 0.0
      %5574 = vmatprep.subr.mxu0 0.0
      %5575 = vmatpush1.msra.mxu0 %v4987
      %5576 = vmatprep.subr.mxu0 0.0
      %5577 = vmatpush1.msra.mxu0 %v4986
      %5578 = vmatprep.subr.mxu0 0.0
      %5579 = vmatpush1.msra.mxu0 %v4985
      %5580 = vmatprep.subr.mxu0 0.0
      %5581 = vmatpush1.msra.mxu0 %v4984
      %5582 = vmatprep.subr.mxu0 0.0
      %5583 = vmatpush2.msra.mxu0 0.0
      %5584 = vmatprep.subr.mxu0 0.0
      %5585 = vmatpush2.msra.mxu0 0.0
      %5586 = vmatprep.subr.mxu0 0.0
      %5587 = vmatpush2.msra.mxu0 0.0
      %5588 = vmatprep.subr.mxu0 0.0
      %5589 = vmatpush2.msra.mxu0 0.0
      %5590 = vmatprep.subr.mxu0 0.0
      %5591 = vmatpush2.msra.mxu0 0.0
      %5592 = vmatprep.subr.mxu0 0.0
      %5593 = vmatpush2.msra.mxu0 0.0
      %5594 = vmatprep.subr.mxu0 0.0
      %5595 = vmatpush2.msra.mxu0 0.0
      %5596 = vmatprep.subr.mxu0 0.0
      %5597 = vmatpush2.msra.mxu0 0.0
      %5598 = vmatprep.subr.mxu0 0.0
      %5599 = vmatpush2.msra.mxu0 0.0
      %5600 = vmatprep.subr.mxu0 0.0
      %5601 = vmatpush2.msra.mxu0 0.0
      %5602 = vmatprep.subr.mxu0 0.0
      %5603 = vmatpush2.msra.mxu0 0.0
      %5604 = vmatprep.subr.mxu0 0.0
      %5605 = vmatpush2.msra.mxu0 0.0
      %5606 = vmatprep.subr.mxu0 0.0
      %5607 = vmatpush2.msra.mxu0 0.0
      %5608 = vmatprep.subr.mxu0 0.0
      %5609 = vmatpush2.msra.mxu0 0.0
      %5610 = vmatprep.subr.mxu0 0.0
      %5611 = vmatpush2.msra.mxu0 0.0
      %5612 = vmatprep.subr.mxu0 0.0
      %5613 = vmatpush2.msra.mxu0 0.0
      %5614 = vmatprep.mubr.f32.mxu0 0.0
      %5615 = vmatmul.mubr.f32.gmra.mxu0 %v5428
      %v5616 = vpop.f32.mrf.mxu0
      %v5617 = vadd.f32 %v5224, %v5616
      %v5618 = vpop.f32.mrf.mxu0
      %5619 = vmatprep.mubr.f32.mxu0 0.0
      %5620 = vmatmul.mubr.f32.gmra.mxu0 %v5431
      %v5621 = vpop.f32.mrf.mxu0
      %v5622 = vadd.f32 %v5229, %v5621
      %v5623 = vpop.f32.mrf.mxu0
      %5624 = vmatprep.mubr.f32.mxu0 0.0
      %5625 = vmatmul.mubr.f32.gmra.mxu0 %v5434
      %v5626 = vpop.f32.mrf.mxu0
      %v5627 = vadd.f32 %v5234, %v5626
      %v5628 = vpop.f32.mrf.mxu0
      %5629 = vmatprep.mubr.f32.mxu0 0.0
      %5630 = vmatmul.mubr.f32.gmra.mxu0 %v5437
      %v5631 = vpop.f32.mrf.mxu0
      %v5632 = vadd.f32 %v5239, %v5631
      %v5633 = vpop.f32.mrf.mxu0
      %5634 = vmatprep.mubr.f32.mxu0 0.0
      %5635 = vmatmul.mubr.f32.gmra.mxu0 %v5440
      %v5636 = vpop.f32.mrf.mxu0
      %v5637 = vadd.f32 %v5244, %v5636
      %v5638 = vpop.f32.mrf.mxu0
      %5639 = vmatprep.mubr.f32.mxu0 0.0
      %5640 = vmatmul.mubr.f32.gmra.mxu0 %v5443
      %v5641 = vpop.f32.mrf.mxu0
      %v5642 = vadd.f32 %v5249, %v5641
      %v5643 = vpop.f32.mrf.mxu0
      %5644 = vmatprep.mubr.f32.mxu0 0.0
      %5645 = vmatmul.mubr.f32.gmra.mxu0 %v5446
      %v5646 = vpop.f32.mrf.mxu0
      %v5647 = vadd.f32 %v5254, %v5646
      %v5648 = vpop.f32.mrf.mxu0
      %5649 = vmatprep.mubr.f32.mxu0 0.0
      %5650 = vmatmul.mubr.f32.gmra.mxu0 %v5449
      %v5651 = vpop.f32.mrf.mxu0
      %v5652 = vadd.f32 %v5259, %v5651
      %v5653 = vpop.f32.mrf.mxu0
      %5654 = vmatprep.mubr.f32.mxu0 0.0
      %5655 = vmatmul.mubr.f32.gmra.mxu0 %v5452
      %v5656 = vpop.f32.mrf.mxu0
      %v5657 = vadd.f32 %v5264, %v5656
      %v5658 = vpop.f32.mrf.mxu0
      %5659 = vmatprep.mubr.f32.mxu0 0.0
      %5660 = vmatmul.mubr.f32.gmra.mxu0 %v5455
      %v5661 = vpop.f32.mrf.mxu0
      %v5662 = vadd.f32 %v5269, %v5661
      %v5663 = vpop.f32.mrf.mxu0
      %5664 = vmatprep.mubr.f32.mxu0 0.0
      %5665 = vmatmul.mubr.f32.gmra.mxu0 %v5458
      %v5666 = vpop.f32.mrf.mxu0
      %v5667 = vadd.f32 %v5274, %v5666
      %v5668 = vpop.f32.mrf.mxu0
      %5669 = vmatprep.mubr.f32.mxu0 0.0
      %5670 = vmatmul.mubr.f32.gmra.mxu0 %v5461
      %v5671 = vpop.f32.mrf.mxu0
      %v5672 = vadd.f32 %v5279, %v5671
      %v5673 = vpop.f32.mrf.mxu0
      %5674 = vmatprep.mubr.f32.mxu0 0.0
      %5675 = vmatmul.mubr.f32.gmra.mxu0 %v5464
      %v5676 = vpop.f32.mrf.mxu0
      %v5677 = vadd.f32 %v5284, %v5676
      %v5678 = vpop.f32.mrf.mxu0
      %5679 = vmatprep.mubr.f32.mxu0 0.0
      %5680 = vmatmul.mubr.f32.gmra.mxu0 %v5467
      %v5681 = vpop.f32.mrf.mxu0
      %v5682 = vadd.f32 %v5289, %v5681
      %v5683 = vpop.f32.mrf.mxu0
      %5684 = vmatprep.mubr.f32.mxu0 0.0
      %5685 = vmatmul.mubr.f32.gmra.mxu0 %v5470
      %v5686 = vpop.f32.mrf.mxu0
      %v5687 = vadd.f32 %v5294, %v5686
      %v5688 = vpop.f32.mrf.mxu0
      %5689 = vmatprep.mubr.f32.mxu0 0.0
      %5690 = vmatmul.mubr.f32.gmra.mxu0 %v5473
      %v5691 = vpop.f32.mrf.mxu0
      %v5692 = vadd.f32 %v5299, %v5691
      %v5693 = vpop.f32.mrf.mxu0
      %5694 = vmatprep.mubr.f32.mxu0 0.0
      %5695 = vmatmul.mubr.f32.gmra.mxu0 %v5476
      %v5696 = vpop.f32.mrf.mxu0
      %v5697 = vadd.f32 %v5304, %v5696
      %v5698 = vpop.f32.mrf.mxu0
      %5699 = vmatprep.mubr.f32.mxu0 0.0
      %5700 = vmatmul.mubr.f32.gmra.mxu0 %v5479
      %v5701 = vpop.f32.mrf.mxu0
      %v5702 = vadd.f32 %v5309, %v5701
      %v5703 = vpop.f32.mrf.mxu0
      %5704 = vmatprep.mubr.f32.mxu0 0.0
      %5705 = vmatmul.mubr.f32.gmra.mxu0 %v5482
      %v5706 = vpop.f32.mrf.mxu0
      %v5707 = vadd.f32 %v5314, %v5706
      %v5708 = vpop.f32.mrf.mxu0
      %5709 = vmatprep.mubr.f32.mxu0 0.0
      %5710 = vmatmul.mubr.f32.gmra.mxu0 %v5485
      %v5711 = vpop.f32.mrf.mxu0
      %v5712 = vadd.f32 %v5319, %v5711
      %v5713 = vpop.f32.mrf.mxu0
      %5714 = vmatprep.mubr.f32.mxu0 0.0
      %5715 = vmatmul.mubr.f32.gmra.mxu0 %v5488
      %v5716 = vpop.f32.mrf.mxu0
      %v5717 = vadd.f32 %v5324, %v5716
      %v5718 = vpop.f32.mrf.mxu0
      %5719 = vmatprep.mubr.f32.mxu0 0.0
      %5720 = vmatmul.mubr.f32.gmra.mxu0 %v5491
      %v5721 = vpop.f32.mrf.mxu0
      %v5722 = vadd.f32 %v5329, %v5721
      %v5723 = vpop.f32.mrf.mxu0
      %5724 = vmatprep.mubr.f32.mxu0 0.0
      %5725 = vmatmul.mubr.f32.gmra.mxu0 %v5494
      %v5726 = vpop.f32.mrf.mxu0
      %v5727 = vadd.f32 %v5334, %v5726
      %v5728 = vpop.f32.mrf.mxu0
      %5729 = vmatprep.mubr.f32.mxu0 0.0
      %5730 = vmatmul.mubr.f32.gmra.mxu0 %v5497
      %v5731 = vpop.f32.mrf.mxu0
      %v5732 = vadd.f32 %v5339, %v5731
      %v5733 = vpop.f32.mrf.mxu0
      %5734 = vmatprep.mubr.f32.mxu0 0.0
      %5735 = vmatmul.mubr.f32.gmra.mxu0 %v5500
      %v5736 = vpop.f32.mrf.mxu0
      %v5737 = vadd.f32 %v5344, %v5736
      %v5738 = vpop.f32.mrf.mxu0
      %5739 = vmatprep.mubr.f32.mxu0 0.0
      %5740 = vmatmul.mubr.f32.gmra.mxu0 %v5503
      %v5741 = vpop.f32.mrf.mxu0
      %v5742 = vadd.f32 %v5349, %v5741
      %v5743 = vpop.f32.mrf.mxu0
      %5744 = vmatprep.mubr.f32.mxu0 0.0
      %5745 = vmatmul.mubr.f32.gmra.mxu0 %v5506
      %v5746 = vpop.f32.mrf.mxu0
      %v5747 = vadd.f32 %v5354, %v5746
      %v5748 = vpop.f32.mrf.mxu0
      %5749 = vmatprep.mubr.f32.mxu0 0.0
      %5750 = vmatmul.mubr.f32.gmra.mxu0 %v5509
      %v5751 = vpop.f32.mrf.mxu0
      %v5752 = vadd.f32 %v5359, %v5751
      %v5753 = vpop.f32.mrf.mxu0
      %5754 = vmatprep.mubr.f32.mxu0 0.0
      %5755 = vmatmul.mubr.f32.gmra.mxu0 %v5512
      %v5756 = vpop.f32.mrf.mxu0
      %v5757 = vadd.f32 %v5364, %v5756
      %v5758 = vpop.f32.mrf.mxu0
      %5759 = vmatprep.mubr.f32.mxu0 0.0
      %5760 = vmatmul.mubr.f32.gmra.mxu0 %v5515
      %v5761 = vpop.f32.mrf.mxu0
      %v5762 = vadd.f32 %v5369, %v5761
      %v5763 = vpop.f32.mrf.mxu0
      %5764 = vmatprep.mubr.f32.mxu0 0.0
      %5765 = vmatmul.mubr.f32.gmra.mxu0 %v5518
      %v5766 = vpop.f32.mrf.mxu0
      %v5767 = vadd.f32 %v5374, %v5766
      %v5768 = vpop.f32.mrf.mxu0
      %5769 = vmatprep.mubr.f32.mxu0 0.0
      %5770 = vmatmul.mubr.f32.gmra.mxu0 %v5521
      %v5771 = vpop.f32.mrf.mxu0
      %v5772 = vadd.f32 %v5379, %v5771
      %v5773 = vpop.f32.mrf.mxu0
      %5774 = vmatprep.mubr.f32.mxu0 0.0
      %5775 = vmatmul.mubr.f32.gmra.mxu0 %v5524
      %v5776 = vpop.f32.mrf.mxu0
      %v5777 = vadd.f32 %v5384, %v5776
      %v5778 = vpop.f32.mrf.mxu0
      %5779 = vmatprep.mubr.f32.mxu0 0.0
      %5780 = vmatmul.mubr.f32.gmra.mxu0 %v5527
      %v5781 = vpop.f32.mrf.mxu0
      %v5782 = vadd.f32 %v5389, %v5781
      %v5783 = vpop.f32.mrf.mxu0
      %5784 = vmatprep.mubr.f32.mxu0 0.0
      %5785 = vmatmul.mubr.f32.gmra.mxu0 %v5530
      %v5786 = vpop.f32.mrf.mxu0
      %v5787 = vadd.f32 %v5394, %v5786
      %v5788 = vpop.f32.mrf.mxu0
      %5789 = vmatprep.mubr.f32.mxu0 0.0
      %5790 = vmatmul.mubr.f32.gmra.mxu0 %v5533
      %v5791 = vpop.f32.mrf.mxu0
      %v5792 = vadd.f32 %v5399, %v5791
      %v5793 = vpop.f32.mrf.mxu0
      %5794 = vmatprep.mubr.f32.mxu0 0.0
      %5795 = vmatmul.mubr.f32.gmra.mxu0 %v5536
      %v5796 = vpop.f32.mrf.mxu0
      %v5797 = vadd.f32 %v5404, %v5796
      %v5798 = vpop.f32.mrf.mxu0
      %5799 = vmatprep.mubr.f32.mxu0 0.0
      %5800 = vmatmul.mubr.f32.gmra.mxu0 %v5539
      %v5801 = vpop.f32.mrf.mxu0
      %v5802 = vadd.f32 %v5409, %v5801
      %v5803 = vpop.f32.mrf.mxu0
      %5804 = vmatprep.mubr.f32.mxu0 0.0
      %5805 = vmatmul.mubr.f32.gmra.mxu0 %v5542
      %v5806 = vpop.f32.mrf.mxu0
      %v5807 = vadd.f32 %v5414, %v5806
      %v5808 = vpop.f32.mrf.mxu0
      %5809 = vmatprep.mubr.f32.mxu0 0.0
      %5810 = vmatmul.mubr.f32.gmra.mxu0 %v5545
      %v5811 = vpop.f32.mrf.mxu0
      %v5812 = vadd.f32 %v5419, %v5811
      %v5813 = vpop.f32.mrf.mxu0
      %5814 = vmatprep.mubr.f32.mxu0 0.0
      %5815 = vmatmul.mubr.f32.gmra.mxu0 %v5548
      %v5816 = vpop.f32.mrf.mxu0
      %v5817 = vadd.f32 %v5424, %v5816
      %v5818 = vpop.f32.mrf.mxu0
      %5819 = vdwg.mxu0
      %v5820 = vld [vmem:[#allocation2 + $0x7] sm:$0xff]
      %v5821 = vld [vmem:[#allocation2 + $0xf] sm:$0xff]
      %v5822 = vld [vmem:[#allocation2 + $0x17] sm:$0xff]
      %v5823 = vld [vmem:[#allocation2 + $0x1f] sm:$0xff]
      %v5824 = vld [vmem:[#allocation2 + $0x27] sm:$0xff]
      %v5825 = vld [vmem:[#allocation2 + $0x2f] sm:$0xff]
      %v5826 = vld [vmem:[#allocation2 + $0x37] sm:$0xff]
      %v5827 = vld [vmem:[#allocation2 + $0x3f] sm:$0xff]
      %v5828 = vld [vmem:[#allocation2 + $0x47] sm:$0xff]
      %v5829 = vld [vmem:[#allocation2 + $0x4f] sm:$0xff]
      %v5830 = vld [vmem:[#allocation2 + $0x57] sm:$0xff]
      %v5831 = vld [vmem:[#allocation2 + $0x5f] sm:$0xff]
      %v5832 = vld [vmem:[#allocation2 + $0x67] sm:$0xff]
      %v5833 = vld [vmem:[#allocation2 + $0x6f] sm:$0xff]
      %v5834 = vld [vmem:[#allocation2 + $0x77] sm:$0xff]
      %v5835 = vld [vmem:[#allocation2 + $0x7f] sm:$0xff]
      %v5836 = vld [vmem:[#allocation2 + $0x87] sm:$0xff]
      %v5837 = vld [vmem:[#allocation2 + $0x8f] sm:$0xff]
      %v5838 = vld [vmem:[#allocation2 + $0x97] sm:$0xff]
      %v5839 = vld [vmem:[#allocation2 + $0x9f] sm:$0xff]
      %v5840 = vld [vmem:[#allocation2 + $0xa7] sm:$0xff]
      %v5841 = vld [vmem:[#allocation2 + $0xaf] sm:$0xff]
      %v5842 = vld [vmem:[#allocation2 + $0xb7] sm:$0xff]
      %v5843 = vld [vmem:[#allocation2 + $0xbf] sm:$0xff]
      %v5844 = vld [vmem:[#allocation2 + $0xc7] sm:$0xff]
      %v5845 = vld [vmem:[#allocation2 + $0xcf] sm:$0xff]
      %v5846 = vld [vmem:[#allocation2 + $0xd7] sm:$0xff]
      %v5847 = vld [vmem:[#allocation2 + $0xdf] sm:$0xff]
      %v5848 = vld [vmem:[#allocation2 + $0xe7] sm:$0xff]
      %v5849 = vld [vmem:[#allocation2 + $0xef] sm:$0xff]
      %v5850 = vld [vmem:[#allocation2 + $0xf7] sm:$0xff]
      %v5851 = vld [vmem:[#allocation2 + $0xff] sm:$0xff]
      %v5852 = vld [vmem:[#allocation2 + $0x107] sm:$0xff]
      %v5853 = vld [vmem:[#allocation2 + $0x10f] sm:$0xff]
      %v5854 = vld [vmem:[#allocation2 + $0x117] sm:$0xff]
      %v5855 = vld [vmem:[#allocation2 + $0x11f] sm:$0xff]
      %v5856 = vld [vmem:[#allocation2 + $0x127] sm:$0xff]
      %v5857 = vld [vmem:[#allocation2 + $0x12f] sm:$0xff]
      %v5858 = vld [vmem:[#allocation2 + $0x137] sm:$0xff]
      %v5859 = vld [vmem:[#allocation2 + $0x13f] sm:$0xff]
      %v5860 = vld [vmem:[#allocation2 + $0x147] sm:$0xf]
      %s5861 = scalar_lea.vmem %s3, 64
      %v5862 = vld [vmem:[%s5861] sm:$0xff]
      %v5863 = vld [vmem:[%s5861 + $0x8] sm:$0xff]
      %v5864 = vld [vmem:[%s5861 + $0x10] sm:$0xff]
      %v5865 = vld [vmem:[%s5861 + $0x18] sm:$0xff]
      %v5867 = vsel %vm4894, %v5820, 0
      %v5870 = vsel %vm4894, %v5821, 0
      %v5873 = vsel %vm4894, %v5822, 0
      %v5876 = vsel %vm4894, %v5823, 0
      %v5879 = vsel %vm4894, %v5824, 0
      %v5882 = vsel %vm4894, %v5825, 0
      %v5885 = vsel %vm4894, %v5826, 0
      %v5888 = vsel %vm4894, %v5827, 0
      %v5891 = vsel %vm4894, %v5828, 0
      %v5894 = vsel %vm4894, %v5829, 0
      %v5897 = vsel %vm4894, %v5830, 0
      %v5900 = vsel %vm4894, %v5831, 0
      %v5903 = vsel %vm4894, %v5832, 0
      %v5906 = vsel %vm4894, %v5833, 0
      %v5909 = vsel %vm4894, %v5834, 0
      %v5912 = vsel %vm4894, %v5835, 0
      %v5915 = vsel %vm4894, %v5836, 0
      %v5918 = vsel %vm4894, %v5837, 0
      %v5921 = vsel %vm4894, %v5838, 0
      %v5924 = vsel %vm4894, %v5839, 0
      %v5927 = vsel %vm4894, %v5840, 0
      %v5930 = vsel %vm4894, %v5841, 0
      %v5933 = vsel %vm4894, %v5842, 0
      %v5936 = vsel %vm4894, %v5843, 0
      %v5939 = vsel %vm4894, %v5844, 0
      %v5942 = vsel %vm4894, %v5845, 0
      %v5945 = vsel %vm4894, %v5846, 0
      %v5948 = vsel %vm4894, %v5847, 0
      %v5951 = vsel %vm4894, %v5848, 0
      %v5954 = vsel %vm4894, %v5849, 0
      %v5957 = vsel %vm4894, %v5850, 0
      %v5960 = vsel %vm4894, %v5851, 0
      %v5963 = vsel %vm4894, %v5852, 0
      %v5966 = vsel %vm4894, %v5853, 0
      %v5969 = vsel %vm4894, %v5854, 0
      %v5972 = vsel %vm4894, %v5855, 0
      %v5975 = vsel %vm4894, %v5856, 0
      %v5978 = vsel %vm4894, %v5857, 0
      %v5981 = vsel %vm4894, %v5858, 0
      %v5984 = vsel %vm4894, %v5859, 0
      %v5987 = vsel %vm4894, %v5860, 0
      %5989 = vmatprep.subr.mxu0 0.0
      %5990 = vmatpush1.msra.mxu0 0.0
      %5991 = vmatprep.subr.mxu0 0.0
      %5992 = vmatpush1.msra.mxu0 0.0
      %5993 = vmatprep.subr.mxu0 0.0
      %5994 = vmatpush1.msra.mxu0 0.0
      %5995 = vmatprep.subr.mxu0 0.0
      %5996 = vmatpush1.msra.mxu0 0.0
      %5997 = vmatprep.subr.mxu0 0.0
      %5998 = vmatpush1.msra.mxu0 0.0
      %5999 = vmatprep.subr.mxu0 0.0
      %6000 = vmatpush1.msra.mxu0 0.0
      %6001 = vmatprep.subr.mxu0 0.0
      %6002 = vmatpush1.msra.mxu0 0.0
      %6003 = vmatprep.subr.mxu0 0.0
      %6004 = vmatpush1.msra.mxu0 0.0
      %6005 = vmatprep.subr.mxu0 0.0
      %6006 = vmatpush1.msra.mxu0 0.0
      %6007 = vmatprep.subr.mxu0 0.0
      %6008 = vmatpush1.msra.mxu0 0.0
      %6009 = vmatprep.subr.mxu0 0.0
      %6010 = vmatpush1.msra.mxu0 0.0
      %6011 = vmatprep.subr.mxu0 0.0
      %6012 = vmatpush1.msra.mxu0 0.0
      %6013 = vmatprep.subr.mxu0 0.0
      %6014 = vmatpush1.msra.mxu0 %v5865
      %6015 = vmatprep.subr.mxu0 0.0
      %6016 = vmatpush1.msra.mxu0 %v5864
      %6017 = vmatprep.subr.mxu0 0.0
      %6018 = vmatpush1.msra.mxu0 %v5863
      %6019 = vmatprep.subr.mxu0 0.0
      %6020 = vmatpush1.msra.mxu0 %v5862
      %6021 = vmatprep.subr.mxu0 0.0
      %6022 = vmatpush2.msra.mxu0 0.0
      %6023 = vmatprep.subr.mxu0 0.0
      %6024 = vmatpush2.msra.mxu0 0.0
      %6025 = vmatprep.subr.mxu0 0.0
      %6026 = vmatpush2.msra.mxu0 0.0
      %6027 = vmatprep.subr.mxu0 0.0
      %6028 = vmatpush2.msra.mxu0 0.0
      %6029 = vmatprep.subr.mxu0 0.0
      %6030 = vmatpush2.msra.mxu0 0.0
      %6031 = vmatprep.subr.mxu0 0.0
      %6032 = vmatpush2.msra.mxu0 0.0
      %6033 = vmatprep.subr.mxu0 0.0
      %6034 = vmatpush2.msra.mxu0 0.0
      %6035 = vmatprep.subr.mxu0 0.0
      %6036 = vmatpush2.msra.mxu0 0.0
      %6037 = vmatprep.subr.mxu0 0.0
      %6038 = vmatpush2.msra.mxu0 0.0
      %6039 = vmatprep.subr.mxu0 0.0
      %6040 = vmatpush2.msra.mxu0 0.0
      %6041 = vmatprep.subr.mxu0 0.0
      %6042 = vmatpush2.msra.mxu0 0.0
      %6043 = vmatprep.subr.mxu0 0.0
      %6044 = vmatpush2.msra.mxu0 0.0
      %6045 = vmatprep.subr.mxu0 0.0
      %6046 = vmatpush2.msra.mxu0 0.0
      %6047 = vmatprep.subr.mxu0 0.0
      %6048 = vmatpush2.msra.mxu0 0.0
      %6049 = vmatprep.subr.mxu0 0.0
      %6050 = vmatpush2.msra.mxu0 0.0
      %6051 = vmatprep.subr.mxu0 0.0
      %6052 = vmatpush2.msra.mxu0 0.0
      %6053 = vmatprep.mubr.f32.mxu0 0.0
      %6054 = vmatmul.mubr.f32.gmra.mxu0 %v5867
      %v6055 = vpop.f32.mrf.mxu0
      %v6056 = vadd.f32 0.0, %v6055
      %v6057 = vpop.f32.mrf.mxu0
      %6058 = vmatprep.mubr.f32.mxu0 0.0
      %6059 = vmatmul.mubr.f32.gmra.mxu0 %v5870
      %v6060 = vpop.f32.mrf.mxu0
      %v6061 = vadd.f32 0.0, %v6060
      %v6062 = vpop.f32.mrf.mxu0
      %6063 = vmatprep.mubr.f32.mxu0 0.0
      %6064 = vmatmul.mubr.f32.gmra.mxu0 %v5873
      %v6065 = vpop.f32.mrf.mxu0
      %v6066 = vadd.f32 0.0, %v6065
      %v6067 = vpop.f32.mrf.mxu0
      %6068 = vmatprep.mubr.f32.mxu0 0.0
      %6069 = vmatmul.mubr.f32.gmra.mxu0 %v5876
      %v6070 = vpop.f32.mrf.mxu0
      %v6071 = vadd.f32 0.0, %v6070
      %v6072 = vpop.f32.mrf.mxu0
      %6073 = vmatprep.mubr.f32.mxu0 0.0
      %6074 = vmatmul.mubr.f32.gmra.mxu0 %v5879
      %v6075 = vpop.f32.mrf.mxu0
      %v6076 = vadd.f32 0.0, %v6075
      %v6077 = vpop.f32.mrf.mxu0
      %6078 = vmatprep.mubr.f32.mxu0 0.0
      %6079 = vmatmul.mubr.f32.gmra.mxu0 %v5882
      %v6080 = vpop.f32.mrf.mxu0
      %v6081 = vadd.f32 0.0, %v6080
      %v6082 = vpop.f32.mrf.mxu0
      %6083 = vmatprep.mubr.f32.mxu0 0.0
      %6084 = vmatmul.mubr.f32.gmra.mxu0 %v5885
      %v6085 = vpop.f32.mrf.mxu0
      %v6086 = vadd.f32 0.0, %v6085
      %v6087 = vpop.f32.mrf.mxu0
      %6088 = vmatprep.mubr.f32.mxu0 0.0
      %6089 = vmatmul.mubr.f32.gmra.mxu0 %v5888
      %v6090 = vpop.f32.mrf.mxu0
      %v6091 = vadd.f32 0.0, %v6090
      %v6092 = vpop.f32.mrf.mxu0
      %6093 = vmatprep.mubr.f32.mxu0 0.0
      %6094 = vmatmul.mubr.f32.gmra.mxu0 %v5891
      %v6095 = vpop.f32.mrf.mxu0
      %v6096 = vadd.f32 0.0, %v6095
      %v6097 = vpop.f32.mrf.mxu0
      %6098 = vmatprep.mubr.f32.mxu0 0.0
      %6099 = vmatmul.mubr.f32.gmra.mxu0 %v5894
      %v6100 = vpop.f32.mrf.mxu0
      %v6101 = vadd.f32 0.0, %v6100
      %v6102 = vpop.f32.mrf.mxu0
      %6103 = vmatprep.mubr.f32.mxu0 0.0
      %6104 = vmatmul.mubr.f32.gmra.mxu0 %v5897
      %v6105 = vpop.f32.mrf.mxu0
      %v6106 = vadd.f32 0.0, %v6105
      %v6107 = vpop.f32.mrf.mxu0
      %6108 = vmatprep.mubr.f32.mxu0 0.0
      %6109 = vmatmul.mubr.f32.gmra.mxu0 %v5900
      %v6110 = vpop.f32.mrf.mxu0
      %v6111 = vadd.f32 0.0, %v6110
      %v6112 = vpop.f32.mrf.mxu0
      %6113 = vmatprep.mubr.f32.mxu0 0.0
      %6114 = vmatmul.mubr.f32.gmra.mxu0 %v5903
      %v6115 = vpop.f32.mrf.mxu0
      %v6116 = vadd.f32 0.0, %v6115
      %v6117 = vpop.f32.mrf.mxu0
      %6118 = vmatprep.mubr.f32.mxu0 0.0
      %6119 = vmatmul.mubr.f32.gmra.mxu0 %v5906
      %v6120 = vpop.f32.mrf.mxu0
      %v6121 = vadd.f32 0.0, %v6120
      %v6122 = vpop.f32.mrf.mxu0
      %6123 = vmatprep.mubr.f32.mxu0 0.0
      %6124 = vmatmul.mubr.f32.gmra.mxu0 %v5909
      %v6125 = vpop.f32.mrf.mxu0
      %v6126 = vadd.f32 0.0, %v6125
      %v6127 = vpop.f32.mrf.mxu0
      %6128 = vmatprep.mubr.f32.mxu0 0.0
      %6129 = vmatmul.mubr.f32.gmra.mxu0 %v5912
      %v6130 = vpop.f32.mrf.mxu0
      %v6131 = vadd.f32 0.0, %v6130
      %v6132 = vpop.f32.mrf.mxu0
      %6133 = vmatprep.mubr.f32.mxu0 0.0
      %6134 = vmatmul.mubr.f32.gmra.mxu0 %v5915
      %v6135 = vpop.f32.mrf.mxu0
      %v6136 = vadd.f32 0.0, %v6135
      %v6137 = vpop.f32.mrf.mxu0
      %6138 = vmatprep.mubr.f32.mxu0 0.0
      %6139 = vmatmul.mubr.f32.gmra.mxu0 %v5918
      %v6140 = vpop.f32.mrf.mxu0
      %v6141 = vadd.f32 0.0, %v6140
      %v6142 = vpop.f32.mrf.mxu0
      %6143 = vmatprep.mubr.f32.mxu0 0.0
      %6144 = vmatmul.mubr.f32.gmra.mxu0 %v5921
      %v6145 = vpop.f32.mrf.mxu0
      %v6146 = vadd.f32 0.0, %v6145
      %v6147 = vpop.f32.mrf.mxu0
      %6148 = vmatprep.mubr.f32.mxu0 0.0
      %6149 = vmatmul.mubr.f32.gmra.mxu0 %v5924
      %v6150 = vpop.f32.mrf.mxu0
      %v6151 = vadd.f32 0.0, %v6150
      %v6152 = vpop.f32.mrf.mxu0
      %6153 = vmatprep.mubr.f32.mxu0 0.0
      %6154 = vmatmul.mubr.f32.gmra.mxu0 %v5927
      %v6155 = vpop.f32.mrf.mxu0
      %v6156 = vadd.f32 0.0, %v6155
      %v6157 = vpop.f32.mrf.mxu0
      %6158 = vmatprep.mubr.f32.mxu0 0.0
      %6159 = vmatmul.mubr.f32.gmra.mxu0 %v5930
      %v6160 = vpop.f32.mrf.mxu0
      %v6161 = vadd.f32 0.0, %v6160
      %v6162 = vpop.f32.mrf.mxu0
      %6163 = vmatprep.mubr.f32.mxu0 0.0
      %6164 = vmatmul.mubr.f32.gmra.mxu0 %v5933
      %v6165 = vpop.f32.mrf.mxu0
      %v6166 = vadd.f32 0.0, %v6165
      %v6167 = vpop.f32.mrf.mxu0
      %6168 = vmatprep.mubr.f32.mxu0 0.0
      %6169 = vmatmul.mubr.f32.gmra.mxu0 %v5936
      %v6170 = vpop.f32.mrf.mxu0
      %v6171 = vadd.f32 0.0, %v6170
      %v6172 = vpop.f32.mrf.mxu0
      %6173 = vmatprep.mubr.f32.mxu0 0.0
      %6174 = vmatmul.mubr.f32.gmra.mxu0 %v5939
      %v6175 = vpop.f32.mrf.mxu0
      %v6176 = vadd.f32 0.0, %v6175
      %v6177 = vpop.f32.mrf.mxu0
      %6178 = vmatprep.mubr.f32.mxu0 0.0
      %6179 = vmatmul.mubr.f32.gmra.mxu0 %v5942
      %v6180 = vpop.f32.mrf.mxu0
      %v6181 = vadd.f32 0.0, %v6180
      %v6182 = vpop.f32.mrf.mxu0
      %6183 = vmatprep.mubr.f32.mxu0 0.0
      %6184 = vmatmul.mubr.f32.gmra.mxu0 %v5945
      %v6185 = vpop.f32.mrf.mxu0
      %v6186 = vadd.f32 0.0, %v6185
      %v6187 = vpop.f32.mrf.mxu0
      %6188 = vmatprep.mubr.f32.mxu0 0.0
      %6189 = vmatmul.mubr.f32.gmra.mxu0 %v5948
      %v6190 = vpop.f32.mrf.mxu0
      %v6191 = vadd.f32 0.0, %v6190
      %v6192 = vpop.f32.mrf.mxu0
      %6193 = vmatprep.mubr.f32.mxu0 0.0
      %6194 = vmatmul.mubr.f32.gmra.mxu0 %v5951
      %v6195 = vpop.f32.mrf.mxu0
      %v6196 = vadd.f32 0.0, %v6195
      %v6197 = vpop.f32.mrf.mxu0
      %6198 = vmatprep.mubr.f32.mxu0 0.0
      %6199 = vmatmul.mubr.f32.gmra.mxu0 %v5954
      %v6200 = vpop.f32.mrf.mxu0
      %v6201 = vadd.f32 0.0, %v6200
      %v6202 = vpop.f32.mrf.mxu0
      %6203 = vmatprep.mubr.f32.mxu0 0.0
      %6204 = vmatmul.mubr.f32.gmra.mxu0 %v5957
      %v6205 = vpop.f32.mrf.mxu0
      %v6206 = vadd.f32 0.0, %v6205
      %v6207 = vpop.f32.mrf.mxu0
      %6208 = vmatprep.mubr.f32.mxu0 0.0
      %6209 = vmatmul.mubr.f32.gmra.mxu0 %v5960
      %v6210 = vpop.f32.mrf.mxu0
      %v6211 = vadd.f32 0.0, %v6210
      %v6212 = vpop.f32.mrf.mxu0
      %6213 = vmatprep.mubr.f32.mxu0 0.0
      %6214 = vmatmul.mubr.f32.gmra.mxu0 %v5963
      %v6215 = vpop.f32.mrf.mxu0
      %v6216 = vadd.f32 0.0, %v6215
      %v6217 = vpop.f32.mrf.mxu0
      %6218 = vmatprep.mubr.f32.mxu0 0.0
      %6219 = vmatmul.mubr.f32.gmra.mxu0 %v5966
      %v6220 = vpop.f32.mrf.mxu0
      %v6221 = vadd.f32 0.0, %v6220
      %v6222 = vpop.f32.mrf.mxu0
      %6223 = vmatprep.mubr.f32.mxu0 0.0
      %6224 = vmatmul.mubr.f32.gmra.mxu0 %v5969
      %v6225 = vpop.f32.mrf.mxu0
      %v6226 = vadd.f32 0.0, %v6225
      %v6227 = vpop.f32.mrf.mxu0
      %6228 = vmatprep.mubr.f32.mxu0 0.0
      %6229 = vmatmul.mubr.f32.gmra.mxu0 %v5972
      %v6230 = vpop.f32.mrf.mxu0
      %v6231 = vadd.f32 0.0, %v6230
      %v6232 = vpop.f32.mrf.mxu0
      %6233 = vmatprep.mubr.f32.mxu0 0.0
      %6234 = vmatmul.mubr.f32.gmra.mxu0 %v5975
      %v6235 = vpop.f32.mrf.mxu0
      %v6236 = vadd.f32 0.0, %v6235
      %v6237 = vpop.f32.mrf.mxu0
      %6238 = vmatprep.mubr.f32.mxu0 0.0
      %6239 = vmatmul.mubr.f32.gmra.mxu0 %v5978
      %v6240 = vpop.f32.mrf.mxu0
      %v6241 = vadd.f32 0.0, %v6240
      %v6242 = vpop.f32.mrf.mxu0
      %6243 = vmatprep.mubr.f32.mxu0 0.0
      %6244 = vmatmul.mubr.f32.gmra.mxu0 %v5981
      %v6245 = vpop.f32.mrf.mxu0
      %v6246 = vadd.f32 0.0, %v6245
      %v6247 = vpop.f32.mrf.mxu0
      %6248 = vmatprep.mubr.f32.mxu0 0.0
      %6249 = vmatmul.mubr.f32.gmra.mxu0 %v5984
      %v6250 = vpop.f32.mrf.mxu0
      %v6251 = vadd.f32 0.0, %v6250
      %v6252 = vpop.f32.mrf.mxu0
      %6253 = vmatprep.mubr.f32.mxu0 0.0
      %6254 = vmatmul.mubr.f32.gmra.mxu0 %v5987
      %v6255 = vpop.f32.mrf.mxu0
      %v6256 = vadd.f32 0.0, %v6255
      %v6257 = vpop.f32.mrf.mxu0
      %6258 = vdwg.mxu0
      %v6259 = vadd.f32 %v5617, %v6056
      %v6260 = vadd.f32 %v5622, %v6061
      %v6261 = vadd.f32 %v5627, %v6066
      %v6262 = vadd.f32 %v5632, %v6071
      %v6263 = vadd.f32 %v5637, %v6076
      %v6264 = vadd.f32 %v5642, %v6081
      %v6265 = vadd.f32 %v5647, %v6086
      %v6266 = vadd.f32 %v5652, %v6091
      %v6267 = vadd.f32 %v5657, %v6096
      %v6268 = vadd.f32 %v5662, %v6101
      %v6269 = vadd.f32 %v5667, %v6106
      %v6270 = vadd.f32 %v5672, %v6111
      %v6271 = vadd.f32 %v5677, %v6116
      %v6272 = vadd.f32 %v5682, %v6121
      %v6273 = vadd.f32 %v5687, %v6126
      %v6274 = vadd.f32 %v5692, %v6131
      %v6275 = vadd.f32 %v5697, %v6136
      %v6276 = vadd.f32 %v5702, %v6141
      %v6277 = vadd.f32 %v5707, %v6146
      %v6278 = vadd.f32 %v5712, %v6151
      %v6279 = vadd.f32 %v5717, %v6156
      %v6280 = vadd.f32 %v5722, %v6161
      %v6281 = vadd.f32 %v5727, %v6166
      %v6282 = vadd.f32 %v5732, %v6171
      %v6283 = vadd.f32 %v5737, %v6176
      %v6284 = vadd.f32 %v5742, %v6181
      %v6285 = vadd.f32 %v5747, %v6186
      %v6286 = vadd.f32 %v5752, %v6191
      %v6287 = vadd.f32 %v5757, %v6196
      %v6288 = vadd.f32 %v5762, %v6201
      %v6289 = vadd.f32 %v5767, %v6206
      %v6290 = vadd.f32 %v5772, %v6211
      %v6291 = vadd.f32 %v5777, %v6216
      %v6292 = vadd.f32 %v5782, %v6221
      %v6293 = vadd.f32 %v5787, %v6226
      %v6294 = vadd.f32 %v5792, %v6231
      %v6295 = vadd.f32 %v5797, %v6236
      %v6296 = vadd.f32 %v5802, %v6241
      %v6297 = vadd.f32 %v5807, %v6246
      %v6298 = vadd.f32 %v5812, %v6251
      %v6299 = vadd.f32 %v5817, %v6256
      %v6300 = vld [vmem:[#allocation2 + $0x17] sm:$0xff]
      %v6301 = vld [vmem:[#allocation2 + $0x1f] sm:$0xff]
      %v6302 = vld [vmem:[#allocation2 + $0x27] sm:$0xff]
      %v6303 = vld [vmem:[#allocation2 + $0x2f] sm:$0xff]
      %v6304 = vld [vmem:[#allocation2 + $0x37] sm:$0xff]
      %v6305 = vld [vmem:[#allocation2 + $0x3f] sm:$0xff]
      %v6306 = vld [vmem:[#allocation2 + $0x47] sm:$0xff]
      %v6307 = vld [vmem:[#allocation2 + $0x4f] sm:$0xff]
      %v6308 = vld [vmem:[#allocation2 + $0x57] sm:$0xff]
      %v6309 = vld [vmem:[#allocation2 + $0x5f] sm:$0xff]
      %v6310 = vld [vmem:[#allocation2 + $0x67] sm:$0xff]
      %v6311 = vld [vmem:[#allocation2 + $0x6f] sm:$0xff]
      %v6312 = vld [vmem:[#allocation2 + $0x77] sm:$0xff]
      %v6313 = vld [vmem:[#allocation2 + $0x7f] sm:$0xff]
      %v6314 = vld [vmem:[#allocation2 + $0x87] sm:$0xff]
      %v6315 = vld [vmem:[#allocation2 + $0x8f] sm:$0xff]
      %v6316 = vld [vmem:[#allocation2 + $0x97] sm:$0xff]
      %v6317 = vld [vmem:[#allocation2 + $0x9f] sm:$0xff]
      %v6318 = vld [vmem:[#allocation2 + $0xa7] sm:$0xff]
      %v6319 = vld [vmem:[#allocation2 + $0xaf] sm:$0xff]
      %v6320 = vld [vmem:[#allocation2 + $0xb7] sm:$0xff]
      %v6321 = vld [vmem:[#allocation2 + $0xbf] sm:$0xff]
      %v6322 = vld [vmem:[#allocation2 + $0xc7] sm:$0xff]
      %v6323 = vld [vmem:[#allocation2 + $0xcf] sm:$0xff]
      %v6324 = vld [vmem:[#allocation2 + $0xd7] sm:$0xff]
      %v6325 = vld [vmem:[#allocation2 + $0xdf] sm:$0xff]
      %v6326 = vld [vmem:[#allocation2 + $0xe7] sm:$0xff]
      %v6327 = vld [vmem:[#allocation2 + $0xef] sm:$0xff]
      %v6328 = vld [vmem:[#allocation2 + $0xf7] sm:$0xff]
      %v6329 = vld [vmem:[#allocation2 + $0xff] sm:$0xff]
      %v6330 = vld [vmem:[#allocation2 + $0x107] sm:$0xff]
      %v6331 = vld [vmem:[#allocation2 + $0x10f] sm:$0xff]
      %v6332 = vld [vmem:[#allocation2 + $0x117] sm:$0xff]
      %v6333 = vld [vmem:[#allocation2 + $0x11f] sm:$0xff]
      %v6334 = vld [vmem:[#allocation2 + $0x127] sm:$0xff]
      %v6335 = vld [vmem:[#allocation2 + $0x12f] sm:$0xff]
      %v6336 = vld [vmem:[#allocation2 + $0x137] sm:$0xff]
      %v6337 = vld [vmem:[#allocation2 + $0x13f] sm:$0xff]
      %v6338 = vld [vmem:[#allocation2 + $0x147] sm:$0xff]
      %v6339 = vld [vmem:[#allocation2 + $0x14f] sm:$0xff]
      %v6340 = vld [vmem:[#allocation2 + $0x157] sm:$0xf]
      %s6341 = scalar_lea.vmem %s3, 96
      %v6342 = vld [vmem:[%s6341] sm:$0xff]
      %v6343 = vld [vmem:[%s6341 + $0x8] sm:$0xff]
      %v6344 = vld [vmem:[%s6341 + $0x10] sm:$0xff]
      %v6345 = vld [vmem:[%s6341 + $0x18] sm:$0xff]
      %v6347 = vsel %vm4894, %v6300, 0
      %v6350 = vsel %vm4894, %v6301, 0
      %v6353 = vsel %vm4894, %v6302, 0
      %v6356 = vsel %vm4894, %v6303, 0
      %v6359 = vsel %vm4894, %v6304, 0
      %v6362 = vsel %vm4894, %v6305, 0
      %v6365 = vsel %vm4894, %v6306, 0
      %v6368 = vsel %vm4894, %v6307, 0
      %v6371 = vsel %vm4894, %v6308, 0
      %v6374 = vsel %vm4894, %v6309, 0
      %v6377 = vsel %vm4894, %v6310, 0
      %v6380 = vsel %vm4894, %v6311, 0
      %v6383 = vsel %vm4894, %v6312, 0
      %v6386 = vsel %vm4894, %v6313, 0
      %v6389 = vsel %vm4894, %v6314, 0
      %v6392 = vsel %vm4894, %v6315, 0
      %v6395 = vsel %vm4894, %v6316, 0
      %v6398 = vsel %vm4894, %v6317, 0
      %v6401 = vsel %vm4894, %v6318, 0
      %v6404 = vsel %vm4894, %v6319, 0
      %v6407 = vsel %vm4894, %v6320, 0
      %v6410 = vsel %vm4894, %v6321, 0
      %v6413 = vsel %vm4894, %v6322, 0
      %v6416 = vsel %vm4894, %v6323, 0
      %v6419 = vsel %vm4894, %v6324, 0
      %v6422 = vsel %vm4894, %v6325, 0
      %v6425 = vsel %vm4894, %v6326, 0
      %v6428 = vsel %vm4894, %v6327, 0
      %v6431 = vsel %vm4894, %v6328, 0
      %v6434 = vsel %vm4894, %v6329, 0
      %v6437 = vsel %vm4894, %v6330, 0
      %v6440 = vsel %vm4894, %v6331, 0
      %v6443 = vsel %vm4894, %v6332, 0
      %v6446 = vsel %vm4894, %v6333, 0
      %v6449 = vsel %vm4894, %v6334, 0
      %v6452 = vsel %vm4894, %v6335, 0
      %v6455 = vsel %vm4894, %v6336, 0
      %v6458 = vsel %vm4894, %v6337, 0
      %v6461 = vsel %vm4894, %v6338, 0
      %v6464 = vsel %vm4894, %v6339, 0
      %v6467 = vsel %vm4894, %v6340, 0
      %6469 = vmatprep.subr.mxu0 0.0
      %6470 = vmatpush1.msra.mxu0 0.0
      %6471 = vmatprep.subr.mxu0 0.0
      %6472 = vmatpush1.msra.mxu0 0.0
      %6473 = vmatprep.subr.mxu0 0.0
      %6474 = vmatpush1.msra.mxu0 0.0
      %6475 = vmatprep.subr.mxu0 0.0
      %6476 = vmatpush1.msra.mxu0 0.0
      %6477 = vmatprep.subr.mxu0 0.0
      %6478 = vmatpush1.msra.mxu0 0.0
      %6479 = vmatprep.subr.mxu0 0.0
      %6480 = vmatpush1.msra.mxu0 0.0
      %6481 = vmatprep.subr.mxu0 0.0
      %6482 = vmatpush1.msra.mxu0 0.0
      %6483 = vmatprep.subr.mxu0 0.0
      %6484 = vmatpush1.msra.mxu0 0.0
      %6485 = vmatprep.subr.mxu0 0.0
      %6486 = vmatpush1.msra.mxu0 0.0
      %6487 = vmatprep.subr.mxu0 0.0
      %6488 = vmatpush1.msra.mxu0 0.0
      %6489 = vmatprep.subr.mxu0 0.0
      %6490 = vmatpush1.msra.mxu0 0.0
      %6491 = vmatprep.subr.mxu0 0.0
      %6492 = vmatpush1.msra.mxu0 0.0
      %6493 = vmatprep.subr.mxu0 0.0
      %6494 = vmatpush1.msra.mxu0 %v6345
      %6495 = vmatprep.subr.mxu0 0.0
      %6496 = vmatpush1.msra.mxu0 %v6344
      %6497 = vmatprep.subr.mxu0 0.0
      %6498 = vmatpush1.msra.mxu0 %v6343
      %6499 = vmatprep.subr.mxu0 0.0
      %6500 = vmatpush1.msra.mxu0 %v6342
      %6501 = vmatprep.subr.mxu0 0.0
      %6502 = vmatpush2.msra.mxu0 0.0
      %6503 = vmatprep.subr.mxu0 0.0
      %6504 = vmatpush2.msra.mxu0 0.0
      %6505 = vmatprep.subr.mxu0 0.0
      %6506 = vmatpush2.msra.mxu0 0.0
      %6507 = vmatprep.subr.mxu0 0.0
      %6508 = vmatpush2.msra.mxu0 0.0
      %6509 = vmatprep.subr.mxu0 0.0
      %6510 = vmatpush2.msra.mxu0 0.0
      %6511 = vmatprep.subr.mxu0 0.0
      %6512 = vmatpush2.msra.mxu0 0.0
      %6513 = vmatprep.subr.mxu0 0.0
      %6514 = vmatpush2.msra.mxu0 0.0
      %6515 = vmatprep.subr.mxu0 0.0
      %6516 = vmatpush2.msra.mxu0 0.0
      %6517 = vmatprep.subr.mxu0 0.0
      %6518 = vmatpush2.msra.mxu0 0.0
      %6519 = vmatprep.subr.mxu0 0.0
      %6520 = vmatpush2.msra.mxu0 0.0
      %6521 = vmatprep.subr.mxu0 0.0
      %6522 = vmatpush2.msra.mxu0 0.0
      %6523 = vmatprep.subr.mxu0 0.0
      %6524 = vmatpush2.msra.mxu0 0.0
      %6525 = vmatprep.subr.mxu0 0.0
      %6526 = vmatpush2.msra.mxu0 0.0
      %6527 = vmatprep.subr.mxu0 0.0
      %6528 = vmatpush2.msra.mxu0 0.0
      %6529 = vmatprep.subr.mxu0 0.0
      %6530 = vmatpush2.msra.mxu0 0.0
      %6531 = vmatprep.subr.mxu0 0.0
      %6532 = vmatpush2.msra.mxu0 0.0
      %6533 = vmatprep.mubr.f32.mxu0 0.0
      %6534 = vmatmul.mubr.f32.gmra.mxu0 %v6347
      %v6535 = vpop.f32.mrf.mxu0
      %v6536 = vadd.f32 0.0, %v6535
      %v6537 = vpop.f32.mrf.mxu0
      %6538 = vmatprep.mubr.f32.mxu0 0.0
      %6539 = vmatmul.mubr.f32.gmra.mxu0 %v6350
      %v6540 = vpop.f32.mrf.mxu0
      %v6541 = vadd.f32 0.0, %v6540
      %v6542 = vpop.f32.mrf.mxu0
      %6543 = vmatprep.mubr.f32.mxu0 0.0
      %6544 = vmatmul.mubr.f32.gmra.mxu0 %v6353
      %v6545 = vpop.f32.mrf.mxu0
      %v6546 = vadd.f32 0.0, %v6545
      %v6547 = vpop.f32.mrf.mxu0
      %6548 = vmatprep.mubr.f32.mxu0 0.0
      %6549 = vmatmul.mubr.f32.gmra.mxu0 %v6356
      %v6550 = vpop.f32.mrf.mxu0
      %v6551 = vadd.f32 0.0, %v6550
      %v6552 = vpop.f32.mrf.mxu0
      %6553 = vmatprep.mubr.f32.mxu0 0.0
      %6554 = vmatmul.mubr.f32.gmra.mxu0 %v6359
      %v6555 = vpop.f32.mrf.mxu0
      %v6556 = vadd.f32 0.0, %v6555
      %v6557 = vpop.f32.mrf.mxu0
      %6558 = vmatprep.mubr.f32.mxu0 0.0
      %6559 = vmatmul.mubr.f32.gmra.mxu0 %v6362
      %v6560 = vpop.f32.mrf.mxu0
      %v6561 = vadd.f32 0.0, %v6560
      %v6562 = vpop.f32.mrf.mxu0
      %6563 = vmatprep.mubr.f32.mxu0 0.0
      %6564 = vmatmul.mubr.f32.gmra.mxu0 %v6365
      %v6565 = vpop.f32.mrf.mxu0
      %v6566 = vadd.f32 0.0, %v6565
      %v6567 = vpop.f32.mrf.mxu0
      %6568 = vmatprep.mubr.f32.mxu0 0.0
      %6569 = vmatmul.mubr.f32.gmra.mxu0 %v6368
      %v6570 = vpop.f32.mrf.mxu0
      %v6571 = vadd.f32 0.0, %v6570
      %v6572 = vpop.f32.mrf.mxu0
      %6573 = vmatprep.mubr.f32.mxu0 0.0
      %6574 = vmatmul.mubr.f32.gmra.mxu0 %v6371
      %v6575 = vpop.f32.mrf.mxu0
      %v6576 = vadd.f32 0.0, %v6575
      %v6577 = vpop.f32.mrf.mxu0
      %6578 = vmatprep.mubr.f32.mxu0 0.0
      %6579 = vmatmul.mubr.f32.gmra.mxu0 %v6374
      %v6580 = vpop.f32.mrf.mxu0
      %v6581 = vadd.f32 0.0, %v6580
      %v6582 = vpop.f32.mrf.mxu0
      %6583 = vmatprep.mubr.f32.mxu0 0.0
      %6584 = vmatmul.mubr.f32.gmra.mxu0 %v6377
      %v6585 = vpop.f32.mrf.mxu0
      %v6586 = vadd.f32 0.0, %v6585
      %v6587 = vpop.f32.mrf.mxu0
      %6588 = vmatprep.mubr.f32.mxu0 0.0
      %6589 = vmatmul.mubr.f32.gmra.mxu0 %v6380
      %v6590 = vpop.f32.mrf.mxu0
      %v6591 = vadd.f32 0.0, %v6590
      %v6592 = vpop.f32.mrf.mxu0
      %6593 = vmatprep.mubr.f32.mxu0 0.0
      %6594 = vmatmul.mubr.f32.gmra.mxu0 %v6383
      %v6595 = vpop.f32.mrf.mxu0
      %v6596 = vadd.f32 0.0, %v6595
      %v6597 = vpop.f32.mrf.mxu0
      %6598 = vmatprep.mubr.f32.mxu0 0.0
      %6599 = vmatmul.mubr.f32.gmra.mxu0 %v6386
      %v6600 = vpop.f32.mrf.mxu0
      %v6601 = vadd.f32 0.0, %v6600
      %v6602 = vpop.f32.mrf.mxu0
      %6603 = vmatprep.mubr.f32.mxu0 0.0
      %6604 = vmatmul.mubr.f32.gmra.mxu0 %v6389
      %v6605 = vpop.f32.mrf.mxu0
      %v6606 = vadd.f32 0.0, %v6605
      %v6607 = vpop.f32.mrf.mxu0
      %6608 = vmatprep.mubr.f32.mxu0 0.0
      %6609 = vmatmul.mubr.f32.gmra.mxu0 %v6392
      %v6610 = vpop.f32.mrf.mxu0
      %v6611 = vadd.f32 0.0, %v6610
      %v6612 = vpop.f32.mrf.mxu0
      %6613 = vmatprep.mubr.f32.mxu0 0.0
      %6614 = vmatmul.mubr.f32.gmra.mxu0 %v6395
      %v6615 = vpop.f32.mrf.mxu0
      %v6616 = vadd.f32 0.0, %v6615
      %v6617 = vpop.f32.mrf.mxu0
      %6618 = vmatprep.mubr.f32.mxu0 0.0
      %6619 = vmatmul.mubr.f32.gmra.mxu0 %v6398
      %v6620 = vpop.f32.mrf.mxu0
      %v6621 = vadd.f32 0.0, %v6620
      %v6622 = vpop.f32.mrf.mxu0
      %6623 = vmatprep.mubr.f32.mxu0 0.0
      %6624 = vmatmul.mubr.f32.gmra.mxu0 %v6401
      %v6625 = vpop.f32.mrf.mxu0
      %v6626 = vadd.f32 0.0, %v6625
      %v6627 = vpop.f32.mrf.mxu0
      %6628 = vmatprep.mubr.f32.mxu0 0.0
      %6629 = vmatmul.mubr.f32.gmra.mxu0 %v6404
      %v6630 = vpop.f32.mrf.mxu0
      %v6631 = vadd.f32 0.0, %v6630
      %v6632 = vpop.f32.mrf.mxu0
      %6633 = vmatprep.mubr.f32.mxu0 0.0
      %6634 = vmatmul.mubr.f32.gmra.mxu0 %v6407
      %v6635 = vpop.f32.mrf.mxu0
      %v6636 = vadd.f32 0.0, %v6635
      %v6637 = vpop.f32.mrf.mxu0
      %6638 = vmatprep.mubr.f32.mxu0 0.0
      %6639 = vmatmul.mubr.f32.gmra.mxu0 %v6410
      %v6640 = vpop.f32.mrf.mxu0
      %v6641 = vadd.f32 0.0, %v6640
      %v6642 = vpop.f32.mrf.mxu0
      %6643 = vmatprep.mubr.f32.mxu0 0.0
      %6644 = vmatmul.mubr.f32.gmra.mxu0 %v6413
      %v6645 = vpop.f32.mrf.mxu0
      %v6646 = vadd.f32 0.0, %v6645
      %v6647 = vpop.f32.mrf.mxu0
      %6648 = vmatprep.mubr.f32.mxu0 0.0
      %6649 = vmatmul.mubr.f32.gmra.mxu0 %v6416
      %v6650 = vpop.f32.mrf.mxu0
      %v6651 = vadd.f32 0.0, %v6650
      %v6652 = vpop.f32.mrf.mxu0
      %6653 = vmatprep.mubr.f32.mxu0 0.0
      %6654 = vmatmul.mubr.f32.gmra.mxu0 %v6419
      %v6655 = vpop.f32.mrf.mxu0
      %v6656 = vadd.f32 0.0, %v6655
      %v6657 = vpop.f32.mrf.mxu0
      %6658 = vmatprep.mubr.f32.mxu0 0.0
      %6659 = vmatmul.mubr.f32.gmra.mxu0 %v6422
      %v6660 = vpop.f32.mrf.mxu0
      %v6661 = vadd.f32 0.0, %v6660
      %v6662 = vpop.f32.mrf.mxu0
      %6663 = vmatprep.mubr.f32.mxu0 0.0
      %6664 = vmatmul.mubr.f32.gmra.mxu0 %v6425
      %v6665 = vpop.f32.mrf.mxu0
      %v6666 = vadd.f32 0.0, %v6665
      %v6667 = vpop.f32.mrf.mxu0
      %6668 = vmatprep.mubr.f32.mxu0 0.0
      %6669 = vmatmul.mubr.f32.gmra.mxu0 %v6428
      %v6670 = vpop.f32.mrf.mxu0
      %v6671 = vadd.f32 0.0, %v6670
      %v6672 = vpop.f32.mrf.mxu0
      %6673 = vmatprep.mubr.f32.mxu0 0.0
      %6674 = vmatmul.mubr.f32.gmra.mxu0 %v6431
      %v6675 = vpop.f32.mrf.mxu0
      %v6676 = vadd.f32 0.0, %v6675
      %v6677 = vpop.f32.mrf.mxu0
      %6678 = vmatprep.mubr.f32.mxu0 0.0
      %6679 = vmatmul.mubr.f32.gmra.mxu0 %v6434
      %v6680 = vpop.f32.mrf.mxu0
      %v6681 = vadd.f32 0.0, %v6680
      %v6682 = vpop.f32.mrf.mxu0
      %6683 = vmatprep.mubr.f32.mxu0 0.0
      %6684 = vmatmul.mubr.f32.gmra.mxu0 %v6437
      %v6685 = vpop.f32.mrf.mxu0
      %v6686 = vadd.f32 0.0, %v6685
      %v6687 = vpop.f32.mrf.mxu0
      %6688 = vmatprep.mubr.f32.mxu0 0.0
      %6689 = vmatmul.mubr.f32.gmra.mxu0 %v6440
      %v6690 = vpop.f32.mrf.mxu0
      %v6691 = vadd.f32 0.0, %v6690
      %v6692 = vpop.f32.mrf.mxu0
      %6693 = vmatprep.mubr.f32.mxu0 0.0
      %6694 = vmatmul.mubr.f32.gmra.mxu0 %v6443
      %v6695 = vpop.f32.mrf.mxu0
      %v6696 = vadd.f32 0.0, %v6695
      %v6697 = vpop.f32.mrf.mxu0
      %6698 = vmatprep.mubr.f32.mxu0 0.0
      %6699 = vmatmul.mubr.f32.gmra.mxu0 %v6446
      %v6700 = vpop.f32.mrf.mxu0
      %v6701 = vadd.f32 0.0, %v6700
      %v6702 = vpop.f32.mrf.mxu0
      %6703 = vmatprep.mubr.f32.mxu0 0.0
      %6704 = vmatmul.mubr.f32.gmra.mxu0 %v6449
      %v6705 = vpop.f32.mrf.mxu0
      %v6706 = vadd.f32 0.0, %v6705
      %v6707 = vpop.f32.mrf.mxu0
      %6708 = vmatprep.mubr.f32.mxu0 0.0
      %6709 = vmatmul.mubr.f32.gmra.mxu0 %v6452
      %v6710 = vpop.f32.mrf.mxu0
      %v6711 = vadd.f32 0.0, %v6710
      %v6712 = vpop.f32.mrf.mxu0
      %6713 = vmatprep.mubr.f32.mxu0 0.0
      %6714 = vmatmul.mubr.f32.gmra.mxu0 %v6455
      %v6715 = vpop.f32.mrf.mxu0
      %v6716 = vadd.f32 0.0, %v6715
      %v6717 = vpop.f32.mrf.mxu0
      %6718 = vmatprep.mubr.f32.mxu0 0.0
      %6719 = vmatmul.mubr.f32.gmra.mxu0 %v6458
      %v6720 = vpop.f32.mrf.mxu0
      %v6721 = vadd.f32 0.0, %v6720
      %v6722 = vpop.f32.mrf.mxu0
      %6723 = vmatprep.mubr.f32.mxu0 0.0
      %6724 = vmatmul.mubr.f32.gmra.mxu0 %v6461
      %v6725 = vpop.f32.mrf.mxu0
      %v6726 = vadd.f32 0.0, %v6725
      %v6727 = vpop.f32.mrf.mxu0
      %6728 = vmatprep.mubr.f32.mxu0 0.0
      %6729 = vmatmul.mubr.f32.gmra.mxu0 %v6464
      %v6730 = vpop.f32.mrf.mxu0
      %v6731 = vadd.f32 0.0, %v6730
      %v6732 = vpop.f32.mrf.mxu0
      %6733 = vmatprep.mubr.f32.mxu0 0.0
      %6734 = vmatmul.mubr.f32.gmra.mxu0 %v6467
      %v6735 = vpop.f32.mrf.mxu0
      %v6736 = vadd.f32 0.0, %v6735
      %v6737 = vpop.f32.mrf.mxu0
      %6738 = vdwg.mxu0
      %v6739 = vadd.f32 %v6259, %v6536
      %v6740 = vadd.f32 %v6260, %v6541
      %v6741 = vadd.f32 %v6261, %v6546
      %v6742 = vadd.f32 %v6262, %v6551
      %v6743 = vadd.f32 %v6263, %v6556
      %v6744 = vadd.f32 %v6264, %v6561
      %v6745 = vadd.f32 %v6265, %v6566
      %v6746 = vadd.f32 %v6266, %v6571
      %v6747 = vadd.f32 %v6267, %v6576
      %v6748 = vadd.f32 %v6268, %v6581
      %v6749 = vadd.f32 %v6269, %v6586
      %v6750 = vadd.f32 %v6270, %v6591
      %v6751 = vadd.f32 %v6271, %v6596
      %v6752 = vadd.f32 %v6272, %v6601
      %v6753 = vadd.f32 %v6273, %v6606
      %v6754 = vadd.f32 %v6274, %v6611
      %v6755 = vadd.f32 %v6275, %v6616
      %v6756 = vadd.f32 %v6276, %v6621
      %v6757 = vadd.f32 %v6277, %v6626
      %v6758 = vadd.f32 %v6278, %v6631
      %v6759 = vadd.f32 %v6279, %v6636
      %v6760 = vadd.f32 %v6280, %v6641
      %v6761 = vadd.f32 %v6281, %v6646
      %v6762 = vadd.f32 %v6282, %v6651
      %v6763 = vadd.f32 %v6283, %v6656
      %v6764 = vadd.f32 %v6284, %v6661
      %v6765 = vadd.f32 %v6285, %v6666
      %v6766 = vadd.f32 %v6286, %v6671
      %v6767 = vadd.f32 %v6287, %v6676
      %v6768 = vadd.f32 %v6288, %v6681
      %v6769 = vadd.f32 %v6289, %v6686
      %v6770 = vadd.f32 %v6290, %v6691
      %v6771 = vadd.f32 %v6291, %v6696
      %v6772 = vadd.f32 %v6292, %v6701
      %v6773 = vadd.f32 %v6293, %v6706
      %v6774 = vadd.f32 %v6294, %v6711
      %v6775 = vadd.f32 %v6295, %v6716
      %v6776 = vadd.f32 %v6296, %v6721
      %v6777 = vadd.f32 %v6297, %v6726
      %v6778 = vadd.f32 %v6298, %v6731
      %v6779 = vadd.f32 %v6299, %v6736
      %v6780 = vld [vmem:[#allocation2 + $0x18] sm:$0xff]
      %v6781 = vld [vmem:[#allocation2 + $0x20] sm:$0xff]
      %v6782 = vld [vmem:[#allocation2 + $0x28] sm:$0xff]
      %v6783 = vld [vmem:[#allocation2 + $0x30] sm:$0xff]
      %v6784 = vld [vmem:[#allocation2 + $0x38] sm:$0xff]
      %v6785 = vld [vmem:[#allocation2 + $0x40] sm:$0xff]
      %v6786 = vld [vmem:[#allocation2 + $0x48] sm:$0xff]
      %v6787 = vld [vmem:[#allocation2 + $0x50] sm:$0xff]
      %v6788 = vld [vmem:[#allocation2 + $0x58] sm:$0xff]
      %v6789 = vld [vmem:[#allocation2 + $0x60] sm:$0xff]
      %v6790 = vld [vmem:[#allocation2 + $0x68] sm:$0xff]
      %v6791 = vld [vmem:[#allocation2 + $0x70] sm:$0xff]
      %v6792 = vld [vmem:[#allocation2 + $0x78] sm:$0xff]
      %v6793 = vld [vmem:[#allocation2 + $0x80] sm:$0xff]
      %v6794 = vld [vmem:[#allocation2 + $0x88] sm:$0xff]
      %v6795 = vld [vmem:[#allocation2 + $0x90] sm:$0xff]
      %v6796 = vld [vmem:[#allocation2 + $0x98] sm:$0xff]
      %v6797 = vld [vmem:[#allocation2 + $0xa0] sm:$0xff]
      %v6798 = vld [vmem:[#allocation2 + $0xa8] sm:$0xff]
      %v6799 = vld [vmem:[#allocation2 + $0xb0] sm:$0xff]
      %v6800 = vld [vmem:[#allocation2 + $0xb8] sm:$0xff]
      %v6801 = vld [vmem:[#allocation2 + $0xc0] sm:$0xff]
      %v6802 = vld [vmem:[#allocation2 + $0xc8] sm:$0xff]
      %v6803 = vld [vmem:[#allocation2 + $0xd0] sm:$0xff]
      %v6804 = vld [vmem:[#allocation2 + $0xd8] sm:$0xff]
      %v6805 = vld [vmem:[#allocation2 + $0xe0] sm:$0xff]
      %v6806 = vld [vmem:[#allocation2 + $0xe8] sm:$0xff]
      %v6807 = vld [vmem:[#allocation2 + $0xf0] sm:$0xff]
      %v6808 = vld [vmem:[#allocation2 + $0xf8] sm:$0xff]
      %v6809 = vld [vmem:[#allocation2 + $0x100] sm:$0xff]
      %v6810 = vld [vmem:[#allocation2 + $0x108] sm:$0xff]
      %v6811 = vld [vmem:[#allocation2 + $0x110] sm:$0xff]
      %v6812 = vld [vmem:[#allocation2 + $0x118] sm:$0xff]
      %v6813 = vld [vmem:[#allocation2 + $0x120] sm:$0xff]
      %v6814 = vld [vmem:[#allocation2 + $0x128] sm:$0xff]
      %v6815 = vld [vmem:[#allocation2 + $0x130] sm:$0xff]
      %v6816 = vld [vmem:[#allocation2 + $0x138] sm:$0xff]
      %v6817 = vld [vmem:[#allocation2 + $0x140] sm:$0xff]
      %v6818 = vld [vmem:[#allocation2 + $0x148] sm:$0xff]
      %v6819 = vld [vmem:[#allocation2 + $0x150] sm:$0xff]
      %v6820 = vld [vmem:[#allocation2 + $0x158] sm:$0xf]
      %s6821 = scalar_lea.vmem %s3, 128
      %v6822 = vld [vmem:[%s6821] sm:$0xff]
      %v6823 = vld [vmem:[%s6821 + $0x8] sm:$0xff]
      %v6824 = vld [vmem:[%s6821 + $0x10] sm:$0xff]
      %v6825 = vld [vmem:[%s6821 + $0x18] sm:$0xff]
      %v6827 = vsel %vm4894, %v6780, 0
      %v6830 = vsel %vm4894, %v6781, 0
      %v6833 = vsel %vm4894, %v6782, 0
      %v6836 = vsel %vm4894, %v6783, 0
      %v6839 = vsel %vm4894, %v6784, 0
      %v6842 = vsel %vm4894, %v6785, 0
      %v6845 = vsel %vm4894, %v6786, 0
      %v6848 = vsel %vm4894, %v6787, 0
      %v6851 = vsel %vm4894, %v6788, 0
      %v6854 = vsel %vm4894, %v6789, 0
      %v6857 = vsel %vm4894, %v6790, 0
      %v6860 = vsel %vm4894, %v6791, 0
      %v6863 = vsel %vm4894, %v6792, 0
      %v6866 = vsel %vm4894, %v6793, 0
      %v6869 = vsel %vm4894, %v6794, 0
      %v6872 = vsel %vm4894, %v6795, 0
      %v6875 = vsel %vm4894, %v6796, 0
      %v6878 = vsel %vm4894, %v6797, 0
      %v6881 = vsel %vm4894, %v6798, 0
      %v6884 = vsel %vm4894, %v6799, 0
      %v6887 = vsel %vm4894, %v6800, 0
      %v6890 = vsel %vm4894, %v6801, 0
      %v6893 = vsel %vm4894, %v6802, 0
      %v6896 = vsel %vm4894, %v6803, 0
      %v6899 = vsel %vm4894, %v6804, 0
      %v6902 = vsel %vm4894, %v6805, 0
      %v6905 = vsel %vm4894, %v6806, 0
      %v6908 = vsel %vm4894, %v6807, 0
      %v6911 = vsel %vm4894, %v6808, 0
      %v6914 = vsel %vm4894, %v6809, 0
      %v6917 = vsel %vm4894, %v6810, 0
      %v6920 = vsel %vm4894, %v6811, 0
      %v6923 = vsel %vm4894, %v6812, 0
      %v6926 = vsel %vm4894, %v6813, 0
      %v6929 = vsel %vm4894, %v6814, 0
      %v6932 = vsel %vm4894, %v6815, 0
      %v6935 = vsel %vm4894, %v6816, 0
      %v6938 = vsel %vm4894, %v6817, 0
      %v6941 = vsel %vm4894, %v6818, 0
      %v6944 = vsel %vm4894, %v6819, 0
      %v6947 = vsel %vm4894, %v6820, 0
      %6949 = vmatprep.subr.mxu0 0.0
      %6950 = vmatpush1.msra.mxu0 0.0
      %6951 = vmatprep.subr.mxu0 0.0
      %6952 = vmatpush1.msra.mxu0 0.0
      %6953 = vmatprep.subr.mxu0 0.0
      %6954 = vmatpush1.msra.mxu0 0.0
      %6955 = vmatprep.subr.mxu0 0.0
      %6956 = vmatpush1.msra.mxu0 0.0
      %6957 = vmatprep.subr.mxu0 0.0
      %6958 = vmatpush1.msra.mxu0 0.0
      %6959 = vmatprep.subr.mxu0 0.0
      %6960 = vmatpush1.msra.mxu0 0.0
      %6961 = vmatprep.subr.mxu0 0.0
      %6962 = vmatpush1.msra.mxu0 0.0
      %6963 = vmatprep.subr.mxu0 0.0
      %6964 = vmatpush1.msra.mxu0 0.0
      %6965 = vmatprep.subr.mxu0 0.0
      %6966 = vmatpush1.msra.mxu0 0.0
      %6967 = vmatprep.subr.mxu0 0.0
      %6968 = vmatpush1.msra.mxu0 0.0
      %6969 = vmatprep.subr.mxu0 0.0
      %6970 = vmatpush1.msra.mxu0 0.0
      %6971 = vmatprep.subr.mxu0 0.0
      %6972 = vmatpush1.msra.mxu0 0.0
      %6973 = vmatprep.subr.mxu0 0.0
      %6974 = vmatpush1.msra.mxu0 %v6825
      %6975 = vmatprep.subr.mxu0 0.0
      %6976 = vmatpush1.msra.mxu0 %v6824
      %6977 = vmatprep.subr.mxu0 0.0
      %6978 = vmatpush1.msra.mxu0 %v6823
      %6979 = vmatprep.subr.mxu0 0.0
      %6980 = vmatpush1.msra.mxu0 %v6822
      %6981 = vmatprep.subr.mxu0 0.0
      %6982 = vmatpush2.msra.mxu0 0.0
      %6983 = vmatprep.subr.mxu0 0.0
      %6984 = vmatpush2.msra.mxu0 0.0
      %6985 = vmatprep.subr.mxu0 0.0
      %6986 = vmatpush2.msra.mxu0 0.0
      %6987 = vmatprep.subr.mxu0 0.0
      %6988 = vmatpush2.msra.mxu0 0.0
      %6989 = vmatprep.subr.mxu0 0.0
      %6990 = vmatpush2.msra.mxu0 0.0
      %6991 = vmatprep.subr.mxu0 0.0
      %6992 = vmatpush2.msra.mxu0 0.0
      %6993 = vmatprep.subr.mxu0 0.0
      %6994 = vmatpush2.msra.mxu0 0.0
      %6995 = vmatprep.subr.mxu0 0.0
      %6996 = vmatpush2.msra.mxu0 0.0
      %6997 = vmatprep.subr.mxu0 0.0
      %6998 = vmatpush2.msra.mxu0 0.0
      %6999 = vmatprep.subr.mxu0 0.0
      %7000 = vmatpush2.msra.mxu0 0.0
      %7001 = vmatprep.subr.mxu0 0.0
      %7002 = vmatpush2.msra.mxu0 0.0
      %7003 = vmatprep.subr.mxu0 0.0
      %7004 = vmatpush2.msra.mxu0 0.0
      %7005 = vmatprep.subr.mxu0 0.0
      %7006 = vmatpush2.msra.mxu0 0.0
      %7007 = vmatprep.subr.mxu0 0.0
      %7008 = vmatpush2.msra.mxu0 0.0
      %7009 = vmatprep.subr.mxu0 0.0
      %7010 = vmatpush2.msra.mxu0 0.0
      %7011 = vmatprep.subr.mxu0 0.0
      %7012 = vmatpush2.msra.mxu0 0.0
      %7013 = vmatprep.mubr.f32.mxu0 0.0
      %7014 = vmatmul.mubr.f32.gmra.mxu0 %v6827
      %v7015 = vpop.f32.mrf.mxu0
      %v7016 = vadd.f32 0.0, %v7015
      %v7017 = vpop.f32.mrf.mxu0
      %7018 = vmatprep.mubr.f32.mxu0 0.0
      %7019 = vmatmul.mubr.f32.gmra.mxu0 %v6830
      %v7020 = vpop.f32.mrf.mxu0
      %v7021 = vadd.f32 0.0, %v7020
      %v7022 = vpop.f32.mrf.mxu0
      %7023 = vmatprep.mubr.f32.mxu0 0.0
      %7024 = vmatmul.mubr.f32.gmra.mxu0 %v6833
      %v7025 = vpop.f32.mrf.mxu0
      %v7026 = vadd.f32 0.0, %v7025
      %v7027 = vpop.f32.mrf.mxu0
      %7028 = vmatprep.mubr.f32.mxu0 0.0
      %7029 = vmatmul.mubr.f32.gmra.mxu0 %v6836
      %v7030 = vpop.f32.mrf.mxu0
      %v7031 = vadd.f32 0.0, %v7030
      %v7032 = vpop.f32.mrf.mxu0
      %7033 = vmatprep.mubr.f32.mxu0 0.0
      %7034 = vmatmul.mubr.f32.gmra.mxu0 %v6839
      %v7035 = vpop.f32.mrf.mxu0
      %v7036 = vadd.f32 0.0, %v7035
      %v7037 = vpop.f32.mrf.mxu0
      %7038 = vmatprep.mubr.f32.mxu0 0.0
      %7039 = vmatmul.mubr.f32.gmra.mxu0 %v6842
      %v7040 = vpop.f32.mrf.mxu0
      %v7041 = vadd.f32 0.0, %v7040
      %v7042 = vpop.f32.mrf.mxu0
      %7043 = vmatprep.mubr.f32.mxu0 0.0
      %7044 = vmatmul.mubr.f32.gmra.mxu0 %v6845
      %v7045 = vpop.f32.mrf.mxu0
      %v7046 = vadd.f32 0.0, %v7045
      %v7047 = vpop.f32.mrf.mxu0
      %7048 = vmatprep.mubr.f32.mxu0 0.0
      %7049 = vmatmul.mubr.f32.gmra.mxu0 %v6848
      %v7050 = vpop.f32.mrf.mxu0
      %v7051 = vadd.f32 0.0, %v7050
      %v7052 = vpop.f32.mrf.mxu0
      %7053 = vmatprep.mubr.f32.mxu0 0.0
      %7054 = vmatmul.mubr.f32.gmra.mxu0 %v6851
      %v7055 = vpop.f32.mrf.mxu0
      %v7056 = vadd.f32 0.0, %v7055
      %v7057 = vpop.f32.mrf.mxu0
      %7058 = vmatprep.mubr.f32.mxu0 0.0
      %7059 = vmatmul.mubr.f32.gmra.mxu0 %v6854
      %v7060 = vpop.f32.mrf.mxu0
      %v7061 = vadd.f32 0.0, %v7060
      %v7062 = vpop.f32.mrf.mxu0
      %7063 = vmatprep.mubr.f32.mxu0 0.0
      %7064 = vmatmul.mubr.f32.gmra.mxu0 %v6857
      %v7065 = vpop.f32.mrf.mxu0
      %v7066 = vadd.f32 0.0, %v7065
      %v7067 = vpop.f32.mrf.mxu0
      %7068 = vmatprep.mubr.f32.mxu0 0.0
      %7069 = vmatmul.mubr.f32.gmra.mxu0 %v6860
      %v7070 = vpop.f32.mrf.mxu0
      %v7071 = vadd.f32 0.0, %v7070
      %v7072 = vpop.f32.mrf.mxu0
      %7073 = vmatprep.mubr.f32.mxu0 0.0
      %7074 = vmatmul.mubr.f32.gmra.mxu0 %v6863
      %v7075 = vpop.f32.mrf.mxu0
      %v7076 = vadd.f32 0.0, %v7075
      %v7077 = vpop.f32.mrf.mxu0
      %7078 = vmatprep.mubr.f32.mxu0 0.0
      %7079 = vmatmul.mubr.f32.gmra.mxu0 %v6866
      %v7080 = vpop.f32.mrf.mxu0
      %v7081 = vadd.f32 0.0, %v7080
      %v7082 = vpop.f32.mrf.mxu0
      %7083 = vmatprep.mubr.f32.mxu0 0.0
      %7084 = vmatmul.mubr.f32.gmra.mxu0 %v6869
      %v7085 = vpop.f32.mrf.mxu0
      %v7086 = vadd.f32 0.0, %v7085
      %v7087 = vpop.f32.mrf.mxu0
      %7088 = vmatprep.mubr.f32.mxu0 0.0
      %7089 = vmatmul.mubr.f32.gmra.mxu0 %v6872
      %v7090 = vpop.f32.mrf.mxu0
      %v7091 = vadd.f32 0.0, %v7090
      %v7092 = vpop.f32.mrf.mxu0
      %7093 = vmatprep.mubr.f32.mxu0 0.0
      %7094 = vmatmul.mubr.f32.gmra.mxu0 %v6875
      %v7095 = vpop.f32.mrf.mxu0
      %v7096 = vadd.f32 0.0, %v7095
      %v7097 = vpop.f32.mrf.mxu0
      %7098 = vmatprep.mubr.f32.mxu0 0.0
      %7099 = vmatmul.mubr.f32.gmra.mxu0 %v6878
      %v7100 = vpop.f32.mrf.mxu0
      %v7101 = vadd.f32 0.0, %v7100
      %v7102 = vpop.f32.mrf.mxu0
      %7103 = vmatprep.mubr.f32.mxu0 0.0
      %7104 = vmatmul.mubr.f32.gmra.mxu0 %v6881
      %v7105 = vpop.f32.mrf.mxu0
      %v7106 = vadd.f32 0.0, %v7105
      %v7107 = vpop.f32.mrf.mxu0
      %7108 = vmatprep.mubr.f32.mxu0 0.0
      %7109 = vmatmul.mubr.f32.gmra.mxu0 %v6884
      %v7110 = vpop.f32.mrf.mxu0
      %v7111 = vadd.f32 0.0, %v7110
      %v7112 = vpop.f32.mrf.mxu0
      %7113 = vmatprep.mubr.f32.mxu0 0.0
      %7114 = vmatmul.mubr.f32.gmra.mxu0 %v6887
      %v7115 = vpop.f32.mrf.mxu0
      %v7116 = vadd.f32 0.0, %v7115
      %v7117 = vpop.f32.mrf.mxu0
      %7118 = vmatprep.mubr.f32.mxu0 0.0
      %7119 = vmatmul.mubr.f32.gmra.mxu0 %v6890
      %v7120 = vpop.f32.mrf.mxu0
      %v7121 = vadd.f32 0.0, %v7120
      %v7122 = vpop.f32.mrf.mxu0
      %7123 = vmatprep.mubr.f32.mxu0 0.0
      %7124 = vmatmul.mubr.f32.gmra.mxu0 %v6893
      %v7125 = vpop.f32.mrf.mxu0
      %v7126 = vadd.f32 0.0, %v7125
      %v7127 = vpop.f32.mrf.mxu0
      %7128 = vmatprep.mubr.f32.mxu0 0.0
      %7129 = vmatmul.mubr.f32.gmra.mxu0 %v6896
      %v7130 = vpop.f32.mrf.mxu0
      %v7131 = vadd.f32 0.0, %v7130
      %v7132 = vpop.f32.mrf.mxu0
      %7133 = vmatprep.mubr.f32.mxu0 0.0
      %7134 = vmatmul.mubr.f32.gmra.mxu0 %v6899
      %v7135 = vpop.f32.mrf.mxu0
      %v7136 = vadd.f32 0.0, %v7135
      %v7137 = vpop.f32.mrf.mxu0
      %7138 = vmatprep.mubr.f32.mxu0 0.0
      %7139 = vmatmul.mubr.f32.gmra.mxu0 %v6902
      %v7140 = vpop.f32.mrf.mxu0
      %v7141 = vadd.f32 0.0, %v7140
      %v7142 = vpop.f32.mrf.mxu0
      %7143 = vmatprep.mubr.f32.mxu0 0.0
      %7144 = vmatmul.mubr.f32.gmra.mxu0 %v6905
      %v7145 = vpop.f32.mrf.mxu0
      %v7146 = vadd.f32 0.0, %v7145
      %v7147 = vpop.f32.mrf.mxu0
      %7148 = vmatprep.mubr.f32.mxu0 0.0
      %7149 = vmatmul.mubr.f32.gmra.mxu0 %v6908
      %v7150 = vpop.f32.mrf.mxu0
      %v7151 = vadd.f32 0.0, %v7150
      %v7152 = vpop.f32.mrf.mxu0
      %7153 = vmatprep.mubr.f32.mxu0 0.0
      %7154 = vmatmul.mubr.f32.gmra.mxu0 %v6911
      %v7155 = vpop.f32.mrf.mxu0
      %v7156 = vadd.f32 0.0, %v7155
      %v7157 = vpop.f32.mrf.mxu0
      %7158 = vmatprep.mubr.f32.mxu0 0.0
      %7159 = vmatmul.mubr.f32.gmra.mxu0 %v6914
      %v7160 = vpop.f32.mrf.mxu0
      %v7161 = vadd.f32 0.0, %v7160
      %v7162 = vpop.f32.mrf.mxu0
      %7163 = vmatprep.mubr.f32.mxu0 0.0
      %7164 = vmatmul.mubr.f32.gmra.mxu0 %v6917
      %v7165 = vpop.f32.mrf.mxu0
      %v7166 = vadd.f32 0.0, %v7165
      %v7167 = vpop.f32.mrf.mxu0
      %7168 = vmatprep.mubr.f32.mxu0 0.0
      %7169 = vmatmul.mubr.f32.gmra.mxu0 %v6920
      %v7170 = vpop.f32.mrf.mxu0
      %v7171 = vadd.f32 0.0, %v7170
      %v7172 = vpop.f32.mrf.mxu0
      %7173 = vmatprep.mubr.f32.mxu0 0.0
      %7174 = vmatmul.mubr.f32.gmra.mxu0 %v6923
      %v7175 = vpop.f32.mrf.mxu0
      %v7176 = vadd.f32 0.0, %v7175
      %v7177 = vpop.f32.mrf.mxu0
      %7178 = vmatprep.mubr.f32.mxu0 0.0
      %7179 = vmatmul.mubr.f32.gmra.mxu0 %v6926
      %v7180 = vpop.f32.mrf.mxu0
      %v7181 = vadd.f32 0.0, %v7180
      %v7182 = vpop.f32.mrf.mxu0
      %7183 = vmatprep.mubr.f32.mxu0 0.0
      %7184 = vmatmul.mubr.f32.gmra.mxu0 %v6929
      %v7185 = vpop.f32.mrf.mxu0
      %v7186 = vadd.f32 0.0, %v7185
      %v7187 = vpop.f32.mrf.mxu0
      %7188 = vmatprep.mubr.f32.mxu0 0.0
      %7189 = vmatmul.mubr.f32.gmra.mxu0 %v6932
      %v7190 = vpop.f32.mrf.mxu0
      %v7191 = vadd.f32 0.0, %v7190
      %v7192 = vpop.f32.mrf.mxu0
      %7193 = vmatprep.mubr.f32.mxu0 0.0
      %7194 = vmatmul.mubr.f32.gmra.mxu0 %v6935
      %v7195 = vpop.f32.mrf.mxu0
      %v7196 = vadd.f32 0.0, %v7195
      %v7197 = vpop.f32.mrf.mxu0
      %7198 = vmatprep.mubr.f32.mxu0 0.0
      %7199 = vmatmul.mubr.f32.gmra.mxu0 %v6938
      %v7200 = vpop.f32.mrf.mxu0
      %v7201 = vadd.f32 0.0, %v7200
      %v7202 = vpop.f32.mrf.mxu0
      %7203 = vmatprep.mubr.f32.mxu0 0.0
      %7204 = vmatmul.mubr.f32.gmra.mxu0 %v6941
      %v7205 = vpop.f32.mrf.mxu0
      %v7206 = vadd.f32 0.0, %v7205
      %v7207 = vpop.f32.mrf.mxu0
      %7208 = vmatprep.mubr.f32.mxu0 0.0
      %7209 = vmatmul.mubr.f32.gmra.mxu0 %v6944
      %v7210 = vpop.f32.mrf.mxu0
      %v7211 = vadd.f32 0.0, %v7210
      %v7212 = vpop.f32.mrf.mxu0
      %7213 = vmatprep.mubr.f32.mxu0 0.0
      %7214 = vmatmul.mubr.f32.gmra.mxu0 %v6947
      %v7215 = vpop.f32.mrf.mxu0
      %v7216 = vadd.f32 0.0, %v7215
      %v7217 = vpop.f32.mrf.mxu0
      %7218 = vdwg.mxu0
      %v7219 = vadd.f32 %v6739, %v7016
      %v7220 = vadd.f32 %v6740, %v7021
      %v7221 = vadd.f32 %v6741, %v7026
      %v7222 = vadd.f32 %v6742, %v7031
      %v7223 = vadd.f32 %v6743, %v7036
      %v7224 = vadd.f32 %v6744, %v7041
      %v7225 = vadd.f32 %v6745, %v7046
      %v7226 = vadd.f32 %v6746, %v7051
      %v7227 = vadd.f32 %v6747, %v7056
      %v7228 = vadd.f32 %v6748, %v7061
      %v7229 = vadd.f32 %v6749, %v7066
      %v7230 = vadd.f32 %v6750, %v7071
      %v7231 = vadd.f32 %v6751, %v7076
      %v7232 = vadd.f32 %v6752, %v7081
      %v7233 = vadd.f32 %v6753, %v7086
      %v7234 = vadd.f32 %v6754, %v7091
      %v7235 = vadd.f32 %v6755, %v7096
      %v7236 = vadd.f32 %v6756, %v7101
      %v7237 = vadd.f32 %v6757, %v7106
      %v7238 = vadd.f32 %v6758, %v7111
      %v7239 = vadd.f32 %v6759, %v7116
      %v7240 = vadd.f32 %v6760, %v7121
      %v7241 = vadd.f32 %v6761, %v7126
      %v7242 = vadd.f32 %v6762, %v7131
      %v7243 = vadd.f32 %v6763, %v7136
      %v7244 = vadd.f32 %v6764, %v7141
      %v7245 = vadd.f32 %v6765, %v7146
      %v7246 = vadd.f32 %v6766, %v7151
      %v7247 = vadd.f32 %v6767, %v7156
      %v7248 = vadd.f32 %v6768, %v7161
      %v7249 = vadd.f32 %v6769, %v7166
      %v7250 = vadd.f32 %v6770, %v7171
      %v7251 = vadd.f32 %v6771, %v7176
      %v7252 = vadd.f32 %v6772, %v7181
      %v7253 = vadd.f32 %v6773, %v7186
      %v7254 = vadd.f32 %v6774, %v7191
      %v7255 = vadd.f32 %v6775, %v7196
      %v7256 = vadd.f32 %v6776, %v7201
      %v7257 = vadd.f32 %v6777, %v7206
      %v7258 = vadd.f32 %v6778, %v7211
      %v7259 = vadd.f32 %v6779, %v7216
      %v7260 = vld [vmem:[#allocation2 + $0x19] sm:$0xff]
      %v7261 = vld [vmem:[#allocation2 + $0x21] sm:$0xff]
      %v7262 = vld [vmem:[#allocation2 + $0x29] sm:$0xff]
      %v7263 = vld [vmem:[#allocation2 + $0x31] sm:$0xff]
      %v7264 = vld [vmem:[#allocation2 + $0x39] sm:$0xff]
      %v7265 = vld [vmem:[#allocation2 + $0x41] sm:$0xff]
      %v7266 = vld [vmem:[#allocation2 + $0x49] sm:$0xff]
      %v7267 = vld [vmem:[#allocation2 + $0x51] sm:$0xff]
      %v7268 = vld [vmem:[#allocation2 + $0x59] sm:$0xff]
      %v7269 = vld [vmem:[#allocation2 + $0x61] sm:$0xff]
      %v7270 = vld [vmem:[#allocation2 + $0x69] sm:$0xff]
      %v7271 = vld [vmem:[#allocation2 + $0x71] sm:$0xff]
      %v7272 = vld [vmem:[#allocation2 + $0x79] sm:$0xff]
      %v7273 = vld [vmem:[#allocation2 + $0x81] sm:$0xff]
      %v7274 = vld [vmem:[#allocation2 + $0x89] sm:$0xff]
      %v7275 = vld [vmem:[#allocation2 + $0x91] sm:$0xff]
      %v7276 = vld [vmem:[#allocation2 + $0x99] sm:$0xff]
      %v7277 = vld [vmem:[#allocation2 + $0xa1] sm:$0xff]
      %v7278 = vld [vmem:[#allocation2 + $0xa9] sm:$0xff]
      %v7279 = vld [vmem:[#allocation2 + $0xb1] sm:$0xff]
      %v7280 = vld [vmem:[#allocation2 + $0xb9] sm:$0xff]
      %v7281 = vld [vmem:[#allocation2 + $0xc1] sm:$0xff]
      %v7282 = vld [vmem:[#allocation2 + $0xc9] sm:$0xff]
      %v7283 = vld [vmem:[#allocation2 + $0xd1] sm:$0xff]
      %v7284 = vld [vmem:[#allocation2 + $0xd9] sm:$0xff]
      %v7285 = vld [vmem:[#allocation2 + $0xe1] sm:$0xff]
      %v7286 = vld [vmem:[#allocation2 + $0xe9] sm:$0xff]
      %v7287 = vld [vmem:[#allocation2 + $0xf1] sm:$0xff]
      %v7288 = vld [vmem:[#allocation2 + $0xf9] sm:$0xff]
      %v7289 = vld [vmem:[#allocation2 + $0x101] sm:$0xff]
      %v7290 = vld [vmem:[#allocation2 + $0x109] sm:$0xff]
      %v7291 = vld [vmem:[#allocation2 + $0x111] sm:$0xff]
      %v7292 = vld [vmem:[#allocation2 + $0x119] sm:$0xff]
      %v7293 = vld [vmem:[#allocation2 + $0x121] sm:$0xff]
      %v7294 = vld [vmem:[#allocation2 + $0x129] sm:$0xff]
      %v7295 = vld [vmem:[#allocation2 + $0x131] sm:$0xff]
      %v7296 = vld [vmem:[#allocation2 + $0x139] sm:$0xff]
      %v7297 = vld [vmem:[#allocation2 + $0x141] sm:$0xff]
      %v7298 = vld [vmem:[#allocation2 + $0x149] sm:$0xff]
      %v7299 = vld [vmem:[#allocation2 + $0x151] sm:$0xff]
      %v7300 = vld [vmem:[#allocation2 + $0x159] sm:$0xf]
      %s7301 = scalar_lea.vmem %s3, 160
      %v7302 = vld [vmem:[%s7301] sm:$0xff]
      %v7303 = vld [vmem:[%s7301 + $0x8] sm:$0xff]
      %v7304 = vld [vmem:[%s7301 + $0x10] sm:$0xff]
      %v7305 = vld [vmem:[%s7301 + $0x18] sm:$0xff]
      %v7307 = vsel %vm4894, %v7260, 0
      %v7310 = vsel %vm4894, %v7261, 0
      %v7313 = vsel %vm4894, %v7262, 0
      %v7316 = vsel %vm4894, %v7263, 0
      %v7319 = vsel %vm4894, %v7264, 0
      %v7322 = vsel %vm4894, %v7265, 0
      %v7325 = vsel %vm4894, %v7266, 0
      %v7328 = vsel %vm4894, %v7267, 0
      %v7331 = vsel %vm4894, %v7268, 0
      %v7334 = vsel %vm4894, %v7269, 0
      %v7337 = vsel %vm4894, %v7270, 0
      %v7340 = vsel %vm4894, %v7271, 0
      %v7343 = vsel %vm4894, %v7272, 0
      %v7346 = vsel %vm4894, %v7273, 0
      %v7349 = vsel %vm4894, %v7274, 0
      %v7352 = vsel %vm4894, %v7275, 0
      %v7355 = vsel %vm4894, %v7276, 0
      %v7358 = vsel %vm4894, %v7277, 0
      %v7361 = vsel %vm4894, %v7278, 0
      %v7364 = vsel %vm4894, %v7279, 0
      %v7367 = vsel %vm4894, %v7280, 0
      %v7370 = vsel %vm4894, %v7281, 0
      %v7373 = vsel %vm4894, %v7282, 0
      %v7376 = vsel %vm4894, %v7283, 0
      %v7379 = vsel %vm4894, %v7284, 0
      %v7382 = vsel %vm4894, %v7285, 0
      %v7385 = vsel %vm4894, %v7286, 0
      %v7388 = vsel %vm4894, %v7287, 0
      %v7391 = vsel %vm4894, %v7288, 0
      %v7394 = vsel %vm4894, %v7289, 0
      %v7397 = vsel %vm4894, %v7290, 0
      %v7400 = vsel %vm4894, %v7291, 0
      %v7403 = vsel %vm4894, %v7292, 0
      %v7406 = vsel %vm4894, %v7293, 0
      %v7409 = vsel %vm4894, %v7294, 0
      %v7412 = vsel %vm4894, %v7295, 0
      %v7415 = vsel %vm4894, %v7296, 0
      %v7418 = vsel %vm4894, %v7297, 0
      %v7421 = vsel %vm4894, %v7298, 0
      %v7424 = vsel %vm4894, %v7299, 0
      %v7427 = vsel %vm4894, %v7300, 0
      %7429 = vmatprep.subr.mxu0 0.0
      %7430 = vmatpush1.msra.mxu0 0.0
      %7431 = vmatprep.subr.mxu0 0.0
      %7432 = vmatpush1.msra.mxu0 0.0
      %7433 = vmatprep.subr.mxu0 0.0
      %7434 = vmatpush1.msra.mxu0 0.0
      %7435 = vmatprep.subr.mxu0 0.0
      %7436 = vmatpush1.msra.mxu0 0.0
      %7437 = vmatprep.subr.mxu0 0.0
      %7438 = vmatpush1.msra.mxu0 0.0
      %7439 = vmatprep.subr.mxu0 0.0
      %7440 = vmatpush1.msra.mxu0 0.0
      %7441 = vmatprep.subr.mxu0 0.0
      %7442 = vmatpush1.msra.mxu0 0.0
      %7443 = vmatprep.subr.mxu0 0.0
      %7444 = vmatpush1.msra.mxu0 0.0
      %7445 = vmatprep.subr.mxu0 0.0
      %7446 = vmatpush1.msra.mxu0 0.0
      %7447 = vmatprep.subr.mxu0 0.0
      %7448 = vmatpush1.msra.mxu0 0.0
      %7449 = vmatprep.subr.mxu0 0.0
      %7450 = vmatpush1.msra.mxu0 0.0
      %7451 = vmatprep.subr.mxu0 0.0
      %7452 = vmatpush1.msra.mxu0 0.0
      %7453 = vmatprep.subr.mxu0 0.0
      %7454 = vmatpush1.msra.mxu0 %v7305
      %7455 = vmatprep.subr.mxu0 0.0
      %7456 = vmatpush1.msra.mxu0 %v7304
      %7457 = vmatprep.subr.mxu0 0.0
      %7458 = vmatpush1.msra.mxu0 %v7303
      %7459 = vmatprep.subr.mxu0 0.0
      %7460 = vmatpush1.msra.mxu0 %v7302
      %7461 = vmatprep.subr.mxu0 0.0
      %7462 = vmatpush2.msra.mxu0 0.0
      %7463 = vmatprep.subr.mxu0 0.0
      %7464 = vmatpush2.msra.mxu0 0.0
      %7465 = vmatprep.subr.mxu0 0.0
      %7466 = vmatpush2.msra.mxu0 0.0
      %7467 = vmatprep.subr.mxu0 0.0
      %7468 = vmatpush2.msra.mxu0 0.0
      %7469 = vmatprep.subr.mxu0 0.0
      %7470 = vmatpush2.msra.mxu0 0.0
      %7471 = vmatprep.subr.mxu0 0.0
      %7472 = vmatpush2.msra.mxu0 0.0
      %7473 = vmatprep.subr.mxu0 0.0
      %7474 = vmatpush2.msra.mxu0 0.0
      %7475 = vmatprep.subr.mxu0 0.0
      %7476 = vmatpush2.msra.mxu0 0.0
      %7477 = vmatprep.subr.mxu0 0.0
      %7478 = vmatpush2.msra.mxu0 0.0
      %7479 = vmatprep.subr.mxu0 0.0
      %7480 = vmatpush2.msra.mxu0 0.0
      %7481 = vmatprep.subr.mxu0 0.0
      %7482 = vmatpush2.msra.mxu0 0.0
      %7483 = vmatprep.subr.mxu0 0.0
      %7484 = vmatpush2.msra.mxu0 0.0
      %7485 = vmatprep.subr.mxu0 0.0
      %7486 = vmatpush2.msra.mxu0 0.0
      %7487 = vmatprep.subr.mxu0 0.0
      %7488 = vmatpush2.msra.mxu0 0.0
      %7489 = vmatprep.subr.mxu0 0.0
      %7490 = vmatpush2.msra.mxu0 0.0
      %7491 = vmatprep.subr.mxu0 0.0
      %7492 = vmatpush2.msra.mxu0 0.0
      %7493 = vmatprep.mubr.f32.mxu0 0.0
      %7494 = vmatmul.mubr.f32.gmra.mxu0 %v7307
      %v7495 = vpop.f32.mrf.mxu0
      %v7496 = vadd.f32 0.0, %v7495
      %v7497 = vpop.f32.mrf.mxu0
      %7498 = vmatprep.mubr.f32.mxu0 0.0
      %7499 = vmatmul.mubr.f32.gmra.mxu0 %v7310
      %v7500 = vpop.f32.mrf.mxu0
      %v7501 = vadd.f32 0.0, %v7500
      %v7502 = vpop.f32.mrf.mxu0
      %7503 = vmatprep.mubr.f32.mxu0 0.0
      %7504 = vmatmul.mubr.f32.gmra.mxu0 %v7313
      %v7505 = vpop.f32.mrf.mxu0
      %v7506 = vadd.f32 0.0, %v7505
      %v7507 = vpop.f32.mrf.mxu0
      %7508 = vmatprep.mubr.f32.mxu0 0.0
      %7509 = vmatmul.mubr.f32.gmra.mxu0 %v7316
      %v7510 = vpop.f32.mrf.mxu0
      %v7511 = vadd.f32 0.0, %v7510
      %v7512 = vpop.f32.mrf.mxu0
      %7513 = vmatprep.mubr.f32.mxu0 0.0
      %7514 = vmatmul.mubr.f32.gmra.mxu0 %v7319
      %v7515 = vpop.f32.mrf.mxu0
      %v7516 = vadd.f32 0.0, %v7515
      %v7517 = vpop.f32.mrf.mxu0
      %7518 = vmatprep.mubr.f32.mxu0 0.0
      %7519 = vmatmul.mubr.f32.gmra.mxu0 %v7322
      %v7520 = vpop.f32.mrf.mxu0
      %v7521 = vadd.f32 0.0, %v7520
      %v7522 = vpop.f32.mrf.mxu0
      %7523 = vmatprep.mubr.f32.mxu0 0.0
      %7524 = vmatmul.mubr.f32.gmra.mxu0 %v7325
      %v7525 = vpop.f32.mrf.mxu0
      %v7526 = vadd.f32 0.0, %v7525
      %v7527 = vpop.f32.mrf.mxu0
      %7528 = vmatprep.mubr.f32.mxu0 0.0
      %7529 = vmatmul.mubr.f32.gmra.mxu0 %v7328
      %v7530 = vpop.f32.mrf.mxu0
      %v7531 = vadd.f32 0.0, %v7530
      %v7532 = vpop.f32.mrf.mxu0
      %7533 = vmatprep.mubr.f32.mxu0 0.0
      %7534 = vmatmul.mubr.f32.gmra.mxu0 %v7331
      %v7535 = vpop.f32.mrf.mxu0
      %v7536 = vadd.f32 0.0, %v7535
      %v7537 = vpop.f32.mrf.mxu0
      %7538 = vmatprep.mubr.f32.mxu0 0.0
      %7539 = vmatmul.mubr.f32.gmra.mxu0 %v7334
      %v7540 = vpop.f32.mrf.mxu0
      %v7541 = vadd.f32 0.0, %v7540
      %v7542 = vpop.f32.mrf.mxu0
      %7543 = vmatprep.mubr.f32.mxu0 0.0
      %7544 = vmatmul.mubr.f32.gmra.mxu0 %v7337
      %v7545 = vpop.f32.mrf.mxu0
      %v7546 = vadd.f32 0.0, %v7545
      %v7547 = vpop.f32.mrf.mxu0
      %7548 = vmatprep.mubr.f32.mxu0 0.0
      %7549 = vmatmul.mubr.f32.gmra.mxu0 %v7340
      %v7550 = vpop.f32.mrf.mxu0
      %v7551 = vadd.f32 0.0, %v7550
      %v7552 = vpop.f32.mrf.mxu0
      %7553 = vmatprep.mubr.f32.mxu0 0.0
      %7554 = vmatmul.mubr.f32.gmra.mxu0 %v7343
      %v7555 = vpop.f32.mrf.mxu0
      %v7556 = vadd.f32 0.0, %v7555
      %v7557 = vpop.f32.mrf.mxu0
      %7558 = vmatprep.mubr.f32.mxu0 0.0
      %7559 = vmatmul.mubr.f32.gmra.mxu0 %v7346
      %v7560 = vpop.f32.mrf.mxu0
      %v7561 = vadd.f32 0.0, %v7560
      %v7562 = vpop.f32.mrf.mxu0
      %7563 = vmatprep.mubr.f32.mxu0 0.0
      %7564 = vmatmul.mubr.f32.gmra.mxu0 %v7349
      %v7565 = vpop.f32.mrf.mxu0
      %v7566 = vadd.f32 0.0, %v7565
      %v7567 = vpop.f32.mrf.mxu0
      %7568 = vmatprep.mubr.f32.mxu0 0.0
      %7569 = vmatmul.mubr.f32.gmra.mxu0 %v7352
      %v7570 = vpop.f32.mrf.mxu0
      %v7571 = vadd.f32 0.0, %v7570
      %v7572 = vpop.f32.mrf.mxu0
      %7573 = vmatprep.mubr.f32.mxu0 0.0
      %7574 = vmatmul.mubr.f32.gmra.mxu0 %v7355
      %v7575 = vpop.f32.mrf.mxu0
      %v7576 = vadd.f32 0.0, %v7575
      %v7577 = vpop.f32.mrf.mxu0
      %7578 = vmatprep.mubr.f32.mxu0 0.0
      %7579 = vmatmul.mubr.f32.gmra.mxu0 %v7358
      %v7580 = vpop.f32.mrf.mxu0
      %v7581 = vadd.f32 0.0, %v7580
      %v7582 = vpop.f32.mrf.mxu0
      %7583 = vmatprep.mubr.f32.mxu0 0.0
      %7584 = vmatmul.mubr.f32.gmra.mxu0 %v7361
      %v7585 = vpop.f32.mrf.mxu0
      %v7586 = vadd.f32 0.0, %v7585
      %v7587 = vpop.f32.mrf.mxu0
      %7588 = vmatprep.mubr.f32.mxu0 0.0
      %7589 = vmatmul.mubr.f32.gmra.mxu0 %v7364
      %v7590 = vpop.f32.mrf.mxu0
      %v7591 = vadd.f32 0.0, %v7590
      %v7592 = vpop.f32.mrf.mxu0
      %7593 = vmatprep.mubr.f32.mxu0 0.0
      %7594 = vmatmul.mubr.f32.gmra.mxu0 %v7367
      %v7595 = vpop.f32.mrf.mxu0
      %v7596 = vadd.f32 0.0, %v7595
      %v7597 = vpop.f32.mrf.mxu0
      %7598 = vmatprep.mubr.f32.mxu0 0.0
      %7599 = vmatmul.mubr.f32.gmra.mxu0 %v7370
      %v7600 = vpop.f32.mrf.mxu0
      %v7601 = vadd.f32 0.0, %v7600
      %v7602 = vpop.f32.mrf.mxu0
      %7603 = vmatprep.mubr.f32.mxu0 0.0
      %7604 = vmatmul.mubr.f32.gmra.mxu0 %v7373
      %v7605 = vpop.f32.mrf.mxu0
      %v7606 = vadd.f32 0.0, %v7605
      %v7607 = vpop.f32.mrf.mxu0
      %7608 = vmatprep.mubr.f32.mxu0 0.0
      %7609 = vmatmul.mubr.f32.gmra.mxu0 %v7376
      %v7610 = vpop.f32.mrf.mxu0
      %v7611 = vadd.f32 0.0, %v7610
      %v7612 = vpop.f32.mrf.mxu0
      %7613 = vmatprep.mubr.f32.mxu0 0.0
      %7614 = vmatmul.mubr.f32.gmra.mxu0 %v7379
      %v7615 = vpop.f32.mrf.mxu0
      %v7616 = vadd.f32 0.0, %v7615
      %v7617 = vpop.f32.mrf.mxu0
      %7618 = vmatprep.mubr.f32.mxu0 0.0
      %7619 = vmatmul.mubr.f32.gmra.mxu0 %v7382
      %v7620 = vpop.f32.mrf.mxu0
      %v7621 = vadd.f32 0.0, %v7620
      %v7622 = vpop.f32.mrf.mxu0
      %7623 = vmatprep.mubr.f32.mxu0 0.0
      %7624 = vmatmul.mubr.f32.gmra.mxu0 %v7385
      %v7625 = vpop.f32.mrf.mxu0
      %v7626 = vadd.f32 0.0, %v7625
      %v7627 = vpop.f32.mrf.mxu0
      %7628 = vmatprep.mubr.f32.mxu0 0.0
      %7629 = vmatmul.mubr.f32.gmra.mxu0 %v7388
      %v7630 = vpop.f32.mrf.mxu0
      %v7631 = vadd.f32 0.0, %v7630
      %v7632 = vpop.f32.mrf.mxu0
      %7633 = vmatprep.mubr.f32.mxu0 0.0
      %7634 = vmatmul.mubr.f32.gmra.mxu0 %v7391
      %v7635 = vpop.f32.mrf.mxu0
      %v7636 = vadd.f32 0.0, %v7635
      %v7637 = vpop.f32.mrf.mxu0
      %7638 = vmatprep.mubr.f32.mxu0 0.0
      %7639 = vmatmul.mubr.f32.gmra.mxu0 %v7394
      %v7640 = vpop.f32.mrf.mxu0
      %v7641 = vadd.f32 0.0, %v7640
      %v7642 = vpop.f32.mrf.mxu0
      %7643 = vmatprep.mubr.f32.mxu0 0.0
      %7644 = vmatmul.mubr.f32.gmra.mxu0 %v7397
      %v7645 = vpop.f32.mrf.mxu0
      %v7646 = vadd.f32 0.0, %v7645
      %v7647 = vpop.f32.mrf.mxu0
      %7648 = vmatprep.mubr.f32.mxu0 0.0
      %7649 = vmatmul.mubr.f32.gmra.mxu0 %v7400
      %v7650 = vpop.f32.mrf.mxu0
      %v7651 = vadd.f32 0.0, %v7650
      %v7652 = vpop.f32.mrf.mxu0
      %7653 = vmatprep.mubr.f32.mxu0 0.0
      %7654 = vmatmul.mubr.f32.gmra.mxu0 %v7403
      %v7655 = vpop.f32.mrf.mxu0
      %v7656 = vadd.f32 0.0, %v7655
      %v7657 = vpop.f32.mrf.mxu0
      %7658 = vmatprep.mubr.f32.mxu0 0.0
      %7659 = vmatmul.mubr.f32.gmra.mxu0 %v7406
      %v7660 = vpop.f32.mrf.mxu0
      %v7661 = vadd.f32 0.0, %v7660
      %v7662 = vpop.f32.mrf.mxu0
      %7663 = vmatprep.mubr.f32.mxu0 0.0
      %7664 = vmatmul.mubr.f32.gmra.mxu0 %v7409
      %v7665 = vpop.f32.mrf.mxu0
      %v7666 = vadd.f32 0.0, %v7665
      %v7667 = vpop.f32.mrf.mxu0
      %7668 = vmatprep.mubr.f32.mxu0 0.0
      %7669 = vmatmul.mubr.f32.gmra.mxu0 %v7412
      %v7670 = vpop.f32.mrf.mxu0
      %v7671 = vadd.f32 0.0, %v7670
      %v7672 = vpop.f32.mrf.mxu0
      %7673 = vmatprep.mubr.f32.mxu0 0.0
      %7674 = vmatmul.mubr.f32.gmra.mxu0 %v7415
      %v7675 = vpop.f32.mrf.mxu0
      %v7676 = vadd.f32 0.0, %v7675
      %v7677 = vpop.f32.mrf.mxu0
      %7678 = vmatprep.mubr.f32.mxu0 0.0
      %7679 = vmatmul.mubr.f32.gmra.mxu0 %v7418
      %v7680 = vpop.f32.mrf.mxu0
      %v7681 = vadd.f32 0.0, %v7680
      %v7682 = vpop.f32.mrf.mxu0
      %7683 = vmatprep.mubr.f32.mxu0 0.0
      %7684 = vmatmul.mubr.f32.gmra.mxu0 %v7421
      %v7685 = vpop.f32.mrf.mxu0
      %v7686 = vadd.f32 0.0, %v7685
      %v7687 = vpop.f32.mrf.mxu0
      %7688 = vmatprep.mubr.f32.mxu0 0.0
      %7689 = vmatmul.mubr.f32.gmra.mxu0 %v7424
      %v7690 = vpop.f32.mrf.mxu0
      %v7691 = vadd.f32 0.0, %v7690
      %v7692 = vpop.f32.mrf.mxu0
      %7693 = vmatprep.mubr.f32.mxu0 0.0
      %7694 = vmatmul.mubr.f32.gmra.mxu0 %v7427
      %v7695 = vpop.f32.mrf.mxu0
      %v7696 = vadd.f32 0.0, %v7695
      %v7697 = vpop.f32.mrf.mxu0
      %7698 = vdwg.mxu0
      %v7699 = vadd.f32 %v7219, %v7496
      %v7700 = vadd.f32 %v7220, %v7501
      %v7701 = vadd.f32 %v7221, %v7506
      %v7702 = vadd.f32 %v7222, %v7511
      %v7703 = vadd.f32 %v7223, %v7516
      %v7704 = vadd.f32 %v7224, %v7521
      %v7705 = vadd.f32 %v7225, %v7526
      %v7706 = vadd.f32 %v7226, %v7531
      %v7707 = vadd.f32 %v7227, %v7536
      %v7708 = vadd.f32 %v7228, %v7541
      %v7709 = vadd.f32 %v7229, %v7546
      %v7710 = vadd.f32 %v7230, %v7551
      %v7711 = vadd.f32 %v7231, %v7556
      %v7712 = vadd.f32 %v7232, %v7561
      %v7713 = vadd.f32 %v7233, %v7566
      %v7714 = vadd.f32 %v7234, %v7571
      %v7715 = vadd.f32 %v7235, %v7576
      %v7716 = vadd.f32 %v7236, %v7581
      %v7717 = vadd.f32 %v7237, %v7586
      %v7718 = vadd.f32 %v7238, %v7591
      %v7719 = vadd.f32 %v7239, %v7596
      %v7720 = vadd.f32 %v7240, %v7601
      %v7721 = vadd.f32 %v7241, %v7606
      %v7722 = vadd.f32 %v7242, %v7611
      %v7723 = vadd.f32 %v7243, %v7616
      %v7724 = vadd.f32 %v7244, %v7621
      %v7725 = vadd.f32 %v7245, %v7626
      %v7726 = vadd.f32 %v7246, %v7631
      %v7727 = vadd.f32 %v7247, %v7636
      %v7728 = vadd.f32 %v7248, %v7641
      %v7729 = vadd.f32 %v7249, %v7646
      %v7730 = vadd.f32 %v7250, %v7651
      %v7731 = vadd.f32 %v7251, %v7656
      %v7732 = vadd.f32 %v7252, %v7661
      %v7733 = vadd.f32 %v7253, %v7666
      %v7734 = vadd.f32 %v7254, %v7671
      %v7735 = vadd.f32 %v7255, %v7676
      %v7736 = vadd.f32 %v7256, %v7681
      %v7737 = vadd.f32 %v7257, %v7686
      %v7738 = vadd.f32 %v7258, %v7691
      %v7739 = vadd.f32 %v7259, %v7696
      %v7740 = vld [vmem:[#allocation2 + $0x29] sm:$0xff]
      %v7741 = vld [vmem:[#allocation2 + $0x31] sm:$0xff]
      %v7742 = vld [vmem:[#allocation2 + $0x39] sm:$0xff]
      %v7743 = vld [vmem:[#allocation2 + $0x41] sm:$0xff]
      %v7744 = vld [vmem:[#allocation2 + $0x49] sm:$0xff]
      %v7745 = vld [vmem:[#allocation2 + $0x51] sm:$0xff]
      %v7746 = vld [vmem:[#allocation2 + $0x59] sm:$0xff]
      %v7747 = vld [vmem:[#allocation2 + $0x61] sm:$0xff]
      %v7748 = vld [vmem:[#allocation2 + $0x69] sm:$0xff]
      %v7749 = vld [vmem:[#allocation2 + $0x71] sm:$0xff]
      %v7750 = vld [vmem:[#allocation2 + $0x79] sm:$0xff]
      %v7751 = vld [vmem:[#allocation2 + $0x81] sm:$0xff]
      %v7752 = vld [vmem:[#allocation2 + $0x89] sm:$0xff]
      %v7753 = vld [vmem:[#allocation2 + $0x91] sm:$0xff]
      %v7754 = vld [vmem:[#allocation2 + $0x99] sm:$0xff]
      %v7755 = vld [vmem:[#allocation2 + $0xa1] sm:$0xff]
      %v7756 = vld [vmem:[#allocation2 + $0xa9] sm:$0xff]
      %v7757 = vld [vmem:[#allocation2 + $0xb1] sm:$0xff]
      %v7758 = vld [vmem:[#allocation2 + $0xb9] sm:$0xff]
      %v7759 = vld [vmem:[#allocation2 + $0xc1] sm:$0xff]
      %v7760 = vld [vmem:[#allocation2 + $0xc9] sm:$0xff]
      %v7761 = vld [vmem:[#allocation2 + $0xd1] sm:$0xff]
      %v7762 = vld [vmem:[#allocation2 + $0xd9] sm:$0xff]
      %v7763 = vld [vmem:[#allocation2 + $0xe1] sm:$0xff]
      %v7764 = vld [vmem:[#allocation2 + $0xe9] sm:$0xff]
      %v7765 = vld [vmem:[#allocation2 + $0xf1] sm:$0xff]
      %v7766 = vld [vmem:[#allocation2 + $0xf9] sm:$0xff]
      %v7767 = vld [vmem:[#allocation2 + $0x101] sm:$0xff]
      %v7768 = vld [vmem:[#allocation2 + $0x109] sm:$0xff]
      %v7769 = vld [vmem:[#allocation2 + $0x111] sm:$0xff]
      %v7770 = vld [vmem:[#allocation2 + $0x119] sm:$0xff]
      %v7771 = vld [vmem:[#allocation2 + $0x121] sm:$0xff]
      %v7772 = vld [vmem:[#allocation2 + $0x129] sm:$0xff]
      %v7773 = vld [vmem:[#allocation2 + $0x131] sm:$0xff]
      %v7774 = vld [vmem:[#allocation2 + $0x139] sm:$0xff]
      %v7775 = vld [vmem:[#allocation2 + $0x141] sm:$0xff]
      %v7776 = vld [vmem:[#allocation2 + $0x149] sm:$0xff]
      %v7777 = vld [vmem:[#allocation2 + $0x151] sm:$0xff]
      %v7778 = vld [vmem:[#allocation2 + $0x159] sm:$0xff]
      %v7779 = vld [vmem:[#allocation2 + $0x161] sm:$0xff]
      %v7780 = vld [vmem:[#allocation2 + $0x169] sm:$0xf]
      %s7781 = scalar_lea.vmem %s3, 192
      %v7782 = vld [vmem:[%s7781] sm:$0xff]
      %v7783 = vld [vmem:[%s7781 + $0x8] sm:$0xff]
      %v7784 = vld [vmem:[%s7781 + $0x10] sm:$0xff]
      %v7785 = vld [vmem:[%s7781 + $0x18] sm:$0xff]
      %v7787 = vsel %vm4894, %v7740, 0
      %v7790 = vsel %vm4894, %v7741, 0
      %v7793 = vsel %vm4894, %v7742, 0
      %v7796 = vsel %vm4894, %v7743, 0
      %v7799 = vsel %vm4894, %v7744, 0
      %v7802 = vsel %vm4894, %v7745, 0
      %v7805 = vsel %vm4894, %v7746, 0
      %v7808 = vsel %vm4894, %v7747, 0
      %v7811 = vsel %vm4894, %v7748, 0
      %v7814 = vsel %vm4894, %v7749, 0
      %v7817 = vsel %vm4894, %v7750, 0
      %v7820 = vsel %vm4894, %v7751, 0
      %v7823 = vsel %vm4894, %v7752, 0
      %v7826 = vsel %vm4894, %v7753, 0
      %v7829 = vsel %vm4894, %v7754, 0
      %v7832 = vsel %vm4894, %v7755, 0
      %v7835 = vsel %vm4894, %v7756, 0
      %v7838 = vsel %vm4894, %v7757, 0
      %v7841 = vsel %vm4894, %v7758, 0
      %v7844 = vsel %vm4894, %v7759, 0
      %v7847 = vsel %vm4894, %v7760, 0
      %v7850 = vsel %vm4894, %v7761, 0
      %v7853 = vsel %vm4894, %v7762, 0
      %v7856 = vsel %vm4894, %v7763, 0
      %v7859 = vsel %vm4894, %v7764, 0
      %v7862 = vsel %vm4894, %v7765, 0
      %v7865 = vsel %vm4894, %v7766, 0
      %v7868 = vsel %vm4894, %v7767, 0
      %v7871 = vsel %vm4894, %v7768, 0
      %v7874 = vsel %vm4894, %v7769, 0
      %v7877 = vsel %vm4894, %v7770, 0
      %v7880 = vsel %vm4894, %v7771, 0
      %v7883 = vsel %vm4894, %v7772, 0
      %v7886 = vsel %vm4894, %v7773, 0
      %v7889 = vsel %vm4894, %v7774, 0
      %v7892 = vsel %vm4894, %v7775, 0
      %v7895 = vsel %vm4894, %v7776, 0
      %v7898 = vsel %vm4894, %v7777, 0
      %v7901 = vsel %vm4894, %v7778, 0
      %v7904 = vsel %vm4894, %v7779, 0
      %v7907 = vsel %vm4894, %v7780, 0
      %7909 = vmatprep.subr.mxu0 0.0
      %7910 = vmatpush1.msra.mxu0 0.0
      %7911 = vmatprep.subr.mxu0 0.0
      %7912 = vmatpush1.msra.mxu0 0.0
      %7913 = vmatprep.subr.mxu0 0.0
      %7914 = vmatpush1.msra.mxu0 0.0
      %7915 = vmatprep.subr.mxu0 0.0
      %7916 = vmatpush1.msra.mxu0 0.0
      %7917 = vmatprep.subr.mxu0 0.0
      %7918 = vmatpush1.msra.mxu0 0.0
      %7919 = vmatprep.subr.mxu0 0.0
      %7920 = vmatpush1.msra.mxu0 0.0
      %7921 = vmatprep.subr.mxu0 0.0
      %7922 = vmatpush1.msra.mxu0 0.0
      %7923 = vmatprep.subr.mxu0 0.0
      %7924 = vmatpush1.msra.mxu0 0.0
      %7925 = vmatprep.subr.mxu0 0.0
      %7926 = vmatpush1.msra.mxu0 0.0
      %7927 = vmatprep.subr.mxu0 0.0
      %7928 = vmatpush1.msra.mxu0 0.0
      %7929 = vmatprep.subr.mxu0 0.0
      %7930 = vmatpush1.msra.mxu0 0.0
      %7931 = vmatprep.subr.mxu0 0.0
      %7932 = vmatpush1.msra.mxu0 0.0
      %7933 = vmatprep.subr.mxu0 0.0
      %7934 = vmatpush1.msra.mxu0 %v7785
      %7935 = vmatprep.subr.mxu0 0.0
      %7936 = vmatpush1.msra.mxu0 %v7784
      %7937 = vmatprep.subr.mxu0 0.0
      %7938 = vmatpush1.msra.mxu0 %v7783
      %7939 = vmatprep.subr.mxu0 0.0
      %7940 = vmatpush1.msra.mxu0 %v7782
      %7941 = vmatprep.subr.mxu0 0.0
      %7942 = vmatpush2.msra.mxu0 0.0
      %7943 = vmatprep.subr.mxu0 0.0
      %7944 = vmatpush2.msra.mxu0 0.0
      %7945 = vmatprep.subr.mxu0 0.0
      %7946 = vmatpush2.msra.mxu0 0.0
      %7947 = vmatprep.subr.mxu0 0.0
      %7948 = vmatpush2.msra.mxu0 0.0
      %7949 = vmatprep.subr.mxu0 0.0
      %7950 = vmatpush2.msra.mxu0 0.0
      %7951 = vmatprep.subr.mxu0 0.0
      %7952 = vmatpush2.msra.mxu0 0.0
      %7953 = vmatprep.subr.mxu0 0.0
      %7954 = vmatpush2.msra.mxu0 0.0
      %7955 = vmatprep.subr.mxu0 0.0
      %7956 = vmatpush2.msra.mxu0 0.0
      %7957 = vmatprep.subr.mxu0 0.0
      %7958 = vmatpush2.msra.mxu0 0.0
      %7959 = vmatprep.subr.mxu0 0.0
      %7960 = vmatpush2.msra.mxu0 0.0
      %7961 = vmatprep.subr.mxu0 0.0
      %7962 = vmatpush2.msra.mxu0 0.0
      %7963 = vmatprep.subr.mxu0 0.0
      %7964 = vmatpush2.msra.mxu0 0.0
      %7965 = vmatprep.subr.mxu0 0.0
      %7966 = vmatpush2.msra.mxu0 0.0
      %7967 = vmatprep.subr.mxu0 0.0
      %7968 = vmatpush2.msra.mxu0 0.0
      %7969 = vmatprep.subr.mxu0 0.0
      %7970 = vmatpush2.msra.mxu0 0.0
      %7971 = vmatprep.subr.mxu0 0.0
      %7972 = vmatpush2.msra.mxu0 0.0
      %7973 = vmatprep.mubr.f32.mxu0 0.0
      %7974 = vmatmul.mubr.f32.gmra.mxu0 %v7787
      %v7975 = vpop.f32.mrf.mxu0
      %v7976 = vadd.f32 0.0, %v7975
      %v7977 = vpop.f32.mrf.mxu0
      %7978 = vmatprep.mubr.f32.mxu0 0.0
      %7979 = vmatmul.mubr.f32.gmra.mxu0 %v7790
      %v7980 = vpop.f32.mrf.mxu0
      %v7981 = vadd.f32 0.0, %v7980
      %v7982 = vpop.f32.mrf.mxu0
      %7983 = vmatprep.mubr.f32.mxu0 0.0
      %7984 = vmatmul.mubr.f32.gmra.mxu0 %v7793
      %v7985 = vpop.f32.mrf.mxu0
      %v7986 = vadd.f32 0.0, %v7985
      %v7987 = vpop.f32.mrf.mxu0
      %7988 = vmatprep.mubr.f32.mxu0 0.0
      %7989 = vmatmul.mubr.f32.gmra.mxu0 %v7796
      %v7990 = vpop.f32.mrf.mxu0
      %v7991 = vadd.f32 0.0, %v7990
      %v7992 = vpop.f32.mrf.mxu0
      %7993 = vmatprep.mubr.f32.mxu0 0.0
      %7994 = vmatmul.mubr.f32.gmra.mxu0 %v7799
      %v7995 = vpop.f32.mrf.mxu0
      %v7996 = vadd.f32 0.0, %v7995
      %v7997 = vpop.f32.mrf.mxu0
      %7998 = vmatprep.mubr.f32.mxu0 0.0
      %7999 = vmatmul.mubr.f32.gmra.mxu0 %v7802
      %v8000 = vpop.f32.mrf.mxu0
      %v8001 = vadd.f32 0.0, %v8000
      %v8002 = vpop.f32.mrf.mxu0
      %8003 = vmatprep.mubr.f32.mxu0 0.0
      %8004 = vmatmul.mubr.f32.gmra.mxu0 %v7805
      %v8005 = vpop.f32.mrf.mxu0
      %v8006 = vadd.f32 0.0, %v8005
      %v8007 = vpop.f32.mrf.mxu0
      %8008 = vmatprep.mubr.f32.mxu0 0.0
      %8009 = vmatmul.mubr.f32.gmra.mxu0 %v7808
      %v8010 = vpop.f32.mrf.mxu0
      %v8011 = vadd.f32 0.0, %v8010
      %v8012 = vpop.f32.mrf.mxu0
      %8013 = vmatprep.mubr.f32.mxu0 0.0
      %8014 = vmatmul.mubr.f32.gmra.mxu0 %v7811
      %v8015 = vpop.f32.mrf.mxu0
      %v8016 = vadd.f32 0.0, %v8015
      %v8017 = vpop.f32.mrf.mxu0
      %8018 = vmatprep.mubr.f32.mxu0 0.0
      %8019 = vmatmul.mubr.f32.gmra.mxu0 %v7814
      %v8020 = vpop.f32.mrf.mxu0
      %v8021 = vadd.f32 0.0, %v8020
      %v8022 = vpop.f32.mrf.mxu0
      %8023 = vmatprep.mubr.f32.mxu0 0.0
      %8024 = vmatmul.mubr.f32.gmra.mxu0 %v7817
      %v8025 = vpop.f32.mrf.mxu0
      %v8026 = vadd.f32 0.0, %v8025
      %v8027 = vpop.f32.mrf.mxu0
      %8028 = vmatprep.mubr.f32.mxu0 0.0
      %8029 = vmatmul.mubr.f32.gmra.mxu0 %v7820
      %v8030 = vpop.f32.mrf.mxu0
      %v8031 = vadd.f32 0.0, %v8030
      %v8032 = vpop.f32.mrf.mxu0
      %8033 = vmatprep.mubr.f32.mxu0 0.0
      %8034 = vmatmul.mubr.f32.gmra.mxu0 %v7823
      %v8035 = vpop.f32.mrf.mxu0
      %v8036 = vadd.f32 0.0, %v8035
      %v8037 = vpop.f32.mrf.mxu0
      %8038 = vmatprep.mubr.f32.mxu0 0.0
      %8039 = vmatmul.mubr.f32.gmra.mxu0 %v7826
      %v8040 = vpop.f32.mrf.mxu0
      %v8041 = vadd.f32 0.0, %v8040
      %v8042 = vpop.f32.mrf.mxu0
      %8043 = vmatprep.mubr.f32.mxu0 0.0
      %8044 = vmatmul.mubr.f32.gmra.mxu0 %v7829
      %v8045 = vpop.f32.mrf.mxu0
      %v8046 = vadd.f32 0.0, %v8045
      %v8047 = vpop.f32.mrf.mxu0
      %8048 = vmatprep.mubr.f32.mxu0 0.0
      %8049 = vmatmul.mubr.f32.gmra.mxu0 %v7832
      %v8050 = vpop.f32.mrf.mxu0
      %v8051 = vadd.f32 0.0, %v8050
      %v8052 = vpop.f32.mrf.mxu0
      %8053 = vmatprep.mubr.f32.mxu0 0.0
      %8054 = vmatmul.mubr.f32.gmra.mxu0 %v7835
      %v8055 = vpop.f32.mrf.mxu0
      %v8056 = vadd.f32 0.0, %v8055
      %v8057 = vpop.f32.mrf.mxu0
      %8058 = vmatprep.mubr.f32.mxu0 0.0
      %8059 = vmatmul.mubr.f32.gmra.mxu0 %v7838
      %v8060 = vpop.f32.mrf.mxu0
      %v8061 = vadd.f32 0.0, %v8060
      %v8062 = vpop.f32.mrf.mxu0
      %8063 = vmatprep.mubr.f32.mxu0 0.0
      %8064 = vmatmul.mubr.f32.gmra.mxu0 %v7841
      %v8065 = vpop.f32.mrf.mxu0
      %v8066 = vadd.f32 0.0, %v8065
      %v8067 = vpop.f32.mrf.mxu0
      %8068 = vmatprep.mubr.f32.mxu0 0.0
      %8069 = vmatmul.mubr.f32.gmra.mxu0 %v7844
      %v8070 = vpop.f32.mrf.mxu0
      %v8071 = vadd.f32 0.0, %v8070
      %v8072 = vpop.f32.mrf.mxu0
      %8073 = vmatprep.mubr.f32.mxu0 0.0
      %8074 = vmatmul.mubr.f32.gmra.mxu0 %v7847
      %v8075 = vpop.f32.mrf.mxu0
      %v8076 = vadd.f32 0.0, %v8075
      %v8077 = vpop.f32.mrf.mxu0
      %8078 = vmatprep.mubr.f32.mxu0 0.0
      %8079 = vmatmul.mubr.f32.gmra.mxu0 %v7850
      %v8080 = vpop.f32.mrf.mxu0
      %v8081 = vadd.f32 0.0, %v8080
      %v8082 = vpop.f32.mrf.mxu0
      %8083 = vmatprep.mubr.f32.mxu0 0.0
      %8084 = vmatmul.mubr.f32.gmra.mxu0 %v7853
      %v8085 = vpop.f32.mrf.mxu0
      %v8086 = vadd.f32 0.0, %v8085
      %v8087 = vpop.f32.mrf.mxu0
      %8088 = vmatprep.mubr.f32.mxu0 0.0
      %8089 = vmatmul.mubr.f32.gmra.mxu0 %v7856
      %v8090 = vpop.f32.mrf.mxu0
      %v8091 = vadd.f32 0.0, %v8090
      %v8092 = vpop.f32.mrf.mxu0
      %8093 = vmatprep.mubr.f32.mxu0 0.0
      %8094 = vmatmul.mubr.f32.gmra.mxu0 %v7859
      %v8095 = vpop.f32.mrf.mxu0
      %v8096 = vadd.f32 0.0, %v8095
      %v8097 = vpop.f32.mrf.mxu0
      %8098 = vmatprep.mubr.f32.mxu0 0.0
      %8099 = vmatmul.mubr.f32.gmra.mxu0 %v7862
      %v8100 = vpop.f32.mrf.mxu0
      %v8101 = vadd.f32 0.0, %v8100
      %v8102 = vpop.f32.mrf.mxu0
      %8103 = vmatprep.mubr.f32.mxu0 0.0
      %8104 = vmatmul.mubr.f32.gmra.mxu0 %v7865
      %v8105 = vpop.f32.mrf.mxu0
      %v8106 = vadd.f32 0.0, %v8105
      %v8107 = vpop.f32.mrf.mxu0
      %8108 = vmatprep.mubr.f32.mxu0 0.0
      %8109 = vmatmul.mubr.f32.gmra.mxu0 %v7868
      %v8110 = vpop.f32.mrf.mxu0
      %v8111 = vadd.f32 0.0, %v8110
      %v8112 = vpop.f32.mrf.mxu0
      %8113 = vmatprep.mubr.f32.mxu0 0.0
      %8114 = vmatmul.mubr.f32.gmra.mxu0 %v7871
      %v8115 = vpop.f32.mrf.mxu0
      %v8116 = vadd.f32 0.0, %v8115
      %v8117 = vpop.f32.mrf.mxu0
      %8118 = vmatprep.mubr.f32.mxu0 0.0
      %8119 = vmatmul.mubr.f32.gmra.mxu0 %v7874
      %v8120 = vpop.f32.mrf.mxu0
      %v8121 = vadd.f32 0.0, %v8120
      %v8122 = vpop.f32.mrf.mxu0
      %8123 = vmatprep.mubr.f32.mxu0 0.0
      %8124 = vmatmul.mubr.f32.gmra.mxu0 %v7877
      %v8125 = vpop.f32.mrf.mxu0
      %v8126 = vadd.f32 0.0, %v8125
      %v8127 = vpop.f32.mrf.mxu0
      %8128 = vmatprep.mubr.f32.mxu0 0.0
      %8129 = vmatmul.mubr.f32.gmra.mxu0 %v7880
      %v8130 = vpop.f32.mrf.mxu0
      %v8131 = vadd.f32 0.0, %v8130
      %v8132 = vpop.f32.mrf.mxu0
      %8133 = vmatprep.mubr.f32.mxu0 0.0
      %8134 = vmatmul.mubr.f32.gmra.mxu0 %v7883
      %v8135 = vpop.f32.mrf.mxu0
      %v8136 = vadd.f32 0.0, %v8135
      %v8137 = vpop.f32.mrf.mxu0
      %8138 = vmatprep.mubr.f32.mxu0 0.0
      %8139 = vmatmul.mubr.f32.gmra.mxu0 %v7886
      %v8140 = vpop.f32.mrf.mxu0
      %v8141 = vadd.f32 0.0, %v8140
      %v8142 = vpop.f32.mrf.mxu0
      %8143 = vmatprep.mubr.f32.mxu0 0.0
      %8144 = vmatmul.mubr.f32.gmra.mxu0 %v7889
      %v8145 = vpop.f32.mrf.mxu0
      %v8146 = vadd.f32 0.0, %v8145
      %v8147 = vpop.f32.mrf.mxu0
      %8148 = vmatprep.mubr.f32.mxu0 0.0
      %8149 = vmatmul.mubr.f32.gmra.mxu0 %v7892
      %v8150 = vpop.f32.mrf.mxu0
      %v8151 = vadd.f32 0.0, %v8150
      %v8152 = vpop.f32.mrf.mxu0
      %8153 = vmatprep.mubr.f32.mxu0 0.0
      %8154 = vmatmul.mubr.f32.gmra.mxu0 %v7895
      %v8155 = vpop.f32.mrf.mxu0
      %v8156 = vadd.f32 0.0, %v8155
      %v8157 = vpop.f32.mrf.mxu0
      %8158 = vmatprep.mubr.f32.mxu0 0.0
      %8159 = vmatmul.mubr.f32.gmra.mxu0 %v7898
      %v8160 = vpop.f32.mrf.mxu0
      %v8161 = vadd.f32 0.0, %v8160
      %v8162 = vpop.f32.mrf.mxu0
      %8163 = vmatprep.mubr.f32.mxu0 0.0
      %8164 = vmatmul.mubr.f32.gmra.mxu0 %v7901
      %v8165 = vpop.f32.mrf.mxu0
      %v8166 = vadd.f32 0.0, %v8165
      %v8167 = vpop.f32.mrf.mxu0
      %8168 = vmatprep.mubr.f32.mxu0 0.0
      %8169 = vmatmul.mubr.f32.gmra.mxu0 %v7904
      %v8170 = vpop.f32.mrf.mxu0
      %v8171 = vadd.f32 0.0, %v8170
      %v8172 = vpop.f32.mrf.mxu0
      %8173 = vmatprep.mubr.f32.mxu0 0.0
      %8174 = vmatmul.mubr.f32.gmra.mxu0 %v7907
      %v8175 = vpop.f32.mrf.mxu0
      %v8176 = vadd.f32 0.0, %v8175
      %v8177 = vpop.f32.mrf.mxu0
      %8178 = vdwg.mxu0
      %v8179 = vadd.f32 %v7699, %v7976
      %v8180 = vadd.f32 %v7700, %v7981
      %v8181 = vadd.f32 %v7701, %v7986
      %v8182 = vadd.f32 %v7702, %v7991
      %v8183 = vadd.f32 %v7703, %v7996
      %v8184 = vadd.f32 %v7704, %v8001
      %v8185 = vadd.f32 %v7705, %v8006
      %v8186 = vadd.f32 %v7706, %v8011
      %v8187 = vadd.f32 %v7707, %v8016
      %v8188 = vadd.f32 %v7708, %v8021
      %v8189 = vadd.f32 %v7709, %v8026
      %v8190 = vadd.f32 %v7710, %v8031
      %v8191 = vadd.f32 %v7711, %v8036
      %v8192 = vadd.f32 %v7712, %v8041
      %v8193 = vadd.f32 %v7713, %v8046
      %v8194 = vadd.f32 %v7714, %v8051
      %v8195 = vadd.f32 %v7715, %v8056
      %v8196 = vadd.f32 %v7716, %v8061
      %v8197 = vadd.f32 %v7717, %v8066
      %v8198 = vadd.f32 %v7718, %v8071
      %v8199 = vadd.f32 %v7719, %v8076
      %v8200 = vadd.f32 %v7720, %v8081
      %v8201 = vadd.f32 %v7721, %v8086
      %v8202 = vadd.f32 %v7722, %v8091
      %v8203 = vadd.f32 %v7723, %v8096
      %v8204 = vadd.f32 %v7724, %v8101
      %v8205 = vadd.f32 %v7725, %v8106
      %v8206 = vadd.f32 %v7726, %v8111
      %v8207 = vadd.f32 %v7727, %v8116
      %v8208 = vadd.f32 %v7728, %v8121
      %v8209 = vadd.f32 %v7729, %v8126
      %v8210 = vadd.f32 %v7730, %v8131
      %v8211 = vadd.f32 %v7731, %v8136
      %v8212 = vadd.f32 %v7732, %v8141
      %v8213 = vadd.f32 %v7733, %v8146
      %v8214 = vadd.f32 %v7734, %v8151
      %v8215 = vadd.f32 %v7735, %v8156
      %v8216 = vadd.f32 %v7736, %v8161
      %v8217 = vadd.f32 %v7737, %v8166
      %v8218 = vadd.f32 %v7738, %v8171
      %v8219 = vadd.f32 %v7739, %v8176
      %v8220 = vld [vmem:[#allocation2 + $0x2a] sm:$0xff]
      %v8221 = vld [vmem:[#allocation2 + $0x32] sm:$0xff]
      %v8222 = vld [vmem:[#allocation2 + $0x3a] sm:$0xff]
      %v8223 = vld [vmem:[#allocation2 + $0x42] sm:$0xff]
      %v8224 = vld [vmem:[#allocation2 + $0x4a] sm:$0xff]
      %v8225 = vld [vmem:[#allocation2 + $0x52] sm:$0xff]
      %v8226 = vld [vmem:[#allocation2 + $0x5a] sm:$0xff]
      %v8227 = vld [vmem:[#allocation2 + $0x62] sm:$0xff]
      %v8228 = vld [vmem:[#allocation2 + $0x6a] sm:$0xff]
      %v8229 = vld [vmem:[#allocation2 + $0x72] sm:$0xff]
      %v8230 = vld [vmem:[#allocation2 + $0x7a] sm:$0xff]
      %v8231 = vld [vmem:[#allocation2 + $0x82] sm:$0xff]
      %v8232 = vld [vmem:[#allocation2 + $0x8a] sm:$0xff]
      %v8233 = vld [vmem:[#allocation2 + $0x92] sm:$0xff]
      %v8234 = vld [vmem:[#allocation2 + $0x9a] sm:$0xff]
      %v8235 = vld [vmem:[#allocation2 + $0xa2] sm:$0xff]
      %v8236 = vld [vmem:[#allocation2 + $0xaa] sm:$0xff]
      %v8237 = vld [vmem:[#allocation2 + $0xb2] sm:$0xff]
      %v8238 = vld [vmem:[#allocation2 + $0xba] sm:$0xff]
      %v8239 = vld [vmem:[#allocation2 + $0xc2] sm:$0xff]
      %v8240 = vld [vmem:[#allocation2 + $0xca] sm:$0xff]
      %v8241 = vld [vmem:[#allocation2 + $0xd2] sm:$0xff]
      %v8242 = vld [vmem:[#allocation2 + $0xda] sm:$0xff]
      %v8243 = vld [vmem:[#allocation2 + $0xe2] sm:$0xff]
      %v8244 = vld [vmem:[#allocation2 + $0xea] sm:$0xff]
      %v8245 = vld [vmem:[#allocation2 + $0xf2] sm:$0xff]
      %v8246 = vld [vmem:[#allocation2 + $0xfa] sm:$0xff]
      %v8247 = vld [vmem:[#allocation2 + $0x102] sm:$0xff]
      %v8248 = vld [vmem:[#allocation2 + $0x10a] sm:$0xff]
      %v8249 = vld [vmem:[#allocation2 + $0x112] sm:$0xff]
      %v8250 = vld [vmem:[#allocation2 + $0x11a] sm:$0xff]
      %v8251 = vld [vmem:[#allocation2 + $0x122] sm:$0xff]
      %v8252 = vld [vmem:[#allocation2 + $0x12a] sm:$0xff]
      %v8253 = vld [vmem:[#allocation2 + $0x132] sm:$0xff]
      %v8254 = vld [vmem:[#allocation2 + $0x13a] sm:$0xff]
      %v8255 = vld [vmem:[#allocation2 + $0x142] sm:$0xff]
      %v8256 = vld [vmem:[#allocation2 + $0x14a] sm:$0xff]
      %v8257 = vld [vmem:[#allocation2 + $0x152] sm:$0xff]
      %v8258 = vld [vmem:[#allocation2 + $0x15a] sm:$0xff]
      %v8259 = vld [vmem:[#allocation2 + $0x162] sm:$0xff]
      %v8260 = vld [vmem:[#allocation2 + $0x16a] sm:$0xf]
      %s8261 = scalar_lea.vmem %s3, 224
      %v8262 = vld [vmem:[%s8261] sm:$0xff]
      %v8263 = vld [vmem:[%s8261 + $0x8] sm:$0xff]
      %v8264 = vld [vmem:[%s8261 + $0x10] sm:$0xff]
      %v8265 = vld [vmem:[%s8261 + $0x18] sm:$0xff]
      %v8267 = vsel %vm4894, %v8220, 0
      %v8270 = vsel %vm4894, %v8221, 0
      %v8273 = vsel %vm4894, %v8222, 0
      %v8276 = vsel %vm4894, %v8223, 0
      %v8279 = vsel %vm4894, %v8224, 0
      %v8282 = vsel %vm4894, %v8225, 0
      %v8285 = vsel %vm4894, %v8226, 0
      %v8288 = vsel %vm4894, %v8227, 0
      %v8291 = vsel %vm4894, %v8228, 0
      %v8294 = vsel %vm4894, %v8229, 0
      %v8297 = vsel %vm4894, %v8230, 0
      %v8300 = vsel %vm4894, %v8231, 0
      %v8303 = vsel %vm4894, %v8232, 0
      %v8306 = vsel %vm4894, %v8233, 0
      %v8309 = vsel %vm4894, %v8234, 0
      %v8312 = vsel %vm4894, %v8235, 0
      %v8315 = vsel %vm4894, %v8236, 0
      %v8318 = vsel %vm4894, %v8237, 0
      %v8321 = vsel %vm4894, %v8238, 0
      %v8324 = vsel %vm4894, %v8239, 0
      %v8327 = vsel %vm4894, %v8240, 0
      %v8330 = vsel %vm4894, %v8241, 0
      %v8333 = vsel %vm4894, %v8242, 0
      %v8336 = vsel %vm4894, %v8243, 0
      %v8339 = vsel %vm4894, %v8244, 0
      %v8342 = vsel %vm4894, %v8245, 0
      %v8345 = vsel %vm4894, %v8246, 0
      %v8348 = vsel %vm4894, %v8247, 0
      %v8351 = vsel %vm4894, %v8248, 0
      %v8354 = vsel %vm4894, %v8249, 0
      %v8357 = vsel %vm4894, %v8250, 0
      %v8360 = vsel %vm4894, %v8251, 0
      %v8363 = vsel %vm4894, %v8252, 0
      %v8366 = vsel %vm4894, %v8253, 0
      %v8369 = vsel %vm4894, %v8254, 0
      %v8372 = vsel %vm4894, %v8255, 0
      %v8375 = vsel %vm4894, %v8256, 0
      %v8378 = vsel %vm4894, %v8257, 0
      %v8381 = vsel %vm4894, %v8258, 0
      %v8384 = vsel %vm4894, %v8259, 0
      %v8387 = vsel %vm4894, %v8260, 0
      %8389 = vmatprep.subr.mxu0 0.0
      %8390 = vmatpush1.msra.mxu0 0.0
      %8391 = vmatprep.subr.mxu0 0.0
      %8392 = vmatpush1.msra.mxu0 0.0
      %8393 = vmatprep.subr.mxu0 0.0
      %8394 = vmatpush1.msra.mxu0 0.0
      %8395 = vmatprep.subr.mxu0 0.0
      %8396 = vmatpush1.msra.mxu0 0.0
      %8397 = vmatprep.subr.mxu0 0.0
      %8398 = vmatpush1.msra.mxu0 0.0
      %8399 = vmatprep.subr.mxu0 0.0
      %8400 = vmatpush1.msra.mxu0 0.0
      %8401 = vmatprep.subr.mxu0 0.0
      %8402 = vmatpush1.msra.mxu0 0.0
      %8403 = vmatprep.subr.mxu0 0.0
      %8404 = vmatpush1.msra.mxu0 0.0
      %8405 = vmatprep.subr.mxu0 0.0
      %8406 = vmatpush1.msra.mxu0 0.0
      %8407 = vmatprep.subr.mxu0 0.0
      %8408 = vmatpush1.msra.mxu0 0.0
      %8409 = vmatprep.subr.mxu0 0.0
      %8410 = vmatpush1.msra.mxu0 0.0
      %8411 = vmatprep.subr.mxu0 0.0
      %8412 = vmatpush1.msra.mxu0 0.0
      %8413 = vmatprep.subr.mxu0 0.0
      %8414 = vmatpush1.msra.mxu0 %v8265
      %8415 = vmatprep.subr.mxu0 0.0
      %8416 = vmatpush1.msra.mxu0 %v8264
      %8417 = vmatprep.subr.mxu0 0.0
      %8418 = vmatpush1.msra.mxu0 %v8263
      %8419 = vmatprep.subr.mxu0 0.0
      %8420 = vmatpush1.msra.mxu0 %v8262
      %8421 = vmatprep.subr.mxu0 0.0
      %8422 = vmatpush2.msra.mxu0 0.0
      %8423 = vmatprep.subr.mxu0 0.0
      %8424 = vmatpush2.msra.mxu0 0.0
      %8425 = vmatprep.subr.mxu0 0.0
      %8426 = vmatpush2.msra.mxu0 0.0
      %8427 = vmatprep.subr.mxu0 0.0
      %8428 = vmatpush2.msra.mxu0 0.0
      %8429 = vmatprep.subr.mxu0 0.0
      %8430 = vmatpush2.msra.mxu0 0.0
      %8431 = vmatprep.subr.mxu0 0.0
      %8432 = vmatpush2.msra.mxu0 0.0
      %8433 = vmatprep.subr.mxu0 0.0
      %8434 = vmatpush2.msra.mxu0 0.0
      %8435 = vmatprep.subr.mxu0 0.0
      %8436 = vmatpush2.msra.mxu0 0.0
      %8437 = vmatprep.subr.mxu0 0.0
      %8438 = vmatpush2.msra.mxu0 0.0
      %8439 = vmatprep.subr.mxu0 0.0
      %8440 = vmatpush2.msra.mxu0 0.0
      %8441 = vmatprep.subr.mxu0 0.0
      %8442 = vmatpush2.msra.mxu0 0.0
      %8443 = vmatprep.subr.mxu0 0.0
      %8444 = vmatpush2.msra.mxu0 0.0
      %8445 = vmatprep.subr.mxu0 0.0
      %8446 = vmatpush2.msra.mxu0 0.0
      %8447 = vmatprep.subr.mxu0 0.0
      %8448 = vmatpush2.msra.mxu0 0.0
      %8449 = vmatprep.subr.mxu0 0.0
      %8450 = vmatpush2.msra.mxu0 0.0
      %8451 = vmatprep.subr.mxu0 0.0
      %8452 = vmatpush2.msra.mxu0 0.0
      %8453 = vmatprep.mubr.f32.mxu0 0.0
      %8454 = vmatmul.mubr.f32.gmra.mxu0 %v8267
      %v8455 = vpop.f32.mrf.mxu0
      %v8456 = vadd.f32 0.0, %v8455
      %v8457 = vpop.f32.mrf.mxu0
      %8458 = vmatprep.mubr.f32.mxu0 0.0
      %8459 = vmatmul.mubr.f32.gmra.mxu0 %v8270
      %v8460 = vpop.f32.mrf.mxu0
      %v8461 = vadd.f32 0.0, %v8460
      %v8462 = vpop.f32.mrf.mxu0
      %8463 = vmatprep.mubr.f32.mxu0 0.0
      %8464 = vmatmul.mubr.f32.gmra.mxu0 %v8273
      %v8465 = vpop.f32.mrf.mxu0
      %v8466 = vadd.f32 0.0, %v8465
      %v8467 = vpop.f32.mrf.mxu0
      %8468 = vmatprep.mubr.f32.mxu0 0.0
      %8469 = vmatmul.mubr.f32.gmra.mxu0 %v8276
      %v8470 = vpop.f32.mrf.mxu0
      %v8471 = vadd.f32 0.0, %v8470
      %v8472 = vpop.f32.mrf.mxu0
      %8473 = vmatprep.mubr.f32.mxu0 0.0
      %8474 = vmatmul.mubr.f32.gmra.mxu0 %v8279
      %v8475 = vpop.f32.mrf.mxu0
      %v8476 = vadd.f32 0.0, %v8475
      %v8477 = vpop.f32.mrf.mxu0
      %8478 = vmatprep.mubr.f32.mxu0 0.0
      %8479 = vmatmul.mubr.f32.gmra.mxu0 %v8282
      %v8480 = vpop.f32.mrf.mxu0
      %v8481 = vadd.f32 0.0, %v8480
      %v8482 = vpop.f32.mrf.mxu0
      %8483 = vmatprep.mubr.f32.mxu0 0.0
      %8484 = vmatmul.mubr.f32.gmra.mxu0 %v8285
      %v8485 = vpop.f32.mrf.mxu0
      %v8486 = vadd.f32 0.0, %v8485
      %v8487 = vpop.f32.mrf.mxu0
      %8488 = vmatprep.mubr.f32.mxu0 0.0
      %8489 = vmatmul.mubr.f32.gmra.mxu0 %v8288
      %v8490 = vpop.f32.mrf.mxu0
      %v8491 = vadd.f32 0.0, %v8490
      %v8492 = vpop.f32.mrf.mxu0
      %8493 = vmatprep.mubr.f32.mxu0 0.0
      %8494 = vmatmul.mubr.f32.gmra.mxu0 %v8291
      %v8495 = vpop.f32.mrf.mxu0
      %v8496 = vadd.f32 0.0, %v8495
      %v8497 = vpop.f32.mrf.mxu0
      %8498 = vmatprep.mubr.f32.mxu0 0.0
      %8499 = vmatmul.mubr.f32.gmra.mxu0 %v8294
      %v8500 = vpop.f32.mrf.mxu0
      %v8501 = vadd.f32 0.0, %v8500
      %v8502 = vpop.f32.mrf.mxu0
      %8503 = vmatprep.mubr.f32.mxu0 0.0
      %8504 = vmatmul.mubr.f32.gmra.mxu0 %v8297
      %v8505 = vpop.f32.mrf.mxu0
      %v8506 = vadd.f32 0.0, %v8505
      %v8507 = vpop.f32.mrf.mxu0
      %8508 = vmatprep.mubr.f32.mxu0 0.0
      %8509 = vmatmul.mubr.f32.gmra.mxu0 %v8300
      %v8510 = vpop.f32.mrf.mxu0
      %v8511 = vadd.f32 0.0, %v8510
      %v8512 = vpop.f32.mrf.mxu0
      %8513 = vmatprep.mubr.f32.mxu0 0.0
      %8514 = vmatmul.mubr.f32.gmra.mxu0 %v8303
      %v8515 = vpop.f32.mrf.mxu0
      %v8516 = vadd.f32 0.0, %v8515
      %v8517 = vpop.f32.mrf.mxu0
      %8518 = vmatprep.mubr.f32.mxu0 0.0
      %8519 = vmatmul.mubr.f32.gmra.mxu0 %v8306
      %v8520 = vpop.f32.mrf.mxu0
      %v8521 = vadd.f32 0.0, %v8520
      %v8522 = vpop.f32.mrf.mxu0
      %8523 = vmatprep.mubr.f32.mxu0 0.0
      %8524 = vmatmul.mubr.f32.gmra.mxu0 %v8309
      %v8525 = vpop.f32.mrf.mxu0
      %v8526 = vadd.f32 0.0, %v8525
      %v8527 = vpop.f32.mrf.mxu0
      %8528 = vmatprep.mubr.f32.mxu0 0.0
      %8529 = vmatmul.mubr.f32.gmra.mxu0 %v8312
      %v8530 = vpop.f32.mrf.mxu0
      %v8531 = vadd.f32 0.0, %v8530
      %v8532 = vpop.f32.mrf.mxu0
      %8533 = vmatprep.mubr.f32.mxu0 0.0
      %8534 = vmatmul.mubr.f32.gmra.mxu0 %v8315
      %v8535 = vpop.f32.mrf.mxu0
      %v8536 = vadd.f32 0.0, %v8535
      %v8537 = vpop.f32.mrf.mxu0
      %8538 = vmatprep.mubr.f32.mxu0 0.0
      %8539 = vmatmul.mubr.f32.gmra.mxu0 %v8318
      %v8540 = vpop.f32.mrf.mxu0
      %v8541 = vadd.f32 0.0, %v8540
      %v8542 = vpop.f32.mrf.mxu0
      %8543 = vmatprep.mubr.f32.mxu0 0.0
      %8544 = vmatmul.mubr.f32.gmra.mxu0 %v8321
      %v8545 = vpop.f32.mrf.mxu0
      %v8546 = vadd.f32 0.0, %v8545
      %v8547 = vpop.f32.mrf.mxu0
      %8548 = vmatprep.mubr.f32.mxu0 0.0
      %8549 = vmatmul.mubr.f32.gmra.mxu0 %v8324
      %v8550 = vpop.f32.mrf.mxu0
      %v8551 = vadd.f32 0.0, %v8550
      %v8552 = vpop.f32.mrf.mxu0
      %8553 = vmatprep.mubr.f32.mxu0 0.0
      %8554 = vmatmul.mubr.f32.gmra.mxu0 %v8327
      %v8555 = vpop.f32.mrf.mxu0
      %v8556 = vadd.f32 0.0, %v8555
      %v8557 = vpop.f32.mrf.mxu0
      %8558 = vmatprep.mubr.f32.mxu0 0.0
      %8559 = vmatmul.mubr.f32.gmra.mxu0 %v8330
      %v8560 = vpop.f32.mrf.mxu0
      %v8561 = vadd.f32 0.0, %v8560
      %v8562 = vpop.f32.mrf.mxu0
      %8563 = vmatprep.mubr.f32.mxu0 0.0
      %8564 = vmatmul.mubr.f32.gmra.mxu0 %v8333
      %v8565 = vpop.f32.mrf.mxu0
      %v8566 = vadd.f32 0.0, %v8565
      %v8567 = vpop.f32.mrf.mxu0
      %8568 = vmatprep.mubr.f32.mxu0 0.0
      %8569 = vmatmul.mubr.f32.gmra.mxu0 %v8336
      %v8570 = vpop.f32.mrf.mxu0
      %v8571 = vadd.f32 0.0, %v8570
      %v8572 = vpop.f32.mrf.mxu0
      %8573 = vmatprep.mubr.f32.mxu0 0.0
      %8574 = vmatmul.mubr.f32.gmra.mxu0 %v8339
      %v8575 = vpop.f32.mrf.mxu0
      %v8576 = vadd.f32 0.0, %v8575
      %v8577 = vpop.f32.mrf.mxu0
      %8578 = vmatprep.mubr.f32.mxu0 0.0
      %8579 = vmatmul.mubr.f32.gmra.mxu0 %v8342
      %v8580 = vpop.f32.mrf.mxu0
      %v8581 = vadd.f32 0.0, %v8580
      %v8582 = vpop.f32.mrf.mxu0
      %8583 = vmatprep.mubr.f32.mxu0 0.0
      %8584 = vmatmul.mubr.f32.gmra.mxu0 %v8345
      %v8585 = vpop.f32.mrf.mxu0
      %v8586 = vadd.f32 0.0, %v8585
      %v8587 = vpop.f32.mrf.mxu0
      %8588 = vmatprep.mubr.f32.mxu0 0.0
      %8589 = vmatmul.mubr.f32.gmra.mxu0 %v8348
      %v8590 = vpop.f32.mrf.mxu0
      %v8591 = vadd.f32 0.0, %v8590
      %v8592 = vpop.f32.mrf.mxu0
      %8593 = vmatprep.mubr.f32.mxu0 0.0
      %8594 = vmatmul.mubr.f32.gmra.mxu0 %v8351
      %v8595 = vpop.f32.mrf.mxu0
      %v8596 = vadd.f32 0.0, %v8595
      %v8597 = vpop.f32.mrf.mxu0
      %8598 = vmatprep.mubr.f32.mxu0 0.0
      %8599 = vmatmul.mubr.f32.gmra.mxu0 %v8354
      %v8600 = vpop.f32.mrf.mxu0
      %v8601 = vadd.f32 0.0, %v8600
      %v8602 = vpop.f32.mrf.mxu0
      %8603 = vmatprep.mubr.f32.mxu0 0.0
      %8604 = vmatmul.mubr.f32.gmra.mxu0 %v8357
      %v8605 = vpop.f32.mrf.mxu0
      %v8606 = vadd.f32 0.0, %v8605
      %v8607 = vpop.f32.mrf.mxu0
      %8608 = vmatprep.mubr.f32.mxu0 0.0
      %8609 = vmatmul.mubr.f32.gmra.mxu0 %v8360
      %v8610 = vpop.f32.mrf.mxu0
      %v8611 = vadd.f32 0.0, %v8610
      %v8612 = vpop.f32.mrf.mxu0
      %8613 = vmatprep.mubr.f32.mxu0 0.0
      %8614 = vmatmul.mubr.f32.gmra.mxu0 %v8363
      %v8615 = vpop.f32.mrf.mxu0
      %v8616 = vadd.f32 0.0, %v8615
      %v8617 = vpop.f32.mrf.mxu0
      %8618 = vmatprep.mubr.f32.mxu0 0.0
      %8619 = vmatmul.mubr.f32.gmra.mxu0 %v8366
      %v8620 = vpop.f32.mrf.mxu0
      %v8621 = vadd.f32 0.0, %v8620
      %v8622 = vpop.f32.mrf.mxu0
      %8623 = vmatprep.mubr.f32.mxu0 0.0
      %8624 = vmatmul.mubr.f32.gmra.mxu0 %v8369
      %v8625 = vpop.f32.mrf.mxu0
      %v8626 = vadd.f32 0.0, %v8625
      %v8627 = vpop.f32.mrf.mxu0
      %8628 = vmatprep.mubr.f32.mxu0 0.0
      %8629 = vmatmul.mubr.f32.gmra.mxu0 %v8372
      %v8630 = vpop.f32.mrf.mxu0
      %v8631 = vadd.f32 0.0, %v8630
      %v8632 = vpop.f32.mrf.mxu0
      %8633 = vmatprep.mubr.f32.mxu0 0.0
      %8634 = vmatmul.mubr.f32.gmra.mxu0 %v8375
      %v8635 = vpop.f32.mrf.mxu0
      %v8636 = vadd.f32 0.0, %v8635
      %v8637 = vpop.f32.mrf.mxu0
      %8638 = vmatprep.mubr.f32.mxu0 0.0
      %8639 = vmatmul.mubr.f32.gmra.mxu0 %v8378
      %v8640 = vpop.f32.mrf.mxu0
      %v8641 = vadd.f32 0.0, %v8640
      %v8642 = vpop.f32.mrf.mxu0
      %8643 = vmatprep.mubr.f32.mxu0 0.0
      %8644 = vmatmul.mubr.f32.gmra.mxu0 %v8381
      %v8645 = vpop.f32.mrf.mxu0
      %v8646 = vadd.f32 0.0, %v8645
      %v8647 = vpop.f32.mrf.mxu0
      %8648 = vmatprep.mubr.f32.mxu0 0.0
      %8649 = vmatmul.mubr.f32.gmra.mxu0 %v8384
      %v8650 = vpop.f32.mrf.mxu0
      %v8651 = vadd.f32 0.0, %v8650
      %v8652 = vpop.f32.mrf.mxu0
      %8653 = vmatprep.mubr.f32.mxu0 0.0
      %8654 = vmatmul.mubr.f32.gmra.mxu0 %v8387
      %v8655 = vpop.f32.mrf.mxu0
      %v8656 = vadd.f32 0.0, %v8655
      %v8657 = vpop.f32.mrf.mxu0
      %8658 = vdwg.mxu0
      %v8659 = vadd.f32 %v8179, %v8456
      %v8660 = vadd.f32 %v8180, %v8461
      %v8661 = vadd.f32 %v8181, %v8466
      %v8662 = vadd.f32 %v8182, %v8471
      %v8663 = vadd.f32 %v8183, %v8476
      %v8664 = vadd.f32 %v8184, %v8481
      %v8665 = vadd.f32 %v8185, %v8486
      %v8666 = vadd.f32 %v8186, %v8491
      %v8667 = vadd.f32 %v8187, %v8496
      %v8668 = vadd.f32 %v8188, %v8501
      %v8669 = vadd.f32 %v8189, %v8506
      %v8670 = vadd.f32 %v8190, %v8511
      %v8671 = vadd.f32 %v8191, %v8516
      %v8672 = vadd.f32 %v8192, %v8521
      %v8673 = vadd.f32 %v8193, %v8526
      %v8674 = vadd.f32 %v8194, %v8531
      %v8675 = vadd.f32 %v8195, %v8536
      %v8676 = vadd.f32 %v8196, %v8541
      %v8677 = vadd.f32 %v8197, %v8546
      %v8678 = vadd.f32 %v8198, %v8551
      %v8679 = vadd.f32 %v8199, %v8556
      %v8680 = vadd.f32 %v8200, %v8561
      %v8681 = vadd.f32 %v8201, %v8566
      %v8682 = vadd.f32 %v8202, %v8571
      %v8683 = vadd.f32 %v8203, %v8576
      %v8684 = vadd.f32 %v8204, %v8581
      %v8685 = vadd.f32 %v8205, %v8586
      %v8686 = vadd.f32 %v8206, %v8591
      %v8687 = vadd.f32 %v8207, %v8596
      %v8688 = vadd.f32 %v8208, %v8601
      %v8689 = vadd.f32 %v8209, %v8606
      %v8690 = vadd.f32 %v8210, %v8611
      %v8691 = vadd.f32 %v8211, %v8616
      %v8692 = vadd.f32 %v8212, %v8621
      %v8693 = vadd.f32 %v8213, %v8626
      %v8694 = vadd.f32 %v8214, %v8631
      %v8695 = vadd.f32 %v8215, %v8636
      %v8696 = vadd.f32 %v8216, %v8641
      %v8697 = vadd.f32 %v8217, %v8646
      %v8698 = vadd.f32 %v8218, %v8651
      %v8699 = vadd.f32 %v8219, %v8656
      %v8700 = vld [vmem:[#allocation2 + $0x2b] sm:$0xff]
      %v8701 = vld [vmem:[#allocation2 + $0x33] sm:$0xff]
      %v8702 = vld [vmem:[#allocation2 + $0x3b] sm:$0xff]
      %v8703 = vld [vmem:[#allocation2 + $0x43] sm:$0xff]
      %v8704 = vld [vmem:[#allocation2 + $0x4b] sm:$0xff]
      %v8705 = vld [vmem:[#allocation2 + $0x53] sm:$0xff]
      %v8706 = vld [vmem:[#allocation2 + $0x5b] sm:$0xff]
      %v8707 = vld [vmem:[#allocation2 + $0x63] sm:$0xff]
      %v8708 = vld [vmem:[#allocation2 + $0x6b] sm:$0xff]
      %v8709 = vld [vmem:[#allocation2 + $0x73] sm:$0xff]
      %v8710 = vld [vmem:[#allocation2 + $0x7b] sm:$0xff]
      %v8711 = vld [vmem:[#allocation2 + $0x83] sm:$0xff]
      %v8712 = vld [vmem:[#allocation2 + $0x8b] sm:$0xff]
      %v8713 = vld [vmem:[#allocation2 + $0x93] sm:$0xff]
      %v8714 = vld [vmem:[#allocation2 + $0x9b] sm:$0xff]
      %v8715 = vld [vmem:[#allocation2 + $0xa3] sm:$0xff]
      %v8716 = vld [vmem:[#allocation2 + $0xab] sm:$0xff]
      %v8717 = vld [vmem:[#allocation2 + $0xb3] sm:$0xff]
      %v8718 = vld [vmem:[#allocation2 + $0xbb] sm:$0xff]
      %v8719 = vld [vmem:[#allocation2 + $0xc3] sm:$0xff]
      %v8720 = vld [vmem:[#allocation2 + $0xcb] sm:$0xff]
      %v8721 = vld [vmem:[#allocation2 + $0xd3] sm:$0xff]
      %v8722 = vld [vmem:[#allocation2 + $0xdb] sm:$0xff]
      %v8723 = vld [vmem:[#allocation2 + $0xe3] sm:$0xff]
      %v8724 = vld [vmem:[#allocation2 + $0xeb] sm:$0xff]
      %v8725 = vld [vmem:[#allocation2 + $0xf3] sm:$0xff]
      %v8726 = vld [vmem:[#allocation2 + $0xfb] sm:$0xff]
      %v8727 = vld [vmem:[#allocation2 + $0x103] sm:$0xff]
      %v8728 = vld [vmem:[#allocation2 + $0x10b] sm:$0xff]
      %v8729 = vld [vmem:[#allocation2 + $0x113] sm:$0xff]
      %v8730 = vld [vmem:[#allocation2 + $0x11b] sm:$0xff]
      %v8731 = vld [vmem:[#allocation2 + $0x123] sm:$0xff]
      %v8732 = vld [vmem:[#allocation2 + $0x12b] sm:$0xff]
      %v8733 = vld [vmem:[#allocation2 + $0x133] sm:$0xff]
      %v8734 = vld [vmem:[#allocation2 + $0x13b] sm:$0xff]
      %v8735 = vld [vmem:[#allocation2 + $0x143] sm:$0xff]
      %v8736 = vld [vmem:[#allocation2 + $0x14b] sm:$0xff]
      %v8737 = vld [vmem:[#allocation2 + $0x153] sm:$0xff]
      %v8738 = vld [vmem:[#allocation2 + $0x15b] sm:$0xff]
      %v8739 = vld [vmem:[#allocation2 + $0x163] sm:$0xff]
      %v8740 = vld [vmem:[#allocation2 + $0x16b] sm:$0xf]
      %s8741 = scalar_lea.vmem %s3, 256
      %v8742 = vld [vmem:[%s8741] sm:$0xff]
      %v8743 = vld [vmem:[%s8741 + $0x8] sm:$0xff]
      %v8744 = vld [vmem:[%s8741 + $0x10] sm:$0xff]
      %v8745 = vld [vmem:[%s8741 + $0x18] sm:$0xff]
      %v8747 = vsel %vm4894, %v8700, 0
      %v8750 = vsel %vm4894, %v8701, 0
      %v8753 = vsel %vm4894, %v8702, 0
      %v8756 = vsel %vm4894, %v8703, 0
      %v8759 = vsel %vm4894, %v8704, 0
      %v8762 = vsel %vm4894, %v8705, 0
      %v8765 = vsel %vm4894, %v8706, 0
      %v8768 = vsel %vm4894, %v8707, 0
      %v8771 = vsel %vm4894, %v8708, 0
      %v8774 = vsel %vm4894, %v8709, 0
      %v8777 = vsel %vm4894, %v8710, 0
      %v8780 = vsel %vm4894, %v8711, 0
      %v8783 = vsel %vm4894, %v8712, 0
      %v8786 = vsel %vm4894, %v8713, 0
      %v8789 = vsel %vm4894, %v8714, 0
      %v8792 = vsel %vm4894, %v8715, 0
      %v8795 = vsel %vm4894, %v8716, 0
      %v8798 = vsel %vm4894, %v8717, 0
      %v8801 = vsel %vm4894, %v8718, 0
      %v8804 = vsel %vm4894, %v8719, 0
      %v8807 = vsel %vm4894, %v8720, 0
      %v8810 = vsel %vm4894, %v8721, 0
      %v8813 = vsel %vm4894, %v8722, 0
      %v8816 = vsel %vm4894, %v8723, 0
      %v8819 = vsel %vm4894, %v8724, 0
      %v8822 = vsel %vm4894, %v8725, 0
      %v8825 = vsel %vm4894, %v8726, 0
      %v8828 = vsel %vm4894, %v8727, 0
      %v8831 = vsel %vm4894, %v8728, 0
      %v8834 = vsel %vm4894, %v8729, 0
      %v8837 = vsel %vm4894, %v8730, 0
      %v8840 = vsel %vm4894, %v8731, 0
      %v8843 = vsel %vm4894, %v8732, 0
      %v8846 = vsel %vm4894, %v8733, 0
      %v8849 = vsel %vm4894, %v8734, 0
      %v8852 = vsel %vm4894, %v8735, 0
      %v8855 = vsel %vm4894, %v8736, 0
      %v8858 = vsel %vm4894, %v8737, 0
      %v8861 = vsel %vm4894, %v8738, 0
      %v8864 = vsel %vm4894, %v8739, 0
      %v8867 = vsel %vm4894, %v8740, 0
      %8869 = vmatprep.subr.mxu0 0.0
      %8870 = vmatpush1.msra.mxu0 0.0
      %8871 = vmatprep.subr.mxu0 0.0
      %8872 = vmatpush1.msra.mxu0 0.0
      %8873 = vmatprep.subr.mxu0 0.0
      %8874 = vmatpush1.msra.mxu0 0.0
      %8875 = vmatprep.subr.mxu0 0.0
      %8876 = vmatpush1.msra.mxu0 0.0
      %8877 = vmatprep.subr.mxu0 0.0
      %8878 = vmatpush1.msra.mxu0 0.0
      %8879 = vmatprep.subr.mxu0 0.0
      %8880 = vmatpush1.msra.mxu0 0.0
      %8881 = vmatprep.subr.mxu0 0.0
      %8882 = vmatpush1.msra.mxu0 0.0
      %8883 = vmatprep.subr.mxu0 0.0
      %8884 = vmatpush1.msra.mxu0 0.0
      %8885 = vmatprep.subr.mxu0 0.0
      %8886 = vmatpush1.msra.mxu0 0.0
      %8887 = vmatprep.subr.mxu0 0.0
      %8888 = vmatpush1.msra.mxu0 0.0
      %8889 = vmatprep.subr.mxu0 0.0
      %8890 = vmatpush1.msra.mxu0 0.0
      %8891 = vmatprep.subr.mxu0 0.0
      %8892 = vmatpush1.msra.mxu0 0.0
      %8893 = vmatprep.subr.mxu0 0.0
      %8894 = vmatpush1.msra.mxu0 %v8745
      %8895 = vmatprep.subr.mxu0 0.0
      %8896 = vmatpush1.msra.mxu0 %v8744
      %8897 = vmatprep.subr.mxu0 0.0
      %8898 = vmatpush1.msra.mxu0 %v8743
      %8899 = vmatprep.subr.mxu0 0.0
      %8900 = vmatpush1.msra.mxu0 %v8742
      %8901 = vmatprep.subr.mxu0 0.0
      %8902 = vmatpush2.msra.mxu0 0.0
      %8903 = vmatprep.subr.mxu0 0.0
      %8904 = vmatpush2.msra.mxu0 0.0
      %8905 = vmatprep.subr.mxu0 0.0
      %8906 = vmatpush2.msra.mxu0 0.0
      %8907 = vmatprep.subr.mxu0 0.0
      %8908 = vmatpush2.msra.mxu0 0.0
      %8909 = vmatprep.subr.mxu0 0.0
      %8910 = vmatpush2.msra.mxu0 0.0
      %8911 = vmatprep.subr.mxu0 0.0
      %8912 = vmatpush2.msra.mxu0 0.0
      %8913 = vmatprep.subr.mxu0 0.0
      %8914 = vmatpush2.msra.mxu0 0.0
      %8915 = vmatprep.subr.mxu0 0.0
      %8916 = vmatpush2.msra.mxu0 0.0
      %8917 = vmatprep.subr.mxu0 0.0
      %8918 = vmatpush2.msra.mxu0 0.0
      %8919 = vmatprep.subr.mxu0 0.0
      %8920 = vmatpush2.msra.mxu0 0.0
      %8921 = vmatprep.subr.mxu0 0.0
      %8922 = vmatpush2.msra.mxu0 0.0
      %8923 = vmatprep.subr.mxu0 0.0
      %8924 = vmatpush2.msra.mxu0 0.0
      %8925 = vmatprep.subr.mxu0 0.0
      %8926 = vmatpush2.msra.mxu0 0.0
      %8927 = vmatprep.subr.mxu0 0.0
      %8928 = vmatpush2.msra.mxu0 0.0
      %8929 = vmatprep.subr.mxu0 0.0
      %8930 = vmatpush2.msra.mxu0 0.0
      %8931 = vmatprep.subr.mxu0 0.0
      %8932 = vmatpush2.msra.mxu0 0.0
      %8933 = vmatprep.mubr.f32.mxu0 0.0
      %8934 = vmatmul.mubr.f32.gmra.mxu0 %v8747
      %v8935 = vpop.f32.mrf.mxu0
      %v8936 = vadd.f32 0.0, %v8935
      %v8937 = vpop.f32.mrf.mxu0
      %8938 = vmatprep.mubr.f32.mxu0 0.0
      %8939 = vmatmul.mubr.f32.gmra.mxu0 %v8750
      %v8940 = vpop.f32.mrf.mxu0
      %v8941 = vadd.f32 0.0, %v8940
      %v8942 = vpop.f32.mrf.mxu0
      %8943 = vmatprep.mubr.f32.mxu0 0.0
      %8944 = vmatmul.mubr.f32.gmra.mxu0 %v8753
      %v8945 = vpop.f32.mrf.mxu0
      %v8946 = vadd.f32 0.0, %v8945
      %v8947 = vpop.f32.mrf.mxu0
      %8948 = vmatprep.mubr.f32.mxu0 0.0
      %8949 = vmatmul.mubr.f32.gmra.mxu0 %v8756
      %v8950 = vpop.f32.mrf.mxu0
      %v8951 = vadd.f32 0.0, %v8950
      %v8952 = vpop.f32.mrf.mxu0
      %8953 = vmatprep.mubr.f32.mxu0 0.0
      %8954 = vmatmul.mubr.f32.gmra.mxu0 %v8759
      %v8955 = vpop.f32.mrf.mxu0
      %v8956 = vadd.f32 0.0, %v8955
      %v8957 = vpop.f32.mrf.mxu0
      %8958 = vmatprep.mubr.f32.mxu0 0.0
      %8959 = vmatmul.mubr.f32.gmra.mxu0 %v8762
      %v8960 = vpop.f32.mrf.mxu0
      %v8961 = vadd.f32 0.0, %v8960
      %v8962 = vpop.f32.mrf.mxu0
      %8963 = vmatprep.mubr.f32.mxu0 0.0
      %8964 = vmatmul.mubr.f32.gmra.mxu0 %v8765
      %v8965 = vpop.f32.mrf.mxu0
      %v8966 = vadd.f32 0.0, %v8965
      %v8967 = vpop.f32.mrf.mxu0
      %8968 = vmatprep.mubr.f32.mxu0 0.0
      %8969 = vmatmul.mubr.f32.gmra.mxu0 %v8768
      %v8970 = vpop.f32.mrf.mxu0
      %v8971 = vadd.f32 0.0, %v8970
      %v8972 = vpop.f32.mrf.mxu0
      %8973 = vmatprep.mubr.f32.mxu0 0.0
      %8974 = vmatmul.mubr.f32.gmra.mxu0 %v8771
      %v8975 = vpop.f32.mrf.mxu0
      %v8976 = vadd.f32 0.0, %v8975
      %v8977 = vpop.f32.mrf.mxu0
      %8978 = vmatprep.mubr.f32.mxu0 0.0
      %8979 = vmatmul.mubr.f32.gmra.mxu0 %v8774
      %v8980 = vpop.f32.mrf.mxu0
      %v8981 = vadd.f32 0.0, %v8980
      %v8982 = vpop.f32.mrf.mxu0
      %8983 = vmatprep.mubr.f32.mxu0 0.0
      %8984 = vmatmul.mubr.f32.gmra.mxu0 %v8777
      %v8985 = vpop.f32.mrf.mxu0
      %v8986 = vadd.f32 0.0, %v8985
      %v8987 = vpop.f32.mrf.mxu0
      %8988 = vmatprep.mubr.f32.mxu0 0.0
      %8989 = vmatmul.mubr.f32.gmra.mxu0 %v8780
      %v8990 = vpop.f32.mrf.mxu0
      %v8991 = vadd.f32 0.0, %v8990
      %v8992 = vpop.f32.mrf.mxu0
      %8993 = vmatprep.mubr.f32.mxu0 0.0
      %8994 = vmatmul.mubr.f32.gmra.mxu0 %v8783
      %v8995 = vpop.f32.mrf.mxu0
      %v8996 = vadd.f32 0.0, %v8995
      %v8997 = vpop.f32.mrf.mxu0
      %8998 = vmatprep.mubr.f32.mxu0 0.0
      %8999 = vmatmul.mubr.f32.gmra.mxu0 %v8786
      %v9000 = vpop.f32.mrf.mxu0
      %v9001 = vadd.f32 0.0, %v9000
      %v9002 = vpop.f32.mrf.mxu0
      %9003 = vmatprep.mubr.f32.mxu0 0.0
      %9004 = vmatmul.mubr.f32.gmra.mxu0 %v8789
      %v9005 = vpop.f32.mrf.mxu0
      %v9006 = vadd.f32 0.0, %v9005
      %v9007 = vpop.f32.mrf.mxu0
      %9008 = vmatprep.mubr.f32.mxu0 0.0
      %9009 = vmatmul.mubr.f32.gmra.mxu0 %v8792
      %v9010 = vpop.f32.mrf.mxu0
      %v9011 = vadd.f32 0.0, %v9010
      %v9012 = vpop.f32.mrf.mxu0
      %9013 = vmatprep.mubr.f32.mxu0 0.0
      %9014 = vmatmul.mubr.f32.gmra.mxu0 %v8795
      %v9015 = vpop.f32.mrf.mxu0
      %v9016 = vadd.f32 0.0, %v9015
      %v9017 = vpop.f32.mrf.mxu0
      %9018 = vmatprep.mubr.f32.mxu0 0.0
      %9019 = vmatmul.mubr.f32.gmra.mxu0 %v8798
      %v9020 = vpop.f32.mrf.mxu0
      %v9021 = vadd.f32 0.0, %v9020
      %v9022 = vpop.f32.mrf.mxu0
      %9023 = vmatprep.mubr.f32.mxu0 0.0
      %9024 = vmatmul.mubr.f32.gmra.mxu0 %v8801
      %v9025 = vpop.f32.mrf.mxu0
      %v9026 = vadd.f32 0.0, %v9025
      %v9027 = vpop.f32.mrf.mxu0
      %9028 = vmatprep.mubr.f32.mxu0 0.0
      %9029 = vmatmul.mubr.f32.gmra.mxu0 %v8804
      %v9030 = vpop.f32.mrf.mxu0
      %v9031 = vadd.f32 0.0, %v9030
      %v9032 = vpop.f32.mrf.mxu0
      %9033 = vmatprep.mubr.f32.mxu0 0.0
      %9034 = vmatmul.mubr.f32.gmra.mxu0 %v8807
      %v9035 = vpop.f32.mrf.mxu0
      %v9036 = vadd.f32 0.0, %v9035
      %v9037 = vpop.f32.mrf.mxu0
      %9038 = vmatprep.mubr.f32.mxu0 0.0
      %9039 = vmatmul.mubr.f32.gmra.mxu0 %v8810
      %v9040 = vpop.f32.mrf.mxu0
      %v9041 = vadd.f32 0.0, %v9040
      %v9042 = vpop.f32.mrf.mxu0
      %9043 = vmatprep.mubr.f32.mxu0 0.0
      %9044 = vmatmul.mubr.f32.gmra.mxu0 %v8813
      %v9045 = vpop.f32.mrf.mxu0
      %v9046 = vadd.f32 0.0, %v9045
      %v9047 = vpop.f32.mrf.mxu0
      %9048 = vmatprep.mubr.f32.mxu0 0.0
      %9049 = vmatmul.mubr.f32.gmra.mxu0 %v8816
      %v9050 = vpop.f32.mrf.mxu0
      %v9051 = vadd.f32 0.0, %v9050
      %v9052 = vpop.f32.mrf.mxu0
      %9053 = vmatprep.mubr.f32.mxu0 0.0
      %9054 = vmatmul.mubr.f32.gmra.mxu0 %v8819
      %v9055 = vpop.f32.mrf.mxu0
      %v9056 = vadd.f32 0.0, %v9055
      %v9057 = vpop.f32.mrf.mxu0
      %9058 = vmatprep.mubr.f32.mxu0 0.0
      %9059 = vmatmul.mubr.f32.gmra.mxu0 %v8822
      %v9060 = vpop.f32.mrf.mxu0
      %v9061 = vadd.f32 0.0, %v9060
      %v9062 = vpop.f32.mrf.mxu0
      %9063 = vmatprep.mubr.f32.mxu0 0.0
      %9064 = vmatmul.mubr.f32.gmra.mxu0 %v8825
      %v9065 = vpop.f32.mrf.mxu0
      %v9066 = vadd.f32 0.0, %v9065
      %v9067 = vpop.f32.mrf.mxu0
      %9068 = vmatprep.mubr.f32.mxu0 0.0
      %9069 = vmatmul.mubr.f32.gmra.mxu0 %v8828
      %v9070 = vpop.f32.mrf.mxu0
      %v9071 = vadd.f32 0.0, %v9070
      %v9072 = vpop.f32.mrf.mxu0
      %9073 = vmatprep.mubr.f32.mxu0 0.0
      %9074 = vmatmul.mubr.f32.gmra.mxu0 %v8831
      %v9075 = vpop.f32.mrf.mxu0
      %v9076 = vadd.f32 0.0, %v9075
      %v9077 = vpop.f32.mrf.mxu0
      %9078 = vmatprep.mubr.f32.mxu0 0.0
      %9079 = vmatmul.mubr.f32.gmra.mxu0 %v8834
      %v9080 = vpop.f32.mrf.mxu0
      %v9081 = vadd.f32 0.0, %v9080
      %v9082 = vpop.f32.mrf.mxu0
      %9083 = vmatprep.mubr.f32.mxu0 0.0
      %9084 = vmatmul.mubr.f32.gmra.mxu0 %v8837
      %v9085 = vpop.f32.mrf.mxu0
      %v9086 = vadd.f32 0.0, %v9085
      %v9087 = vpop.f32.mrf.mxu0
      %9088 = vmatprep.mubr.f32.mxu0 0.0
      %9089 = vmatmul.mubr.f32.gmra.mxu0 %v8840
      %v9090 = vpop.f32.mrf.mxu0
      %v9091 = vadd.f32 0.0, %v9090
      %v9092 = vpop.f32.mrf.mxu0
      %9093 = vmatprep.mubr.f32.mxu0 0.0
      %9094 = vmatmul.mubr.f32.gmra.mxu0 %v8843
      %v9095 = vpop.f32.mrf.mxu0
      %v9096 = vadd.f32 0.0, %v9095
      %v9097 = vpop.f32.mrf.mxu0
      %9098 = vmatprep.mubr.f32.mxu0 0.0
      %9099 = vmatmul.mubr.f32.gmra.mxu0 %v8846
      %v9100 = vpop.f32.mrf.mxu0
      %v9101 = vadd.f32 0.0, %v9100
      %v9102 = vpop.f32.mrf.mxu0
      %9103 = vmatprep.mubr.f32.mxu0 0.0
      %9104 = vmatmul.mubr.f32.gmra.mxu0 %v8849
      %v9105 = vpop.f32.mrf.mxu0
      %v9106 = vadd.f32 0.0, %v9105
      %v9107 = vpop.f32.mrf.mxu0
      %9108 = vmatprep.mubr.f32.mxu0 0.0
      %9109 = vmatmul.mubr.f32.gmra.mxu0 %v8852
      %v9110 = vpop.f32.mrf.mxu0
      %v9111 = vadd.f32 0.0, %v9110
      %v9112 = vpop.f32.mrf.mxu0
      %9113 = vmatprep.mubr.f32.mxu0 0.0
      %9114 = vmatmul.mubr.f32.gmra.mxu0 %v8855
      %v9115 = vpop.f32.mrf.mxu0
      %v9116 = vadd.f32 0.0, %v9115
      %v9117 = vpop.f32.mrf.mxu0
      %9118 = vmatprep.mubr.f32.mxu0 0.0
      %9119 = vmatmul.mubr.f32.gmra.mxu0 %v8858
      %v9120 = vpop.f32.mrf.mxu0
      %v9121 = vadd.f32 0.0, %v9120
      %v9122 = vpop.f32.mrf.mxu0
      %9123 = vmatprep.mubr.f32.mxu0 0.0
      %9124 = vmatmul.mubr.f32.gmra.mxu0 %v8861
      %v9125 = vpop.f32.mrf.mxu0
      %v9126 = vadd.f32 0.0, %v9125
      %v9127 = vpop.f32.mrf.mxu0
      %9128 = vmatprep.mubr.f32.mxu0 0.0
      %9129 = vmatmul.mubr.f32.gmra.mxu0 %v8864
      %v9130 = vpop.f32.mrf.mxu0
      %v9131 = vadd.f32 0.0, %v9130
      %v9132 = vpop.f32.mrf.mxu0
      %9133 = vmatprep.mubr.f32.mxu0 0.0
      %9134 = vmatmul.mubr.f32.gmra.mxu0 %v8867
      %v9135 = vpop.f32.mrf.mxu0
      %v9136 = vadd.f32 0.0, %v9135
      %v9137 = vpop.f32.mrf.mxu0
      %9138 = vdwg.mxu0
      %v9139 = vadd.f32 %v8659, %v8936
      %v9140 = vadd.f32 %v8660, %v8941
      %v9141 = vadd.f32 %v8661, %v8946
      %v9142 = vadd.f32 %v8662, %v8951
      %v9143 = vadd.f32 %v8663, %v8956
      %v9144 = vadd.f32 %v8664, %v8961
      %v9145 = vadd.f32 %v8665, %v8966
      %v9146 = vadd.f32 %v8666, %v8971
      %v9147 = vadd.f32 %v8667, %v8976
      %v9148 = vadd.f32 %v8668, %v8981
      %v9149 = vadd.f32 %v8669, %v8986
      %v9150 = vadd.f32 %v8670, %v8991
      %v9151 = vadd.f32 %v8671, %v8996
      %v9152 = vadd.f32 %v8672, %v9001
      %v9153 = vadd.f32 %v8673, %v9006
      %v9154 = vadd.f32 %v8674, %v9011
      %v9155 = vadd.f32 %v8675, %v9016
      %v9156 = vadd.f32 %v8676, %v9021
      %v9157 = vadd.f32 %v8677, %v9026
      %v9158 = vadd.f32 %v8678, %v9031
      %v9159 = vadd.f32 %v8679, %v9036
      %v9160 = vadd.f32 %v8680, %v9041
      %v9161 = vadd.f32 %v8681, %v9046
      %v9162 = vadd.f32 %v8682, %v9051
      %v9163 = vadd.f32 %v8683, %v9056
      %v9164 = vadd.f32 %v8684, %v9061
      %v9165 = vadd.f32 %v8685, %v9066
      %v9166 = vadd.f32 %v8686, %v9071
      %v9167 = vadd.f32 %v8687, %v9076
      %v9168 = vadd.f32 %v8688, %v9081
      %v9169 = vadd.f32 %v8689, %v9086
      %v9170 = vadd.f32 %v8690, %v9091
      %v9171 = vadd.f32 %v8691, %v9096
      %v9172 = vadd.f32 %v8692, %v9101
      %v9173 = vadd.f32 %v8693, %v9106
      %v9174 = vadd.f32 %v8694, %v9111
      %v9175 = vadd.f32 %v8695, %v9116
      %v9176 = vadd.f32 %v8696, %v9121
      %v9177 = vadd.f32 %v8697, %v9126
      %v9178 = vadd.f32 %v8698, %v9131
      %v9179 = vadd.f32 %v8699, %v9136
      %v9180 = vld [vmem:[%s4] sm:$0x1]
      %v9182 = vlaneseq
      %v9183 = vshrl.u32 %v9182, 7
      %v9184 = vsub.s32 0, %v9183
      %v9185 = vrot.slane %v9180, %v9184
      %v9187 = vadd.f32 %v9139, %v9185
      %v9188 = vadd.f32 %v9140, %v9185
      %v9189 = vadd.f32 %v9141, %v9185
      %v9190 = vadd.f32 %v9142, %v9185
      %v9191 = vadd.f32 %v9143, %v9185
      %v9192 = vadd.f32 %v9144, %v9185
      %v9193 = vadd.f32 %v9145, %v9185
      %v9194 = vadd.f32 %v9146, %v9185
      %v9195 = vadd.f32 %v9147, %v9185
      %v9196 = vadd.f32 %v9148, %v9185
      %v9197 = vadd.f32 %v9149, %v9185
      %v9198 = vadd.f32 %v9150, %v9185
      %v9199 = vadd.f32 %v9151, %v9185
      %v9200 = vadd.f32 %v9152, %v9185
      %v9201 = vadd.f32 %v9153, %v9185
      %v9202 = vadd.f32 %v9154, %v9185
      %v9203 = vadd.f32 %v9155, %v9185
      %v9204 = vadd.f32 %v9156, %v9185
      %v9205 = vadd.f32 %v9157, %v9185
      %v9206 = vadd.f32 %v9158, %v9185
      %v9207 = vadd.f32 %v9159, %v9185
      %v9208 = vadd.f32 %v9160, %v9185
      %v9209 = vadd.f32 %v9161, %v9185
      %v9210 = vadd.f32 %v9162, %v9185
      %v9211 = vadd.f32 %v9163, %v9185
      %v9212 = vadd.f32 %v9164, %v9185
      %v9213 = vadd.f32 %v9165, %v9185
      %v9214 = vadd.f32 %v9166, %v9185
      %v9215 = vadd.f32 %v9167, %v9185
      %v9216 = vadd.f32 %v9168, %v9185
      %v9217 = vadd.f32 %v9169, %v9185
      %v9218 = vadd.f32 %v9170, %v9185
      %v9219 = vadd.f32 %v9171, %v9185
      %v9220 = vadd.f32 %v9172, %v9185
      %v9221 = vadd.f32 %v9173, %v9185
      %v9222 = vadd.f32 %v9174, %v9185
      %v9223 = vadd.f32 %v9175, %v9185
      %v9224 = vadd.f32 %v9176, %v9185
      %v9225 = vadd.f32 %v9177, %v9185
      %v9226 = vadd.f32 %v9178, %v9185
      %v9227 = vadd.f32 %v9179, %v9185
      %v9228 = vmax.f32 %v9187, 0.0
      %v9229 = vmax.f32 %v9188, 0.0
      %v9230 = vmax.f32 %v9189, 0.0
      %v9231 = vmax.f32 %v9190, 0.0
      %v9232 = vmax.f32 %v9191, 0.0
      %v9233 = vmax.f32 %v9192, 0.0
      %v9234 = vmax.f32 %v9193, 0.0
      %v9235 = vmax.f32 %v9194, 0.0
      %v9236 = vmax.f32 %v9195, 0.0
      %v9237 = vmax.f32 %v9196, 0.0
      %v9238 = vmax.f32 %v9197, 0.0
      %v9239 = vmax.f32 %v9198, 0.0
      %v9240 = vmax.f32 %v9199, 0.0
      %v9241 = vmax.f32 %v9200, 0.0
      %v9242 = vmax.f32 %v9201, 0.0
      %v9243 = vmax.f32 %v9202, 0.0
      %v9244 = vmax.f32 %v9203, 0.0
      %v9245 = vmax.f32 %v9204, 0.0
      %v9246 = vmax.f32 %v9205, 0.0
      %v9247 = vmax.f32 %v9206, 0.0
      %v9248 = vmax.f32 %v9207, 0.0
      %v9249 = vmax.f32 %v9208, 0.0
      %v9250 = vmax.f32 %v9209, 0.0
      %v9251 = vmax.f32 %v9210, 0.0
      %v9252 = vmax.f32 %v9211, 0.0
      %v9253 = vmax.f32 %v9212, 0.0
      %v9254 = vmax.f32 %v9213, 0.0
      %v9255 = vmax.f32 %v9214, 0.0
      %v9256 = vmax.f32 %v9215, 0.0
      %v9257 = vmax.f32 %v9216, 0.0
      %v9258 = vmax.f32 %v9217, 0.0
      %v9259 = vmax.f32 %v9218, 0.0
      %v9260 = vmax.f32 %v9219, 0.0
      %v9261 = vmax.f32 %v9220, 0.0
      %v9262 = vmax.f32 %v9221, 0.0
      %v9263 = vmax.f32 %v9222, 0.0
      %v9264 = vmax.f32 %v9223, 0.0
      %v9265 = vmax.f32 %v9224, 0.0
      %v9266 = vmax.f32 %v9225, 0.0
      %v9267 = vmax.f32 %v9226, 0.0
      %v9268 = vmax.f32 %v9227, 0.0
      %v9269 = vld [vmem:[%s6] sm:$0xff]
      %v9270 = vld [vmem:[%s6 + $0x8] sm:$0xff]
      %v9271 = vld [vmem:[%s6 + $0x10] sm:$0xff]
      %v9272 = vld [vmem:[%s6 + $0x18] sm:$0xff]
      %v9273 = vld [vmem:[%s6 + $0x20] sm:$0xff]
      %v9274 = vld [vmem:[%s6 + $0x28] sm:$0xff]
      %vm9275 = vcmask 556032
      %v9277 = vsel %vm9275, %v9271, 0
      %v9280 = vsel %vm9275, %v9274, 0
      %v9283 = vsel %vm488, %v9268, 0
      %9285 = vmatprep.subr.mxu0 0.0
      %9286 = vmatpush1.msra.mxu0 %v9243
      %9287 = vmatprep.subr.mxu0 0.0
      %9288 = vmatpush1.msra.mxu0 %v9242
      %9289 = vmatprep.subr.mxu0 0.0
      %9290 = vmatpush1.msra.mxu0 %v9241
      %9291 = vmatprep.subr.mxu0 0.0
      %9292 = vmatpush1.msra.mxu0 %v9240
      %9293 = vmatprep.subr.mxu0 0.0
      %9294 = vmatpush1.msra.mxu0 %v9239
      %9295 = vmatprep.subr.mxu0 0.0
      %9296 = vmatpush1.msra.mxu0 %v9238
      %9297 = vmatprep.subr.mxu0 0.0
      %9298 = vmatpush1.msra.mxu0 %v9237
      %9299 = vmatprep.subr.mxu0 0.0
      %9300 = vmatpush1.msra.mxu0 %v9236
      %9301 = vmatprep.subr.mxu0 0.0
      %9302 = vmatpush1.msra.mxu0 %v9235
      %9303 = vmatprep.subr.mxu0 0.0
      %9304 = vmatpush1.msra.mxu0 %v9234
      %9305 = vmatprep.subr.mxu0 0.0
      %9306 = vmatpush1.msra.mxu0 %v9233
      %9307 = vmatprep.subr.mxu0 0.0
      %9308 = vmatpush1.msra.mxu0 %v9232
      %9309 = vmatprep.subr.mxu0 0.0
      %9310 = vmatpush1.msra.mxu0 %v9231
      %9311 = vmatprep.subr.mxu0 0.0
      %9312 = vmatpush1.msra.mxu0 %v9230
      %9313 = vmatprep.subr.mxu0 0.0
      %9314 = vmatpush1.msra.mxu0 %v9229
      %9315 = vmatprep.subr.mxu0 0.0
      %9316 = vmatpush1.msra.mxu0 %v9228
      %9317 = vmatprep.subr.mxu0 0.0
      %9318 = vmatpush2.msra.mxu0 %v9259
      %9319 = vmatprep.subr.mxu0 0.0
      %9320 = vmatpush2.msra.mxu0 %v9258
      %9321 = vmatprep.subr.mxu0 0.0
      %9322 = vmatpush2.msra.mxu0 %v9257
      %9323 = vmatprep.subr.mxu0 0.0
      %9324 = vmatpush2.msra.mxu0 %v9256
      %9325 = vmatprep.subr.mxu0 0.0
      %9326 = vmatpush2.msra.mxu0 %v9255
      %9327 = vmatprep.subr.mxu0 0.0
      %9328 = vmatpush2.msra.mxu0 %v9254
      %9329 = vmatprep.subr.mxu0 0.0
      %9330 = vmatpush2.msra.mxu0 %v9253
      %9331 = vmatprep.subr.mxu0 0.0
      %9332 = vmatpush2.msra.mxu0 %v9252
      %9333 = vmatprep.subr.mxu0 0.0
      %9334 = vmatpush2.msra.mxu0 %v9251
      %9335 = vmatprep.subr.mxu0 0.0
      %9336 = vmatpush2.msra.mxu0 %v9250
      %9337 = vmatprep.subr.mxu0 0.0
      %9338 = vmatpush2.msra.mxu0 %v9249
      %9339 = vmatprep.subr.mxu0 0.0
      %9340 = vmatpush2.msra.mxu0 %v9248
      %9341 = vmatprep.subr.mxu0 0.0
      %9342 = vmatpush2.msra.mxu0 %v9247
      %9343 = vmatprep.subr.mxu0 0.0
      %9344 = vmatpush2.msra.mxu0 %v9246
      %9345 = vmatprep.subr.mxu0 0.0
      %9346 = vmatpush2.msra.mxu0 %v9245
      %9347 = vmatprep.subr.mxu0 0.0
      %9348 = vmatpush2.msra.mxu0 %v9244
      %9349 = vmatprep.mubr.f32.mxu0 %v9270
      %9350 = vmatmul.mubr.f32.gmra.mxu0 %v9269
      %v9351 = vpop.f32.mrf.mxu0
      %v9352 = vadd.f32 0.0, %v9351
      %v9353 = vpop.f32.mrf.mxu0
      %9354 = vmatprep.mubr.f32.mxu0 %v9273
      %9355 = vmatmul.mubr.f32.gmra.mxu0 %v9272
      %v9356 = vpop.f32.mrf.mxu0
      %v9357 = vadd.f32 0.0, %v9356
      %v9358 = vpop.f32.mrf.mxu0
      %9359 = vdwg.mxu0
      %9360 = vmatprep.subr.mxu0 0.0
      %9361 = vmatpush1.msra.mxu0 0.0
      %9362 = vmatprep.subr.mxu0 0.0
      %9363 = vmatpush1.msra.mxu0 0.0
      %9364 = vmatprep.subr.mxu0 0.0
      %9365 = vmatpush1.msra.mxu0 0.0
      %9366 = vmatprep.subr.mxu0 0.0
      %9367 = vmatpush1.msra.mxu0 0.0
      %9368 = vmatprep.subr.mxu0 0.0
      %9369 = vmatpush1.msra.mxu0 0.0
      %9370 = vmatprep.subr.mxu0 0.0
      %9371 = vmatpush1.msra.mxu0 0.0
      %9372 = vmatprep.subr.mxu0 0.0
      %9373 = vmatpush1.msra.mxu0 0.0
      %9374 = vmatprep.subr.mxu0 0.0
      %9375 = vmatpush1.msra.mxu0 %v9283
      %9376 = vmatprep.subr.mxu0 0.0
      %9377 = vmatpush1.msra.mxu0 %v9267
      %9378 = vmatprep.subr.mxu0 0.0
      %9379 = vmatpush1.msra.mxu0 %v9266
      %9380 = vmatprep.subr.mxu0 0.0
      %9381 = vmatpush1.msra.mxu0 %v9265
      %9382 = vmatprep.subr.mxu0 0.0
      %9383 = vmatpush1.msra.mxu0 %v9264
      %9384 = vmatprep.subr.mxu0 0.0
      %9385 = vmatpush1.msra.mxu0 %v9263
      %9386 = vmatprep.subr.mxu0 0.0
      %9387 = vmatpush1.msra.mxu0 %v9262
      %9388 = vmatprep.subr.mxu0 0.0
      %9389 = vmatpush1.msra.mxu0 %v9261
      %9390 = vmatprep.subr.mxu0 0.0
      %9391 = vmatpush1.msra.mxu0 %v9260
      %9392 = vmatprep.subr.mxu0 0.0
      %9393 = vmatpush2.msra.mxu0 0.0
      %9394 = vmatprep.subr.mxu0 0.0
      %9395 = vmatpush2.msra.mxu0 0.0
      %9396 = vmatprep.subr.mxu0 0.0
      %9397 = vmatpush2.msra.mxu0 0.0
      %9398 = vmatprep.subr.mxu0 0.0
      %9399 = vmatpush2.msra.mxu0 0.0
      %9400 = vmatprep.subr.mxu0 0.0
      %9401 = vmatpush2.msra.mxu0 0.0
      %9402 = vmatprep.subr.mxu0 0.0
      %9403 = vmatpush2.msra.mxu0 0.0
      %9404 = vmatprep.subr.mxu0 0.0
      %9405 = vmatpush2.msra.mxu0 0.0
      %9406 = vmatprep.subr.mxu0 0.0
      %9407 = vmatpush2.msra.mxu0 0.0
      %9408 = vmatprep.subr.mxu0 0.0
      %9409 = vmatpush2.msra.mxu0 0.0
      %9410 = vmatprep.subr.mxu0 0.0
      %9411 = vmatpush2.msra.mxu0 0.0
      %9412 = vmatprep.subr.mxu0 0.0
      %9413 = vmatpush2.msra.mxu0 0.0
      %9414 = vmatprep.subr.mxu0 0.0
      %9415 = vmatpush2.msra.mxu0 0.0
      %9416 = vmatprep.subr.mxu0 0.0
      %9417 = vmatpush2.msra.mxu0 0.0
      %9418 = vmatprep.subr.mxu0 0.0
      %9419 = vmatpush2.msra.mxu0 0.0
      %9420 = vmatprep.subr.mxu0 0.0
      %9421 = vmatpush2.msra.mxu0 0.0
      %9422 = vmatprep.subr.mxu0 0.0
      %9423 = vmatpush2.msra.mxu0 0.0
      %9424 = vmatprep.mubr.f32.mxu0 0.0
      %9425 = vmatmul.mubr.f32.gmra.mxu0 %v9277
      %v9426 = vpop.f32.mrf.mxu0
      %v9427 = vadd.f32 %v9352, %v9426
      %v9428 = vpop.f32.mrf.mxu0
      %9429 = vmatprep.mubr.f32.mxu0 0.0
      %9430 = vmatmul.mubr.f32.gmra.mxu0 %v9280
      %v9431 = vpop.f32.mrf.mxu0
      %v9432 = vadd.f32 %v9357, %v9431
      %v9433 = vpop.f32.mrf.mxu0
      %9434 = vdwg.mxu0
      %vm9435 = vcmask 523264
      %9436 = vst.msk [vmem:[%s278] sm:$0xff] %vm9435, %v9427
      %9437 = vst.msk [vmem:[%s278 + $0x8] sm:$0xff] %vm9435, %v9432
      %p9438 = scmp.lt.s32.totalorder %s18, 1
      %s9439 = scalar_select %p9438, %s18, 1
      %s9440 = smul.addr %s9439, 2
      %s9441 = smul.addr %s9440, 8
      %s9442 = scalar_lea.vmem %s7, %s9441
      // Predicated region
      $region49: #{rnn_agent_forward.2} parent=47 // pred_check
        %p9443 = pneg %p188
      $region50: #{rnn_agent_forward.2} parent=47 // pred_check_branch
        %9445 = sbr.rel (%p9443) target = $region52
      $region51: #{rnn_agent_forward.2} parent=47 // pred_region
        _
      $region52: #{rnn_agent_forward.2} parent=47 // pred_fallthru
        _
    $region48: #{rnn_agent_forward.2} parent=5 // pred_fallthru
      _
    %p9446 = scmp.le.s32.totalorder 2, %s13
    // Predicated region
    $region53: #{rnn_agent_forward.2} parent=5 // pred_check
      %p9447 = pneg %p9446
    $region54: #{rnn_agent_forward.2} parent=5 // pred_check_branch
      %9449 = sbr.rel (%p9447) target = $region56
    $region55: #{rnn_agent_forward.2} parent=5 // pred_region
      %s9450 = ssub.s32 %s13, 2
      // Predicated region
      $region57: #{rnn_agent_forward.2} parent=55 // pred_check
        %p9451 = pneg %p194
      $region58: #{rnn_agent_forward.2} parent=55 // pred_check_branch
        %9453 = sbr.rel (%p9451) target = $region60
      $region59: #{rnn_agent_forward.2} parent=55 // pred_region
        %p9454 = scmp.lt.s32.totalorder %s19, 1
        %s9455 = scalar_select %p9454, %s19, 1
        %s9456 = smul.addr %s9455, 2
        %s9457 = smul.addr %s9456, 8
        %s9458 = scalar_lea.vmem %s7, %s9457
      $region60: #{rnn_agent_forward.2} parent=55 // pred_fallthru
        _
    $region56: #{rnn_agent_forward.2} parent=5 // pred_fallthru
      _
  $region6: #{rnn_agent_forward.2} parent=0 // loop_footer
    %s17 = sadd.s32 1, %s13
  $region7: #{rnn_agent_forward.2} parent=0 // loop_footer_branch
    %12 = sbr.rel target = $region3
  $region8: #{rnn_agent_forward.2} parent=0 // loop_exit
    _

</llo_original>
